<compile_context>
chip_gen: v6e
topology: v6e:2x2x1
jax: 0.10.0
libtpu: 0.0.40
codegen_flags: <defaults>
</compile_context>

<pallas_src>
import jax
import jax.numpy as jnp
from jax.experimental import pallas as pl
from jax.experimental.pallas import tpu as pltpu


STEP_B = 8  # images processed per grid step (keeps all sublane slices 8-aligned)


# ----------------------------------------------------------------------------
# Fused forward kernel — one grid step == STEP_B images.
#
# Activation layouts (B = STEP_B):
#   p1    : (144*B, 128)  rows = (i,j) over the 12x12 pooled grid, batch-minor;
#                         lanes = (pool-phase ph=dy*2+dx, conv1 tap) (4*32).
#   pool1 : (144*B, 32)   rows = (i*12+j)*B + b ; lanes = conv1 channels (20+pad)
#   a2    : (64*B, 64)    rows = (u*8+v)*B + b  ; lanes = conv2 channels (50+pad)
#   pool2 : (16, B, 64)   dim0 = 4x4 spatial (row-major), dim1 = image
# ----------------------------------------------------------------------------
def _net_kernel(p1_ref, w1_ref, b1_ref, w2_ref, b2_ref, w3_ref, b3_ref,
                w4_ref, b4_ref, o_ref):
    f32 = jnp.float32
    bf16 = jnp.bfloat16
    B = STEP_B

    # conv1 + bias + ReLU: block-diagonal weight computes all 4 pool phases
    # side by side in the lane dimension -> (144B, 128), f32.
    a1 = jnp.dot(p1_ref[...], w1_ref[...], preferred_element_type=f32)
    a1 = jnp.maximum(a1 + b1_ref[...], 0.0)

    # pool1 (2x2/stride 2): max over the 4 phase lane-blocks -> (144B, 32)
    pool1 = jnp.maximum(jnp.maximum(a1[:, 0:32], a1[:, 32:64]),
                        jnp.maximum(a1[:, 64:96], a1[:, 96:128]))

    # conv2 im2col: 25 shifted window slices of the 12x12 map, lane-concatenated
    # into one deep-K operand (64B, 800).  All slices are 8-aligned (B = 8).
    p3 = pool1.reshape(12, 12 * B, 32)                  # [i, j*B + b, c]
    taps = []
    for di in range(5):
        for dj in range(5):
            t = p3[di:di + 8, dj * B:(dj + 8) * B, :]   # (8, 8B, 32)
            taps.append(t.reshape(64 * B, 32))          # rows = (u*8+v)*B + b
    t2 = jnp.concatenate(taps, axis=1).astype(bf16)     # (64B, 800)

    # conv2 (single deep matmul) + bias + ReLU -> (64B, 64), f32
    a2 = jnp.dot(t2, w2_ref[...], preferred_element_type=f32)
    a2 = jnp.maximum(a2 + b2_ref[...], 0.0)

    # pool2 (2x2/stride 2) on the VPU via layout-preserving reshapes + maxes
    x5 = a2.reshape(4, 2, 8, B, 64)                     # (a, ey, v, b, oc)
    m1 = jnp.maximum(x5[:, 0], x5[:, 1])                # (4, 8, B, 64)
    x5b = m1.reshape(4, 4, 2, B, 64)                    # (a, b2, ex, b, oc)
    m2 = jnp.maximum(x5b[:, :, 0], x5b[:, :, 1])        # (4, 4, B, 64)
    pool2 = m2.reshape(16, B, 64)                       # (p2, b, oc)

    # fc1: flatten per image to (B, 1024) (p2-major, channel-minor) -> 1 matmul
    hcat = jnp.concatenate([pool2[p] for p in range(16)], axis=1)   # (B, 1024)
    h = jnp.dot(hcat.astype(bf16), w3_ref[...], preferred_element_type=f32)
    h = jnp.maximum(h + b3_ref[...], 0.0).astype(bf16)              # (B, 512)

    # fc2 + log_softmax (f32 epilogue) -> (B, 10)
    logits = jnp.dot(h, w4_ref[...], preferred_element_type=f32) + b4_ref[...]
    m = jnp.max(logits, axis=-1, keepdims=True)
    z = logits - m
    lse = jnp.log(jnp.sum(jnp.exp(z), axis=-1, keepdims=True))
    o_ref[...] = (z - lse).astype(o_ref.dtype)


# ----------------------------------------------------------------------------
# Plain-JAX glue: conv1 im2col of the raw input, reordered so that
#   rows  = (step, i, j, b_local)            (12x12 pooled grid, batch-minor)
#   lanes = (pool phase dy*2+dx, tap di*5+dj) padded 25 -> 32 taps per phase.
# ----------------------------------------------------------------------------
def _im2col_conv1(x, n_steps):
    xs = x[:, 0]                                                     # (N, 28, 28)
    cols = [xs[:, di:di + 24, dj:dj + 24] for di in range(5) for dj in range(5)]
    p = jnp.stack(cols, axis=-1)                                     # (N,24,24,25)
    p = jnp.pad(p, ((0, 0), (0, 0), (0, 0), (0, 7)))                 # (N,24,24,32)
    p = p.reshape(n_steps, STEP_B, 12, 2, 12, 2, 32)                 # s,b,i,dy,j,dx,t
    p = p.transpose(0, 2, 4, 1, 3, 5, 6)                             # s,i,j,b,dy,dx,t
    return p.reshape(n_steps * 144 * STEP_B, 128).astype(jnp.bfloat16)


# ----------------------------------------------------------------------------
# Forward pass: single pallas_call, grid over batch steps of STEP_B images.
# ----------------------------------------------------------------------------
@jax.jit
def net_forward(x, kp):
    n = x.shape[0]
    n_pad = ((n + STEP_B - 1) // STEP_B) * STEP_B
    if n_pad != n:
        x = jnp.pad(x, ((0, n_pad - n), (0, 0), (0, 0), (0, 0)))
    n_steps = n_pad // STEP_B

    p1 = _im2col_conv1(x, n_steps)
    rows_per_step = 144 * STEP_B

    out = pl.pallas_call(
        _net_kernel,
        out_shape=jax.ShapeDtypeStruct((n_pad, 10), jnp.float32),
        grid_spec=pltpu.PrefetchScalarGridSpec(
            num_scalar_prefetch=0,
            grid=(n_steps,),
            in_specs=[
                pl.BlockSpec((rows_per_step, 128), lambda s: (s, 0)),   # patches
                pl.BlockSpec((128, 128), lambda s: (0, 0)),             # w1 (blkdiag)
                pl.BlockSpec((1, 128), lambda s: (0, 0)),               # b1
                pl.BlockSpec((800, 64), lambda s: (0, 0)),              # w2
                pl.BlockSpec((1, 64), lambda s: (0, 0)),                # b2
                pl.BlockSpec((1024, 512), lambda s: (0, 0)),            # w3 (fc1)
                pl.BlockSpec((1, 512), lambda s: (0, 0)),               # b3
                pl.BlockSpec((512, 10), lambda s: (0, 0)),              # w4 (fc2)
                pl.BlockSpec((1, 10), lambda s: (0, 0)),                # b4
            ],
            out_specs=pl.BlockSpec((STEP_B, 10), lambda s: (s, 0)),
        ),
        compiler_params=pltpu.CompilerParams(
            dimension_semantics=("parallel",),
            vmem_limit_bytes=32 * 1024 * 1024,
        ),
    )(p1, kp["w1"], kp["b1"], kp["w2"], kp["b2"], kp["w3"], kp["b3"],
      kp["w4"], kp["b4"])
    return out[:n]


# ----------------------------------------------------------------------------
# Parameters: synthetic init in PyTorch layout, converted ONCE to kernel layout.
# ----------------------------------------------------------------------------
def init_params(key):
    ks = jax.random.split(key, 8)
    scale = 0.05
    return {
        "conv1_w": scale * jax.random.normal(ks[0], (20, 1, 5, 5), jnp.float32),
        "conv1_b": scale * jax.random.normal(ks[1], (20,), jnp.float32),
        "conv2_w": scale * jax.random.normal(ks[2], (50, 20, 5, 5), jnp.float32),
        "conv2_b": scale * jax.random.normal(ks[3], (50,), jnp.float32),
        "fc1_w": scale * jax.random.normal(ks[4], (500, 800), jnp.float32),
        "fc1_b": scale * jax.random.normal(ks[5], (500,), jnp.float32),
        "fc2_w": scale * jax.random.normal(ks[6], (10, 500), jnp.float32),
        "fc2_b": scale * jax.random.normal(ks[7], (10,), jnp.float32),
    }


def prepare_params(p):
    """PyTorch layout -> kernel layout: permute / zero-pad once, bf16 weights."""
    bf16, f32 = jnp.bfloat16, jnp.float32
    # conv1: (20,1,5,5) -> (25,20) -> pad (32,32) -> block-diag over 4 pool phases
    w1s = jnp.pad(p["conv1_w"].reshape(20, 25).T, ((0, 7), (0, 12)))    # (32,32)
    w1 = jnp.kron(jnp.eye(4, dtype=f32), w1s)                            # (128,128)
    b1 = jnp.tile(jnp.pad(p["conv1_b"], (0, 12)), 4).reshape(1, 128)
    # conv2: (50,20,5,5) -> rows = (tap di*5+dj)*32 + c_in, cols = oc (pad 50->64)
    w2 = p["conv2_w"].transpose(2, 3, 1, 0)                              # (5,5,20,50)
    w2 = jnp.pad(w2, ((0, 0), (0, 0), (0, 12), (0, 14))).reshape(800, 64)
    b2 = jnp.pad(p["conv2_b"], (0, 14)).reshape(1, 64)
    # fc1: (500,800) torch[out, c*16+p2] -> rows = p2*64 + c, cols = out (500->512)
    w3 = p["fc1_w"].reshape(500, 50, 16).transpose(2, 1, 0)              # (16,50,500)
    w3 = jnp.pad(w3, ((0, 0), (0, 14), (0, 12))).reshape(1024, 512)
    b3 = jnp.pad(p["fc1_b"], (0, 12)).reshape(1, 512)
    # fc2: (10,500) -> (512,10), rows padded with zeros
    w4 = jnp.pad(p["fc2_w"].T, ((0, 12), (0, 0)))
    b4 = p["fc2_b"].reshape(1, 10)
    return {
        "w1": w1.astype(bf16), "b1": b1.astype(f32),
        "w2": w2.astype(bf16), "b2": b2.astype(f32),
        "w3": w3.astype(bf16), "b3": b3.astype(f32),
        "w4": w4.astype(bf16), "b4": b4.astype(f32),
    }


# ----------------------------------------------------------------------------
# Pure-JAX f32 reference of the original PyTorch module (test only).
# ----------------------------------------------------------------------------
def reference_forward(x, p):
    hi = jax.lax.Precision.HIGHEST
    y = jax.lax.conv_general_dilated(
        x, p["conv1_w"], (1, 1), "VALID",
        dimension_numbers=("NCHW", "OIHW", "NCHW"), precision=hi)
    y = jax.nn.relu(y + p["conv1_b"][None, :, None, None])
    y = jax.lax.reduce_window(y, -jnp.inf, jax.lax.max,
                              (1, 1, 2, 2), (1, 1, 2, 2), "VALID")
    y = jax.lax.conv_general_dilated(
        y, p["conv2_w"], (1, 1), "VALID",
        dimension_numbers=("NCHW", "OIHW", "NCHW"), precision=hi)
    y = jax.nn.relu(y + p["conv2_b"][None, :, None, None])
    y = jax.lax.reduce_window(y, -jnp.inf, jax.lax.max,
                              (1, 1, 2, 2), (1, 1, 2, 2), "VALID")
    y = y.reshape(y.shape[0], -1)
    y = jax.nn.relu(jnp.dot(y, p["fc1_w"].T, precision=hi) + p["fc1_b"])
    y = jnp.dot(y, p["fc2_w"].T, precision=hi) + p["fc2_b"]
    return jax.nn.log_softmax(y, axis=-1)


if __name__ == "__main__":
    key = jax.random.PRNGKey(0)
    pkey, xkey = jax.random.split(key)
    torch_params = init_params(pkey)          # PyTorch-layout parameters
    kparams = prepare_params(torch_params)    # kernel layout (done once, at init)

    # MNIST-shaped input implied by fc1 (4*4*50): NCHW (batch=16, 1, 28, 28)
    # 16 images -> 2 grid steps of 8, so both v7x TensorCores get work.
    x = jax.random.normal(xkey, (16, 1, 28, 28), jnp.float32)

    out = net_forward(x, kparams)
    out = jax.block_until_ready(out)
    assert out.shape == (16, 10)

    # log_softmax rows must exponentiate-sum to ~1
    assert jnp.allclose(jnp.sum(jnp.exp(out), axis=1), 1.0, atol=1e-3)

    # cross-check against the f32 reference of the original module (bf16 tolerance)
    ref = reference_forward(x, torch_params)
    err = float(jnp.max(jnp.abs(out - ref)))
    assert err < 1e-1, f"mismatch vs reference: {err}"

    print("KERNEL_OK")
</pallas_src>

<mosaic_0001>
module attributes {stable_mosaic.version = 11 : i64} {
  func.func @_net_kernel(%arg0: i32, %arg1: memref<1152x128xbf16, #tpu.memory_space<vmem>>, %arg2: memref<128x128xbf16, #tpu.memory_space<vmem>>, %arg3: memref<1x128xf32, #tpu.memory_space<vmem>>, %arg4: memref<800x64xbf16, #tpu.memory_space<vmem>>, %arg5: memref<1x64xf32, #tpu.memory_space<vmem>>, %arg6: memref<1024x512xbf16, #tpu.memory_space<vmem>>, %arg7: memref<1x512xf32, #tpu.memory_space<vmem>>, %arg8: memref<512x10xbf16, #tpu.memory_space<vmem>>, %arg9: memref<1x10xf32, #tpu.memory_space<vmem>>, %arg10: memref<8x10xf32, #tpu.memory_space<vmem>>) attributes {dimension_semantics = [#tpu.dimension_semantics<parallel>], iteration_bounds = array<i64: 2>, scalar_prefetch = 0 : i64, scratch_operands = 0 : i64, tpu.core_type = #tpu.core_type<tc>, window_params = [{transform_indices = @transform_0, window_bounds = array<i64: 1152, 128>}, {pipeline_mode = #tpu.pipeline_mode<synchronous>, transform_indices = @transform_1, window_bounds = array<i64: 128, 128>}, {pipeline_mode = #tpu.pipeline_mode<synchronous>, transform_indices = @transform_2, window_bounds = array<i64: 1, 128>}, {pipeline_mode = #tpu.pipeline_mode<synchronous>, transform_indices = @transform_3, window_bounds = array<i64: 800, 64>}, {pipeline_mode = #tpu.pipeline_mode<synchronous>, transform_indices = @transform_4, window_bounds = array<i64: 1, 64>}, {pipeline_mode = #tpu.pipeline_mode<synchronous>, transform_indices = @transform_5, window_bounds = array<i64: 1024, 512>}, {pipeline_mode = #tpu.pipeline_mode<synchronous>, transform_indices = @transform_6, window_bounds = array<i64: 1, 512>}, {pipeline_mode = #tpu.pipeline_mode<synchronous>, transform_indices = @transform_7, window_bounds = array<i64: 512, 10>}, {pipeline_mode = #tpu.pipeline_mode<synchronous>, transform_indices = @transform_8, window_bounds = array<i64: 1, 10>}, {transform_indices = @transform_9, window_bounds = array<i64: 8, 10>}]} {
    %c0 = arith.constant 0 : index
    %c0_0 = arith.constant 0 : index
    %0 = vector.load %arg1[%c0, %c0_0] : memref<1152x128xbf16, #tpu.memory_space<vmem>>, vector<1152x128xbf16>
    %c0_1 = arith.constant 0 : index
    %c0_2 = arith.constant 0 : index
    %1 = vector.load %arg2[%c0_1, %c0_2] : memref<128x128xbf16, #tpu.memory_space<vmem>>, vector<128x128xbf16>
    %cst = arith.constant dense<0.000000e+00> : vector<1152x128xf32>
    %2 = tpu.matmul %0, %1, %cst {dimension_numbers = #tpu.dot_dimension_numbers<[1], [0], [0], [1], [0, 0, 1, 1], [], []>} : vector<1152x128xbf16>, vector<128x128xbf16>, vector<1152x128xf32> -> vector<1152x128xf32>
    %c0_3 = arith.constant 0 : index
    %c0_4 = arith.constant 0 : index
    %3 = vector.load %arg3[%c0_3, %c0_4] : memref<1x128xf32, #tpu.memory_space<vmem>>, vector<1x128xf32>
    %4 = vector.broadcast %3 : vector<1x128xf32> to vector<1152x128xf32>
    %5 = arith.addf %2, %4 : vector<1152x128xf32>
    %cst_5 = arith.constant 0.000000e+00 : f32
    %6 = vector.broadcast %cst_5 : f32 to vector<1152x128xf32>
    %7 = arith.maximumf %5, %6 : vector<1152x128xf32>
    %8 = vector.extract_strided_slice %7 {offsets = [0, 0], sizes = [1152, 32], strides = [1, 1]} : vector<1152x128xf32> to vector<1152x32xf32>
    %9 = vector.extract_strided_slice %7 {offsets = [0, 32], sizes = [1152, 32], strides = [1, 1]} : vector<1152x128xf32> to vector<1152x32xf32>
    %10 = arith.maximumf %8, %9 : vector<1152x32xf32>
    %11 = vector.extract_strided_slice %7 {offsets = [0, 64], sizes = [1152, 32], strides = [1, 1]} : vector<1152x128xf32> to vector<1152x32xf32>
    %12 = vector.extract_strided_slice %7 {offsets = [0, 96], sizes = [1152, 32], strides = [1, 1]} : vector<1152x128xf32> to vector<1152x32xf32>
    %13 = arith.maximumf %11, %12 : vector<1152x32xf32>
    %14 = arith.maximumf %10, %13 : vector<1152x32xf32>
    %15 = vector.shape_cast %14 : vector<1152x32xf32> to vector<12x96x32xf32>
    %16 = vector.extract_strided_slice %15 {offsets = [0, 0, 0], sizes = [8, 64, 32], strides = [1, 1, 1]} : vector<12x96x32xf32> to vector<8x64x32xf32>
    %17 = vector.shape_cast %16 : vector<8x64x32xf32> to vector<512x32xf32>
    %18 = vector.extract_strided_slice %15 {offsets = [0, 8, 0], sizes = [8, 64, 32], strides = [1, 1, 1]} : vector<12x96x32xf32> to vector<8x64x32xf32>
    %19 = vector.shape_cast %18 : vector<8x64x32xf32> to vector<512x32xf32>
    %20 = vector.extract_strided_slice %15 {offsets = [0, 16, 0], sizes = [8, 64, 32], strides = [1, 1, 1]} : vector<12x96x32xf32> to vector<8x64x32xf32>
    %21 = vector.shape_cast %20 : vector<8x64x32xf32> to vector<512x32xf32>
    %22 = vector.extract_strided_slice %15 {offsets = [0, 24, 0], sizes = [8, 64, 32], strides = [1, 1, 1]} : vector<12x96x32xf32> to vector<8x64x32xf32>
    %23 = vector.shape_cast %22 : vector<8x64x32xf32> to vector<512x32xf32>
    %24 = vector.extract_strided_slice %15 {offsets = [0, 32, 0], sizes = [8, 64, 32], strides = [1, 1, 1]} : vector<12x96x32xf32> to vector<8x64x32xf32>
    %25 = vector.shape_cast %24 : vector<8x64x32xf32> to vector<512x32xf32>
    %26 = vector.extract_strided_slice %15 {offsets = [1, 0, 0], sizes = [8, 64, 32], strides = [1, 1, 1]} : vector<12x96x32xf32> to vector<8x64x32xf32>
    %27 = vector.shape_cast %26 : vector<8x64x32xf32> to vector<512x32xf32>
    %28 = vector.extract_strided_slice %15 {offsets = [1, 8, 0], sizes = [8, 64, 32], strides = [1, 1, 1]} : vector<12x96x32xf32> to vector<8x64x32xf32>
    %29 = vector.shape_cast %28 : vector<8x64x32xf32> to vector<512x32xf32>
    %30 = vector.extract_strided_slice %15 {offsets = [1, 16, 0], sizes = [8, 64, 32], strides = [1, 1, 1]} : vector<12x96x32xf32> to vector<8x64x32xf32>
    %31 = vector.shape_cast %30 : vector<8x64x32xf32> to vector<512x32xf32>
    %32 = vector.extract_strided_slice %15 {offsets = [1, 24, 0], sizes = [8, 64, 32], strides = [1, 1, 1]} : vector<12x96x32xf32> to vector<8x64x32xf32>
    %33 = vector.shape_cast %32 : vector<8x64x32xf32> to vector<512x32xf32>
    %34 = vector.extract_strided_slice %15 {offsets = [1, 32, 0], sizes = [8, 64, 32], strides = [1, 1, 1]} : vector<12x96x32xf32> to vector<8x64x32xf32>
    %35 = vector.shape_cast %34 : vector<8x64x32xf32> to vector<512x32xf32>
    %36 = vector.extract_strided_slice %15 {offsets = [2, 0, 0], sizes = [8, 64, 32], strides = [1, 1, 1]} : vector<12x96x32xf32> to vector<8x64x32xf32>
    %37 = vector.shape_cast %36 : vector<8x64x32xf32> to vector<512x32xf32>
    %38 = vector.extract_strided_slice %15 {offsets = [2, 8, 0], sizes = [8, 64, 32], strides = [1, 1, 1]} : vector<12x96x32xf32> to vector<8x64x32xf32>
    %39 = vector.shape_cast %38 : vector<8x64x32xf32> to vector<512x32xf32>
    %40 = vector.extract_strided_slice %15 {offsets = [2, 16, 0], sizes = [8, 64, 32], strides = [1, 1, 1]} : vector<12x96x32xf32> to vector<8x64x32xf32>
    %41 = vector.shape_cast %40 : vector<8x64x32xf32> to vector<512x32xf32>
    %42 = vector.extract_strided_slice %15 {offsets = [2, 24, 0], sizes = [8, 64, 32], strides = [1, 1, 1]} : vector<12x96x32xf32> to vector<8x64x32xf32>
    %43 = vector.shape_cast %42 : vector<8x64x32xf32> to vector<512x32xf32>
    %44 = vector.extract_strided_slice %15 {offsets = [2, 32, 0], sizes = [8, 64, 32], strides = [1, 1, 1]} : vector<12x96x32xf32> to vector<8x64x32xf32>
    %45 = vector.shape_cast %44 : vector<8x64x32xf32> to vector<512x32xf32>
    %46 = vector.extract_strided_slice %15 {offsets = [3, 0, 0], sizes = [8, 64, 32], strides = [1, 1, 1]} : vector<12x96x32xf32> to vector<8x64x32xf32>
    %47 = vector.shape_cast %46 : vector<8x64x32xf32> to vector<512x32xf32>
    %48 = vector.extract_strided_slice %15 {offsets = [3, 8, 0], sizes = [8, 64, 32], strides = [1, 1, 1]} : vector<12x96x32xf32> to vector<8x64x32xf32>
    %49 = vector.shape_cast %48 : vector<8x64x32xf32> to vector<512x32xf32>
    %50 = vector.extract_strided_slice %15 {offsets = [3, 16, 0], sizes = [8, 64, 32], strides = [1, 1, 1]} : vector<12x96x32xf32> to vector<8x64x32xf32>
    %51 = vector.shape_cast %50 : vector<8x64x32xf32> to vector<512x32xf32>
    %52 = vector.extract_strided_slice %15 {offsets = [3, 24, 0], sizes = [8, 64, 32], strides = [1, 1, 1]} : vector<12x96x32xf32> to vector<8x64x32xf32>
    %53 = vector.shape_cast %52 : vector<8x64x32xf32> to vector<512x32xf32>
    %54 = vector.extract_strided_slice %15 {offsets = [3, 32, 0], sizes = [8, 64, 32], strides = [1, 1, 1]} : vector<12x96x32xf32> to vector<8x64x32xf32>
    %55 = vector.shape_cast %54 : vector<8x64x32xf32> to vector<512x32xf32>
    %56 = vector.extract_strided_slice %15 {offsets = [4, 0, 0], sizes = [8, 64, 32], strides = [1, 1, 1]} : vector<12x96x32xf32> to vector<8x64x32xf32>
    %57 = vector.shape_cast %56 : vector<8x64x32xf32> to vector<512x32xf32>
    %58 = vector.extract_strided_slice %15 {offsets = [4, 8, 0], sizes = [8, 64, 32], strides = [1, 1, 1]} : vector<12x96x32xf32> to vector<8x64x32xf32>
    %59 = vector.shape_cast %58 : vector<8x64x32xf32> to vector<512x32xf32>
    %60 = vector.extract_strided_slice %15 {offsets = [4, 16, 0], sizes = [8, 64, 32], strides = [1, 1, 1]} : vector<12x96x32xf32> to vector<8x64x32xf32>
    %61 = vector.shape_cast %60 : vector<8x64x32xf32> to vector<512x32xf32>
    %62 = vector.extract_strided_slice %15 {offsets = [4, 24, 0], sizes = [8, 64, 32], strides = [1, 1, 1]} : vector<12x96x32xf32> to vector<8x64x32xf32>
    %63 = vector.shape_cast %62 : vector<8x64x32xf32> to vector<512x32xf32>
    %64 = vector.extract_strided_slice %15 {offsets = [4, 32, 0], sizes = [8, 64, 32], strides = [1, 1, 1]} : vector<12x96x32xf32> to vector<8x64x32xf32>
    %65 = vector.shape_cast %64 : vector<8x64x32xf32> to vector<512x32xf32>
    %66 = tpu.concatenate %17, %19, %21, %23, %25, %27, %29, %31, %33, %35, %37, %39, %41, %43, %45, %47 in 1 : vector<512x32xf32>, vector<512x32xf32>, vector<512x32xf32>, vector<512x32xf32>, vector<512x32xf32>, vector<512x32xf32>, vector<512x32xf32>, vector<512x32xf32>, vector<512x32xf32>, vector<512x32xf32>, vector<512x32xf32>, vector<512x32xf32>, vector<512x32xf32>, vector<512x32xf32>, vector<512x32xf32>, vector<512x32xf32> -> vector<512x512xf32>
    %67 = tpu.concatenate %49, %51, %53, %55, %57, %59, %61, %63, %65 in 1 : vector<512x32xf32>, vector<512x32xf32>, vector<512x32xf32>, vector<512x32xf32>, vector<512x32xf32>, vector<512x32xf32>, vector<512x32xf32>, vector<512x32xf32>, vector<512x32xf32> -> vector<512x288xf32>
    %68 = tpu.concatenate %66, %67 in 1 : vector<512x512xf32>, vector<512x288xf32> -> vector<512x800xf32>
    %69 = arith.truncf %68 : vector<512x800xf32> to vector<512x800xbf16>
    %c0_6 = arith.constant 0 : index
    %c0_7 = arith.constant 0 : index
    %70 = vector.load %arg4[%c0_6, %c0_7] : memref<800x64xbf16, #tpu.memory_space<vmem>>, vector<800x64xbf16>
    %cst_8 = arith.constant dense<0.000000e+00> : vector<512x64xf32>
    %71 = tpu.matmul %69, %70, %cst_8 {dimension_numbers = #tpu.dot_dimension_numbers<[1], [0], [0], [1], [0, 0, 1, 1], [], []>} : vector<512x800xbf16>, vector<800x64xbf16>, vector<512x64xf32> -> vector<512x64xf32>
    %c0_9 = arith.constant 0 : index
    %c0_10 = arith.constant 0 : index
    %72 = vector.load %arg5[%c0_9, %c0_10] : memref<1x64xf32, #tpu.memory_space<vmem>>, vector<1x64xf32>
    %73 = vector.broadcast %72 : vector<1x64xf32> to vector<512x64xf32>
    %74 = arith.addf %71, %73 : vector<512x64xf32>
    %cst_11 = arith.constant 0.000000e+00 : f32
    %75 = vector.broadcast %cst_11 : f32 to vector<512x64xf32>
    %76 = arith.maximumf %74, %75 : vector<512x64xf32>
    %77 = vector.shape_cast %76 : vector<512x64xf32> to vector<4x2x8x8x64xf32>
    %78 = vector.extract_strided_slice %77 {offsets = [0, 0, 0, 0, 0], sizes = [4, 1, 8, 8, 64], strides = [1, 1, 1, 1, 1]} : vector<4x2x8x8x64xf32> to vector<4x1x8x8x64xf32>
    %79 = vector.shape_cast %78 : vector<4x1x8x8x64xf32> to vector<4x8x8x64xf32>
    %80 = vector.extract_strided_slice %77 {offsets = [0, 1, 0, 0, 0], sizes = [4, 1, 8, 8, 64], strides = [1, 1, 1, 1, 1]} : vector<4x2x8x8x64xf32> to vector<4x1x8x8x64xf32>
    %81 = vector.shape_cast %80 : vector<4x1x8x8x64xf32> to vector<4x8x8x64xf32>
    %82 = arith.maximumf %79, %81 : vector<4x8x8x64xf32>
    %83 = vector.shape_cast %82 : vector<4x8x8x64xf32> to vector<4x4x2x8x64xf32>
    %84 = vector.extract_strided_slice %83 {offsets = [0, 0, 0, 0, 0], sizes = [4, 4, 1, 8, 64], strides = [1, 1, 1, 1, 1]} : vector<4x4x2x8x64xf32> to vector<4x4x1x8x64xf32>
    %85 = vector.shape_cast %84 : vector<4x4x1x8x64xf32> to vector<4x4x8x64xf32>
    %86 = vector.extract_strided_slice %83 {offsets = [0, 0, 1, 0, 0], sizes = [4, 4, 1, 8, 64], strides = [1, 1, 1, 1, 1]} : vector<4x4x2x8x64xf32> to vector<4x4x1x8x64xf32>
    %87 = vector.shape_cast %86 : vector<4x4x1x8x64xf32> to vector<4x4x8x64xf32>
    %88 = arith.maximumf %85, %87 : vector<4x4x8x64xf32>
    %89 = vector.shape_cast %88 : vector<4x4x8x64xf32> to vector<16x8x64xf32>
    %90 = vector.extract_strided_slice %89 {offsets = [0, 0, 0], sizes = [1, 8, 64], strides = [1, 1, 1]} : vector<16x8x64xf32> to vector<1x8x64xf32>
    %91 = vector.shape_cast %90 : vector<1x8x64xf32> to vector<8x64xf32>
    %92 = vector.extract_strided_slice %89 {offsets = [1, 0, 0], sizes = [1, 8, 64], strides = [1, 1, 1]} : vector<16x8x64xf32> to vector<1x8x64xf32>
    %93 = vector.shape_cast %92 : vector<1x8x64xf32> to vector<8x64xf32>
    %94 = vector.extract_strided_slice %89 {offsets = [2, 0, 0], sizes = [1, 8, 64], strides = [1, 1, 1]} : vector<16x8x64xf32> to vector<1x8x64xf32>
    %95 = vector.shape_cast %94 : vector<1x8x64xf32> to vector<8x64xf32>
    %96 = vector.extract_strided_slice %89 {offsets = [3, 0, 0], sizes = [1, 8, 64], strides = [1, 1, 1]} : vector<16x8x64xf32> to vector<1x8x64xf32>
    %97 = vector.shape_cast %96 : vector<1x8x64xf32> to vector<8x64xf32>
    %98 = vector.extract_strided_slice %89 {offsets = [4, 0, 0], sizes = [1, 8, 64], strides = [1, 1, 1]} : vector<16x8x64xf32> to vector<1x8x64xf32>
    %99 = vector.shape_cast %98 : vector<1x8x64xf32> to vector<8x64xf32>
    %100 = vector.extract_strided_slice %89 {offsets = [5, 0, 0], sizes = [1, 8, 64], strides = [1, 1, 1]} : vector<16x8x64xf32> to vector<1x8x64xf32>
    %101 = vector.shape_cast %100 : vector<1x8x64xf32> to vector<8x64xf32>
    %102 = vector.extract_strided_slice %89 {offsets = [6, 0, 0], sizes = [1, 8, 64], strides = [1, 1, 1]} : vector<16x8x64xf32> to vector<1x8x64xf32>
    %103 = vector.shape_cast %102 : vector<1x8x64xf32> to vector<8x64xf32>
    %104 = vector.extract_strided_slice %89 {offsets = [7, 0, 0], sizes = [1, 8, 64], strides = [1, 1, 1]} : vector<16x8x64xf32> to vector<1x8x64xf32>
    %105 = vector.shape_cast %104 : vector<1x8x64xf32> to vector<8x64xf32>
    %106 = vector.extract_strided_slice %89 {offsets = [8, 0, 0], sizes = [1, 8, 64], strides = [1, 1, 1]} : vector<16x8x64xf32> to vector<1x8x64xf32>
    %107 = vector.shape_cast %106 : vector<1x8x64xf32> to vector<8x64xf32>
    %108 = vector.extract_strided_slice %89 {offsets = [9, 0, 0], sizes = [1, 8, 64], strides = [1, 1, 1]} : vector<16x8x64xf32> to vector<1x8x64xf32>
    %109 = vector.shape_cast %108 : vector<1x8x64xf32> to vector<8x64xf32>
    %110 = vector.extract_strided_slice %89 {offsets = [10, 0, 0], sizes = [1, 8, 64], strides = [1, 1, 1]} : vector<16x8x64xf32> to vector<1x8x64xf32>
    %111 = vector.shape_cast %110 : vector<1x8x64xf32> to vector<8x64xf32>
    %112 = vector.extract_strided_slice %89 {offsets = [11, 0, 0], sizes = [1, 8, 64], strides = [1, 1, 1]} : vector<16x8x64xf32> to vector<1x8x64xf32>
    %113 = vector.shape_cast %112 : vector<1x8x64xf32> to vector<8x64xf32>
    %114 = vector.extract_strided_slice %89 {offsets = [12, 0, 0], sizes = [1, 8, 64], strides = [1, 1, 1]} : vector<16x8x64xf32> to vector<1x8x64xf32>
    %115 = vector.shape_cast %114 : vector<1x8x64xf32> to vector<8x64xf32>
    %116 = vector.extract_strided_slice %89 {offsets = [13, 0, 0], sizes = [1, 8, 64], strides = [1, 1, 1]} : vector<16x8x64xf32> to vector<1x8x64xf32>
    %117 = vector.shape_cast %116 : vector<1x8x64xf32> to vector<8x64xf32>
    %118 = vector.extract_strided_slice %89 {offsets = [14, 0, 0], sizes = [1, 8, 64], strides = [1, 1, 1]} : vector<16x8x64xf32> to vector<1x8x64xf32>
    %119 = vector.shape_cast %118 : vector<1x8x64xf32> to vector<8x64xf32>
    %120 = vector.extract_strided_slice %89 {offsets = [15, 0, 0], sizes = [1, 8, 64], strides = [1, 1, 1]} : vector<16x8x64xf32> to vector<1x8x64xf32>
    %121 = vector.shape_cast %120 : vector<1x8x64xf32> to vector<8x64xf32>
    %122 = tpu.concatenate %91, %93, %95, %97, %99, %101, %103, %105, %107, %109, %111, %113, %115, %117, %119, %121 in 1 : vector<8x64xf32>, vector<8x64xf32>, vector<8x64xf32>, vector<8x64xf32>, vector<8x64xf32>, vector<8x64xf32>, vector<8x64xf32>, vector<8x64xf32>, vector<8x64xf32>, vector<8x64xf32>, vector<8x64xf32>, vector<8x64xf32>, vector<8x64xf32>, vector<8x64xf32>, vector<8x64xf32>, vector<8x64xf32> -> vector<8x1024xf32>
    %123 = arith.truncf %122 : vector<8x1024xf32> to vector<8x1024xbf16>
    %c0_12 = arith.constant 0 : index
    %c0_13 = arith.constant 0 : index
    %124 = vector.load %arg6[%c0_12, %c0_13] : memref<1024x512xbf16, #tpu.memory_space<vmem>>, vector<1024x512xbf16>
    %cst_14 = arith.constant dense<0.000000e+00> : vector<8x512xf32>
    %125 = tpu.matmul %123, %124, %cst_14 {dimension_numbers = #tpu.dot_dimension_numbers<[1], [0], [0], [1], [0, 0, 1, 1], [], []>} : vector<8x1024xbf16>, vector<1024x512xbf16>, vector<8x512xf32> -> vector<8x512xf32>
    %c0_15 = arith.constant 0 : index
    %c0_16 = arith.constant 0 : index
    %126 = vector.load %arg7[%c0_15, %c0_16] : memref<1x512xf32, #tpu.memory_space<vmem>>, vector<1x512xf32>
    %127 = vector.broadcast %126 : vector<1x512xf32> to vector<8x512xf32>
    %128 = arith.addf %125, %127 : vector<8x512xf32>
    %cst_17 = arith.constant 0.000000e+00 : f32
    %129 = vector.broadcast %cst_17 : f32 to vector<8x512xf32>
    %130 = arith.maximumf %128, %129 : vector<8x512xf32>
    %131 = arith.truncf %130 : vector<8x512xf32> to vector<8x512xbf16>
    %c0_18 = arith.constant 0 : index
    %c0_19 = arith.constant 0 : index
    %132 = vector.load %arg8[%c0_18, %c0_19] : memref<512x10xbf16, #tpu.memory_space<vmem>>, vector<512x10xbf16>
    %cst_20 = arith.constant dense<0.000000e+00> : vector<8x10xf32>
    %133 = tpu.matmul %131, %132, %cst_20 {dimension_numbers = #tpu.dot_dimension_numbers<[1], [0], [0], [1], [0, 0, 1, 1], [], []>} : vector<8x512xbf16>, vector<512x10xbf16>, vector<8x10xf32> -> vector<8x10xf32>
    %c0_21 = arith.constant 0 : index
    %c0_22 = arith.constant 0 : index
    %134 = vector.load %arg9[%c0_21, %c0_22] : memref<1x10xf32, #tpu.memory_space<vmem>>, vector<1x10xf32>
    %135 = vector.broadcast %134 : vector<1x10xf32> to vector<8x10xf32>
    %136 = arith.addf %133, %135 : vector<8x10xf32>
    %cst_23 = arith.constant dense<0xFF800000> : vector<8xf32>
    %137 = vector.multi_reduction <maximumf>, %136, %cst_23 [1] : vector<8x10xf32> to vector<8xf32>
    %138 = vector.shape_cast %137 : vector<8xf32> to vector<8x1xf32>
    %139 = vector.broadcast %138 : vector<8x1xf32> to vector<8x10xf32>
    %140 = arith.subf %136, %139 : vector<8x10xf32>
    %141 = math.exp %140 : vector<8x10xf32>
    %cst_24 = arith.constant dense<0.000000e+00> : vector<8xf32>
    %142 = vector.multi_reduction <add>, %141, %cst_24 [1] : vector<8x10xf32> to vector<8xf32>
    %143 = vector.shape_cast %142 : vector<8xf32> to vector<8x1xf32>
    %144 = math.log %143 : vector<8x1xf32>
    %145 = vector.broadcast %144 : vector<8x1xf32> to vector<8x10xf32>
    %146 = arith.subf %140, %145 : vector<8x10xf32>
    %c0_25 = arith.constant 0 : index
    %c0_26 = arith.constant 0 : index
    %147 = vector.load %arg10[%c0_25, %c0_26] : memref<8x10xf32, #tpu.memory_space<vmem>>, vector<8x10xf32>
    tpu.vector_store %arg10[%c0_25, %c0_26], %146 {strides = array<i32>} : memref<8x10xf32, #tpu.memory_space<vmem>>, vector<8x10xf32>,
    return
  }
  func.func @transform_0(%arg0: i32) -> (i32, i32) {
    %c0_i32 = arith.constant 0 : i32
    %c0_i32_0 = arith.constant 0 : i32
    return %arg0, %c0_i32 : i32, i32
  }
  func.func @transform_1(%arg0: i32) -> (i32, i32) {
    %c0_i32 = arith.constant 0 : i32
    %c0_i32_0 = arith.constant 0 : i32
    %c0_i32_1 = arith.constant 0 : i32
    return %c0_i32, %c0_i32_0 : i32, i32
  }
  func.func @transform_2(%arg0: i32) -> (i32, i32) {
    %c0_i32 = arith.constant 0 : i32
    %c0_i32_0 = arith.constant 0 : i32
    %c0_i32_1 = arith.constant 0 : i32
    return %c0_i32, %c0_i32_0 : i32, i32
  }
  func.func @transform_3(%arg0: i32) -> (i32, i32) {
    %c0_i32 = arith.constant 0 : i32
    %c0_i32_0 = arith.constant 0 : i32
    %c0_i32_1 = arith.constant 0 : i32
    return %c0_i32, %c0_i32_0 : i32, i32
  }
  func.func @transform_4(%arg0: i32) -> (i32, i32) {
    %c0_i32 = arith.constant 0 : i32
    %c0_i32_0 = arith.constant 0 : i32
    %c0_i32_1 = arith.constant 0 : i32
    return %c0_i32, %c0_i32_0 : i32, i32
  }
  func.func @transform_5(%arg0: i32) -> (i32, i32) {
    %c0_i32 = arith.constant 0 : i32
    %c0_i32_0 = arith.constant 0 : i32
    %c0_i32_1 = arith.constant 0 : i32
    return %c0_i32, %c0_i32_0 : i32, i32
  }
  func.func @transform_6(%arg0: i32) -> (i32, i32) {
    %c0_i32 = arith.constant 0 : i32
    %c0_i32_0 = arith.constant 0 : i32
    %c0_i32_1 = arith.constant 0 : i32
    return %c0_i32, %c0_i32_0 : i32, i32
  }
  func.func @transform_7(%arg0: i32) -> (i32, i32) {
    %c0_i32 = arith.constant 0 : i32
    %c0_i32_0 = arith.constant 0 : i32
    %c0_i32_1 = arith.constant 0 : i32
    return %c0_i32, %c0_i32_0 : i32, i32
  }
  func.func @transform_8(%arg0: i32) -> (i32, i32) {
    %c0_i32 = arith.constant 0 : i32
    %c0_i32_0 = arith.constant 0 : i32
    %c0_i32_1 = arith.constant 0 : i32
    return %c0_i32, %c0_i32_0 : i32, i32
  }
  func.func @transform_9(%arg0: i32) -> (i32, i32) {
    %c0_i32 = arith.constant 0 : i32
    %c0_i32_0 = arith.constant 0 : i32
    return %arg0, %c0_i32 : i32, i32
  }
}

</mosaic_0001>

<llo_original>
// kernel: net_forward.1
$region0: #{net_forward.1}
  #allocation0 [shape = 'u32[]', space=smem, size = 0x4, offset = 0x4, fixed_abs, tag = 'smem constant byte address 0x4 - core index']
  #allocation1 [shape = 'u32[144,128]{1,0:T(1,128)}', space=vmem, size = 0x12000, scoped, tag = 'internal scratch']
  %s0 = inlined_call_operand.vmem [shape: bf16[2304,128], index: 0, kind: input, shape index: {}]
  %s1 = inlined_call_operand.vmem [shape: bf16[128,128], index: 1, kind: input, shape index: {}]
  %s2 = inlined_call_operand.vmem [shape: f32[1,128], index: 2, kind: input, shape index: {}]
  %s3 = inlined_call_operand.vmem [shape: bf16[800,64], index: 3, kind: input, shape index: {}]
  %s4 = inlined_call_operand.vmem [shape: f32[1,64], index: 4, kind: input, shape index: {}]
  %s5 = inlined_call_operand.vmem [shape: bf16[1024,512], index: 5, kind: input, shape index: {}]
  %s6 = inlined_call_operand.vmem [shape: f32[1,512], index: 6, kind: input, shape index: {}]
  %s7 = inlined_call_operand.vmem [shape: bf16[512,10], index: 7, kind: input, shape index: {}]
  %s8 = inlined_call_operand.vmem [shape: f32[1,10], index: 8, kind: input, shape index: {}]
  %s9 = inlined_call_operand.hbm [shape: f32[16,10], index: 9, kind: output, shape index: {}]
  %s10 = sld [smem:[#allocation0]]
  $region69: #{net_forward.1} parent=0
    _
  %s12 = ssub.s32 1, %s10
  %s13 = scalar_select 0, %s12, %s10
  $region1: #{net_forward.1} parent=0
    #allocation2 [shape = 'u8[8192]{0}', space=vmem, size = 0x2000, scoped, tag = 'output window, operand 0']
    #allocation3 [shape = 's32[2]{0}', space=sflag, size = 0x8, scoped, tag = 'scoped memory for net_forward.1']
    %14 = vsyncpa [#allocation3], 0
    %s15 = scalar_lea.sflag [#allocation3], 1
    %16 = vsyncpa %s15, 0
    loop: start=0, step=1, limit=4
    $region2: #{net_forward.1} parent=1 // loop_pre_header
      _
    $region3: #{net_forward.1} parent=1 // loop_header
      %s18 = sphi 0, %s22
      %p19 = scmp.ge.s32.totalorder %s18, 4
      %s28 = sphi 0, %s30
      %s31 = sphi 0, %s28
      %s32 = sphi 0, %s31
      %s48 = sphi 0, %s32
      %s52 = sphi 0, %s52
      %s54 = sphi 0, %s52
      %s55 = sphi 0, %s54
      %s69 = sphi 0, %s55
      %s73 = sphi 0, %s73
      %s75 = sphi 0, %s73
      %s76 = sphi 0, %s75
      %s90 = sphi 0, %s76
      %s94 = sphi 0, %s94
      %s96 = sphi 0, %s94
      %s97 = sphi 0, %s96
      %s111 = sphi 0, %s97
      %s115 = sphi 0, %s115
      %s117 = sphi 0, %s115
      %s118 = sphi 0, %s117
      %s132 = sphi 0, %s118
      %s136 = sphi 0, %s136
      %s138 = sphi 0, %s136
      %s139 = sphi 0, %s138
      %s153 = sphi 0, %s139
      %s157 = sphi 0, %s157
      %s159 = sphi 0, %s157
      %s160 = sphi 0, %s159
      %s174 = sphi 0, %s160
      %s178 = sphi 0, %s178
      %s180 = sphi 0, %s178
      %s181 = sphi 0, %s180
      %s195 = sphi 0, %s181
      %s199 = sphi 0, %s199
      %s201 = sphi 0, %s199
      %s202 = sphi 0, %s201
      %s216 = sphi 0, %s202
      %s222 = sphi 0, %s224
      %s225 = sphi 0, %s222
      %s226 = sphi 0, %s225
      %s242 = sphi 0, %s226
    $region4: #{net_forward.1} parent=1 // loop_header_branch
      %21 = sbr.rel (%p19) target = $region8
    $region5: #{net_forward.1} parent=1 // loop_body
      %s23 = ssub.s32 %s18, 1
      %s24 = ssub.s32 %s18, 2
      %s25 = sadd.s32 %s18, 1
      %s26 = ssub.s32 %s18, %s25
      %p27 = scmp.eq.s32.totalorder %s26, 0
      %s29 = sadd.s32 %s28, 1
      %s30 = scalar_select %p27, %s28, %s29
      %p33 = pneg %p27
      %p34 = scmp.eq.s32.totalorder %s18, 1
      %p35 = por %p33, %p34
      %p36 = scmp.ne.s32.totalorder %s28, %s31
      %p37 = scmp.eq.s32.totalorder %s18, 0
      %p38 = por %p36, %p37
      %p39 = scmp.ne.s32.totalorder %s28, %s31
      %p40 = scmp.eq.s32.totalorder %s23, 1
      %p41 = por %p39, %p40
      %p42 = scmp.ne.s32.totalorder %s31, %s32
      %p43 = scmp.eq.s32.totalorder %s23, 0
      %p44 = por %p42, %p43
      %p45 = scmp.ne.s32.totalorder %s31, %s32
      %p46 = scmp.eq.s32.totalorder %s24, 1
      %p47 = por %p45, %p46
      %p49 = scmp.ne.s32.totalorder %s32, %s48
      %p50 = scmp.eq.s32.totalorder %s24, 0
      %p51 = por %p49, %p50
      %s53 = sadd.s32 %s52, 1
      %p56 = scmp.eq.s32.totalorder %s18, 1
      %p57 = scmp.ne.s32.totalorder %s52, %s54
      %p58 = scmp.eq.s32.totalorder %s18, 0
      %p59 = por %p57, %p58
      %p60 = scmp.ne.s32.totalorder %s52, %s54
      %p61 = scmp.eq.s32.totalorder %s23, 1
      %p62 = por %p60, %p61
      %p63 = scmp.ne.s32.totalorder %s54, %s55
      %p64 = scmp.eq.s32.totalorder %s23, 0
      %p65 = por %p63, %p64
      %p66 = scmp.ne.s32.totalorder %s54, %s55
      %p67 = scmp.eq.s32.totalorder %s24, 1
      %p68 = por %p66, %p67
      %p70 = scmp.ne.s32.totalorder %s55, %s69
      %p71 = scmp.eq.s32.totalorder %s24, 0
      %p72 = por %p70, %p71
      %s74 = sadd.s32 %s73, 1
      %p77 = scmp.eq.s32.totalorder %s18, 1
      %p78 = scmp.ne.s32.totalorder %s73, %s75
      %p79 = scmp.eq.s32.totalorder %s18, 0
      %p80 = por %p78, %p79
      %p81 = scmp.ne.s32.totalorder %s73, %s75
      %p82 = scmp.eq.s32.totalorder %s23, 1
      %p83 = por %p81, %p82
      %p84 = scmp.ne.s32.totalorder %s75, %s76
      %p85 = scmp.eq.s32.totalorder %s23, 0
      %p86 = por %p84, %p85
      %p87 = scmp.ne.s32.totalorder %s75, %s76
      %p88 = scmp.eq.s32.totalorder %s24, 1
      %p89 = por %p87, %p88
      %p91 = scmp.ne.s32.totalorder %s76, %s90
      %p92 = scmp.eq.s32.totalorder %s24, 0
      %p93 = por %p91, %p92
      %s95 = sadd.s32 %s94, 1
      %p98 = scmp.eq.s32.totalorder %s18, 1
      %p99 = scmp.ne.s32.totalorder %s94, %s96
      %p100 = scmp.eq.s32.totalorder %s18, 0
      %p101 = por %p99, %p100
      %p102 = scmp.ne.s32.totalorder %s94, %s96
      %p103 = scmp.eq.s32.totalorder %s23, 1
      %p104 = por %p102, %p103
      %p105 = scmp.ne.s32.totalorder %s96, %s97
      %p106 = scmp.eq.s32.totalorder %s23, 0
      %p107 = por %p105, %p106
      %p108 = scmp.ne.s32.totalorder %s96, %s97
      %p109 = scmp.eq.s32.totalorder %s24, 1
      %p110 = por %p108, %p109
      %p112 = scmp.ne.s32.totalorder %s97, %s111
      %p113 = scmp.eq.s32.totalorder %s24, 0
      %p114 = por %p112, %p113
      %s116 = sadd.s32 %s115, 1
      %p119 = scmp.eq.s32.totalorder %s18, 1
      %p120 = scmp.ne.s32.totalorder %s115, %s117
      %p121 = scmp.eq.s32.totalorder %s18, 0
      %p122 = por %p120, %p121
      %p123 = scmp.ne.s32.totalorder %s115, %s117
      %p124 = scmp.eq.s32.totalorder %s23, 1
      %p125 = por %p123, %p124
      %p126 = scmp.ne.s32.totalorder %s117, %s118
      %p127 = scmp.eq.s32.totalorder %s23, 0
      %p128 = por %p126, %p127
      %p129 = scmp.ne.s32.totalorder %s117, %s118
      %p130 = scmp.eq.s32.totalorder %s24, 1
      %p131 = por %p129, %p130
      %p133 = scmp.ne.s32.totalorder %s118, %s132
      %p134 = scmp.eq.s32.totalorder %s24, 0
      %p135 = por %p133, %p134
      %s137 = sadd.s32 %s136, 1
      %p140 = scmp.eq.s32.totalorder %s18, 1
      %p141 = scmp.ne.s32.totalorder %s136, %s138
      %p142 = scmp.eq.s32.totalorder %s18, 0
      %p143 = por %p141, %p142
      %p144 = scmp.ne.s32.totalorder %s136, %s138
      %p145 = scmp.eq.s32.totalorder %s23, 1
      %p146 = por %p144, %p145
      %p147 = scmp.ne.s32.totalorder %s138, %s139
      %p148 = scmp.eq.s32.totalorder %s23, 0
      %p149 = por %p147, %p148
      %p150 = scmp.ne.s32.totalorder %s138, %s139
      %p151 = scmp.eq.s32.totalorder %s24, 1
      %p152 = por %p150, %p151
      %p154 = scmp.ne.s32.totalorder %s139, %s153
      %p155 = scmp.eq.s32.totalorder %s24, 0
      %p156 = por %p154, %p155
      %s158 = sadd.s32 %s157, 1
      %p161 = scmp.eq.s32.totalorder %s18, 1
      %p162 = scmp.ne.s32.totalorder %s157, %s159
      %p163 = scmp.eq.s32.totalorder %s18, 0
      %p164 = por %p162, %p163
      %p165 = scmp.ne.s32.totalorder %s157, %s159
      %p166 = scmp.eq.s32.totalorder %s23, 1
      %p167 = por %p165, %p166
      %p168 = scmp.ne.s32.totalorder %s159, %s160
      %p169 = scmp.eq.s32.totalorder %s23, 0
      %p170 = por %p168, %p169
      %p171 = scmp.ne.s32.totalorder %s159, %s160
      %p172 = scmp.eq.s32.totalorder %s24, 1
      %p173 = por %p171, %p172
      %p175 = scmp.ne.s32.totalorder %s160, %s174
      %p176 = scmp.eq.s32.totalorder %s24, 0
      %p177 = por %p175, %p176
      %s179 = sadd.s32 %s178, 1
      %p182 = scmp.eq.s32.totalorder %s18, 1
      %p183 = scmp.ne.s32.totalorder %s178, %s180
      %p184 = scmp.eq.s32.totalorder %s18, 0
      %p185 = por %p183, %p184
      %p186 = scmp.ne.s32.totalorder %s178, %s180
      %p187 = scmp.eq.s32.totalorder %s23, 1
      %p188 = por %p186, %p187
      %p189 = scmp.ne.s32.totalorder %s180, %s181
      %p190 = scmp.eq.s32.totalorder %s23, 0
      %p191 = por %p189, %p190
      %p192 = scmp.ne.s32.totalorder %s180, %s181
      %p193 = scmp.eq.s32.totalorder %s24, 1
      %p194 = por %p192, %p193
      %p196 = scmp.ne.s32.totalorder %s181, %s195
      %p197 = scmp.eq.s32.totalorder %s24, 0
      %p198 = por %p196, %p197
      %s200 = sadd.s32 %s199, 1
      %p203 = scmp.eq.s32.totalorder %s18, 1
      %p204 = scmp.ne.s32.totalorder %s199, %s201
      %p205 = scmp.eq.s32.totalorder %s18, 0
      %p206 = por %p204, %p205
      %p207 = scmp.ne.s32.totalorder %s199, %s201
      %p208 = scmp.eq.s32.totalorder %s23, 1
      %p209 = por %p207, %p208
      %p210 = scmp.ne.s32.totalorder %s201, %s202
      %p211 = scmp.eq.s32.totalorder %s23, 0
      %p212 = por %p210, %p211
      %p213 = scmp.ne.s32.totalorder %s201, %s202
      %p214 = scmp.eq.s32.totalorder %s24, 1
      %p215 = por %p213, %p214
      %p217 = scmp.ne.s32.totalorder %s202, %s216
      %p218 = scmp.eq.s32.totalorder %s24, 0
      %p219 = por %p217, %p218
      %s220 = ssub.s32 %s18, %s25
      %p221 = scmp.eq.s32.totalorder %s220, 0
      %s223 = sadd.s32 %s222, 1
      %s224 = scalar_select %p221, %s222, %s223
      %p227 = pneg %p221
      %p228 = scmp.eq.s32.totalorder %s18, 1
      %p229 = por %p227, %p228
      %p230 = scmp.ne.s32.totalorder %s222, %s225
      %p231 = scmp.eq.s32.totalorder %s18, 0
      %p232 = por %p230, %p231
      %p233 = scmp.ne.s32.totalorder %s222, %s225
      %p234 = scmp.eq.s32.totalorder %s23, 1
      %p235 = por %p233, %p234
      %p236 = scmp.ne.s32.totalorder %s225, %s226
      %p237 = scmp.eq.s32.totalorder %s23, 0
      %p238 = por %p236, %p237
      %p239 = scmp.ne.s32.totalorder %s225, %s226
      %p240 = scmp.eq.s32.totalorder %s24, 1
      %p241 = por %p239, %p240
      %p243 = scmp.ne.s32.totalorder %s226, %s242
      %p244 = scmp.eq.s32.totalorder %s24, 0
      %p245 = por %p243, %p244
      %p246 = scmp.le.s32.totalorder 1, %s18
      %p247 = scmp.lt.s32.totalorder %s18, 3
      %p248 = pnand %p246, %p247
      %p249 = pneg %p248
      // Predicated region
      $region9: #{net_forward.1} parent=5 // pred_check
        _
      $region10: #{net_forward.1} parent=5 // pred_check_branch
        %251 = sbr.rel (%p248) target = $region12
      $region11: #{net_forward.1} parent=5 // pred_region
        %s252 = ssub.s32 %s18, 1
        // Predicated region
        $region13: #{net_forward.1} parent=11 // pred_check
          %p253 = pneg %p65
        $region14: #{net_forward.1} parent=11 // pred_check_branch
          %255 = sbr.rel (%p253) target = $region16
        $region15: #{net_forward.1} parent=11 // pred_region
          _
        $region16: #{net_forward.1} parent=11 // pred_fallthru
          _
        // Predicated region
        $region17: #{net_forward.1} parent=11 // pred_check
          %p256 = pneg %p86
        $region18: #{net_forward.1} parent=11 // pred_check_branch
          %258 = sbr.rel (%p256) target = $region20
        $region19: #{net_forward.1} parent=11 // pred_region
          _
        $region20: #{net_forward.1} parent=11 // pred_fallthru
          _
        // Predicated region
        $region21: #{net_forward.1} parent=11 // pred_check
          %p259 = pneg %p107
        $region22: #{net_forward.1} parent=11 // pred_check_branch
          %261 = sbr.rel (%p259) target = $region24
        $region23: #{net_forward.1} parent=11 // pred_region
          _
        $region24: #{net_forward.1} parent=11 // pred_fallthru
          _
        // Predicated region
        $region25: #{net_forward.1} parent=11 // pred_check
          %p262 = pneg %p128
        $region26: #{net_forward.1} parent=11 // pred_check_branch
          %264 = sbr.rel (%p262) target = $region28
        $region27: #{net_forward.1} parent=11 // pred_region
          _
        $region28: #{net_forward.1} parent=11 // pred_fallthru
          _
        // Predicated region
        $region29: #{net_forward.1} parent=11 // pred_check
          %p265 = pneg %p149
        $region30: #{net_forward.1} parent=11 // pred_check_branch
          %267 = sbr.rel (%p265) target = $region32
        $region31: #{net_forward.1} parent=11 // pred_region
          _
        $region32: #{net_forward.1} parent=11 // pred_fallthru
          _
        // Predicated region
        $region33: #{net_forward.1} parent=11 // pred_check
          %p268 = pneg %p170
        $region34: #{net_forward.1} parent=11 // pred_check_branch
          %270 = sbr.rel (%p268) target = $region36
        $region35: #{net_forward.1} parent=11 // pred_region
          _
        $region36: #{net_forward.1} parent=11 // pred_fallthru
          _
        // Predicated region
        $region37: #{net_forward.1} parent=11 // pred_check
          %p271 = pneg %p191
        $region38: #{net_forward.1} parent=11 // pred_check_branch
          %273 = sbr.rel (%p271) target = $region40
        $region39: #{net_forward.1} parent=11 // pred_region
          _
        $region40: #{net_forward.1} parent=11 // pred_fallthru
          _
        // Predicated region
        $region41: #{net_forward.1} parent=11 // pred_check
          %p274 = pneg %p212
        $region42: #{net_forward.1} parent=11 // pred_check_branch
          %276 = sbr.rel (%p274) target = $region44
        $region43: #{net_forward.1} parent=11 // pred_region
          _
        $region44: #{net_forward.1} parent=11 // pred_fallthru
          _
      $region12: #{net_forward.1} parent=5 // pred_fallthru
        _
      %p277 = scmp.lt.s32.totalorder %s18, 2
      // Predicated region
      $region45: #{net_forward.1} parent=5 // pred_check
        %p278 = pneg %p277
      $region46: #{net_forward.1} parent=5 // pred_check_branch
        %280 = sbr.rel (%p278) target = $region48
      $region47: #{net_forward.1} parent=5 // pred_region
        // Predicated region
        $region49: #{net_forward.1} parent=47 // pred_check
          %p281 = pneg %p38
        $region50: #{net_forward.1} parent=47 // pred_check_branch
          %283 = sbr.rel (%p281) target = $region52
        $region51: #{net_forward.1} parent=47 // pred_region
          %s284 = smul.u32 144, %s18
          %p285 = scmp.lt.s32.totalorder %s284, 287
          %s286 = scalar_select %p285, %s284, 287
          %s287 = smul.addr %s286, 4
          %s288 = scalar_lea.vmem %s0, %s287
          %s289 = smul.u32 144, %s18
        $region52: #{net_forward.1} parent=47 // pred_fallthru
          _
      $region48: #{net_forward.1} parent=5 // pred_fallthru
        _
      %p290 = scmp.le.s32.totalorder 1, %s18
      %p291 = scmp.lt.s32.totalorder %s18, 3
      %p292 = pnand %p290, %p291
      %p293 = pneg %p292
      // Predicated region
      $region53: #{net_forward.1} parent=5 // pred_check
        _
      $region54: #{net_forward.1} parent=5 // pred_check_branch
        %295 = sbr.rel (%p292) target = $region56
      $region55: #{net_forward.1} parent=5 // pred_region
        %s296 = ssub.s32 %s18, 1
        %s297 = smul.u32 144, %s23
        %p298 = scmp.lt.s32.totalorder %s297, 287
        %s299 = scalar_select %p298, %s297, 287
        %s300 = smul.addr %s299, 4
        %s301 = scalar_lea.vmem %s0, %s300
        %p302 = pneg %p44
        %p303 = pneg %p41
        %p304 = pneg %p65
        %p305 = pneg %p62
        %p306 = pneg %p86
        %p307 = pneg %p83
        %p308 = pneg %p107
        %p309 = pneg %p104
        %p310 = pneg %p128
        %p311 = pneg %p125
        %p312 = pneg %p149
        %p313 = pneg %p146
        %p314 = pneg %p170
        %p315 = pneg %p167
        %p316 = pneg %p191
        %p317 = pneg %p188
        %p318 = pneg %p212
        %p319 = pneg %p209
        %p320 = pneg %p238
        %p321 = pneg %p235
        %s322 = sand.u32 %s225, 1
        %s323 = scalar_lea.sflag [#allocation3], %s322
        %s324 = sand.u32 %s225, 1
        %s325 = smul.addr %s324, 8
        %s326 = scalar_lea.vmem [#allocation2], %s325
        %s327 = smul.u32 144, %s23
        %p328 = scmp.lt.s32.totalorder %s327, 287
        %s329 = scalar_select %p328, %s327, 287
        %s330 = smul.addr %s329, 4
        %s331 = scalar_lea.vmem %s0, %s330
        %s332 = smul.u32 144, %s23
        %v334 = vld [vmem:[%s331] sm:$0xf]
        %v335 = vld [vmem:[%s331 + $0x4] sm:$0xf]
        %v336 = vld [vmem:[%s331 + $0x8] sm:$0xf]
        %v337 = vld [vmem:[%s331 + $0xc] sm:$0xf]
        %v338 = vld [vmem:[%s331 + $0x10] sm:$0xf]
        %v339 = vld [vmem:[%s331 + $0x14] sm:$0xf]
        %v340 = vld [vmem:[%s331 + $0x18] sm:$0xf]
        %v341 = vld [vmem:[%s331 + $0x1c] sm:$0xf]
        %v342 = vld [vmem:[%s331 + $0x20] sm:$0xf]
        %v343 = vld [vmem:[%s331 + $0x24] sm:$0xf]
        %v344 = vld [vmem:[%s331 + $0x28] sm:$0xf]
        %v345 = vld [vmem:[%s331 + $0x2c] sm:$0xf]
        %v346 = vld [vmem:[%s331 + $0x30] sm:$0xf]
        %v347 = vld [vmem:[%s331 + $0x34] sm:$0xf]
        %v348 = vld [vmem:[%s331 + $0x38] sm:$0xf]
        %v349 = vld [vmem:[%s331 + $0x3c] sm:$0xf]
        %v350 = vld [vmem:[%s331 + $0x40] sm:$0xf]
        %v351 = vld [vmem:[%s331 + $0x44] sm:$0xf]
        %v352 = vld [vmem:[%s331 + $0x48] sm:$0xf]
        %v353 = vld [vmem:[%s331 + $0x4c] sm:$0xf]
        %v354 = vld [vmem:[%s331 + $0x50] sm:$0xf]
        %v355 = vld [vmem:[%s331 + $0x54] sm:$0xf]
        %v356 = vld [vmem:[%s331 + $0x58] sm:$0xf]
        %v357 = vld [vmem:[%s331 + $0x5c] sm:$0xf]
        %v358 = vld [vmem:[%s331 + $0x60] sm:$0xf]
        %v359 = vld [vmem:[%s331 + $0x64] sm:$0xf]
        %v360 = vld [vmem:[%s331 + $0x68] sm:$0xf]
        %v361 = vld [vmem:[%s331 + $0x6c] sm:$0xf]
        %v362 = vld [vmem:[%s331 + $0x70] sm:$0xf]
        %v363 = vld [vmem:[%s331 + $0x74] sm:$0xf]
        %v364 = vld [vmem:[%s331 + $0x78] sm:$0xf]
        %v365 = vld [vmem:[%s331 + $0x7c] sm:$0xf]
        %v366 = vld [vmem:[%s331 + $0x80] sm:$0xf]
        %v367 = vld [vmem:[%s331 + $0x84] sm:$0xf]
        %v368 = vld [vmem:[%s331 + $0x88] sm:$0xf]
        %v369 = vld [vmem:[%s331 + $0x8c] sm:$0xf]
        %v370 = vld [vmem:[%s331 + $0x90] sm:$0xf]
        %v371 = vld [vmem:[%s331 + $0x94] sm:$0xf]
        %v372 = vld [vmem:[%s331 + $0x98] sm:$0xf]
        %v373 = vld [vmem:[%s331 + $0x9c] sm:$0xf]
        %v374 = vld [vmem:[%s331 + $0xa0] sm:$0xf]
        %v375 = vld [vmem:[%s331 + $0xa4] sm:$0xf]
        %v376 = vld [vmem:[%s331 + $0xa8] sm:$0xf]
        %v377 = vld [vmem:[%s331 + $0xac] sm:$0xf]
        %v378 = vld [vmem:[%s331 + $0xb0] sm:$0xf]
        %v379 = vld [vmem:[%s331 + $0xb4] sm:$0xf]
        %v380 = vld [vmem:[%s331 + $0xb8] sm:$0xf]
        %v381 = vld [vmem:[%s331 + $0xbc] sm:$0xf]
        %v382 = vld [vmem:[%s331 + $0xc0] sm:$0xf]
        %v383 = vld [vmem:[%s331 + $0xc4] sm:$0xf]
        %v384 = vld [vmem:[%s331 + $0xc8] sm:$0xf]
        %v385 = vld [vmem:[%s331 + $0xcc] sm:$0xf]
        %v386 = vld [vmem:[%s331 + $0xd0] sm:$0xf]
        %v387 = vld [vmem:[%s331 + $0xd4] sm:$0xf]
        %v388 = vld [vmem:[%s331 + $0xd8] sm:$0xf]
        %v389 = vld [vmem:[%s331 + $0xdc] sm:$0xf]
        %v390 = vld [vmem:[%s331 + $0xe0] sm:$0xf]
        %v391 = vld [vmem:[%s331 + $0xe4] sm:$0xf]
        %v392 = vld [vmem:[%s331 + $0xe8] sm:$0xf]
        %v393 = vld [vmem:[%s331 + $0xec] sm:$0xf]
        %v394 = vld [vmem:[%s331 + $0xf0] sm:$0xf]
        %v395 = vld [vmem:[%s331 + $0xf4] sm:$0xf]
        %v396 = vld [vmem:[%s331 + $0xf8] sm:$0xf]
        %v397 = vld [vmem:[%s331 + $0xfc] sm:$0xf]
        %v398 = vld [vmem:[%s331 + $0x100] sm:$0xf]
        %v399 = vld [vmem:[%s331 + $0x104] sm:$0xf]
        %v400 = vld [vmem:[%s331 + $0x108] sm:$0xf]
        %v401 = vld [vmem:[%s331 + $0x10c] sm:$0xf]
        %v402 = vld [vmem:[%s331 + $0x110] sm:$0xf]
        %v403 = vld [vmem:[%s331 + $0x114] sm:$0xf]
        %v404 = vld [vmem:[%s331 + $0x118] sm:$0xf]
        %v405 = vld [vmem:[%s331 + $0x11c] sm:$0xf]
        %v406 = vld [vmem:[%s331 + $0x120] sm:$0xf]
        %v407 = vld [vmem:[%s331 + $0x124] sm:$0xf]
        %v408 = vld [vmem:[%s331 + $0x128] sm:$0xf]
        %v409 = vld [vmem:[%s331 + $0x12c] sm:$0xf]
        %v410 = vld [vmem:[%s331 + $0x130] sm:$0xf]
        %v411 = vld [vmem:[%s331 + $0x134] sm:$0xf]
        %v412 = vld [vmem:[%s331 + $0x138] sm:$0xf]
        %v413 = vld [vmem:[%s331 + $0x13c] sm:$0xf]
        %v414 = vld [vmem:[%s331 + $0x140] sm:$0xf]
        %v415 = vld [vmem:[%s331 + $0x144] sm:$0xf]
        %v416 = vld [vmem:[%s331 + $0x148] sm:$0xf]
        %v417 = vld [vmem:[%s331 + $0x14c] sm:$0xf]
        %v418 = vld [vmem:[%s331 + $0x150] sm:$0xf]
        %v419 = vld [vmem:[%s331 + $0x154] sm:$0xf]
        %v420 = vld [vmem:[%s331 + $0x158] sm:$0xf]
        %v421 = vld [vmem:[%s331 + $0x15c] sm:$0xf]
        %v422 = vld [vmem:[%s331 + $0x160] sm:$0xf]
        %v423 = vld [vmem:[%s331 + $0x164] sm:$0xf]
        %v424 = vld [vmem:[%s331 + $0x168] sm:$0xf]
        %v425 = vld [vmem:[%s331 + $0x16c] sm:$0xf]
        %v426 = vld [vmem:[%s331 + $0x170] sm:$0xf]
        %v427 = vld [vmem:[%s331 + $0x174] sm:$0xf]
        %v428 = vld [vmem:[%s331 + $0x178] sm:$0xf]
        %v429 = vld [vmem:[%s331 + $0x17c] sm:$0xf]
        %v430 = vld [vmem:[%s331 + $0x180] sm:$0xf]
        %v431 = vld [vmem:[%s331 + $0x184] sm:$0xf]
        %v432 = vld [vmem:[%s331 + $0x188] sm:$0xf]
        %v433 = vld [vmem:[%s331 + $0x18c] sm:$0xf]
        %v434 = vld [vmem:[%s331 + $0x190] sm:$0xf]
        %v435 = vld [vmem:[%s331 + $0x194] sm:$0xf]
        %v436 = vld [vmem:[%s331 + $0x198] sm:$0xf]
        %v437 = vld [vmem:[%s331 + $0x19c] sm:$0xf]
        %v438 = vld [vmem:[%s331 + $0x1a0] sm:$0xf]
        %v439 = vld [vmem:[%s331 + $0x1a4] sm:$0xf]
        %v440 = vld [vmem:[%s331 + $0x1a8] sm:$0xf]
        %v441 = vld [vmem:[%s331 + $0x1ac] sm:$0xf]
        %v442 = vld [vmem:[%s331 + $0x1b0] sm:$0xf]
        %v443 = vld [vmem:[%s331 + $0x1b4] sm:$0xf]
        %v444 = vld [vmem:[%s331 + $0x1b8] sm:$0xf]
        %v445 = vld [vmem:[%s331 + $0x1bc] sm:$0xf]
        %v446 = vld [vmem:[%s331 + $0x1c0] sm:$0xf]
        %v447 = vld [vmem:[%s331 + $0x1c4] sm:$0xf]
        %v448 = vld [vmem:[%s331 + $0x1c8] sm:$0xf]
        %v449 = vld [vmem:[%s331 + $0x1cc] sm:$0xf]
        %v450 = vld [vmem:[%s331 + $0x1d0] sm:$0xf]
        %v451 = vld [vmem:[%s331 + $0x1d4] sm:$0xf]
        %v452 = vld [vmem:[%s331 + $0x1d8] sm:$0xf]
        %v453 = vld [vmem:[%s331 + $0x1dc] sm:$0xf]
        %v454 = vld [vmem:[%s331 + $0x1e0] sm:$0xf]
        %v455 = vld [vmem:[%s331 + $0x1e4] sm:$0xf]
        %v456 = vld [vmem:[%s331 + $0x1e8] sm:$0xf]
        %v457 = vld [vmem:[%s331 + $0x1ec] sm:$0xf]
        %v458 = vld [vmem:[%s331 + $0x1f0] sm:$0xf]
        %v459 = vld [vmem:[%s331 + $0x1f4] sm:$0xf]
        %v460 = vld [vmem:[%s331 + $0x1f8] sm:$0xf]
        %v461 = vld [vmem:[%s331 + $0x1fc] sm:$0xf]
        %v462 = vld [vmem:[%s331 + $0x200] sm:$0xf]
        %v463 = vld [vmem:[%s331 + $0x204] sm:$0xf]
        %v464 = vld [vmem:[%s331 + $0x208] sm:$0xf]
        %v465 = vld [vmem:[%s331 + $0x20c] sm:$0xf]
        %v466 = vld [vmem:[%s331 + $0x210] sm:$0xf]
        %v467 = vld [vmem:[%s331 + $0x214] sm:$0xf]
        %v468 = vld [vmem:[%s331 + $0x218] sm:$0xf]
        %v469 = vld [vmem:[%s331 + $0x21c] sm:$0xf]
        %v470 = vld [vmem:[%s331 + $0x220] sm:$0xf]
        %v471 = vld [vmem:[%s331 + $0x224] sm:$0xf]
        %v472 = vld [vmem:[%s331 + $0x228] sm:$0xf]
        %v473 = vld [vmem:[%s331 + $0x22c] sm:$0xf]
        %v474 = vld [vmem:[%s331 + $0x230] sm:$0xf]
        %v475 = vld [vmem:[%s331 + $0x234] sm:$0xf]
        %v476 = vld [vmem:[%s331 + $0x238] sm:$0xf]
        %v477 = vld [vmem:[%s331 + $0x23c] sm:$0xf]
        %v478 = vld [vmem:[%s1] sm:$0xf]
        %v479 = vld [vmem:[%s1 + $0x4] sm:$0xf]
        %v480 = vld [vmem:[%s1 + $0x8] sm:$0xf]
        %v481 = vld [vmem:[%s1 + $0xc] sm:$0xf]
        %v482 = vld [vmem:[%s1 + $0x10] sm:$0xf]
        %v483 = vld [vmem:[%s1 + $0x14] sm:$0xf]
        %v484 = vld [vmem:[%s1 + $0x18] sm:$0xf]
        %v485 = vld [vmem:[%s1 + $0x1c] sm:$0xf]
        %v486 = vld [vmem:[%s1 + $0x20] sm:$0xf]
        %v487 = vld [vmem:[%s1 + $0x24] sm:$0xf]
        %v488 = vld [vmem:[%s1 + $0x28] sm:$0xf]
        %v489 = vld [vmem:[%s1 + $0x2c] sm:$0xf]
        %v490 = vld [vmem:[%s1 + $0x30] sm:$0xf]
        %v491 = vld [vmem:[%s1 + $0x34] sm:$0xf]
        %v492 = vld [vmem:[%s1 + $0x38] sm:$0xf]
        %v493 = vld [vmem:[%s1 + $0x3c] sm:$0xf]
        %v494 = vld [vmem:[%s2] sm:$0x1]
        %v496 = vlaneseq
        %v497 = vshrl.u32 %v496, 7
        %v498 = vsub.s32 0, %v497
        %v499 = vrot.slane %v494, %v498
        %v645 = vunpack.c.l.b16 %v334
        %v646 = vunpack.c.l.b16 %v335
        %v647 = vunpack.c.l.b16 %v336
        %v648 = vunpack.c.l.b16 %v337
        %v649 = vunpack.c.l.b16 %v338
        %v650 = vunpack.c.l.b16 %v339
        %v651 = vunpack.c.l.b16 %v340
        %v652 = vunpack.c.l.b16 %v341
        %v653 = vunpack.c.l.b16 %v342
        %v654 = vunpack.c.l.b16 %v343
        %v655 = vunpack.c.l.b16 %v344
        %v656 = vunpack.c.l.b16 %v345
        %v657 = vunpack.c.l.b16 %v346
        %v658 = vunpack.c.l.b16 %v347
        %v659 = vunpack.c.l.b16 %v348
        %v660 = vunpack.c.l.b16 %v349
        %v661 = vunpack.c.l.b16 %v350
        %v662 = vunpack.c.l.b16 %v351
        %v663 = vunpack.c.l.b16 %v352
        %v664 = vunpack.c.l.b16 %v353
        %v665 = vunpack.c.l.b16 %v354
        %v666 = vunpack.c.l.b16 %v355
        %v667 = vunpack.c.l.b16 %v356
        %v668 = vunpack.c.l.b16 %v357
        %v669 = vunpack.c.l.b16 %v358
        %v670 = vunpack.c.l.b16 %v359
        %v671 = vunpack.c.l.b16 %v360
        %v672 = vunpack.c.l.b16 %v361
        %v673 = vunpack.c.l.b16 %v362
        %v674 = vunpack.c.l.b16 %v363
        %v675 = vunpack.c.l.b16 %v364
        %v676 = vunpack.c.l.b16 %v365
        %v677 = vunpack.c.l.b16 %v366
        %v678 = vunpack.c.l.b16 %v367
        %v679 = vunpack.c.l.b16 %v368
        %v680 = vunpack.c.l.b16 %v369
        %v681 = vunpack.c.l.b16 %v370
        %v682 = vunpack.c.l.b16 %v371
        %v683 = vunpack.c.l.b16 %v372
        %v684 = vunpack.c.l.b16 %v373
        %v685 = vunpack.c.l.b16 %v374
        %v686 = vunpack.c.l.b16 %v375
        %v687 = vunpack.c.l.b16 %v376
        %v688 = vunpack.c.l.b16 %v377
        %v689 = vunpack.c.l.b16 %v378
        %v690 = vunpack.c.l.b16 %v379
        %v691 = vunpack.c.l.b16 %v380
        %v692 = vunpack.c.l.b16 %v381
        %v693 = vunpack.c.l.b16 %v382
        %v694 = vunpack.c.l.b16 %v383
        %v695 = vunpack.c.l.b16 %v384
        %v696 = vunpack.c.l.b16 %v385
        %v697 = vunpack.c.l.b16 %v386
        %v698 = vunpack.c.l.b16 %v387
        %v699 = vunpack.c.l.b16 %v388
        %v700 = vunpack.c.l.b16 %v389
        %v701 = vunpack.c.l.b16 %v390
        %v702 = vunpack.c.l.b16 %v391
        %v703 = vunpack.c.l.b16 %v392
        %v704 = vunpack.c.l.b16 %v393
        %v705 = vunpack.c.l.b16 %v394
        %v706 = vunpack.c.l.b16 %v395
        %v707 = vunpack.c.l.b16 %v396
        %v708 = vunpack.c.l.b16 %v397
        %v709 = vunpack.c.l.b16 %v398
        %v710 = vunpack.c.l.b16 %v399
        %v711 = vunpack.c.l.b16 %v400
        %v712 = vunpack.c.l.b16 %v401
        %v713 = vunpack.c.l.b16 %v402
        %v714 = vunpack.c.l.b16 %v403
        %v715 = vunpack.c.l.b16 %v404
        %v716 = vunpack.c.l.b16 %v405
        %v717 = vunpack.c.l.b16 %v406
        %v718 = vunpack.c.l.b16 %v407
        %v719 = vunpack.c.l.b16 %v408
        %v720 = vunpack.c.l.b16 %v409
        %v721 = vunpack.c.l.b16 %v410
        %v722 = vunpack.c.l.b16 %v411
        %v723 = vunpack.c.l.b16 %v412
        %v724 = vunpack.c.l.b16 %v413
        %v725 = vunpack.c.l.b16 %v414
        %v726 = vunpack.c.l.b16 %v415
        %v727 = vunpack.c.l.b16 %v416
        %v728 = vunpack.c.l.b16 %v417
        %v729 = vunpack.c.l.b16 %v418
        %v730 = vunpack.c.l.b16 %v419
        %v731 = vunpack.c.l.b16 %v420
        %v732 = vunpack.c.l.b16 %v421
        %v733 = vunpack.c.l.b16 %v422
        %v734 = vunpack.c.l.b16 %v423
        %v735 = vunpack.c.l.b16 %v424
        %v736 = vunpack.c.l.b16 %v425
        %v737 = vunpack.c.l.b16 %v426
        %v738 = vunpack.c.l.b16 %v427
        %v739 = vunpack.c.l.b16 %v428
        %v740 = vunpack.c.l.b16 %v429
        %v741 = vunpack.c.l.b16 %v430
        %v742 = vunpack.c.l.b16 %v431
        %v743 = vunpack.c.l.b16 %v432
        %v744 = vunpack.c.l.b16 %v433
        %v745 = vunpack.c.l.b16 %v434
        %v746 = vunpack.c.l.b16 %v435
        %v747 = vunpack.c.l.b16 %v436
        %v748 = vunpack.c.l.b16 %v437
        %v749 = vunpack.c.l.b16 %v438
        %v750 = vunpack.c.l.b16 %v439
        %v751 = vunpack.c.l.b16 %v440
        %v752 = vunpack.c.l.b16 %v441
        %v753 = vunpack.c.l.b16 %v442
        %v754 = vunpack.c.l.b16 %v443
        %v755 = vunpack.c.l.b16 %v444
        %v756 = vunpack.c.l.b16 %v445
        %v757 = vunpack.c.l.b16 %v446
        %v758 = vunpack.c.l.b16 %v447
        %v759 = vunpack.c.l.b16 %v448
        %v760 = vunpack.c.l.b16 %v449
        %v761 = vunpack.c.l.b16 %v450
        %v762 = vunpack.c.l.b16 %v451
        %v763 = vunpack.c.l.b16 %v452
        %v764 = vunpack.c.l.b16 %v453
        %v765 = vunpack.c.l.b16 %v454
        %v766 = vunpack.c.l.b16 %v455
        %v767 = vunpack.c.l.b16 %v456
        %v768 = vunpack.c.l.b16 %v457
        %v769 = vunpack.c.l.b16 %v458
        %v770 = vunpack.c.l.b16 %v459
        %v771 = vunpack.c.l.b16 %v460
        %v772 = vunpack.c.l.b16 %v461
        %v773 = vunpack.c.l.b16 %v462
        %v774 = vunpack.c.l.b16 %v463
        %v775 = vunpack.c.l.b16 %v464
        %v776 = vunpack.c.l.b16 %v465
        %v777 = vunpack.c.l.b16 %v466
        %v778 = vunpack.c.l.b16 %v467
        %v779 = vunpack.c.l.b16 %v468
        %v780 = vunpack.c.l.b16 %v469
        %v781 = vunpack.c.l.b16 %v470
        %v782 = vunpack.c.l.b16 %v471
        %v783 = vunpack.c.l.b16 %v472
        %v784 = vunpack.c.l.b16 %v473
        %v785 = vunpack.c.l.b16 %v474
        %v786 = vunpack.c.l.b16 %v475
        %v787 = vunpack.c.l.b16 %v476
        %v788 = vunpack.c.l.b16 %v477
        %v789 = vpack.c.b16 %v646, %v645
        %v790 = vpack.c.b16 %v648, %v647
        %v791 = vpack.c.b16 %v650, %v649
        %v792 = vpack.c.b16 %v652, %v651
        %v793 = vpack.c.b16 %v654, %v653
        %v794 = vpack.c.b16 %v656, %v655
        %v795 = vpack.c.b16 %v658, %v657
        %v796 = vpack.c.b16 %v660, %v659
        %v797 = vpack.c.b16 %v662, %v661
        %v798 = vpack.c.b16 %v664, %v663
        %v799 = vpack.c.b16 %v666, %v665
        %v800 = vpack.c.b16 %v668, %v667
        %v801 = vpack.c.b16 %v670, %v669
        %v802 = vpack.c.b16 %v672, %v671
        %v803 = vpack.c.b16 %v674, %v673
        %v804 = vpack.c.b16 %v676, %v675
        %v805 = vpack.c.b16 %v678, %v677
        %v806 = vpack.c.b16 %v680, %v679
        %v807 = vpack.c.b16 %v682, %v681
        %v808 = vpack.c.b16 %v684, %v683
        %v809 = vpack.c.b16 %v686, %v685
        %v810 = vpack.c.b16 %v688, %v687
        %v811 = vpack.c.b16 %v690, %v689
        %v812 = vpack.c.b16 %v692, %v691
        %v813 = vpack.c.b16 %v694, %v693
        %v814 = vpack.c.b16 %v696, %v695
        %v815 = vpack.c.b16 %v698, %v697
        %v816 = vpack.c.b16 %v700, %v699
        %v817 = vpack.c.b16 %v702, %v701
        %v818 = vpack.c.b16 %v704, %v703
        %v819 = vpack.c.b16 %v706, %v705
        %v820 = vpack.c.b16 %v708, %v707
        %v821 = vpack.c.b16 %v710, %v709
        %v822 = vpack.c.b16 %v712, %v711
        %v823 = vpack.c.b16 %v714, %v713
        %v824 = vpack.c.b16 %v716, %v715
        %v825 = vpack.c.b16 %v718, %v717
        %v826 = vpack.c.b16 %v720, %v719
        %v827 = vpack.c.b16 %v722, %v721
        %v828 = vpack.c.b16 %v724, %v723
        %v829 = vpack.c.b16 %v726, %v725
        %v830 = vpack.c.b16 %v728, %v727
        %v831 = vpack.c.b16 %v730, %v729
        %v832 = vpack.c.b16 %v732, %v731
        %v833 = vpack.c.b16 %v734, %v733
        %v834 = vpack.c.b16 %v736, %v735
        %v835 = vpack.c.b16 %v738, %v737
        %v836 = vpack.c.b16 %v740, %v739
        %v837 = vpack.c.b16 %v742, %v741
        %v838 = vpack.c.b16 %v744, %v743
        %v839 = vpack.c.b16 %v746, %v745
        %v840 = vpack.c.b16 %v748, %v747
        %v841 = vpack.c.b16 %v750, %v749
        %v842 = vpack.c.b16 %v752, %v751
        %v843 = vpack.c.b16 %v754, %v753
        %v844 = vpack.c.b16 %v756, %v755
        %v845 = vpack.c.b16 %v758, %v757
        %v846 = vpack.c.b16 %v760, %v759
        %v847 = vpack.c.b16 %v762, %v761
        %v848 = vpack.c.b16 %v764, %v763
        %v849 = vpack.c.b16 %v766, %v765
        %v850 = vpack.c.b16 %v768, %v767
        %v851 = vpack.c.b16 %v770, %v769
        %v852 = vpack.c.b16 %v772, %v771
        %v853 = vpack.c.b16 %v774, %v773
        %v854 = vpack.c.b16 %v776, %v775
        %v855 = vpack.c.b16 %v778, %v777
        %v856 = vpack.c.b16 %v780, %v779
        %v857 = vpack.c.b16 %v782, %v781
        %v858 = vpack.c.b16 %v784, %v783
        %v859 = vpack.c.b16 %v786, %v785
        %v860 = vpack.c.b16 %v788, %v787
        %v949 = vunpack.c.l.b16 %v478
        %v950 = vunpack.c.l.b16 %v479
        %v951 = vunpack.c.l.b16 %v480
        %v952 = vunpack.c.l.b16 %v481
        %v953 = vunpack.c.l.b16 %v482
        %v954 = vunpack.c.l.b16 %v483
        %v955 = vunpack.c.l.b16 %v484
        %v956 = vunpack.c.l.b16 %v485
        %v957 = vunpack.c.l.b16 %v486
        %v958 = vunpack.c.l.b16 %v487
        %v959 = vunpack.c.l.b16 %v488
        %v960 = vunpack.c.l.b16 %v489
        %v961 = vunpack.c.l.b16 %v490
        %v962 = vunpack.c.l.b16 %v491
        %v963 = vunpack.c.l.b16 %v492
        %v964 = vunpack.c.l.b16 %v493
        %v965 = vpack.c.b16 %v950, %v949
        %v966 = vpack.c.b16 %v952, %v951
        %v967 = vpack.c.b16 %v954, %v953
        %v968 = vpack.c.b16 %v956, %v955
        %v969 = vpack.c.b16 %v958, %v957
        %v970 = vpack.c.b16 %v960, %v959
        %v971 = vpack.c.b16 %v962, %v961
        %v972 = vpack.c.b16 %v964, %v963
        %981 = vmatprep.subr.bf16.mxu0 0
        %982 = vmatpush1.bf16.msra.mxu0 %v972
        %983 = vmatprep.subr.bf16.mxu0 0
        %984 = vmatpush1.bf16.msra.mxu0 %v971
        %985 = vmatprep.subr.bf16.mxu0 0
        %986 = vmatpush1.bf16.msra.mxu0 %v970
        %987 = vmatprep.subr.bf16.mxu0 0
        %988 = vmatpush1.bf16.msra.mxu0 %v969
        %989 = vmatprep.subr.bf16.mxu0 0
        %990 = vmatpush1.bf16.msra.mxu0 %v968
        %991 = vmatprep.subr.bf16.mxu0 0
        %992 = vmatpush1.bf16.msra.mxu0 %v967
        %993 = vmatprep.subr.bf16.mxu0 0
        %994 = vmatpush1.bf16.msra.mxu0 %v966
        %995 = vmatprep.subr.bf16.mxu0 0
        %996 = vmatpush1.bf16.msra.mxu0 %v965
        %997 = vmatprep.subr.bf16.mxu0 0
        %998 = vmatpush2.bf16.msra.mxu0 0
        %999 = vmatprep.subr.bf16.mxu0 0
        %1000 = vmatpush2.bf16.msra.mxu0 0
        %1001 = vmatprep.subr.bf16.mxu0 0
        %1002 = vmatpush2.bf16.msra.mxu0 0
        %1003 = vmatprep.subr.bf16.mxu0 0
        %1004 = vmatpush2.bf16.msra.mxu0 0
        %1005 = vmatprep.subr.bf16.mxu0 0
        %1006 = vmatpush2.bf16.msra.mxu0 0
        %1007 = vmatprep.subr.bf16.mxu0 0
        %1008 = vmatpush2.bf16.msra.mxu0 0
        %1009 = vmatprep.subr.bf16.mxu0 0
        %1010 = vmatpush2.bf16.msra.mxu0 0
        %1011 = vmatprep.subr.bf16.mxu0 0
        %1012 = vmatpush2.bf16.msra.mxu0 0
        %1013 = vmatprep.mubr.bf16.mxu0 0
        %1014 = vmatmul.mubr.bf16.gmra.mxu0 %v789
        %v1015 = vpop.f32.mrf.mxu0
        %v1016 = vadd.f32 %v499, %v1015
        %v1017 = vpop.f32.mrf.mxu0
        %v1018 = vpop.f32.mrf.mxu0
        %v1019 = vadd.f32 %v499, %v1018
        %v1020 = vpop.f32.mrf.mxu0
        %1021 = vmatprep.mubr.bf16.mxu0 0
        %1022 = vmatmul.mubr.bf16.gmra.mxu0 %v790
        %v1023 = vpop.f32.mrf.mxu0
        %v1024 = vadd.f32 %v499, %v1023
        %v1025 = vpop.f32.mrf.mxu0
        %v1026 = vpop.f32.mrf.mxu0
        %v1027 = vadd.f32 %v499, %v1026
        %v1028 = vpop.f32.mrf.mxu0
        %1029 = vmatprep.mubr.bf16.mxu0 0
        %1030 = vmatmul.mubr.bf16.gmra.mxu0 %v791
        %v1031 = vpop.f32.mrf.mxu0
        %v1032 = vadd.f32 %v499, %v1031
        %v1033 = vpop.f32.mrf.mxu0
        %v1034 = vpop.f32.mrf.mxu0
        %v1035 = vadd.f32 %v499, %v1034
        %v1036 = vpop.f32.mrf.mxu0
        %1037 = vmatprep.mubr.bf16.mxu0 0
        %1038 = vmatmul.mubr.bf16.gmra.mxu0 %v792
        %v1039 = vpop.f32.mrf.mxu0
        %v1040 = vadd.f32 %v499, %v1039
        %v1041 = vpop.f32.mrf.mxu0
        %v1042 = vpop.f32.mrf.mxu0
        %v1043 = vadd.f32 %v499, %v1042
        %v1044 = vpop.f32.mrf.mxu0
        %1045 = vmatprep.mubr.bf16.mxu0 0
        %1046 = vmatmul.mubr.bf16.gmra.mxu0 %v793
        %v1047 = vpop.f32.mrf.mxu0
        %v1048 = vadd.f32 %v499, %v1047
        %v1049 = vpop.f32.mrf.mxu0
        %v1050 = vpop.f32.mrf.mxu0
        %v1051 = vadd.f32 %v499, %v1050
        %v1052 = vpop.f32.mrf.mxu0
        %1053 = vmatprep.mubr.bf16.mxu0 0
        %1054 = vmatmul.mubr.bf16.gmra.mxu0 %v794
        %v1055 = vpop.f32.mrf.mxu0
        %v1056 = vadd.f32 %v499, %v1055
        %v1057 = vpop.f32.mrf.mxu0
        %v1058 = vpop.f32.mrf.mxu0
        %v1059 = vadd.f32 %v499, %v1058
        %v1060 = vpop.f32.mrf.mxu0
        %1061 = vmatprep.mubr.bf16.mxu0 0
        %1062 = vmatmul.mubr.bf16.gmra.mxu0 %v795
        %v1063 = vpop.f32.mrf.mxu0
        %v1064 = vadd.f32 %v499, %v1063
        %v1065 = vpop.f32.mrf.mxu0
        %v1066 = vpop.f32.mrf.mxu0
        %v1067 = vadd.f32 %v499, %v1066
        %v1068 = vpop.f32.mrf.mxu0
        %1069 = vmatprep.mubr.bf16.mxu0 0
        %1070 = vmatmul.mubr.bf16.gmra.mxu0 %v796
        %v1071 = vpop.f32.mrf.mxu0
        %v1072 = vadd.f32 %v499, %v1071
        %v1073 = vpop.f32.mrf.mxu0
        %v1074 = vpop.f32.mrf.mxu0
        %v1075 = vadd.f32 %v499, %v1074
        %v1076 = vpop.f32.mrf.mxu0
        %1077 = vmatprep.mubr.bf16.mxu0 0
        %1078 = vmatmul.mubr.bf16.gmra.mxu0 %v797
        %v1079 = vpop.f32.mrf.mxu0
        %v1080 = vadd.f32 %v499, %v1079
        %v1081 = vpop.f32.mrf.mxu0
        %v1082 = vpop.f32.mrf.mxu0
        %v1083 = vadd.f32 %v499, %v1082
        %v1084 = vpop.f32.mrf.mxu0
        %1085 = vmatprep.mubr.bf16.mxu0 0
        %1086 = vmatmul.mubr.bf16.gmra.mxu0 %v798
        %v1087 = vpop.f32.mrf.mxu0
        %v1088 = vadd.f32 %v499, %v1087
        %v1089 = vpop.f32.mrf.mxu0
        %v1090 = vpop.f32.mrf.mxu0
        %v1091 = vadd.f32 %v499, %v1090
        %v1092 = vpop.f32.mrf.mxu0
        %1093 = vmatprep.mubr.bf16.mxu0 0
        %1094 = vmatmul.mubr.bf16.gmra.mxu0 %v799
        %v1095 = vpop.f32.mrf.mxu0
        %v1096 = vadd.f32 %v499, %v1095
        %v1097 = vpop.f32.mrf.mxu0
        %v1098 = vpop.f32.mrf.mxu0
        %v1099 = vadd.f32 %v499, %v1098
        %v1100 = vpop.f32.mrf.mxu0
        %1101 = vmatprep.mubr.bf16.mxu0 0
        %1102 = vmatmul.mubr.bf16.gmra.mxu0 %v800
        %v1103 = vpop.f32.mrf.mxu0
        %v1104 = vadd.f32 %v499, %v1103
        %v1105 = vpop.f32.mrf.mxu0
        %v1106 = vpop.f32.mrf.mxu0
        %v1107 = vadd.f32 %v499, %v1106
        %v1108 = vpop.f32.mrf.mxu0
        %1109 = vmatprep.mubr.bf16.mxu0 0
        %1110 = vmatmul.mubr.bf16.gmra.mxu0 %v801
        %v1111 = vpop.f32.mrf.mxu0
        %v1112 = vadd.f32 %v499, %v1111
        %v1113 = vpop.f32.mrf.mxu0
        %v1114 = vpop.f32.mrf.mxu0
        %v1115 = vadd.f32 %v499, %v1114
        %v1116 = vpop.f32.mrf.mxu0
        %1117 = vmatprep.mubr.bf16.mxu0 0
        %1118 = vmatmul.mubr.bf16.gmra.mxu0 %v802
        %v1119 = vpop.f32.mrf.mxu0
        %v1120 = vadd.f32 %v499, %v1119
        %v1121 = vpop.f32.mrf.mxu0
        %v1122 = vpop.f32.mrf.mxu0
        %v1123 = vadd.f32 %v499, %v1122
        %v1124 = vpop.f32.mrf.mxu0
        %1125 = vmatprep.mubr.bf16.mxu0 0
        %1126 = vmatmul.mubr.bf16.gmra.mxu0 %v803
        %v1127 = vpop.f32.mrf.mxu0
        %v1128 = vadd.f32 %v499, %v1127
        %v1129 = vpop.f32.mrf.mxu0
        %v1130 = vpop.f32.mrf.mxu0
        %v1131 = vadd.f32 %v499, %v1130
        %v1132 = vpop.f32.mrf.mxu0
        %1133 = vmatprep.mubr.bf16.mxu0 0
        %1134 = vmatmul.mubr.bf16.gmra.mxu0 %v804
        %v1135 = vpop.f32.mrf.mxu0
        %v1136 = vadd.f32 %v499, %v1135
        %v1137 = vpop.f32.mrf.mxu0
        %v1138 = vpop.f32.mrf.mxu0
        %v1139 = vadd.f32 %v499, %v1138
        %v1140 = vpop.f32.mrf.mxu0
        %1141 = vmatprep.mubr.bf16.mxu0 0
        %1142 = vmatmul.mubr.bf16.gmra.mxu0 %v805
        %v1143 = vpop.f32.mrf.mxu0
        %v1144 = vadd.f32 %v499, %v1143
        %v1145 = vpop.f32.mrf.mxu0
        %v1146 = vpop.f32.mrf.mxu0
        %v1147 = vadd.f32 %v499, %v1146
        %v1148 = vpop.f32.mrf.mxu0
        %1149 = vmatprep.mubr.bf16.mxu0 0
        %1150 = vmatmul.mubr.bf16.gmra.mxu0 %v806
        %v1151 = vpop.f32.mrf.mxu0
        %v1152 = vadd.f32 %v499, %v1151
        %v1153 = vpop.f32.mrf.mxu0
        %v1154 = vpop.f32.mrf.mxu0
        %v1155 = vadd.f32 %v499, %v1154
        %v1156 = vpop.f32.mrf.mxu0
        %1157 = vmatprep.mubr.bf16.mxu0 0
        %1158 = vmatmul.mubr.bf16.gmra.mxu0 %v807
        %v1159 = vpop.f32.mrf.mxu0
        %v1160 = vadd.f32 %v499, %v1159
        %v1161 = vpop.f32.mrf.mxu0
        %v1162 = vpop.f32.mrf.mxu0
        %v1163 = vadd.f32 %v499, %v1162
        %v1164 = vpop.f32.mrf.mxu0
        %1165 = vmatprep.mubr.bf16.mxu0 0
        %1166 = vmatmul.mubr.bf16.gmra.mxu0 %v808
        %v1167 = vpop.f32.mrf.mxu0
        %v1168 = vadd.f32 %v499, %v1167
        %v1169 = vpop.f32.mrf.mxu0
        %v1170 = vpop.f32.mrf.mxu0
        %v1171 = vadd.f32 %v499, %v1170
        %v1172 = vpop.f32.mrf.mxu0
        %1173 = vmatprep.mubr.bf16.mxu0 0
        %1174 = vmatmul.mubr.bf16.gmra.mxu0 %v809
        %v1175 = vpop.f32.mrf.mxu0
        %v1176 = vadd.f32 %v499, %v1175
        %v1177 = vpop.f32.mrf.mxu0
        %v1178 = vpop.f32.mrf.mxu0
        %v1179 = vadd.f32 %v499, %v1178
        %v1180 = vpop.f32.mrf.mxu0
        %1181 = vmatprep.mubr.bf16.mxu0 0
        %1182 = vmatmul.mubr.bf16.gmra.mxu0 %v810
        %v1183 = vpop.f32.mrf.mxu0
        %v1184 = vadd.f32 %v499, %v1183
        %v1185 = vpop.f32.mrf.mxu0
        %v1186 = vpop.f32.mrf.mxu0
        %v1187 = vadd.f32 %v499, %v1186
        %v1188 = vpop.f32.mrf.mxu0
        %1189 = vmatprep.mubr.bf16.mxu0 0
        %1190 = vmatmul.mubr.bf16.gmra.mxu0 %v811
        %v1191 = vpop.f32.mrf.mxu0
        %v1192 = vadd.f32 %v499, %v1191
        %v1193 = vpop.f32.mrf.mxu0
        %v1194 = vpop.f32.mrf.mxu0
        %v1195 = vadd.f32 %v499, %v1194
        %v1196 = vpop.f32.mrf.mxu0
        %1197 = vmatprep.mubr.bf16.mxu0 0
        %1198 = vmatmul.mubr.bf16.gmra.mxu0 %v812
        %v1199 = vpop.f32.mrf.mxu0
        %v1200 = vadd.f32 %v499, %v1199
        %v1201 = vpop.f32.mrf.mxu0
        %v1202 = vpop.f32.mrf.mxu0
        %v1203 = vadd.f32 %v499, %v1202
        %v1204 = vpop.f32.mrf.mxu0
        %1205 = vmatprep.mubr.bf16.mxu0 0
        %1206 = vmatmul.mubr.bf16.gmra.mxu0 %v813
        %v1207 = vpop.f32.mrf.mxu0
        %v1208 = vadd.f32 %v499, %v1207
        %v1209 = vpop.f32.mrf.mxu0
        %v1210 = vpop.f32.mrf.mxu0
        %v1211 = vadd.f32 %v499, %v1210
        %v1212 = vpop.f32.mrf.mxu0
        %1213 = vmatprep.mubr.bf16.mxu0 0
        %1214 = vmatmul.mubr.bf16.gmra.mxu0 %v814
        %v1215 = vpop.f32.mrf.mxu0
        %v1216 = vadd.f32 %v499, %v1215
        %v1217 = vpop.f32.mrf.mxu0
        %v1218 = vpop.f32.mrf.mxu0
        %v1219 = vadd.f32 %v499, %v1218
        %v1220 = vpop.f32.mrf.mxu0
        %1221 = vmatprep.mubr.bf16.mxu0 0
        %1222 = vmatmul.mubr.bf16.gmra.mxu0 %v815
        %v1223 = vpop.f32.mrf.mxu0
        %v1224 = vadd.f32 %v499, %v1223
        %v1225 = vpop.f32.mrf.mxu0
        %v1226 = vpop.f32.mrf.mxu0
        %v1227 = vadd.f32 %v499, %v1226
        %v1228 = vpop.f32.mrf.mxu0
        %1229 = vmatprep.mubr.bf16.mxu0 0
        %1230 = vmatmul.mubr.bf16.gmra.mxu0 %v816
        %v1231 = vpop.f32.mrf.mxu0
        %v1232 = vadd.f32 %v499, %v1231
        %v1233 = vpop.f32.mrf.mxu0
        %v1234 = vpop.f32.mrf.mxu0
        %v1235 = vadd.f32 %v499, %v1234
        %v1236 = vpop.f32.mrf.mxu0
        %1237 = vmatprep.mubr.bf16.mxu0 0
        %1238 = vmatmul.mubr.bf16.gmra.mxu0 %v817
        %v1239 = vpop.f32.mrf.mxu0
        %v1240 = vadd.f32 %v499, %v1239
        %v1241 = vpop.f32.mrf.mxu0
        %v1242 = vpop.f32.mrf.mxu0
        %v1243 = vadd.f32 %v499, %v1242
        %v1244 = vpop.f32.mrf.mxu0
        %1245 = vmatprep.mubr.bf16.mxu0 0
        %1246 = vmatmul.mubr.bf16.gmra.mxu0 %v818
        %v1247 = vpop.f32.mrf.mxu0
        %v1248 = vadd.f32 %v499, %v1247
        %v1249 = vpop.f32.mrf.mxu0
        %v1250 = vpop.f32.mrf.mxu0
        %v1251 = vadd.f32 %v499, %v1250
        %v1252 = vpop.f32.mrf.mxu0
        %1253 = vmatprep.mubr.bf16.mxu0 0
        %1254 = vmatmul.mubr.bf16.gmra.mxu0 %v819
        %v1255 = vpop.f32.mrf.mxu0
        %v1256 = vadd.f32 %v499, %v1255
        %v1257 = vpop.f32.mrf.mxu0
        %v1258 = vpop.f32.mrf.mxu0
        %v1259 = vadd.f32 %v499, %v1258
        %v1260 = vpop.f32.mrf.mxu0
        %1261 = vmatprep.mubr.bf16.mxu0 0
        %1262 = vmatmul.mubr.bf16.gmra.mxu0 %v820
        %v1263 = vpop.f32.mrf.mxu0
        %v1264 = vadd.f32 %v499, %v1263
        %v1265 = vpop.f32.mrf.mxu0
        %v1266 = vpop.f32.mrf.mxu0
        %v1267 = vadd.f32 %v499, %v1266
        %v1268 = vpop.f32.mrf.mxu0
        %1269 = vmatprep.mubr.bf16.mxu0 0
        %1270 = vmatmul.mubr.bf16.gmra.mxu0 %v821
        %v1271 = vpop.f32.mrf.mxu0
        %v1272 = vadd.f32 %v499, %v1271
        %v1273 = vpop.f32.mrf.mxu0
        %v1274 = vpop.f32.mrf.mxu0
        %v1275 = vadd.f32 %v499, %v1274
        %v1276 = vpop.f32.mrf.mxu0
        %1277 = vmatprep.mubr.bf16.mxu0 0
        %1278 = vmatmul.mubr.bf16.gmra.mxu0 %v822
        %v1279 = vpop.f32.mrf.mxu0
        %v1280 = vadd.f32 %v499, %v1279
        %v1281 = vpop.f32.mrf.mxu0
        %v1282 = vpop.f32.mrf.mxu0
        %v1283 = vadd.f32 %v499, %v1282
        %v1284 = vpop.f32.mrf.mxu0
        %1285 = vmatprep.mubr.bf16.mxu0 0
        %1286 = vmatmul.mubr.bf16.gmra.mxu0 %v823
        %v1287 = vpop.f32.mrf.mxu0
        %v1288 = vadd.f32 %v499, %v1287
        %v1289 = vpop.f32.mrf.mxu0
        %v1290 = vpop.f32.mrf.mxu0
        %v1291 = vadd.f32 %v499, %v1290
        %v1292 = vpop.f32.mrf.mxu0
        %1293 = vmatprep.mubr.bf16.mxu0 0
        %1294 = vmatmul.mubr.bf16.gmra.mxu0 %v824
        %v1295 = vpop.f32.mrf.mxu0
        %v1296 = vadd.f32 %v499, %v1295
        %v1297 = vpop.f32.mrf.mxu0
        %v1298 = vpop.f32.mrf.mxu0
        %v1299 = vadd.f32 %v499, %v1298
        %v1300 = vpop.f32.mrf.mxu0
        %1301 = vmatprep.mubr.bf16.mxu0 0
        %1302 = vmatmul.mubr.bf16.gmra.mxu0 %v825
        %v1303 = vpop.f32.mrf.mxu0
        %v1304 = vadd.f32 %v499, %v1303
        %v1305 = vpop.f32.mrf.mxu0
        %v1306 = vpop.f32.mrf.mxu0
        %v1307 = vadd.f32 %v499, %v1306
        %v1308 = vpop.f32.mrf.mxu0
        %1309 = vmatprep.mubr.bf16.mxu0 0
        %1310 = vmatmul.mubr.bf16.gmra.mxu0 %v826
        %v1311 = vpop.f32.mrf.mxu0
        %v1312 = vadd.f32 %v499, %v1311
        %v1313 = vpop.f32.mrf.mxu0
        %v1314 = vpop.f32.mrf.mxu0
        %v1315 = vadd.f32 %v499, %v1314
        %v1316 = vpop.f32.mrf.mxu0
        %1317 = vmatprep.mubr.bf16.mxu0 0
        %1318 = vmatmul.mubr.bf16.gmra.mxu0 %v827
        %v1319 = vpop.f32.mrf.mxu0
        %v1320 = vadd.f32 %v499, %v1319
        %v1321 = vpop.f32.mrf.mxu0
        %v1322 = vpop.f32.mrf.mxu0
        %v1323 = vadd.f32 %v499, %v1322
        %v1324 = vpop.f32.mrf.mxu0
        %1325 = vmatprep.mubr.bf16.mxu0 0
        %1326 = vmatmul.mubr.bf16.gmra.mxu0 %v828
        %v1327 = vpop.f32.mrf.mxu0
        %v1328 = vadd.f32 %v499, %v1327
        %v1329 = vpop.f32.mrf.mxu0
        %v1330 = vpop.f32.mrf.mxu0
        %v1331 = vadd.f32 %v499, %v1330
        %v1332 = vpop.f32.mrf.mxu0
        %1333 = vmatprep.mubr.bf16.mxu0 0
        %1334 = vmatmul.mubr.bf16.gmra.mxu0 %v829
        %v1335 = vpop.f32.mrf.mxu0
        %v1336 = vadd.f32 %v499, %v1335
        %v1337 = vpop.f32.mrf.mxu0
        %v1338 = vpop.f32.mrf.mxu0
        %v1339 = vadd.f32 %v499, %v1338
        %v1340 = vpop.f32.mrf.mxu0
        %1341 = vmatprep.mubr.bf16.mxu0 0
        %1342 = vmatmul.mubr.bf16.gmra.mxu0 %v830
        %v1343 = vpop.f32.mrf.mxu0
        %v1344 = vadd.f32 %v499, %v1343
        %v1345 = vpop.f32.mrf.mxu0
        %v1346 = vpop.f32.mrf.mxu0
        %v1347 = vadd.f32 %v499, %v1346
        %v1348 = vpop.f32.mrf.mxu0
        %1349 = vmatprep.mubr.bf16.mxu0 0
        %1350 = vmatmul.mubr.bf16.gmra.mxu0 %v831
        %v1351 = vpop.f32.mrf.mxu0
        %v1352 = vadd.f32 %v499, %v1351
        %v1353 = vpop.f32.mrf.mxu0
        %v1354 = vpop.f32.mrf.mxu0
        %v1355 = vadd.f32 %v499, %v1354
        %v1356 = vpop.f32.mrf.mxu0
        %1357 = vmatprep.mubr.bf16.mxu0 0
        %1358 = vmatmul.mubr.bf16.gmra.mxu0 %v832
        %v1359 = vpop.f32.mrf.mxu0
        %v1360 = vadd.f32 %v499, %v1359
        %v1361 = vpop.f32.mrf.mxu0
        %v1362 = vpop.f32.mrf.mxu0
        %v1363 = vadd.f32 %v499, %v1362
        %v1364 = vpop.f32.mrf.mxu0
        %1365 = vmatprep.mubr.bf16.mxu0 0
        %1366 = vmatmul.mubr.bf16.gmra.mxu0 %v833
        %v1367 = vpop.f32.mrf.mxu0
        %v1368 = vadd.f32 %v499, %v1367
        %v1369 = vpop.f32.mrf.mxu0
        %v1370 = vpop.f32.mrf.mxu0
        %v1371 = vadd.f32 %v499, %v1370
        %v1372 = vpop.f32.mrf.mxu0
        %1373 = vmatprep.mubr.bf16.mxu0 0
        %1374 = vmatmul.mubr.bf16.gmra.mxu0 %v834
        %v1375 = vpop.f32.mrf.mxu0
        %v1376 = vadd.f32 %v499, %v1375
        %v1377 = vpop.f32.mrf.mxu0
        %v1378 = vpop.f32.mrf.mxu0
        %v1379 = vadd.f32 %v499, %v1378
        %v1380 = vpop.f32.mrf.mxu0
        %1381 = vmatprep.mubr.bf16.mxu0 0
        %1382 = vmatmul.mubr.bf16.gmra.mxu0 %v835
        %v1383 = vpop.f32.mrf.mxu0
        %v1384 = vadd.f32 %v499, %v1383
        %v1385 = vpop.f32.mrf.mxu0
        %v1386 = vpop.f32.mrf.mxu0
        %v1387 = vadd.f32 %v499, %v1386
        %v1388 = vpop.f32.mrf.mxu0
        %1389 = vmatprep.mubr.bf16.mxu0 0
        %1390 = vmatmul.mubr.bf16.gmra.mxu0 %v836
        %v1391 = vpop.f32.mrf.mxu0
        %v1392 = vadd.f32 %v499, %v1391
        %v1393 = vpop.f32.mrf.mxu0
        %v1394 = vpop.f32.mrf.mxu0
        %v1395 = vadd.f32 %v499, %v1394
        %v1396 = vpop.f32.mrf.mxu0
        %1397 = vmatprep.mubr.bf16.mxu0 0
        %1398 = vmatmul.mubr.bf16.gmra.mxu0 %v837
        %v1399 = vpop.f32.mrf.mxu0
        %v1400 = vadd.f32 %v499, %v1399
        %v1401 = vpop.f32.mrf.mxu0
        %v1402 = vpop.f32.mrf.mxu0
        %v1403 = vadd.f32 %v499, %v1402
        %v1404 = vpop.f32.mrf.mxu0
        %1405 = vmatprep.mubr.bf16.mxu0 0
        %1406 = vmatmul.mubr.bf16.gmra.mxu0 %v838
        %v1407 = vpop.f32.mrf.mxu0
        %v1408 = vadd.f32 %v499, %v1407
        %v1409 = vpop.f32.mrf.mxu0
        %v1410 = vpop.f32.mrf.mxu0
        %v1411 = vadd.f32 %v499, %v1410
        %v1412 = vpop.f32.mrf.mxu0
        %1413 = vmatprep.mubr.bf16.mxu0 0
        %1414 = vmatmul.mubr.bf16.gmra.mxu0 %v839
        %v1415 = vpop.f32.mrf.mxu0
        %v1416 = vadd.f32 %v499, %v1415
        %v1417 = vpop.f32.mrf.mxu0
        %v1418 = vpop.f32.mrf.mxu0
        %v1419 = vadd.f32 %v499, %v1418
        %v1420 = vpop.f32.mrf.mxu0
        %1421 = vmatprep.mubr.bf16.mxu0 0
        %1422 = vmatmul.mubr.bf16.gmra.mxu0 %v840
        %v1423 = vpop.f32.mrf.mxu0
        %v1424 = vadd.f32 %v499, %v1423
        %v1425 = vpop.f32.mrf.mxu0
        %v1426 = vpop.f32.mrf.mxu0
        %v1427 = vadd.f32 %v499, %v1426
        %v1428 = vpop.f32.mrf.mxu0
        %1429 = vmatprep.mubr.bf16.mxu0 0
        %1430 = vmatmul.mubr.bf16.gmra.mxu0 %v841
        %v1431 = vpop.f32.mrf.mxu0
        %v1432 = vadd.f32 %v499, %v1431
        %v1433 = vpop.f32.mrf.mxu0
        %v1434 = vpop.f32.mrf.mxu0
        %v1435 = vadd.f32 %v499, %v1434
        %v1436 = vpop.f32.mrf.mxu0
        %1437 = vmatprep.mubr.bf16.mxu0 0
        %1438 = vmatmul.mubr.bf16.gmra.mxu0 %v842
        %v1439 = vpop.f32.mrf.mxu0
        %v1440 = vadd.f32 %v499, %v1439
        %v1441 = vpop.f32.mrf.mxu0
        %v1442 = vpop.f32.mrf.mxu0
        %v1443 = vadd.f32 %v499, %v1442
        %v1444 = vpop.f32.mrf.mxu0
        %1445 = vmatprep.mubr.bf16.mxu0 0
        %1446 = vmatmul.mubr.bf16.gmra.mxu0 %v843
        %v1447 = vpop.f32.mrf.mxu0
        %v1448 = vadd.f32 %v499, %v1447
        %v1449 = vpop.f32.mrf.mxu0
        %v1450 = vpop.f32.mrf.mxu0
        %v1451 = vadd.f32 %v499, %v1450
        %v1452 = vpop.f32.mrf.mxu0
        %1453 = vmatprep.mubr.bf16.mxu0 0
        %1454 = vmatmul.mubr.bf16.gmra.mxu0 %v844
        %v1455 = vpop.f32.mrf.mxu0
        %v1456 = vadd.f32 %v499, %v1455
        %v1457 = vpop.f32.mrf.mxu0
        %v1458 = vpop.f32.mrf.mxu0
        %v1459 = vadd.f32 %v499, %v1458
        %v1460 = vpop.f32.mrf.mxu0
        %1461 = vmatprep.mubr.bf16.mxu0 0
        %1462 = vmatmul.mubr.bf16.gmra.mxu0 %v845
        %v1463 = vpop.f32.mrf.mxu0
        %v1464 = vadd.f32 %v499, %v1463
        %v1465 = vpop.f32.mrf.mxu0
        %v1466 = vpop.f32.mrf.mxu0
        %v1467 = vadd.f32 %v499, %v1466
        %v1468 = vpop.f32.mrf.mxu0
        %1469 = vmatprep.mubr.bf16.mxu0 0
        %1470 = vmatmul.mubr.bf16.gmra.mxu0 %v846
        %v1471 = vpop.f32.mrf.mxu0
        %v1472 = vadd.f32 %v499, %v1471
        %v1473 = vpop.f32.mrf.mxu0
        %v1474 = vpop.f32.mrf.mxu0
        %v1475 = vadd.f32 %v499, %v1474
        %v1476 = vpop.f32.mrf.mxu0
        %1477 = vmatprep.mubr.bf16.mxu0 0
        %1478 = vmatmul.mubr.bf16.gmra.mxu0 %v847
        %v1479 = vpop.f32.mrf.mxu0
        %v1480 = vadd.f32 %v499, %v1479
        %v1481 = vpop.f32.mrf.mxu0
        %v1482 = vpop.f32.mrf.mxu0
        %v1483 = vadd.f32 %v499, %v1482
        %v1484 = vpop.f32.mrf.mxu0
        %1485 = vmatprep.mubr.bf16.mxu0 0
        %1486 = vmatmul.mubr.bf16.gmra.mxu0 %v848
        %v1487 = vpop.f32.mrf.mxu0
        %v1488 = vadd.f32 %v499, %v1487
        %v1489 = vpop.f32.mrf.mxu0
        %v1490 = vpop.f32.mrf.mxu0
        %v1491 = vadd.f32 %v499, %v1490
        %v1492 = vpop.f32.mrf.mxu0
        %1493 = vmatprep.mubr.bf16.mxu0 0
        %1494 = vmatmul.mubr.bf16.gmra.mxu0 %v849
        %v1495 = vpop.f32.mrf.mxu0
        %v1496 = vadd.f32 %v499, %v1495
        %v1497 = vpop.f32.mrf.mxu0
        %v1498 = vpop.f32.mrf.mxu0
        %v1499 = vadd.f32 %v499, %v1498
        %v1500 = vpop.f32.mrf.mxu0
        %1501 = vmatprep.mubr.bf16.mxu0 0
        %1502 = vmatmul.mubr.bf16.gmra.mxu0 %v850
        %v1503 = vpop.f32.mrf.mxu0
        %v1504 = vadd.f32 %v499, %v1503
        %v1505 = vpop.f32.mrf.mxu0
        %v1506 = vpop.f32.mrf.mxu0
        %v1507 = vadd.f32 %v499, %v1506
        %v1508 = vpop.f32.mrf.mxu0
        %1509 = vmatprep.mubr.bf16.mxu0 0
        %1510 = vmatmul.mubr.bf16.gmra.mxu0 %v851
        %v1511 = vpop.f32.mrf.mxu0
        %v1512 = vadd.f32 %v499, %v1511
        %v1513 = vpop.f32.mrf.mxu0
        %v1514 = vpop.f32.mrf.mxu0
        %v1515 = vadd.f32 %v499, %v1514
        %v1516 = vpop.f32.mrf.mxu0
        %1517 = vmatprep.mubr.bf16.mxu0 0
        %1518 = vmatmul.mubr.bf16.gmra.mxu0 %v852
        %v1519 = vpop.f32.mrf.mxu0
        %v1520 = vadd.f32 %v499, %v1519
        %v1521 = vpop.f32.mrf.mxu0
        %v1522 = vpop.f32.mrf.mxu0
        %v1523 = vadd.f32 %v499, %v1522
        %v1524 = vpop.f32.mrf.mxu0
        %1525 = vmatprep.mubr.bf16.mxu0 0
        %1526 = vmatmul.mubr.bf16.gmra.mxu0 %v853
        %v1527 = vpop.f32.mrf.mxu0
        %v1528 = vadd.f32 %v499, %v1527
        %v1529 = vpop.f32.mrf.mxu0
        %v1530 = vpop.f32.mrf.mxu0
        %v1531 = vadd.f32 %v499, %v1530
        %v1532 = vpop.f32.mrf.mxu0
        %1533 = vmatprep.mubr.bf16.mxu0 0
        %1534 = vmatmul.mubr.bf16.gmra.mxu0 %v854
        %v1535 = vpop.f32.mrf.mxu0
        %v1536 = vadd.f32 %v499, %v1535
        %v1537 = vpop.f32.mrf.mxu0
        %v1538 = vpop.f32.mrf.mxu0
        %v1539 = vadd.f32 %v499, %v1538
        %v1540 = vpop.f32.mrf.mxu0
        %1541 = vmatprep.mubr.bf16.mxu0 0
        %1542 = vmatmul.mubr.bf16.gmra.mxu0 %v855
        %v1543 = vpop.f32.mrf.mxu0
        %v1544 = vadd.f32 %v499, %v1543
        %v1545 = vpop.f32.mrf.mxu0
        %v1546 = vpop.f32.mrf.mxu0
        %v1547 = vadd.f32 %v499, %v1546
        %v1548 = vpop.f32.mrf.mxu0
        %1549 = vmatprep.mubr.bf16.mxu0 0
        %1550 = vmatmul.mubr.bf16.gmra.mxu0 %v856
        %v1551 = vpop.f32.mrf.mxu0
        %v1552 = vadd.f32 %v499, %v1551
        %v1553 = vpop.f32.mrf.mxu0
        %v1554 = vpop.f32.mrf.mxu0
        %v1555 = vadd.f32 %v499, %v1554
        %v1556 = vpop.f32.mrf.mxu0
        %1557 = vmatprep.mubr.bf16.mxu0 0
        %1558 = vmatmul.mubr.bf16.gmra.mxu0 %v857
        %v1559 = vpop.f32.mrf.mxu0
        %v1560 = vadd.f32 %v499, %v1559
        %v1561 = vpop.f32.mrf.mxu0
        %v1562 = vpop.f32.mrf.mxu0
        %v1563 = vadd.f32 %v499, %v1562
        %v1564 = vpop.f32.mrf.mxu0
        %1565 = vmatprep.mubr.bf16.mxu0 0
        %1566 = vmatmul.mubr.bf16.gmra.mxu0 %v858
        %v1567 = vpop.f32.mrf.mxu0
        %v1568 = vadd.f32 %v499, %v1567
        %v1569 = vpop.f32.mrf.mxu0
        %v1570 = vpop.f32.mrf.mxu0
        %v1571 = vadd.f32 %v499, %v1570
        %v1572 = vpop.f32.mrf.mxu0
        %1573 = vmatprep.mubr.bf16.mxu0 0
        %1574 = vmatmul.mubr.bf16.gmra.mxu0 %v859
        %v1575 = vpop.f32.mrf.mxu0
        %v1576 = vadd.f32 %v499, %v1575
        %v1577 = vpop.f32.mrf.mxu0
        %v1578 = vpop.f32.mrf.mxu0
        %v1579 = vadd.f32 %v499, %v1578
        %v1580 = vpop.f32.mrf.mxu0
        %1581 = vmatprep.mubr.bf16.mxu0 0
        %1582 = vmatmul.mubr.bf16.gmra.mxu0 %v860
        %v1583 = vpop.f32.mrf.mxu0
        %v1584 = vadd.f32 %v499, %v1583
        %v1585 = vpop.f32.mrf.mxu0
        %v1586 = vpop.f32.mrf.mxu0
        %v1587 = vadd.f32 %v499, %v1586
        %v1588 = vpop.f32.mrf.mxu0
        %1589 = vdwg.mxu0
        %v1590 = vmax.f32 %v1016, 0.0
        %v1591 = vmax.f32 %v1019, 0.0
        %v1592 = vmax.f32 %v1024, 0.0
        %v1593 = vmax.f32 %v1027, 0.0
        %v1594 = vmax.f32 %v1032, 0.0
        %v1595 = vmax.f32 %v1035, 0.0
        %v1596 = vmax.f32 %v1040, 0.0
        %v1597 = vmax.f32 %v1043, 0.0
        %v1598 = vmax.f32 %v1048, 0.0
        %v1599 = vmax.f32 %v1051, 0.0
        %v1600 = vmax.f32 %v1056, 0.0
        %v1601 = vmax.f32 %v1059, 0.0
        %v1602 = vmax.f32 %v1064, 0.0
        %v1603 = vmax.f32 %v1067, 0.0
        %v1604 = vmax.f32 %v1072, 0.0
        %v1605 = vmax.f32 %v1075, 0.0
        %v1606 = vmax.f32 %v1080, 0.0
        %v1607 = vmax.f32 %v1083, 0.0
        %v1608 = vmax.f32 %v1088, 0.0
        %v1609 = vmax.f32 %v1091, 0.0
        %v1610 = vmax.f32 %v1096, 0.0
        %v1611 = vmax.f32 %v1099, 0.0
        %v1612 = vmax.f32 %v1104, 0.0
        %v1613 = vmax.f32 %v1107, 0.0
        %v1614 = vmax.f32 %v1112, 0.0
        %v1615 = vmax.f32 %v1115, 0.0
        %v1616 = vmax.f32 %v1120, 0.0
        %v1617 = vmax.f32 %v1123, 0.0
        %v1618 = vmax.f32 %v1128, 0.0
        %v1619 = vmax.f32 %v1131, 0.0
        %v1620 = vmax.f32 %v1136, 0.0
        %v1621 = vmax.f32 %v1139, 0.0
        %v1622 = vmax.f32 %v1144, 0.0
        %v1623 = vmax.f32 %v1147, 0.0
        %v1624 = vmax.f32 %v1152, 0.0
        %v1625 = vmax.f32 %v1155, 0.0
        %v1626 = vmax.f32 %v1160, 0.0
        %v1627 = vmax.f32 %v1163, 0.0
        %v1628 = vmax.f32 %v1168, 0.0
        %v1629 = vmax.f32 %v1171, 0.0
        %v1630 = vmax.f32 %v1176, 0.0
        %v1631 = vmax.f32 %v1179, 0.0
        %v1632 = vmax.f32 %v1184, 0.0
        %v1633 = vmax.f32 %v1187, 0.0
        %v1634 = vmax.f32 %v1192, 0.0
        %v1635 = vmax.f32 %v1195, 0.0
        %v1636 = vmax.f32 %v1200, 0.0
        %v1637 = vmax.f32 %v1203, 0.0
        %v1638 = vmax.f32 %v1208, 0.0
        %v1639 = vmax.f32 %v1211, 0.0
        %v1640 = vmax.f32 %v1216, 0.0
        %v1641 = vmax.f32 %v1219, 0.0
        %v1642 = vmax.f32 %v1224, 0.0
        %v1643 = vmax.f32 %v1227, 0.0
        %v1644 = vmax.f32 %v1232, 0.0
        %v1645 = vmax.f32 %v1235, 0.0
        %v1646 = vmax.f32 %v1240, 0.0
        %v1647 = vmax.f32 %v1243, 0.0
        %v1648 = vmax.f32 %v1248, 0.0
        %v1649 = vmax.f32 %v1251, 0.0
        %v1650 = vmax.f32 %v1256, 0.0
        %v1651 = vmax.f32 %v1259, 0.0
        %v1652 = vmax.f32 %v1264, 0.0
        %v1653 = vmax.f32 %v1267, 0.0
        %v1654 = vmax.f32 %v1272, 0.0
        %v1655 = vmax.f32 %v1275, 0.0
        %v1656 = vmax.f32 %v1280, 0.0
        %v1657 = vmax.f32 %v1283, 0.0
        %v1658 = vmax.f32 %v1288, 0.0
        %v1659 = vmax.f32 %v1291, 0.0
        %v1660 = vmax.f32 %v1296, 0.0
        %v1661 = vmax.f32 %v1299, 0.0
        %v1662 = vmax.f32 %v1304, 0.0
        %v1663 = vmax.f32 %v1307, 0.0
        %v1664 = vmax.f32 %v1312, 0.0
        %v1665 = vmax.f32 %v1315, 0.0
        %v1666 = vmax.f32 %v1320, 0.0
        %v1667 = vmax.f32 %v1323, 0.0
        %v1668 = vmax.f32 %v1328, 0.0
        %v1669 = vmax.f32 %v1331, 0.0
        %v1670 = vmax.f32 %v1336, 0.0
        %v1671 = vmax.f32 %v1339, 0.0
        %v1672 = vmax.f32 %v1344, 0.0
        %v1673 = vmax.f32 %v1347, 0.0
        %v1674 = vmax.f32 %v1352, 0.0
        %v1675 = vmax.f32 %v1355, 0.0
        %v1676 = vmax.f32 %v1360, 0.0
        %v1677 = vmax.f32 %v1363, 0.0
        %v1678 = vmax.f32 %v1368, 0.0
        %v1679 = vmax.f32 %v1371, 0.0
        %v1680 = vmax.f32 %v1376, 0.0
        %v1681 = vmax.f32 %v1379, 0.0
        %v1682 = vmax.f32 %v1384, 0.0
        %v1683 = vmax.f32 %v1387, 0.0
        %v1684 = vmax.f32 %v1392, 0.0
        %v1685 = vmax.f32 %v1395, 0.0
        %v1686 = vmax.f32 %v1400, 0.0
        %v1687 = vmax.f32 %v1403, 0.0
        %v1688 = vmax.f32 %v1408, 0.0
        %v1689 = vmax.f32 %v1411, 0.0
        %v1690 = vmax.f32 %v1416, 0.0
        %v1691 = vmax.f32 %v1419, 0.0
        %v1692 = vmax.f32 %v1424, 0.0
        %v1693 = vmax.f32 %v1427, 0.0
        %v1694 = vmax.f32 %v1432, 0.0
        %v1695 = vmax.f32 %v1435, 0.0
        %v1696 = vmax.f32 %v1440, 0.0
        %v1697 = vmax.f32 %v1443, 0.0
        %v1698 = vmax.f32 %v1448, 0.0
        %v1699 = vmax.f32 %v1451, 0.0
        %v1700 = vmax.f32 %v1456, 0.0
        %v1701 = vmax.f32 %v1459, 0.0
        %v1702 = vmax.f32 %v1464, 0.0
        %v1703 = vmax.f32 %v1467, 0.0
        %v1704 = vmax.f32 %v1472, 0.0
        %v1705 = vmax.f32 %v1475, 0.0
        %v1706 = vmax.f32 %v1480, 0.0
        %v1707 = vmax.f32 %v1483, 0.0
        %v1708 = vmax.f32 %v1488, 0.0
        %v1709 = vmax.f32 %v1491, 0.0
        %v1710 = vmax.f32 %v1496, 0.0
        %v1711 = vmax.f32 %v1499, 0.0
        %v1712 = vmax.f32 %v1504, 0.0
        %v1713 = vmax.f32 %v1507, 0.0
        %v1714 = vmax.f32 %v1512, 0.0
        %v1715 = vmax.f32 %v1515, 0.0
        %v1716 = vmax.f32 %v1520, 0.0
        %v1717 = vmax.f32 %v1523, 0.0
        %v1718 = vmax.f32 %v1528, 0.0
        %v1719 = vmax.f32 %v1531, 0.0
        %v1720 = vmax.f32 %v1536, 0.0
        %v1721 = vmax.f32 %v1539, 0.0
        %v1722 = vmax.f32 %v1544, 0.0
        %v1723 = vmax.f32 %v1547, 0.0
        %v1724 = vmax.f32 %v1552, 0.0
        %v1725 = vmax.f32 %v1555, 0.0
        %v1726 = vmax.f32 %v1560, 0.0
        %v1727 = vmax.f32 %v1563, 0.0
        %v1728 = vmax.f32 %v1568, 0.0
        %v1729 = vmax.f32 %v1571, 0.0
        %v1730 = vmax.f32 %v1576, 0.0
        %v1731 = vmax.f32 %v1579, 0.0
        %v1732 = vmax.f32 %v1584, 0.0
        %v1733 = vmax.f32 %v1587, 0.0
        %1878 = vrot.lane.b32.xlu0 %v1590, 96
        %v1879 = vpop.permute.xlu0 %1878
        %1880 = vrot.lane.b32.xlu0 %v1591, 96
        %v1881 = vpop.permute.xlu0 %1880
        %1882 = vrot.lane.b32.xlu0 %v1592, 96
        %v1883 = vpop.permute.xlu0 %1882
        %1884 = vrot.lane.b32.xlu0 %v1593, 96
        %v1885 = vpop.permute.xlu0 %1884
        %1886 = vrot.lane.b32.xlu0 %v1594, 96
        %v1887 = vpop.permute.xlu0 %1886
        %1888 = vrot.lane.b32.xlu0 %v1595, 96
        %v1889 = vpop.permute.xlu0 %1888
        %1890 = vrot.lane.b32.xlu0 %v1596, 96
        %v1891 = vpop.permute.xlu0 %1890
        %1892 = vrot.lane.b32.xlu0 %v1597, 96
        %v1893 = vpop.permute.xlu0 %1892
        %1894 = vrot.lane.b32.xlu0 %v1598, 96
        %v1895 = vpop.permute.xlu0 %1894
        %1896 = vrot.lane.b32.xlu0 %v1599, 96
        %v1897 = vpop.permute.xlu0 %1896
        %1898 = vrot.lane.b32.xlu0 %v1600, 96
        %v1899 = vpop.permute.xlu0 %1898
        %1900 = vrot.lane.b32.xlu0 %v1601, 96
        %v1901 = vpop.permute.xlu0 %1900
        %1902 = vrot.lane.b32.xlu0 %v1602, 96
        %v1903 = vpop.permute.xlu0 %1902
        %1904 = vrot.lane.b32.xlu0 %v1603, 96
        %v1905 = vpop.permute.xlu0 %1904
        %1906 = vrot.lane.b32.xlu0 %v1604, 96
        %v1907 = vpop.permute.xlu0 %1906
        %1908 = vrot.lane.b32.xlu0 %v1605, 96
        %v1909 = vpop.permute.xlu0 %1908
        %1910 = vrot.lane.b32.xlu0 %v1606, 96
        %v1911 = vpop.permute.xlu0 %1910
        %1912 = vrot.lane.b32.xlu0 %v1607, 96
        %v1913 = vpop.permute.xlu0 %1912
        %1914 = vrot.lane.b32.xlu0 %v1608, 96
        %v1915 = vpop.permute.xlu0 %1914
        %1916 = vrot.lane.b32.xlu0 %v1609, 96
        %v1917 = vpop.permute.xlu0 %1916
        %1918 = vrot.lane.b32.xlu0 %v1610, 96
        %v1919 = vpop.permute.xlu0 %1918
        %1920 = vrot.lane.b32.xlu0 %v1611, 96
        %v1921 = vpop.permute.xlu0 %1920
        %1922 = vrot.lane.b32.xlu0 %v1612, 96
        %v1923 = vpop.permute.xlu0 %1922
        %1924 = vrot.lane.b32.xlu0 %v1613, 96
        %v1925 = vpop.permute.xlu0 %1924
        %1926 = vrot.lane.b32.xlu0 %v1614, 96
        %v1927 = vpop.permute.xlu0 %1926
        %1928 = vrot.lane.b32.xlu0 %v1615, 96
        %v1929 = vpop.permute.xlu0 %1928
        %1930 = vrot.lane.b32.xlu0 %v1616, 96
        %v1931 = vpop.permute.xlu0 %1930
        %1932 = vrot.lane.b32.xlu0 %v1617, 96
        %v1933 = vpop.permute.xlu0 %1932
        %1934 = vrot.lane.b32.xlu0 %v1618, 96
        %v1935 = vpop.permute.xlu0 %1934
        %1936 = vrot.lane.b32.xlu0 %v1619, 96
        %v1937 = vpop.permute.xlu0 %1936
        %1938 = vrot.lane.b32.xlu0 %v1620, 96
        %v1939 = vpop.permute.xlu0 %1938
        %1940 = vrot.lane.b32.xlu0 %v1621, 96
        %v1941 = vpop.permute.xlu0 %1940
        %1942 = vrot.lane.b32.xlu0 %v1622, 96
        %v1943 = vpop.permute.xlu0 %1942
        %1944 = vrot.lane.b32.xlu0 %v1623, 96
        %v1945 = vpop.permute.xlu0 %1944
        %1946 = vrot.lane.b32.xlu0 %v1624, 96
        %v1947 = vpop.permute.xlu0 %1946
        %1948 = vrot.lane.b32.xlu0 %v1625, 96
        %v1949 = vpop.permute.xlu0 %1948
        %1950 = vrot.lane.b32.xlu0 %v1626, 96
        %v1951 = vpop.permute.xlu0 %1950
        %1952 = vrot.lane.b32.xlu0 %v1627, 96
        %v1953 = vpop.permute.xlu0 %1952
        %1954 = vrot.lane.b32.xlu0 %v1628, 96
        %v1955 = vpop.permute.xlu0 %1954
        %1956 = vrot.lane.b32.xlu0 %v1629, 96
        %v1957 = vpop.permute.xlu0 %1956
        %1958 = vrot.lane.b32.xlu0 %v1630, 96
        %v1959 = vpop.permute.xlu0 %1958
        %1960 = vrot.lane.b32.xlu0 %v1631, 96
        %v1961 = vpop.permute.xlu0 %1960
        %1962 = vrot.lane.b32.xlu0 %v1632, 96
        %v1963 = vpop.permute.xlu0 %1962
        %1964 = vrot.lane.b32.xlu0 %v1633, 96
        %v1965 = vpop.permute.xlu0 %1964
        %1966 = vrot.lane.b32.xlu0 %v1634, 96
        %v1967 = vpop.permute.xlu0 %1966
        %1968 = vrot.lane.b32.xlu0 %v1635, 96
        %v1969 = vpop.permute.xlu0 %1968
        %1970 = vrot.lane.b32.xlu0 %v1636, 96
        %v1971 = vpop.permute.xlu0 %1970
        %1972 = vrot.lane.b32.xlu0 %v1637, 96
        %v1973 = vpop.permute.xlu0 %1972
        %1974 = vrot.lane.b32.xlu0 %v1638, 96
        %v1975 = vpop.permute.xlu0 %1974
        %1976 = vrot.lane.b32.xlu0 %v1639, 96
        %v1977 = vpop.permute.xlu0 %1976
        %1978 = vrot.lane.b32.xlu0 %v1640, 96
        %v1979 = vpop.permute.xlu0 %1978
        %1980 = vrot.lane.b32.xlu0 %v1641, 96
        %v1981 = vpop.permute.xlu0 %1980
        %1982 = vrot.lane.b32.xlu0 %v1642, 96
        %v1983 = vpop.permute.xlu0 %1982
        %1984 = vrot.lane.b32.xlu0 %v1643, 96
        %v1985 = vpop.permute.xlu0 %1984
        %1986 = vrot.lane.b32.xlu0 %v1644, 96
        %v1987 = vpop.permute.xlu0 %1986
        %1988 = vrot.lane.b32.xlu0 %v1645, 96
        %v1989 = vpop.permute.xlu0 %1988
        %1990 = vrot.lane.b32.xlu0 %v1646, 96
        %v1991 = vpop.permute.xlu0 %1990
        %1992 = vrot.lane.b32.xlu0 %v1647, 96
        %v1993 = vpop.permute.xlu0 %1992
        %1994 = vrot.lane.b32.xlu0 %v1648, 96
        %v1995 = vpop.permute.xlu0 %1994
        %1996 = vrot.lane.b32.xlu0 %v1649, 96
        %v1997 = vpop.permute.xlu0 %1996
        %1998 = vrot.lane.b32.xlu0 %v1650, 96
        %v1999 = vpop.permute.xlu0 %1998
        %2000 = vrot.lane.b32.xlu0 %v1651, 96
        %v2001 = vpop.permute.xlu0 %2000
        %2002 = vrot.lane.b32.xlu0 %v1652, 96
        %v2003 = vpop.permute.xlu0 %2002
        %2004 = vrot.lane.b32.xlu0 %v1653, 96
        %v2005 = vpop.permute.xlu0 %2004
        %2006 = vrot.lane.b32.xlu0 %v1654, 96
        %v2007 = vpop.permute.xlu0 %2006
        %2008 = vrot.lane.b32.xlu0 %v1655, 96
        %v2009 = vpop.permute.xlu0 %2008
        %2010 = vrot.lane.b32.xlu0 %v1656, 96
        %v2011 = vpop.permute.xlu0 %2010
        %2012 = vrot.lane.b32.xlu0 %v1657, 96
        %v2013 = vpop.permute.xlu0 %2012
        %2014 = vrot.lane.b32.xlu0 %v1658, 96
        %v2015 = vpop.permute.xlu0 %2014
        %2016 = vrot.lane.b32.xlu0 %v1659, 96
        %v2017 = vpop.permute.xlu0 %2016
        %2018 = vrot.lane.b32.xlu0 %v1660, 96
        %v2019 = vpop.permute.xlu0 %2018
        %2020 = vrot.lane.b32.xlu0 %v1661, 96
        %v2021 = vpop.permute.xlu0 %2020
        %2022 = vrot.lane.b32.xlu0 %v1662, 96
        %v2023 = vpop.permute.xlu0 %2022
        %2024 = vrot.lane.b32.xlu0 %v1663, 96
        %v2025 = vpop.permute.xlu0 %2024
        %2026 = vrot.lane.b32.xlu0 %v1664, 96
        %v2027 = vpop.permute.xlu0 %2026
        %2028 = vrot.lane.b32.xlu0 %v1665, 96
        %v2029 = vpop.permute.xlu0 %2028
        %2030 = vrot.lane.b32.xlu0 %v1666, 96
        %v2031 = vpop.permute.xlu0 %2030
        %2032 = vrot.lane.b32.xlu0 %v1667, 96
        %v2033 = vpop.permute.xlu0 %2032
        %2034 = vrot.lane.b32.xlu0 %v1668, 96
        %v2035 = vpop.permute.xlu0 %2034
        %2036 = vrot.lane.b32.xlu0 %v1669, 96
        %v2037 = vpop.permute.xlu0 %2036
        %2038 = vrot.lane.b32.xlu0 %v1670, 96
        %v2039 = vpop.permute.xlu0 %2038
        %2040 = vrot.lane.b32.xlu0 %v1671, 96
        %v2041 = vpop.permute.xlu0 %2040
        %2042 = vrot.lane.b32.xlu0 %v1672, 96
        %v2043 = vpop.permute.xlu0 %2042
        %2044 = vrot.lane.b32.xlu0 %v1673, 96
        %v2045 = vpop.permute.xlu0 %2044
        %2046 = vrot.lane.b32.xlu0 %v1674, 96
        %v2047 = vpop.permute.xlu0 %2046
        %2048 = vrot.lane.b32.xlu0 %v1675, 96
        %v2049 = vpop.permute.xlu0 %2048
        %2050 = vrot.lane.b32.xlu0 %v1676, 96
        %v2051 = vpop.permute.xlu0 %2050
        %2052 = vrot.lane.b32.xlu0 %v1677, 96
        %v2053 = vpop.permute.xlu0 %2052
        %2054 = vrot.lane.b32.xlu0 %v1678, 96
        %v2055 = vpop.permute.xlu0 %2054
        %2056 = vrot.lane.b32.xlu0 %v1679, 96
        %v2057 = vpop.permute.xlu0 %2056
        %2058 = vrot.lane.b32.xlu0 %v1680, 96
        %v2059 = vpop.permute.xlu0 %2058
        %2060 = vrot.lane.b32.xlu0 %v1681, 96
        %v2061 = vpop.permute.xlu0 %2060
        %2062 = vrot.lane.b32.xlu0 %v1682, 96
        %v2063 = vpop.permute.xlu0 %2062
        %2064 = vrot.lane.b32.xlu0 %v1683, 96
        %v2065 = vpop.permute.xlu0 %2064
        %2066 = vrot.lane.b32.xlu0 %v1684, 96
        %v2067 = vpop.permute.xlu0 %2066
        %2068 = vrot.lane.b32.xlu0 %v1685, 96
        %v2069 = vpop.permute.xlu0 %2068
        %2070 = vrot.lane.b32.xlu0 %v1686, 96
        %v2071 = vpop.permute.xlu0 %2070
        %2072 = vrot.lane.b32.xlu0 %v1687, 96
        %v2073 = vpop.permute.xlu0 %2072
        %2074 = vrot.lane.b32.xlu0 %v1688, 96
        %v2075 = vpop.permute.xlu0 %2074
        %2076 = vrot.lane.b32.xlu0 %v1689, 96
        %v2077 = vpop.permute.xlu0 %2076
        %2078 = vrot.lane.b32.xlu0 %v1690, 96
        %v2079 = vpop.permute.xlu0 %2078
        %2080 = vrot.lane.b32.xlu0 %v1691, 96
        %v2081 = vpop.permute.xlu0 %2080
        %2082 = vrot.lane.b32.xlu0 %v1692, 96
        %v2083 = vpop.permute.xlu0 %2082
        %2084 = vrot.lane.b32.xlu0 %v1693, 96
        %v2085 = vpop.permute.xlu0 %2084
        %2086 = vrot.lane.b32.xlu0 %v1694, 96
        %v2087 = vpop.permute.xlu0 %2086
        %2088 = vrot.lane.b32.xlu0 %v1695, 96
        %v2089 = vpop.permute.xlu0 %2088
        %2090 = vrot.lane.b32.xlu0 %v1696, 96
        %v2091 = vpop.permute.xlu0 %2090
        %2092 = vrot.lane.b32.xlu0 %v1697, 96
        %v2093 = vpop.permute.xlu0 %2092
        %2094 = vrot.lane.b32.xlu0 %v1698, 96
        %v2095 = vpop.permute.xlu0 %2094
        %2096 = vrot.lane.b32.xlu0 %v1699, 96
        %v2097 = vpop.permute.xlu0 %2096
        %2098 = vrot.lane.b32.xlu0 %v1700, 96
        %v2099 = vpop.permute.xlu0 %2098
        %2100 = vrot.lane.b32.xlu0 %v1701, 96
        %v2101 = vpop.permute.xlu0 %2100
        %2102 = vrot.lane.b32.xlu0 %v1702, 96
        %v2103 = vpop.permute.xlu0 %2102
        %2104 = vrot.lane.b32.xlu0 %v1703, 96
        %v2105 = vpop.permute.xlu0 %2104
        %2106 = vrot.lane.b32.xlu0 %v1704, 96
        %v2107 = vpop.permute.xlu0 %2106
        %2108 = vrot.lane.b32.xlu0 %v1705, 96
        %v2109 = vpop.permute.xlu0 %2108
        %2110 = vrot.lane.b32.xlu0 %v1706, 96
        %v2111 = vpop.permute.xlu0 %2110
        %2112 = vrot.lane.b32.xlu0 %v1707, 96
        %v2113 = vpop.permute.xlu0 %2112
        %2114 = vrot.lane.b32.xlu0 %v1708, 96
        %v2115 = vpop.permute.xlu0 %2114
        %2116 = vrot.lane.b32.xlu0 %v1709, 96
        %v2117 = vpop.permute.xlu0 %2116
        %2118 = vrot.lane.b32.xlu0 %v1710, 96
        %v2119 = vpop.permute.xlu0 %2118
        %2120 = vrot.lane.b32.xlu0 %v1711, 96
        %v2121 = vpop.permute.xlu0 %2120
        %2122 = vrot.lane.b32.xlu0 %v1712, 96
        %v2123 = vpop.permute.xlu0 %2122
        %2124 = vrot.lane.b32.xlu0 %v1713, 96
        %v2125 = vpop.permute.xlu0 %2124
        %2126 = vrot.lane.b32.xlu0 %v1714, 96
        %v2127 = vpop.permute.xlu0 %2126
        %2128 = vrot.lane.b32.xlu0 %v1715, 96
        %v2129 = vpop.permute.xlu0 %2128
        %2130 = vrot.lane.b32.xlu0 %v1716, 96
        %v2131 = vpop.permute.xlu0 %2130
        %2132 = vrot.lane.b32.xlu0 %v1717, 96
        %v2133 = vpop.permute.xlu0 %2132
        %2134 = vrot.lane.b32.xlu0 %v1718, 96
        %v2135 = vpop.permute.xlu0 %2134
        %2136 = vrot.lane.b32.xlu0 %v1719, 96
        %v2137 = vpop.permute.xlu0 %2136
        %2138 = vrot.lane.b32.xlu0 %v1720, 96
        %v2139 = vpop.permute.xlu0 %2138
        %2140 = vrot.lane.b32.xlu0 %v1721, 96
        %v2141 = vpop.permute.xlu0 %2140
        %2142 = vrot.lane.b32.xlu0 %v1722, 96
        %v2143 = vpop.permute.xlu0 %2142
        %2144 = vrot.lane.b32.xlu0 %v1723, 96
        %v2145 = vpop.permute.xlu0 %2144
        %2146 = vrot.lane.b32.xlu0 %v1724, 96
        %v2147 = vpop.permute.xlu0 %2146
        %2148 = vrot.lane.b32.xlu0 %v1725, 96
        %v2149 = vpop.permute.xlu0 %2148
        %2150 = vrot.lane.b32.xlu0 %v1726, 96
        %v2151 = vpop.permute.xlu0 %2150
        %2152 = vrot.lane.b32.xlu0 %v1727, 96
        %v2153 = vpop.permute.xlu0 %2152
        %2154 = vrot.lane.b32.xlu0 %v1728, 96
        %v2155 = vpop.permute.xlu0 %2154
        %2156 = vrot.lane.b32.xlu0 %v1729, 96
        %v2157 = vpop.permute.xlu0 %2156
        %2158 = vrot.lane.b32.xlu0 %v1730, 96
        %v2159 = vpop.permute.xlu0 %2158
        %2160 = vrot.lane.b32.xlu0 %v1731, 96
        %v2161 = vpop.permute.xlu0 %2160
        %2162 = vrot.lane.b32.xlu0 %v1732, 96
        %v2163 = vpop.permute.xlu0 %2162
        %2164 = vrot.lane.b32.xlu0 %v1733, 96
        %v2165 = vpop.permute.xlu0 %2164
        %v2310 = vmax.f32 %v1590, %v1879
        %v2311 = vmax.f32 %v1591, %v1881
        %v2312 = vmax.f32 %v1592, %v1883
        %v2313 = vmax.f32 %v1593, %v1885
        %v2314 = vmax.f32 %v1594, %v1887
        %v2315 = vmax.f32 %v1595, %v1889
        %v2316 = vmax.f32 %v1596, %v1891
        %v2317 = vmax.f32 %v1597, %v1893
        %v2318 = vmax.f32 %v1598, %v1895
        %v2319 = vmax.f32 %v1599, %v1897
        %v2320 = vmax.f32 %v1600, %v1899
        %v2321 = vmax.f32 %v1601, %v1901
        %v2322 = vmax.f32 %v1602, %v1903
        %v2323 = vmax.f32 %v1603, %v1905
        %v2324 = vmax.f32 %v1604, %v1907
        %v2325 = vmax.f32 %v1605, %v1909
        %v2326 = vmax.f32 %v1606, %v1911
        %v2327 = vmax.f32 %v1607, %v1913
        %v2328 = vmax.f32 %v1608, %v1915
        %v2329 = vmax.f32 %v1609, %v1917
        %v2330 = vmax.f32 %v1610, %v1919
        %v2331 = vmax.f32 %v1611, %v1921
        %v2332 = vmax.f32 %v1612, %v1923
        %v2333 = vmax.f32 %v1613, %v1925
        %v2334 = vmax.f32 %v1614, %v1927
        %v2335 = vmax.f32 %v1615, %v1929
        %v2336 = vmax.f32 %v1616, %v1931
        %v2337 = vmax.f32 %v1617, %v1933
        %v2338 = vmax.f32 %v1618, %v1935
        %v2339 = vmax.f32 %v1619, %v1937
        %v2340 = vmax.f32 %v1620, %v1939
        %v2341 = vmax.f32 %v1621, %v1941
        %v2342 = vmax.f32 %v1622, %v1943
        %v2343 = vmax.f32 %v1623, %v1945
        %v2344 = vmax.f32 %v1624, %v1947
        %v2345 = vmax.f32 %v1625, %v1949
        %v2346 = vmax.f32 %v1626, %v1951
        %v2347 = vmax.f32 %v1627, %v1953
        %v2348 = vmax.f32 %v1628, %v1955
        %v2349 = vmax.f32 %v1629, %v1957
        %v2350 = vmax.f32 %v1630, %v1959
        %v2351 = vmax.f32 %v1631, %v1961
        %v2352 = vmax.f32 %v1632, %v1963
        %v2353 = vmax.f32 %v1633, %v1965
        %v2354 = vmax.f32 %v1634, %v1967
        %v2355 = vmax.f32 %v1635, %v1969
        %v2356 = vmax.f32 %v1636, %v1971
        %v2357 = vmax.f32 %v1637, %v1973
        %v2358 = vmax.f32 %v1638, %v1975
        %v2359 = vmax.f32 %v1639, %v1977
        %v2360 = vmax.f32 %v1640, %v1979
        %v2361 = vmax.f32 %v1641, %v1981
        %v2362 = vmax.f32 %v1642, %v1983
        %v2363 = vmax.f32 %v1643, %v1985
        %v2364 = vmax.f32 %v1644, %v1987
        %v2365 = vmax.f32 %v1645, %v1989
        %v2366 = vmax.f32 %v1646, %v1991
        %v2367 = vmax.f32 %v1647, %v1993
        %v2368 = vmax.f32 %v1648, %v1995
        %v2369 = vmax.f32 %v1649, %v1997
        %v2370 = vmax.f32 %v1650, %v1999
        %v2371 = vmax.f32 %v1651, %v2001
        %v2372 = vmax.f32 %v1652, %v2003
        %v2373 = vmax.f32 %v1653, %v2005
        %v2374 = vmax.f32 %v1654, %v2007
        %v2375 = vmax.f32 %v1655, %v2009
        %v2376 = vmax.f32 %v1656, %v2011
        %v2377 = vmax.f32 %v1657, %v2013
        %v2378 = vmax.f32 %v1658, %v2015
        %v2379 = vmax.f32 %v1659, %v2017
        %v2380 = vmax.f32 %v1660, %v2019
        %v2381 = vmax.f32 %v1661, %v2021
        %v2382 = vmax.f32 %v1662, %v2023
        %v2383 = vmax.f32 %v1663, %v2025
        %v2384 = vmax.f32 %v1664, %v2027
        %v2385 = vmax.f32 %v1665, %v2029
        %v2386 = vmax.f32 %v1666, %v2031
        %v2387 = vmax.f32 %v1667, %v2033
        %v2388 = vmax.f32 %v1668, %v2035
        %v2389 = vmax.f32 %v1669, %v2037
        %v2390 = vmax.f32 %v1670, %v2039
        %v2391 = vmax.f32 %v1671, %v2041
        %v2392 = vmax.f32 %v1672, %v2043
        %v2393 = vmax.f32 %v1673, %v2045
        %v2394 = vmax.f32 %v1674, %v2047
        %v2395 = vmax.f32 %v1675, %v2049
        %v2396 = vmax.f32 %v1676, %v2051
        %v2397 = vmax.f32 %v1677, %v2053
        %v2398 = vmax.f32 %v1678, %v2055
        %v2399 = vmax.f32 %v1679, %v2057
        %v2400 = vmax.f32 %v1680, %v2059
        %v2401 = vmax.f32 %v1681, %v2061
        %v2402 = vmax.f32 %v1682, %v2063
        %v2403 = vmax.f32 %v1683, %v2065
        %v2404 = vmax.f32 %v1684, %v2067
        %v2405 = vmax.f32 %v1685, %v2069
        %v2406 = vmax.f32 %v1686, %v2071
        %v2407 = vmax.f32 %v1687, %v2073
        %v2408 = vmax.f32 %v1688, %v2075
        %v2409 = vmax.f32 %v1689, %v2077
        %v2410 = vmax.f32 %v1690, %v2079
        %v2411 = vmax.f32 %v1691, %v2081
        %v2412 = vmax.f32 %v1692, %v2083
        %v2413 = vmax.f32 %v1693, %v2085
        %v2414 = vmax.f32 %v1694, %v2087
        %v2415 = vmax.f32 %v1695, %v2089
        %v2416 = vmax.f32 %v1696, %v2091
        %v2417 = vmax.f32 %v1697, %v2093
        %v2418 = vmax.f32 %v1698, %v2095
        %v2419 = vmax.f32 %v1699, %v2097
        %v2420 = vmax.f32 %v1700, %v2099
        %v2421 = vmax.f32 %v1701, %v2101
        %v2422 = vmax.f32 %v1702, %v2103
        %v2423 = vmax.f32 %v1703, %v2105
        %v2424 = vmax.f32 %v1704, %v2107
        %v2425 = vmax.f32 %v1705, %v2109
        %v2426 = vmax.f32 %v1706, %v2111
        %v2427 = vmax.f32 %v1707, %v2113
        %v2428 = vmax.f32 %v1708, %v2115
        %v2429 = vmax.f32 %v1709, %v2117
        %v2430 = vmax.f32 %v1710, %v2119
        %v2431 = vmax.f32 %v1711, %v2121
        %v2432 = vmax.f32 %v1712, %v2123
        %v2433 = vmax.f32 %v1713, %v2125
        %v2434 = vmax.f32 %v1714, %v2127
        %v2435 = vmax.f32 %v1715, %v2129
        %v2436 = vmax.f32 %v1716, %v2131
        %v2437 = vmax.f32 %v1717, %v2133
        %v2438 = vmax.f32 %v1718, %v2135
        %v2439 = vmax.f32 %v1719, %v2137
        %v2440 = vmax.f32 %v1720, %v2139
        %v2441 = vmax.f32 %v1721, %v2141
        %v2442 = vmax.f32 %v1722, %v2143
        %v2443 = vmax.f32 %v1723, %v2145
        %v2444 = vmax.f32 %v1724, %v2147
        %v2445 = vmax.f32 %v1725, %v2149
        %v2446 = vmax.f32 %v1726, %v2151
        %v2447 = vmax.f32 %v1727, %v2153
        %v2448 = vmax.f32 %v1728, %v2155
        %v2449 = vmax.f32 %v1729, %v2157
        %v2450 = vmax.f32 %v1730, %v2159
        %v2451 = vmax.f32 %v1731, %v2161
        %v2452 = vmax.f32 %v1732, %v2163
        %v2453 = vmax.f32 %v1733, %v2165
        %2598 = vrot.lane.b32.xlu0 %v2310, 64
        %v2599 = vpop.permute.xlu0 %2598
        %2600 = vrot.lane.b32.xlu0 %v2311, 64
        %v2601 = vpop.permute.xlu0 %2600
        %2602 = vrot.lane.b32.xlu0 %v2312, 64
        %v2603 = vpop.permute.xlu0 %2602
        %2604 = vrot.lane.b32.xlu0 %v2313, 64
        %v2605 = vpop.permute.xlu0 %2604
        %2606 = vrot.lane.b32.xlu0 %v2314, 64
        %v2607 = vpop.permute.xlu0 %2606
        %2608 = vrot.lane.b32.xlu0 %v2315, 64
        %v2609 = vpop.permute.xlu0 %2608
        %2610 = vrot.lane.b32.xlu0 %v2316, 64
        %v2611 = vpop.permute.xlu0 %2610
        %2612 = vrot.lane.b32.xlu0 %v2317, 64
        %v2613 = vpop.permute.xlu0 %2612
        %2614 = vrot.lane.b32.xlu0 %v2318, 64
        %v2615 = vpop.permute.xlu0 %2614
        %2616 = vrot.lane.b32.xlu0 %v2319, 64
        %v2617 = vpop.permute.xlu0 %2616
        %2618 = vrot.lane.b32.xlu0 %v2320, 64
        %v2619 = vpop.permute.xlu0 %2618
        %2620 = vrot.lane.b32.xlu0 %v2321, 64
        %v2621 = vpop.permute.xlu0 %2620
        %2622 = vrot.lane.b32.xlu0 %v2322, 64
        %v2623 = vpop.permute.xlu0 %2622
        %2624 = vrot.lane.b32.xlu0 %v2323, 64
        %v2625 = vpop.permute.xlu0 %2624
        %2626 = vrot.lane.b32.xlu0 %v2324, 64
        %v2627 = vpop.permute.xlu0 %2626
        %2628 = vrot.lane.b32.xlu0 %v2325, 64
        %v2629 = vpop.permute.xlu0 %2628
        %2630 = vrot.lane.b32.xlu0 %v2326, 64
        %v2631 = vpop.permute.xlu0 %2630
        %2632 = vrot.lane.b32.xlu0 %v2327, 64
        %v2633 = vpop.permute.xlu0 %2632
        %2634 = vrot.lane.b32.xlu0 %v2328, 64
        %v2635 = vpop.permute.xlu0 %2634
        %2636 = vrot.lane.b32.xlu0 %v2329, 64
        %v2637 = vpop.permute.xlu0 %2636
        %2638 = vrot.lane.b32.xlu0 %v2330, 64
        %v2639 = vpop.permute.xlu0 %2638
        %2640 = vrot.lane.b32.xlu0 %v2331, 64
        %v2641 = vpop.permute.xlu0 %2640
        %2642 = vrot.lane.b32.xlu0 %v2332, 64
        %v2643 = vpop.permute.xlu0 %2642
        %2644 = vrot.lane.b32.xlu0 %v2333, 64
        %v2645 = vpop.permute.xlu0 %2644
        %2646 = vrot.lane.b32.xlu0 %v2334, 64
        %v2647 = vpop.permute.xlu0 %2646
        %2648 = vrot.lane.b32.xlu0 %v2335, 64
        %v2649 = vpop.permute.xlu0 %2648
        %2650 = vrot.lane.b32.xlu0 %v2336, 64
        %v2651 = vpop.permute.xlu0 %2650
        %2652 = vrot.lane.b32.xlu0 %v2337, 64
        %v2653 = vpop.permute.xlu0 %2652
        %2654 = vrot.lane.b32.xlu0 %v2338, 64
        %v2655 = vpop.permute.xlu0 %2654
        %2656 = vrot.lane.b32.xlu0 %v2339, 64
        %v2657 = vpop.permute.xlu0 %2656
        %2658 = vrot.lane.b32.xlu0 %v2340, 64
        %v2659 = vpop.permute.xlu0 %2658
        %2660 = vrot.lane.b32.xlu0 %v2341, 64
        %v2661 = vpop.permute.xlu0 %2660
        %2662 = vrot.lane.b32.xlu0 %v2342, 64
        %v2663 = vpop.permute.xlu0 %2662
        %2664 = vrot.lane.b32.xlu0 %v2343, 64
        %v2665 = vpop.permute.xlu0 %2664
        %2666 = vrot.lane.b32.xlu0 %v2344, 64
        %v2667 = vpop.permute.xlu0 %2666
        %2668 = vrot.lane.b32.xlu0 %v2345, 64
        %v2669 = vpop.permute.xlu0 %2668
        %2670 = vrot.lane.b32.xlu0 %v2346, 64
        %v2671 = vpop.permute.xlu0 %2670
        %2672 = vrot.lane.b32.xlu0 %v2347, 64
        %v2673 = vpop.permute.xlu0 %2672
        %2674 = vrot.lane.b32.xlu0 %v2348, 64
        %v2675 = vpop.permute.xlu0 %2674
        %2676 = vrot.lane.b32.xlu0 %v2349, 64
        %v2677 = vpop.permute.xlu0 %2676
        %2678 = vrot.lane.b32.xlu0 %v2350, 64
        %v2679 = vpop.permute.xlu0 %2678
        %2680 = vrot.lane.b32.xlu0 %v2351, 64
        %v2681 = vpop.permute.xlu0 %2680
        %2682 = vrot.lane.b32.xlu0 %v2352, 64
        %v2683 = vpop.permute.xlu0 %2682
        %2684 = vrot.lane.b32.xlu0 %v2353, 64
        %v2685 = vpop.permute.xlu0 %2684
        %2686 = vrot.lane.b32.xlu0 %v2354, 64
        %v2687 = vpop.permute.xlu0 %2686
        %2688 = vrot.lane.b32.xlu0 %v2355, 64
        %v2689 = vpop.permute.xlu0 %2688
        %2690 = vrot.lane.b32.xlu0 %v2356, 64
        %v2691 = vpop.permute.xlu0 %2690
        %2692 = vrot.lane.b32.xlu0 %v2357, 64
        %v2693 = vpop.permute.xlu0 %2692
        %2694 = vrot.lane.b32.xlu0 %v2358, 64
        %v2695 = vpop.permute.xlu0 %2694
        %2696 = vrot.lane.b32.xlu0 %v2359, 64
        %v2697 = vpop.permute.xlu0 %2696
        %2698 = vrot.lane.b32.xlu0 %v2360, 64
        %v2699 = vpop.permute.xlu0 %2698
        %2700 = vrot.lane.b32.xlu0 %v2361, 64
        %v2701 = vpop.permute.xlu0 %2700
        %2702 = vrot.lane.b32.xlu0 %v2362, 64
        %v2703 = vpop.permute.xlu0 %2702
        %2704 = vrot.lane.b32.xlu0 %v2363, 64
        %v2705 = vpop.permute.xlu0 %2704
        %2706 = vrot.lane.b32.xlu0 %v2364, 64
        %v2707 = vpop.permute.xlu0 %2706
        %2708 = vrot.lane.b32.xlu0 %v2365, 64
        %v2709 = vpop.permute.xlu0 %2708
        %2710 = vrot.lane.b32.xlu0 %v2366, 64
        %v2711 = vpop.permute.xlu0 %2710
        %2712 = vrot.lane.b32.xlu0 %v2367, 64
        %v2713 = vpop.permute.xlu0 %2712
        %2714 = vrot.lane.b32.xlu0 %v2368, 64
        %v2715 = vpop.permute.xlu0 %2714
        %2716 = vrot.lane.b32.xlu0 %v2369, 64
        %v2717 = vpop.permute.xlu0 %2716
        %2718 = vrot.lane.b32.xlu0 %v2370, 64
        %v2719 = vpop.permute.xlu0 %2718
        %2720 = vrot.lane.b32.xlu0 %v2371, 64
        %v2721 = vpop.permute.xlu0 %2720
        %2722 = vrot.lane.b32.xlu0 %v2372, 64
        %v2723 = vpop.permute.xlu0 %2722
        %2724 = vrot.lane.b32.xlu0 %v2373, 64
        %v2725 = vpop.permute.xlu0 %2724
        %2726 = vrot.lane.b32.xlu0 %v2374, 64
        %v2727 = vpop.permute.xlu0 %2726
        %2728 = vrot.lane.b32.xlu0 %v2375, 64
        %v2729 = vpop.permute.xlu0 %2728
        %2730 = vrot.lane.b32.xlu0 %v2376, 64
        %v2731 = vpop.permute.xlu0 %2730
        %2732 = vrot.lane.b32.xlu0 %v2377, 64
        %v2733 = vpop.permute.xlu0 %2732
        %2734 = vrot.lane.b32.xlu0 %v2378, 64
        %v2735 = vpop.permute.xlu0 %2734
        %2736 = vrot.lane.b32.xlu0 %v2379, 64
        %v2737 = vpop.permute.xlu0 %2736
        %2738 = vrot.lane.b32.xlu0 %v2380, 64
        %v2739 = vpop.permute.xlu0 %2738
        %2740 = vrot.lane.b32.xlu0 %v2381, 64
        %v2741 = vpop.permute.xlu0 %2740
        %2742 = vrot.lane.b32.xlu0 %v2382, 64
        %v2743 = vpop.permute.xlu0 %2742
        %2744 = vrot.lane.b32.xlu0 %v2383, 64
        %v2745 = vpop.permute.xlu0 %2744
        %2746 = vrot.lane.b32.xlu0 %v2384, 64
        %v2747 = vpop.permute.xlu0 %2746
        %2748 = vrot.lane.b32.xlu0 %v2385, 64
        %v2749 = vpop.permute.xlu0 %2748
        %2750 = vrot.lane.b32.xlu0 %v2386, 64
        %v2751 = vpop.permute.xlu0 %2750
        %2752 = vrot.lane.b32.xlu0 %v2387, 64
        %v2753 = vpop.permute.xlu0 %2752
        %2754 = vrot.lane.b32.xlu0 %v2388, 64
        %v2755 = vpop.permute.xlu0 %2754
        %2756 = vrot.lane.b32.xlu0 %v2389, 64
        %v2757 = vpop.permute.xlu0 %2756
        %2758 = vrot.lane.b32.xlu0 %v2390, 64
        %v2759 = vpop.permute.xlu0 %2758
        %2760 = vrot.lane.b32.xlu0 %v2391, 64
        %v2761 = vpop.permute.xlu0 %2760
        %2762 = vrot.lane.b32.xlu0 %v2392, 64
        %v2763 = vpop.permute.xlu0 %2762
        %2764 = vrot.lane.b32.xlu0 %v2393, 64
        %v2765 = vpop.permute.xlu0 %2764
        %2766 = vrot.lane.b32.xlu0 %v2394, 64
        %v2767 = vpop.permute.xlu0 %2766
        %2768 = vrot.lane.b32.xlu0 %v2395, 64
        %v2769 = vpop.permute.xlu0 %2768
        %2770 = vrot.lane.b32.xlu0 %v2396, 64
        %v2771 = vpop.permute.xlu0 %2770
        %2772 = vrot.lane.b32.xlu0 %v2397, 64
        %v2773 = vpop.permute.xlu0 %2772
        %2774 = vrot.lane.b32.xlu0 %v2398, 64
        %v2775 = vpop.permute.xlu0 %2774
        %2776 = vrot.lane.b32.xlu0 %v2399, 64
        %v2777 = vpop.permute.xlu0 %2776
        %2778 = vrot.lane.b32.xlu0 %v2400, 64
        %v2779 = vpop.permute.xlu0 %2778
        %2780 = vrot.lane.b32.xlu0 %v2401, 64
        %v2781 = vpop.permute.xlu0 %2780
        %2782 = vrot.lane.b32.xlu0 %v2402, 64
        %v2783 = vpop.permute.xlu0 %2782
        %2784 = vrot.lane.b32.xlu0 %v2403, 64
        %v2785 = vpop.permute.xlu0 %2784
        %2786 = vrot.lane.b32.xlu0 %v2404, 64
        %v2787 = vpop.permute.xlu0 %2786
        %2788 = vrot.lane.b32.xlu0 %v2405, 64
        %v2789 = vpop.permute.xlu0 %2788
        %2790 = vrot.lane.b32.xlu0 %v2406, 64
        %v2791 = vpop.permute.xlu0 %2790
        %2792 = vrot.lane.b32.xlu0 %v2407, 64
        %v2793 = vpop.permute.xlu0 %2792
        %2794 = vrot.lane.b32.xlu0 %v2408, 64
        %v2795 = vpop.permute.xlu0 %2794
        %2796 = vrot.lane.b32.xlu0 %v2409, 64
        %v2797 = vpop.permute.xlu0 %2796
        %2798 = vrot.lane.b32.xlu0 %v2410, 64
        %v2799 = vpop.permute.xlu0 %2798
        %2800 = vrot.lane.b32.xlu0 %v2411, 64
        %v2801 = vpop.permute.xlu0 %2800
        %2802 = vrot.lane.b32.xlu0 %v2412, 64
        %v2803 = vpop.permute.xlu0 %2802
        %2804 = vrot.lane.b32.xlu0 %v2413, 64
        %v2805 = vpop.permute.xlu0 %2804
        %2806 = vrot.lane.b32.xlu0 %v2414, 64
        %v2807 = vpop.permute.xlu0 %2806
        %2808 = vrot.lane.b32.xlu0 %v2415, 64
        %v2809 = vpop.permute.xlu0 %2808
        %2810 = vrot.lane.b32.xlu0 %v2416, 64
        %v2811 = vpop.permute.xlu0 %2810
        %2812 = vrot.lane.b32.xlu0 %v2417, 64
        %v2813 = vpop.permute.xlu0 %2812
        %2814 = vrot.lane.b32.xlu0 %v2418, 64
        %v2815 = vpop.permute.xlu0 %2814
        %2816 = vrot.lane.b32.xlu0 %v2419, 64
        %v2817 = vpop.permute.xlu0 %2816
        %2818 = vrot.lane.b32.xlu0 %v2420, 64
        %v2819 = vpop.permute.xlu0 %2818
        %2820 = vrot.lane.b32.xlu0 %v2421, 64
        %v2821 = vpop.permute.xlu0 %2820
        %2822 = vrot.lane.b32.xlu0 %v2422, 64
        %v2823 = vpop.permute.xlu0 %2822
        %2824 = vrot.lane.b32.xlu0 %v2423, 64
        %v2825 = vpop.permute.xlu0 %2824
        %2826 = vrot.lane.b32.xlu0 %v2424, 64
        %v2827 = vpop.permute.xlu0 %2826
        %2828 = vrot.lane.b32.xlu0 %v2425, 64
        %v2829 = vpop.permute.xlu0 %2828
        %2830 = vrot.lane.b32.xlu0 %v2426, 64
        %v2831 = vpop.permute.xlu0 %2830
        %2832 = vrot.lane.b32.xlu0 %v2427, 64
        %v2833 = vpop.permute.xlu0 %2832
        %2834 = vrot.lane.b32.xlu0 %v2428, 64
        %v2835 = vpop.permute.xlu0 %2834
        %2836 = vrot.lane.b32.xlu0 %v2429, 64
        %v2837 = vpop.permute.xlu0 %2836
        %2838 = vrot.lane.b32.xlu0 %v2430, 64
        %v2839 = vpop.permute.xlu0 %2838
        %2840 = vrot.lane.b32.xlu0 %v2431, 64
        %v2841 = vpop.permute.xlu0 %2840
        %2842 = vrot.lane.b32.xlu0 %v2432, 64
        %v2843 = vpop.permute.xlu0 %2842
        %2844 = vrot.lane.b32.xlu0 %v2433, 64
        %v2845 = vpop.permute.xlu0 %2844
        %2846 = vrot.lane.b32.xlu0 %v2434, 64
        %v2847 = vpop.permute.xlu0 %2846
        %2848 = vrot.lane.b32.xlu0 %v2435, 64
        %v2849 = vpop.permute.xlu0 %2848
        %2850 = vrot.lane.b32.xlu0 %v2436, 64
        %v2851 = vpop.permute.xlu0 %2850
        %2852 = vrot.lane.b32.xlu0 %v2437, 64
        %v2853 = vpop.permute.xlu0 %2852
        %2854 = vrot.lane.b32.xlu0 %v2438, 64
        %v2855 = vpop.permute.xlu0 %2854
        %2856 = vrot.lane.b32.xlu0 %v2439, 64
        %v2857 = vpop.permute.xlu0 %2856
        %2858 = vrot.lane.b32.xlu0 %v2440, 64
        %v2859 = vpop.permute.xlu0 %2858
        %2860 = vrot.lane.b32.xlu0 %v2441, 64
        %v2861 = vpop.permute.xlu0 %2860
        %2862 = vrot.lane.b32.xlu0 %v2442, 64
        %v2863 = vpop.permute.xlu0 %2862
        %2864 = vrot.lane.b32.xlu0 %v2443, 64
        %v2865 = vpop.permute.xlu0 %2864
        %2866 = vrot.lane.b32.xlu0 %v2444, 64
        %v2867 = vpop.permute.xlu0 %2866
        %2868 = vrot.lane.b32.xlu0 %v2445, 64
        %v2869 = vpop.permute.xlu0 %2868
        %2870 = vrot.lane.b32.xlu0 %v2446, 64
        %v2871 = vpop.permute.xlu0 %2870
        %2872 = vrot.lane.b32.xlu0 %v2447, 64
        %v2873 = vpop.permute.xlu0 %2872
        %2874 = vrot.lane.b32.xlu0 %v2448, 64
        %v2875 = vpop.permute.xlu0 %2874
        %2876 = vrot.lane.b32.xlu0 %v2449, 64
        %v2877 = vpop.permute.xlu0 %2876
        %2878 = vrot.lane.b32.xlu0 %v2450, 64
        %v2879 = vpop.permute.xlu0 %2878
        %2880 = vrot.lane.b32.xlu0 %v2451, 64
        %v2881 = vpop.permute.xlu0 %2880
        %2882 = vrot.lane.b32.xlu0 %v2452, 64
        %v2883 = vpop.permute.xlu0 %2882
        %2884 = vrot.lane.b32.xlu0 %v2453, 64
        %v2885 = vpop.permute.xlu0 %2884
        %v3030 = vmax.f32 %v2310, %v2599
        %v3031 = vmax.f32 %v2311, %v2601
        %v3032 = vmax.f32 %v2312, %v2603
        %v3033 = vmax.f32 %v2313, %v2605
        %v3034 = vmax.f32 %v2314, %v2607
        %v3035 = vmax.f32 %v2315, %v2609
        %v3036 = vmax.f32 %v2316, %v2611
        %v3037 = vmax.f32 %v2317, %v2613
        %v3038 = vmax.f32 %v2318, %v2615
        %v3039 = vmax.f32 %v2319, %v2617
        %v3040 = vmax.f32 %v2320, %v2619
        %v3041 = vmax.f32 %v2321, %v2621
        %v3042 = vmax.f32 %v2322, %v2623
        %v3043 = vmax.f32 %v2323, %v2625
        %v3044 = vmax.f32 %v2324, %v2627
        %v3045 = vmax.f32 %v2325, %v2629
        %v3046 = vmax.f32 %v2326, %v2631
        %v3047 = vmax.f32 %v2327, %v2633
        %v3048 = vmax.f32 %v2328, %v2635
        %v3049 = vmax.f32 %v2329, %v2637
        %v3050 = vmax.f32 %v2330, %v2639
        %v3051 = vmax.f32 %v2331, %v2641
        %v3052 = vmax.f32 %v2332, %v2643
        %v3053 = vmax.f32 %v2333, %v2645
        %v3054 = vmax.f32 %v2334, %v2647
        %v3055 = vmax.f32 %v2335, %v2649
        %v3056 = vmax.f32 %v2336, %v2651
        %v3057 = vmax.f32 %v2337, %v2653
        %v3058 = vmax.f32 %v2338, %v2655
        %v3059 = vmax.f32 %v2339, %v2657
        %v3060 = vmax.f32 %v2340, %v2659
        %v3061 = vmax.f32 %v2341, %v2661
        %v3062 = vmax.f32 %v2342, %v2663
        %v3063 = vmax.f32 %v2343, %v2665
        %v3064 = vmax.f32 %v2344, %v2667
        %v3065 = vmax.f32 %v2345, %v2669
        %v3066 = vmax.f32 %v2346, %v2671
        %v3067 = vmax.f32 %v2347, %v2673
        %v3068 = vmax.f32 %v2348, %v2675
        %v3069 = vmax.f32 %v2349, %v2677
        %v3070 = vmax.f32 %v2350, %v2679
        %v3071 = vmax.f32 %v2351, %v2681
        %v3072 = vmax.f32 %v2352, %v2683
        %v3073 = vmax.f32 %v2353, %v2685
        %v3074 = vmax.f32 %v2354, %v2687
        %v3075 = vmax.f32 %v2355, %v2689
        %v3076 = vmax.f32 %v2356, %v2691
        %v3077 = vmax.f32 %v2357, %v2693
        %v3078 = vmax.f32 %v2358, %v2695
        %v3079 = vmax.f32 %v2359, %v2697
        %v3080 = vmax.f32 %v2360, %v2699
        %v3081 = vmax.f32 %v2361, %v2701
        %v3082 = vmax.f32 %v2362, %v2703
        %v3083 = vmax.f32 %v2363, %v2705
        %v3084 = vmax.f32 %v2364, %v2707
        %v3085 = vmax.f32 %v2365, %v2709
        %v3086 = vmax.f32 %v2366, %v2711
        %v3087 = vmax.f32 %v2367, %v2713
        %v3088 = vmax.f32 %v2368, %v2715
        %v3089 = vmax.f32 %v2369, %v2717
        %v3090 = vmax.f32 %v2370, %v2719
        %v3091 = vmax.f32 %v2371, %v2721
        %v3092 = vmax.f32 %v2372, %v2723
        %v3093 = vmax.f32 %v2373, %v2725
        %v3094 = vmax.f32 %v2374, %v2727
        %v3095 = vmax.f32 %v2375, %v2729
        %v3096 = vmax.f32 %v2376, %v2731
        %v3097 = vmax.f32 %v2377, %v2733
        %v3098 = vmax.f32 %v2378, %v2735
        %v3099 = vmax.f32 %v2379, %v2737
        %v3100 = vmax.f32 %v2380, %v2739
        %v3101 = vmax.f32 %v2381, %v2741
        %v3102 = vmax.f32 %v2382, %v2743
        %v3103 = vmax.f32 %v2383, %v2745
        %v3104 = vmax.f32 %v2384, %v2747
        %v3105 = vmax.f32 %v2385, %v2749
        %v3106 = vmax.f32 %v2386, %v2751
        %v3107 = vmax.f32 %v2387, %v2753
        %v3108 = vmax.f32 %v2388, %v2755
        %v3109 = vmax.f32 %v2389, %v2757
        %v3110 = vmax.f32 %v2390, %v2759
        %v3111 = vmax.f32 %v2391, %v2761
        %v3112 = vmax.f32 %v2392, %v2763
        %v3113 = vmax.f32 %v2393, %v2765
        %v3114 = vmax.f32 %v2394, %v2767
        %v3115 = vmax.f32 %v2395, %v2769
        %v3116 = vmax.f32 %v2396, %v2771
        %v3117 = vmax.f32 %v2397, %v2773
        %v3118 = vmax.f32 %v2398, %v2775
        %v3119 = vmax.f32 %v2399, %v2777
        %v3120 = vmax.f32 %v2400, %v2779
        %v3121 = vmax.f32 %v2401, %v2781
        %v3122 = vmax.f32 %v2402, %v2783
        %v3123 = vmax.f32 %v2403, %v2785
        %v3124 = vmax.f32 %v2404, %v2787
        %v3125 = vmax.f32 %v2405, %v2789
        %v3126 = vmax.f32 %v2406, %v2791
        %v3127 = vmax.f32 %v2407, %v2793
        %v3128 = vmax.f32 %v2408, %v2795
        %v3129 = vmax.f32 %v2409, %v2797
        %v3130 = vmax.f32 %v2410, %v2799
        %v3131 = vmax.f32 %v2411, %v2801
        %v3132 = vmax.f32 %v2412, %v2803
        %v3133 = vmax.f32 %v2413, %v2805
        %v3134 = vmax.f32 %v2414, %v2807
        %v3135 = vmax.f32 %v2415, %v2809
        %v3136 = vmax.f32 %v2416, %v2811
        %v3137 = vmax.f32 %v2417, %v2813
        %v3138 = vmax.f32 %v2418, %v2815
        %v3139 = vmax.f32 %v2419, %v2817
        %v3140 = vmax.f32 %v2420, %v2819
        %v3141 = vmax.f32 %v2421, %v2821
        %v3142 = vmax.f32 %v2422, %v2823
        %v3143 = vmax.f32 %v2423, %v2825
        %v3144 = vmax.f32 %v2424, %v2827
        %v3145 = vmax.f32 %v2425, %v2829
        %v3146 = vmax.f32 %v2426, %v2831
        %v3147 = vmax.f32 %v2427, %v2833
        %v3148 = vmax.f32 %v2428, %v2835
        %v3149 = vmax.f32 %v2429, %v2837
        %v3150 = vmax.f32 %v2430, %v2839
        %v3151 = vmax.f32 %v2431, %v2841
        %v3152 = vmax.f32 %v2432, %v2843
        %v3153 = vmax.f32 %v2433, %v2845
        %v3154 = vmax.f32 %v2434, %v2847
        %v3155 = vmax.f32 %v2435, %v2849
        %v3156 = vmax.f32 %v2436, %v2851
        %v3157 = vmax.f32 %v2437, %v2853
        %v3158 = vmax.f32 %v2438, %v2855
        %v3159 = vmax.f32 %v2439, %v2857
        %v3160 = vmax.f32 %v2440, %v2859
        %v3161 = vmax.f32 %v2441, %v2861
        %v3162 = vmax.f32 %v2442, %v2863
        %v3163 = vmax.f32 %v2443, %v2865
        %v3164 = vmax.f32 %v2444, %v2867
        %v3165 = vmax.f32 %v2445, %v2869
        %v3166 = vmax.f32 %v2446, %v2871
        %v3167 = vmax.f32 %v2447, %v2873
        %v3168 = vmax.f32 %v2448, %v2875
        %v3169 = vmax.f32 %v2449, %v2877
        %v3170 = vmax.f32 %v2450, %v2879
        %v3171 = vmax.f32 %v2451, %v2881
        %v3172 = vmax.f32 %v2452, %v2883
        %v3173 = vmax.f32 %v2453, %v2885
        %3238 = vrot.lane.b32.xlu0 %v3031, 32
        %v3239 = vpop.permute.xlu0 %3238
        %3240 = vrot.lane.b32.xlu0 %v3032, 32
        %v3241 = vpop.permute.xlu0 %3240
        %3242 = vrot.lane.b32.xlu0 %v3033, 32
        %v3243 = vpop.permute.xlu0 %3242
        %3244 = vrot.lane.b32.xlu0 %v3034, 32
        %v3245 = vpop.permute.xlu0 %3244
        %3246 = vrot.lane.b32.xlu0 %v3035, 32
        %v3247 = vpop.permute.xlu0 %3246
        %3248 = vrot.lane.b32.xlu0 %v3036, 32
        %v3249 = vpop.permute.xlu0 %3248
        %3250 = vrot.lane.b32.xlu0 %v3037, 32
        %v3251 = vpop.permute.xlu0 %3250
        %3252 = vrot.lane.b32.xlu0 %v3038, 32
        %v3253 = vpop.permute.xlu0 %3252
        %3254 = vrot.lane.b32.xlu0 %v3043, 32
        %v3255 = vpop.permute.xlu0 %3254
        %3256 = vrot.lane.b32.xlu0 %v3044, 32
        %v3257 = vpop.permute.xlu0 %3256
        %3258 = vrot.lane.b32.xlu0 %v3045, 32
        %v3259 = vpop.permute.xlu0 %3258
        %3260 = vrot.lane.b32.xlu0 %v3046, 32
        %v3261 = vpop.permute.xlu0 %3260
        %3262 = vrot.lane.b32.xlu0 %v3047, 32
        %v3263 = vpop.permute.xlu0 %3262
        %3264 = vrot.lane.b32.xlu0 %v3048, 32
        %v3265 = vpop.permute.xlu0 %3264
        %3266 = vrot.lane.b32.xlu0 %v3049, 32
        %v3267 = vpop.permute.xlu0 %3266
        %3268 = vrot.lane.b32.xlu0 %v3050, 32
        %v3269 = vpop.permute.xlu0 %3268
        %3270 = vrot.lane.b32.xlu0 %v3055, 32
        %v3271 = vpop.permute.xlu0 %3270
        %3272 = vrot.lane.b32.xlu0 %v3056, 32
        %v3273 = vpop.permute.xlu0 %3272
        %3274 = vrot.lane.b32.xlu0 %v3057, 32
        %v3275 = vpop.permute.xlu0 %3274
        %3276 = vrot.lane.b32.xlu0 %v3058, 32
        %v3277 = vpop.permute.xlu0 %3276
        %3278 = vrot.lane.b32.xlu0 %v3059, 32
        %v3279 = vpop.permute.xlu0 %3278
        %3280 = vrot.lane.b32.xlu0 %v3060, 32
        %v3281 = vpop.permute.xlu0 %3280
        %3282 = vrot.lane.b32.xlu0 %v3061, 32
        %v3283 = vpop.permute.xlu0 %3282
        %3284 = vrot.lane.b32.xlu0 %v3062, 32
        %v3285 = vpop.permute.xlu0 %3284
        %3286 = vrot.lane.b32.xlu0 %v3067, 32
        %v3287 = vpop.permute.xlu0 %3286
        %3288 = vrot.lane.b32.xlu0 %v3068, 32
        %v3289 = vpop.permute.xlu0 %3288
        %3290 = vrot.lane.b32.xlu0 %v3069, 32
        %v3291 = vpop.permute.xlu0 %3290
        %3292 = vrot.lane.b32.xlu0 %v3070, 32
        %v3293 = vpop.permute.xlu0 %3292
        %3294 = vrot.lane.b32.xlu0 %v3071, 32
        %v3295 = vpop.permute.xlu0 %3294
        %3296 = vrot.lane.b32.xlu0 %v3072, 32
        %v3297 = vpop.permute.xlu0 %3296
        %3298 = vrot.lane.b32.xlu0 %v3073, 32
        %v3299 = vpop.permute.xlu0 %3298
        %3300 = vrot.lane.b32.xlu0 %v3074, 32
        %v3301 = vpop.permute.xlu0 %3300
        %3302 = vrot.lane.b32.xlu0 %v3079, 32
        %v3303 = vpop.permute.xlu0 %3302
        %3304 = vrot.lane.b32.xlu0 %v3080, 32
        %v3305 = vpop.permute.xlu0 %3304
        %3306 = vrot.lane.b32.xlu0 %v3081, 32
        %v3307 = vpop.permute.xlu0 %3306
        %3308 = vrot.lane.b32.xlu0 %v3082, 32
        %v3309 = vpop.permute.xlu0 %3308
        %3310 = vrot.lane.b32.xlu0 %v3083, 32
        %v3311 = vpop.permute.xlu0 %3310
        %3312 = vrot.lane.b32.xlu0 %v3084, 32
        %v3313 = vpop.permute.xlu0 %3312
        %3314 = vrot.lane.b32.xlu0 %v3085, 32
        %v3315 = vpop.permute.xlu0 %3314
        %3316 = vrot.lane.b32.xlu0 %v3086, 32
        %v3317 = vpop.permute.xlu0 %3316
        %3318 = vrot.lane.b32.xlu0 %v3091, 32
        %v3319 = vpop.permute.xlu0 %3318
        %3320 = vrot.lane.b32.xlu0 %v3092, 32
        %v3321 = vpop.permute.xlu0 %3320
        %3322 = vrot.lane.b32.xlu0 %v3093, 32
        %v3323 = vpop.permute.xlu0 %3322
        %3324 = vrot.lane.b32.xlu0 %v3094, 32
        %v3325 = vpop.permute.xlu0 %3324
        %3326 = vrot.lane.b32.xlu0 %v3095, 32
        %v3327 = vpop.permute.xlu0 %3326
        %3328 = vrot.lane.b32.xlu0 %v3096, 32
        %v3329 = vpop.permute.xlu0 %3328
        %3330 = vrot.lane.b32.xlu0 %v3097, 32
        %v3331 = vpop.permute.xlu0 %3330
        %3332 = vrot.lane.b32.xlu0 %v3098, 32
        %v3333 = vpop.permute.xlu0 %3332
        %3334 = vrot.lane.b32.xlu0 %v3103, 32
        %v3335 = vpop.permute.xlu0 %3334
        %3336 = vrot.lane.b32.xlu0 %v3104, 32
        %v3337 = vpop.permute.xlu0 %3336
        %3338 = vrot.lane.b32.xlu0 %v3105, 32
        %v3339 = vpop.permute.xlu0 %3338
        %3340 = vrot.lane.b32.xlu0 %v3106, 32
        %v3341 = vpop.permute.xlu0 %3340
        %3342 = vrot.lane.b32.xlu0 %v3107, 32
        %v3343 = vpop.permute.xlu0 %3342
        %3344 = vrot.lane.b32.xlu0 %v3108, 32
        %v3345 = vpop.permute.xlu0 %3344
        %3346 = vrot.lane.b32.xlu0 %v3109, 32
        %v3347 = vpop.permute.xlu0 %3346
        %3348 = vrot.lane.b32.xlu0 %v3110, 32
        %v3349 = vpop.permute.xlu0 %3348
        %3350 = vrot.lane.b32.xlu0 %v3115, 32
        %v3351 = vpop.permute.xlu0 %3350
        %3352 = vrot.lane.b32.xlu0 %v3116, 32
        %v3353 = vpop.permute.xlu0 %3352
        %3354 = vrot.lane.b32.xlu0 %v3117, 32
        %v3355 = vpop.permute.xlu0 %3354
        %3356 = vrot.lane.b32.xlu0 %v3118, 32
        %v3357 = vpop.permute.xlu0 %3356
        %3358 = vrot.lane.b32.xlu0 %v3119, 32
        %v3359 = vpop.permute.xlu0 %3358
        %3360 = vrot.lane.b32.xlu0 %v3120, 32
        %v3361 = vpop.permute.xlu0 %3360
        %3362 = vrot.lane.b32.xlu0 %v3121, 32
        %v3363 = vpop.permute.xlu0 %3362
        %3364 = vrot.lane.b32.xlu0 %v3122, 32
        %v3365 = vpop.permute.xlu0 %3364
        %3438 = vrot.lane.b32.xlu0 %v3032, 64
        %v3439 = vpop.permute.xlu0 %3438
        %3440 = vrot.lane.b32.xlu0 %v3033, 64
        %v3441 = vpop.permute.xlu0 %3440
        %3442 = vrot.lane.b32.xlu0 %v3034, 64
        %v3443 = vpop.permute.xlu0 %3442
        %3444 = vrot.lane.b32.xlu0 %v3035, 64
        %v3445 = vpop.permute.xlu0 %3444
        %3446 = vrot.lane.b32.xlu0 %v3036, 64
        %v3447 = vpop.permute.xlu0 %3446
        %3448 = vrot.lane.b32.xlu0 %v3037, 64
        %v3449 = vpop.permute.xlu0 %3448
        %3450 = vrot.lane.b32.xlu0 %v3038, 64
        %v3451 = vpop.permute.xlu0 %3450
        %3452 = vrot.lane.b32.xlu0 %v3039, 64
        %v3453 = vpop.permute.xlu0 %3452
        %3454 = vrot.lane.b32.xlu0 %v3044, 64
        %v3455 = vpop.permute.xlu0 %3454
        %3456 = vrot.lane.b32.xlu0 %v3045, 64
        %v3457 = vpop.permute.xlu0 %3456
        %3458 = vrot.lane.b32.xlu0 %v3046, 64
        %v3459 = vpop.permute.xlu0 %3458
        %3460 = vrot.lane.b32.xlu0 %v3047, 64
        %v3461 = vpop.permute.xlu0 %3460
        %3462 = vrot.lane.b32.xlu0 %v3048, 64
        %v3463 = vpop.permute.xlu0 %3462
        %3464 = vrot.lane.b32.xlu0 %v3049, 64
        %v3465 = vpop.permute.xlu0 %3464
        %3466 = vrot.lane.b32.xlu0 %v3050, 64
        %v3467 = vpop.permute.xlu0 %3466
        %3468 = vrot.lane.b32.xlu0 %v3051, 64
        %v3469 = vpop.permute.xlu0 %3468
        %3470 = vrot.lane.b32.xlu0 %v3056, 64
        %v3471 = vpop.permute.xlu0 %3470
        %3472 = vrot.lane.b32.xlu0 %v3057, 64
        %v3473 = vpop.permute.xlu0 %3472
        %3474 = vrot.lane.b32.xlu0 %v3058, 64
        %v3475 = vpop.permute.xlu0 %3474
        %3476 = vrot.lane.b32.xlu0 %v3059, 64
        %v3477 = vpop.permute.xlu0 %3476
        %3478 = vrot.lane.b32.xlu0 %v3060, 64
        %v3479 = vpop.permute.xlu0 %3478
        %3480 = vrot.lane.b32.xlu0 %v3061, 64
        %v3481 = vpop.permute.xlu0 %3480
        %3482 = vrot.lane.b32.xlu0 %v3062, 64
        %v3483 = vpop.permute.xlu0 %3482
        %3484 = vrot.lane.b32.xlu0 %v3063, 64
        %v3485 = vpop.permute.xlu0 %3484
        %3486 = vrot.lane.b32.xlu0 %v3068, 64
        %v3487 = vpop.permute.xlu0 %3486
        %3488 = vrot.lane.b32.xlu0 %v3069, 64
        %v3489 = vpop.permute.xlu0 %3488
        %3490 = vrot.lane.b32.xlu0 %v3070, 64
        %v3491 = vpop.permute.xlu0 %3490
        %3492 = vrot.lane.b32.xlu0 %v3071, 64
        %v3493 = vpop.permute.xlu0 %3492
        %3494 = vrot.lane.b32.xlu0 %v3072, 64
        %v3495 = vpop.permute.xlu0 %3494
        %3496 = vrot.lane.b32.xlu0 %v3073, 64
        %v3497 = vpop.permute.xlu0 %3496
        %3498 = vrot.lane.b32.xlu0 %v3074, 64
        %v3499 = vpop.permute.xlu0 %3498
        %3500 = vrot.lane.b32.xlu0 %v3075, 64
        %v3501 = vpop.permute.xlu0 %3500
        %3502 = vrot.lane.b32.xlu0 %v3080, 64
        %v3503 = vpop.permute.xlu0 %3502
        %3504 = vrot.lane.b32.xlu0 %v3081, 64
        %v3505 = vpop.permute.xlu0 %3504
        %3506 = vrot.lane.b32.xlu0 %v3082, 64
        %v3507 = vpop.permute.xlu0 %3506
        %3508 = vrot.lane.b32.xlu0 %v3083, 64
        %v3509 = vpop.permute.xlu0 %3508
        %3510 = vrot.lane.b32.xlu0 %v3084, 64
        %v3511 = vpop.permute.xlu0 %3510
        %3512 = vrot.lane.b32.xlu0 %v3085, 64
        %v3513 = vpop.permute.xlu0 %3512
        %3514 = vrot.lane.b32.xlu0 %v3086, 64
        %v3515 = vpop.permute.xlu0 %3514
        %3516 = vrot.lane.b32.xlu0 %v3087, 64
        %v3517 = vpop.permute.xlu0 %3516
        %3518 = vrot.lane.b32.xlu0 %v3092, 64
        %v3519 = vpop.permute.xlu0 %3518
        %3520 = vrot.lane.b32.xlu0 %v3093, 64
        %v3521 = vpop.permute.xlu0 %3520
        %3522 = vrot.lane.b32.xlu0 %v3094, 64
        %v3523 = vpop.permute.xlu0 %3522
        %3524 = vrot.lane.b32.xlu0 %v3095, 64
        %v3525 = vpop.permute.xlu0 %3524
        %3526 = vrot.lane.b32.xlu0 %v3096, 64
        %v3527 = vpop.permute.xlu0 %3526
        %3528 = vrot.lane.b32.xlu0 %v3097, 64
        %v3529 = vpop.permute.xlu0 %3528
        %3530 = vrot.lane.b32.xlu0 %v3098, 64
        %v3531 = vpop.permute.xlu0 %3530
        %3532 = vrot.lane.b32.xlu0 %v3099, 64
        %v3533 = vpop.permute.xlu0 %3532
        %3534 = vrot.lane.b32.xlu0 %v3104, 64
        %v3535 = vpop.permute.xlu0 %3534
        %3536 = vrot.lane.b32.xlu0 %v3105, 64
        %v3537 = vpop.permute.xlu0 %3536
        %3538 = vrot.lane.b32.xlu0 %v3106, 64
        %v3539 = vpop.permute.xlu0 %3538
        %3540 = vrot.lane.b32.xlu0 %v3107, 64
        %v3541 = vpop.permute.xlu0 %3540
        %3542 = vrot.lane.b32.xlu0 %v3108, 64
        %v3543 = vpop.permute.xlu0 %3542
        %3544 = vrot.lane.b32.xlu0 %v3109, 64
        %v3545 = vpop.permute.xlu0 %3544
        %3546 = vrot.lane.b32.xlu0 %v3110, 64
        %v3547 = vpop.permute.xlu0 %3546
        %3548 = vrot.lane.b32.xlu0 %v3111, 64
        %v3549 = vpop.permute.xlu0 %3548
        %3550 = vrot.lane.b32.xlu0 %v3116, 64
        %v3551 = vpop.permute.xlu0 %3550
        %3552 = vrot.lane.b32.xlu0 %v3117, 64
        %v3553 = vpop.permute.xlu0 %3552
        %3554 = vrot.lane.b32.xlu0 %v3118, 64
        %v3555 = vpop.permute.xlu0 %3554
        %3556 = vrot.lane.b32.xlu0 %v3119, 64
        %v3557 = vpop.permute.xlu0 %3556
        %3558 = vrot.lane.b32.xlu0 %v3120, 64
        %v3559 = vpop.permute.xlu0 %3558
        %3560 = vrot.lane.b32.xlu0 %v3121, 64
        %v3561 = vpop.permute.xlu0 %3560
        %3562 = vrot.lane.b32.xlu0 %v3122, 64
        %v3563 = vpop.permute.xlu0 %3562
        %3564 = vrot.lane.b32.xlu0 %v3123, 64
        %v3565 = vpop.permute.xlu0 %3564
        %3638 = vrot.lane.b32.xlu0 %v3033, 96
        %v3639 = vpop.permute.xlu0 %3638
        %3640 = vrot.lane.b32.xlu0 %v3034, 96
        %v3641 = vpop.permute.xlu0 %3640
        %3642 = vrot.lane.b32.xlu0 %v3035, 96
        %v3643 = vpop.permute.xlu0 %3642
        %3644 = vrot.lane.b32.xlu0 %v3036, 96
        %v3645 = vpop.permute.xlu0 %3644
        %3646 = vrot.lane.b32.xlu0 %v3037, 96
        %v3647 = vpop.permute.xlu0 %3646
        %3648 = vrot.lane.b32.xlu0 %v3038, 96
        %v3649 = vpop.permute.xlu0 %3648
        %3650 = vrot.lane.b32.xlu0 %v3039, 96
        %v3651 = vpop.permute.xlu0 %3650
        %3652 = vrot.lane.b32.xlu0 %v3040, 96
        %v3653 = vpop.permute.xlu0 %3652
        %3654 = vrot.lane.b32.xlu0 %v3045, 96
        %v3655 = vpop.permute.xlu0 %3654
        %3656 = vrot.lane.b32.xlu0 %v3046, 96
        %v3657 = vpop.permute.xlu0 %3656
        %3658 = vrot.lane.b32.xlu0 %v3047, 96
        %v3659 = vpop.permute.xlu0 %3658
        %3660 = vrot.lane.b32.xlu0 %v3048, 96
        %v3661 = vpop.permute.xlu0 %3660
        %3662 = vrot.lane.b32.xlu0 %v3049, 96
        %v3663 = vpop.permute.xlu0 %3662
        %3664 = vrot.lane.b32.xlu0 %v3050, 96
        %v3665 = vpop.permute.xlu0 %3664
        %3666 = vrot.lane.b32.xlu0 %v3051, 96
        %v3667 = vpop.permute.xlu0 %3666
        %3668 = vrot.lane.b32.xlu0 %v3052, 96
        %v3669 = vpop.permute.xlu0 %3668
        %3670 = vrot.lane.b32.xlu0 %v3057, 96
        %v3671 = vpop.permute.xlu0 %3670
        %3672 = vrot.lane.b32.xlu0 %v3058, 96
        %v3673 = vpop.permute.xlu0 %3672
        %3674 = vrot.lane.b32.xlu0 %v3059, 96
        %v3675 = vpop.permute.xlu0 %3674
        %3676 = vrot.lane.b32.xlu0 %v3060, 96
        %v3677 = vpop.permute.xlu0 %3676
        %3678 = vrot.lane.b32.xlu0 %v3061, 96
        %v3679 = vpop.permute.xlu0 %3678
        %3680 = vrot.lane.b32.xlu0 %v3062, 96
        %v3681 = vpop.permute.xlu0 %3680
        %3682 = vrot.lane.b32.xlu0 %v3063, 96
        %v3683 = vpop.permute.xlu0 %3682
        %3684 = vrot.lane.b32.xlu0 %v3064, 96
        %v3685 = vpop.permute.xlu0 %3684
        %3686 = vrot.lane.b32.xlu0 %v3069, 96
        %v3687 = vpop.permute.xlu0 %3686
        %3688 = vrot.lane.b32.xlu0 %v3070, 96
        %v3689 = vpop.permute.xlu0 %3688
        %3690 = vrot.lane.b32.xlu0 %v3071, 96
        %v3691 = vpop.permute.xlu0 %3690
        %3692 = vrot.lane.b32.xlu0 %v3072, 96
        %v3693 = vpop.permute.xlu0 %3692
        %3694 = vrot.lane.b32.xlu0 %v3073, 96
        %v3695 = vpop.permute.xlu0 %3694
        %3696 = vrot.lane.b32.xlu0 %v3074, 96
        %v3697 = vpop.permute.xlu0 %3696
        %3698 = vrot.lane.b32.xlu0 %v3075, 96
        %v3699 = vpop.permute.xlu0 %3698
        %3700 = vrot.lane.b32.xlu0 %v3076, 96
        %v3701 = vpop.permute.xlu0 %3700
        %3702 = vrot.lane.b32.xlu0 %v3081, 96
        %v3703 = vpop.permute.xlu0 %3702
        %3704 = vrot.lane.b32.xlu0 %v3082, 96
        %v3705 = vpop.permute.xlu0 %3704
        %3706 = vrot.lane.b32.xlu0 %v3083, 96
        %v3707 = vpop.permute.xlu0 %3706
        %3708 = vrot.lane.b32.xlu0 %v3084, 96
        %v3709 = vpop.permute.xlu0 %3708
        %3710 = vrot.lane.b32.xlu0 %v3085, 96
        %v3711 = vpop.permute.xlu0 %3710
        %3712 = vrot.lane.b32.xlu0 %v3086, 96
        %v3713 = vpop.permute.xlu0 %3712
        %3714 = vrot.lane.b32.xlu0 %v3087, 96
        %v3715 = vpop.permute.xlu0 %3714
        %3716 = vrot.lane.b32.xlu0 %v3088, 96
        %v3717 = vpop.permute.xlu0 %3716
        %3718 = vrot.lane.b32.xlu0 %v3093, 96
        %v3719 = vpop.permute.xlu0 %3718
        %3720 = vrot.lane.b32.xlu0 %v3094, 96
        %v3721 = vpop.permute.xlu0 %3720
        %3722 = vrot.lane.b32.xlu0 %v3095, 96
        %v3723 = vpop.permute.xlu0 %3722
        %3724 = vrot.lane.b32.xlu0 %v3096, 96
        %v3725 = vpop.permute.xlu0 %3724
        %3726 = vrot.lane.b32.xlu0 %v3097, 96
        %v3727 = vpop.permute.xlu0 %3726
        %3728 = vrot.lane.b32.xlu0 %v3098, 96
        %v3729 = vpop.permute.xlu0 %3728
        %3730 = vrot.lane.b32.xlu0 %v3099, 96
        %v3731 = vpop.permute.xlu0 %3730
        %3732 = vrot.lane.b32.xlu0 %v3100, 96
        %v3733 = vpop.permute.xlu0 %3732
        %3734 = vrot.lane.b32.xlu0 %v3105, 96
        %v3735 = vpop.permute.xlu0 %3734
        %3736 = vrot.lane.b32.xlu0 %v3106, 96
        %v3737 = vpop.permute.xlu0 %3736
        %3738 = vrot.lane.b32.xlu0 %v3107, 96
        %v3739 = vpop.permute.xlu0 %3738
        %3740 = vrot.lane.b32.xlu0 %v3108, 96
        %v3741 = vpop.permute.xlu0 %3740
        %3742 = vrot.lane.b32.xlu0 %v3109, 96
        %v3743 = vpop.permute.xlu0 %3742
        %3744 = vrot.lane.b32.xlu0 %v3110, 96
        %v3745 = vpop.permute.xlu0 %3744
        %3746 = vrot.lane.b32.xlu0 %v3111, 96
        %v3747 = vpop.permute.xlu0 %3746
        %3748 = vrot.lane.b32.xlu0 %v3112, 96
        %v3749 = vpop.permute.xlu0 %3748
        %3750 = vrot.lane.b32.xlu0 %v3117, 96
        %v3751 = vpop.permute.xlu0 %3750
        %3752 = vrot.lane.b32.xlu0 %v3118, 96
        %v3753 = vpop.permute.xlu0 %3752
        %3754 = vrot.lane.b32.xlu0 %v3119, 96
        %v3755 = vpop.permute.xlu0 %3754
        %3756 = vrot.lane.b32.xlu0 %v3120, 96
        %v3757 = vpop.permute.xlu0 %3756
        %3758 = vrot.lane.b32.xlu0 %v3121, 96
        %v3759 = vpop.permute.xlu0 %3758
        %3760 = vrot.lane.b32.xlu0 %v3122, 96
        %v3761 = vpop.permute.xlu0 %3760
        %3762 = vrot.lane.b32.xlu0 %v3123, 96
        %v3763 = vpop.permute.xlu0 %3762
        %3764 = vrot.lane.b32.xlu0 %v3124, 96
        %v3765 = vpop.permute.xlu0 %3764
        %3845 = vrot.lane.b32.xlu0 %v3042, 32
        %v3846 = vpop.permute.xlu0 %3845
        %3847 = vrot.lane.b32.xlu0 %v3054, 32
        %v3848 = vpop.permute.xlu0 %3847
        %3849 = vrot.lane.b32.xlu0 %v3066, 32
        %v3850 = vpop.permute.xlu0 %3849
        %3851 = vrot.lane.b32.xlu0 %v3078, 32
        %v3852 = vpop.permute.xlu0 %3851
        %3853 = vrot.lane.b32.xlu0 %v3090, 32
        %v3854 = vpop.permute.xlu0 %3853
        %3855 = vrot.lane.b32.xlu0 %v3102, 32
        %v3856 = vpop.permute.xlu0 %3855
        %3857 = vrot.lane.b32.xlu0 %v3114, 32
        %v3858 = vpop.permute.xlu0 %3857
        %3859 = vrot.lane.b32.xlu0 %v3126, 32
        %v3860 = vpop.permute.xlu0 %3859
        %3861 = vrot.lane.b32.xlu0 %v3127, 32
        %v3862 = vpop.permute.xlu0 %3861
        %3863 = vrot.lane.b32.xlu0 %v3128, 32
        %v3864 = vpop.permute.xlu0 %3863
        %3865 = vrot.lane.b32.xlu0 %v3129, 32
        %v3866 = vpop.permute.xlu0 %3865
        %3867 = vrot.lane.b32.xlu0 %v3130, 32
        %v3868 = vpop.permute.xlu0 %3867
        %3869 = vrot.lane.b32.xlu0 %v3131, 32
        %v3870 = vpop.permute.xlu0 %3869
        %3871 = vrot.lane.b32.xlu0 %v3132, 32
        %v3872 = vpop.permute.xlu0 %3871
        %3873 = vrot.lane.b32.xlu0 %v3133, 32
        %v3874 = vpop.permute.xlu0 %3873
        %3891 = vrot.lane.b32.xlu0 %v3043, 64
        %v3892 = vpop.permute.xlu0 %3891
        %3893 = vrot.lane.b32.xlu0 %v3055, 64
        %v3894 = vpop.permute.xlu0 %3893
        %3895 = vrot.lane.b32.xlu0 %v3067, 64
        %v3896 = vpop.permute.xlu0 %3895
        %3897 = vrot.lane.b32.xlu0 %v3079, 64
        %v3898 = vpop.permute.xlu0 %3897
        %3899 = vrot.lane.b32.xlu0 %v3091, 64
        %v3900 = vpop.permute.xlu0 %3899
        %3901 = vrot.lane.b32.xlu0 %v3103, 64
        %v3902 = vpop.permute.xlu0 %3901
        %3903 = vrot.lane.b32.xlu0 %v3115, 64
        %v3904 = vpop.permute.xlu0 %3903
        %3905 = vrot.lane.b32.xlu0 %v3127, 64
        %v3906 = vpop.permute.xlu0 %3905
        %3907 = vrot.lane.b32.xlu0 %v3128, 64
        %v3908 = vpop.permute.xlu0 %3907
        %3909 = vrot.lane.b32.xlu0 %v3129, 64
        %v3910 = vpop.permute.xlu0 %3909
        %3911 = vrot.lane.b32.xlu0 %v3130, 64
        %v3912 = vpop.permute.xlu0 %3911
        %3913 = vrot.lane.b32.xlu0 %v3131, 64
        %v3914 = vpop.permute.xlu0 %3913
        %3915 = vrot.lane.b32.xlu0 %v3132, 64
        %v3916 = vpop.permute.xlu0 %3915
        %3917 = vrot.lane.b32.xlu0 %v3133, 64
        %v3918 = vpop.permute.xlu0 %3917
        %3919 = vrot.lane.b32.xlu0 %v3134, 64
        %v3920 = vpop.permute.xlu0 %3919
        %3937 = vrot.lane.b32.xlu0 %v3044, 96
        %v3938 = vpop.permute.xlu0 %3937
        %3939 = vrot.lane.b32.xlu0 %v3056, 96
        %v3940 = vpop.permute.xlu0 %3939
        %3941 = vrot.lane.b32.xlu0 %v3068, 96
        %v3942 = vpop.permute.xlu0 %3941
        %3943 = vrot.lane.b32.xlu0 %v3080, 96
        %v3944 = vpop.permute.xlu0 %3943
        %3945 = vrot.lane.b32.xlu0 %v3092, 96
        %v3946 = vpop.permute.xlu0 %3945
        %3947 = vrot.lane.b32.xlu0 %v3104, 96
        %v3948 = vpop.permute.xlu0 %3947
        %3949 = vrot.lane.b32.xlu0 %v3116, 96
        %v3950 = vpop.permute.xlu0 %3949
        %3951 = vrot.lane.b32.xlu0 %v3128, 96
        %v3952 = vpop.permute.xlu0 %3951
        %3953 = vrot.lane.b32.xlu0 %v3129, 96
        %v3954 = vpop.permute.xlu0 %3953
        %3955 = vrot.lane.b32.xlu0 %v3130, 96
        %v3956 = vpop.permute.xlu0 %3955
        %3957 = vrot.lane.b32.xlu0 %v3131, 96
        %v3958 = vpop.permute.xlu0 %3957
        %3959 = vrot.lane.b32.xlu0 %v3132, 96
        %v3960 = vpop.permute.xlu0 %3959
        %3961 = vrot.lane.b32.xlu0 %v3133, 96
        %v3962 = vpop.permute.xlu0 %3961
        %3963 = vrot.lane.b32.xlu0 %v3134, 96
        %v3964 = vpop.permute.xlu0 %3963
        %3965 = vrot.lane.b32.xlu0 %v3135, 96
        %v3966 = vpop.permute.xlu0 %3965
        %3991 = vrot.lane.b32.xlu0 %v3051, 32
        %v3992 = vpop.permute.xlu0 %3991
        %3993 = vrot.lane.b32.xlu0 %v3052, 32
        %v3994 = vpop.permute.xlu0 %3993
        %3995 = vrot.lane.b32.xlu0 %v3053, 32
        %v3996 = vpop.permute.xlu0 %3995
        %3997 = vrot.lane.b32.xlu0 %v3063, 32
        %v3998 = vpop.permute.xlu0 %3997
        %3999 = vrot.lane.b32.xlu0 %v3064, 32
        %v4000 = vpop.permute.xlu0 %3999
        %4001 = vrot.lane.b32.xlu0 %v3065, 32
        %v4002 = vpop.permute.xlu0 %4001
        %4003 = vrot.lane.b32.xlu0 %v3075, 32
        %v4004 = vpop.permute.xlu0 %4003
        %4005 = vrot.lane.b32.xlu0 %v3076, 32
        %v4006 = vpop.permute.xlu0 %4005
        %4007 = vrot.lane.b32.xlu0 %v3077, 32
        %v4008 = vpop.permute.xlu0 %4007
        %4009 = vrot.lane.b32.xlu0 %v3087, 32
        %v4010 = vpop.permute.xlu0 %4009
        %4011 = vrot.lane.b32.xlu0 %v3088, 32
        %v4012 = vpop.permute.xlu0 %4011
        %4013 = vrot.lane.b32.xlu0 %v3089, 32
        %v4014 = vpop.permute.xlu0 %4013
        %4015 = vrot.lane.b32.xlu0 %v3099, 32
        %v4016 = vpop.permute.xlu0 %4015
        %4017 = vrot.lane.b32.xlu0 %v3100, 32
        %v4018 = vpop.permute.xlu0 %4017
        %4019 = vrot.lane.b32.xlu0 %v3101, 32
        %v4020 = vpop.permute.xlu0 %4019
        %4021 = vrot.lane.b32.xlu0 %v3111, 32
        %v4022 = vpop.permute.xlu0 %4021
        %4023 = vrot.lane.b32.xlu0 %v3112, 32
        %v4024 = vpop.permute.xlu0 %4023
        %4025 = vrot.lane.b32.xlu0 %v3113, 32
        %v4026 = vpop.permute.xlu0 %4025
        %4027 = vrot.lane.b32.xlu0 %v3123, 32
        %v4028 = vpop.permute.xlu0 %4027
        %4029 = vrot.lane.b32.xlu0 %v3124, 32
        %v4030 = vpop.permute.xlu0 %4029
        %4031 = vrot.lane.b32.xlu0 %v3125, 32
        %v4032 = vpop.permute.xlu0 %4031
        %4033 = vrot.lane.b32.xlu0 %v3134, 32
        %v4034 = vpop.permute.xlu0 %4033
        %4035 = vrot.lane.b32.xlu0 %v3135, 32
        %v4036 = vpop.permute.xlu0 %4035
        %4037 = vrot.lane.b32.xlu0 %v3136, 32
        %v4038 = vpop.permute.xlu0 %4037
        %4039 = vrot.lane.b32.xlu0 %v3137, 32
        %v4040 = vpop.permute.xlu0 %4039
        %4074 = vrot.lane.b32.xlu0 %v3054, 64
        %v4075 = vpop.permute.xlu0 %4074
        %4076 = vrot.lane.b32.xlu0 %v3066, 64
        %v4077 = vpop.permute.xlu0 %4076
        %4078 = vrot.lane.b32.xlu0 %v3078, 64
        %v4079 = vpop.permute.xlu0 %4078
        %4080 = vrot.lane.b32.xlu0 %v3090, 64
        %v4081 = vpop.permute.xlu0 %4080
        %4082 = vrot.lane.b32.xlu0 %v3102, 64
        %v4083 = vpop.permute.xlu0 %4082
        %4084 = vrot.lane.b32.xlu0 %v3114, 64
        %v4085 = vpop.permute.xlu0 %4084
        %4086 = vrot.lane.b32.xlu0 %v3126, 64
        %v4087 = vpop.permute.xlu0 %4086
        %4088 = vrot.lane.b32.xlu0 %v3138, 64
        %v4089 = vpop.permute.xlu0 %4088
        %4090 = vrot.lane.b32.xlu0 %v3139, 64
        %v4091 = vpop.permute.xlu0 %4090
        %4092 = vrot.lane.b32.xlu0 %v3140, 64
        %v4093 = vpop.permute.xlu0 %4092
        %4094 = vrot.lane.b32.xlu0 %v3141, 64
        %v4095 = vpop.permute.xlu0 %4094
        %4096 = vrot.lane.b32.xlu0 %v3142, 64
        %v4097 = vpop.permute.xlu0 %4096
        %4098 = vrot.lane.b32.xlu0 %v3143, 64
        %v4099 = vpop.permute.xlu0 %4098
        %4100 = vrot.lane.b32.xlu0 %v3144, 64
        %v4101 = vpop.permute.xlu0 %4100
        %4102 = vrot.lane.b32.xlu0 %v3145, 64
        %v4103 = vpop.permute.xlu0 %4102
        %4120 = vrot.lane.b32.xlu0 %v3055, 96
        %v4121 = vpop.permute.xlu0 %4120
        %4122 = vrot.lane.b32.xlu0 %v3067, 96
        %v4123 = vpop.permute.xlu0 %4122
        %4124 = vrot.lane.b32.xlu0 %v3079, 96
        %v4125 = vpop.permute.xlu0 %4124
        %4126 = vrot.lane.b32.xlu0 %v3091, 96
        %v4127 = vpop.permute.xlu0 %4126
        %4128 = vrot.lane.b32.xlu0 %v3103, 96
        %v4129 = vpop.permute.xlu0 %4128
        %4130 = vrot.lane.b32.xlu0 %v3115, 96
        %v4131 = vpop.permute.xlu0 %4130
        %4132 = vrot.lane.b32.xlu0 %v3127, 96
        %v4133 = vpop.permute.xlu0 %4132
        %4134 = vrot.lane.b32.xlu0 %v3139, 96
        %v4135 = vpop.permute.xlu0 %4134
        %4136 = vrot.lane.b32.xlu0 %v3140, 96
        %v4137 = vpop.permute.xlu0 %4136
        %4138 = vrot.lane.b32.xlu0 %v3141, 96
        %v4139 = vpop.permute.xlu0 %4138
        %4140 = vrot.lane.b32.xlu0 %v3142, 96
        %v4141 = vpop.permute.xlu0 %4140
        %4142 = vrot.lane.b32.xlu0 %v3143, 96
        %v4143 = vpop.permute.xlu0 %4142
        %4144 = vrot.lane.b32.xlu0 %v3144, 96
        %v4145 = vpop.permute.xlu0 %4144
        %4146 = vrot.lane.b32.xlu0 %v3145, 96
        %v4147 = vpop.permute.xlu0 %4146
        %4148 = vrot.lane.b32.xlu0 %v3146, 96
        %v4149 = vpop.permute.xlu0 %4148
        %4167 = vrot.lane.b32.xlu0 %v3141, 32
        %v4168 = vpop.permute.xlu0 %4167
        %4169 = vrot.lane.b32.xlu0 %v3142, 32
        %v4170 = vpop.permute.xlu0 %4169
        %4171 = vrot.lane.b32.xlu0 %v3143, 32
        %v4172 = vpop.permute.xlu0 %4171
        %4173 = vrot.lane.b32.xlu0 %v3144, 32
        %v4174 = vpop.permute.xlu0 %4173
        %4175 = vrot.lane.b32.xlu0 %v3145, 32
        %v4176 = vpop.permute.xlu0 %4175
        %4177 = vrot.lane.b32.xlu0 %v3146, 32
        %v4178 = vpop.permute.xlu0 %4177
        %4179 = vrot.lane.b32.xlu0 %v3147, 32
        %v4180 = vpop.permute.xlu0 %4179
        %4181 = vrot.lane.b32.xlu0 %v3148, 32
        %v4182 = vpop.permute.xlu0 %4181
        %4192 = vrot.lane.b32.xlu0 %v3064, 64
        %v4193 = vpop.permute.xlu0 %4192
        %4194 = vrot.lane.b32.xlu0 %v3065, 64
        %v4195 = vpop.permute.xlu0 %4194
        %4196 = vrot.lane.b32.xlu0 %v3076, 64
        %v4197 = vpop.permute.xlu0 %4196
        %4198 = vrot.lane.b32.xlu0 %v3077, 64
        %v4199 = vpop.permute.xlu0 %4198
        %4200 = vrot.lane.b32.xlu0 %v3088, 64
        %v4201 = vpop.permute.xlu0 %4200
        %4202 = vrot.lane.b32.xlu0 %v3089, 64
        %v4203 = vpop.permute.xlu0 %4202
        %4204 = vrot.lane.b32.xlu0 %v3100, 64
        %v4205 = vpop.permute.xlu0 %4204
        %4206 = vrot.lane.b32.xlu0 %v3101, 64
        %v4207 = vpop.permute.xlu0 %4206
        %4208 = vrot.lane.b32.xlu0 %v3112, 64
        %v4209 = vpop.permute.xlu0 %4208
        %4210 = vrot.lane.b32.xlu0 %v3113, 64
        %v4211 = vpop.permute.xlu0 %4210
        %4212 = vrot.lane.b32.xlu0 %v3124, 64
        %v4213 = vpop.permute.xlu0 %4212
        %4214 = vrot.lane.b32.xlu0 %v3125, 64
        %v4215 = vpop.permute.xlu0 %4214
        %4216 = vrot.lane.b32.xlu0 %v3135, 64
        %v4217 = vpop.permute.xlu0 %4216
        %4218 = vrot.lane.b32.xlu0 %v3136, 64
        %v4219 = vpop.permute.xlu0 %4218
        %4220 = vrot.lane.b32.xlu0 %v3137, 64
        %v4221 = vpop.permute.xlu0 %4220
        %4222 = vrot.lane.b32.xlu0 %v3146, 64
        %v4223 = vpop.permute.xlu0 %4222
        %4224 = vrot.lane.b32.xlu0 %v3147, 64
        %v4225 = vpop.permute.xlu0 %4224
        %4226 = vrot.lane.b32.xlu0 %v3148, 64
        %v4227 = vpop.permute.xlu0 %4226
        %4228 = vrot.lane.b32.xlu0 %v3149, 64
        %v4229 = vpop.permute.xlu0 %4228
        %4257 = vrot.lane.b32.xlu0 %v3066, 96
        %v4258 = vpop.permute.xlu0 %4257
        %4259 = vrot.lane.b32.xlu0 %v3078, 96
        %v4260 = vpop.permute.xlu0 %4259
        %4261 = vrot.lane.b32.xlu0 %v3090, 96
        %v4262 = vpop.permute.xlu0 %4261
        %4263 = vrot.lane.b32.xlu0 %v3102, 96
        %v4264 = vpop.permute.xlu0 %4263
        %4265 = vrot.lane.b32.xlu0 %v3114, 96
        %v4266 = vpop.permute.xlu0 %4265
        %4267 = vrot.lane.b32.xlu0 %v3126, 96
        %v4268 = vpop.permute.xlu0 %4267
        %4269 = vrot.lane.b32.xlu0 %v3138, 96
        %v4270 = vpop.permute.xlu0 %4269
        %4271 = vrot.lane.b32.xlu0 %v3150, 96
        %v4272 = vpop.permute.xlu0 %4271
        %4273 = vrot.lane.b32.xlu0 %v3151, 96
        %v4274 = vpop.permute.xlu0 %4273
        %4275 = vrot.lane.b32.xlu0 %v3152, 96
        %v4276 = vpop.permute.xlu0 %4275
        %4277 = vrot.lane.b32.xlu0 %v3153, 96
        %v4278 = vpop.permute.xlu0 %4277
        %4279 = vrot.lane.b32.xlu0 %v3154, 96
        %v4280 = vpop.permute.xlu0 %4279
        %4281 = vrot.lane.b32.xlu0 %v3155, 96
        %v4282 = vpop.permute.xlu0 %4281
        %4283 = vrot.lane.b32.xlu0 %v3156, 96
        %v4284 = vpop.permute.xlu0 %4283
        %4285 = vrot.lane.b32.xlu0 %v3157, 96
        %v4286 = vpop.permute.xlu0 %4285
        %vm4302 = vcmask 261120
        %v4303 = vsel %vm4302, %v3030, %v3239
        %v4304 = vsel %vm4302, %v3031, %v3241
        %v4305 = vsel %vm4302, %v3032, %v3243
        %v4306 = vsel %vm4302, %v3033, %v3245
        %v4307 = vsel %vm4302, %v3034, %v3247
        %v4308 = vsel %vm4302, %v3035, %v3249
        %v4309 = vsel %vm4302, %v3036, %v3251
        %v4310 = vsel %vm4302, %v3037, %v3253
        %v4311 = vsel %vm4302, %v3042, %v3255
        %v4312 = vsel %vm4302, %v3043, %v3257
        %v4313 = vsel %vm4302, %v3044, %v3259
        %v4314 = vsel %vm4302, %v3045, %v3261
        %v4315 = vsel %vm4302, %v3046, %v3263
        %v4316 = vsel %vm4302, %v3047, %v3265
        %v4317 = vsel %vm4302, %v3048, %v3267
        %v4318 = vsel %vm4302, %v3049, %v3269
        %v4319 = vsel %vm4302, %v3054, %v3271
        %v4320 = vsel %vm4302, %v3055, %v3273
        %v4321 = vsel %vm4302, %v3056, %v3275
        %v4322 = vsel %vm4302, %v3057, %v3277
        %v4323 = vsel %vm4302, %v3058, %v3279
        %v4324 = vsel %vm4302, %v3059, %v3281
        %v4325 = vsel %vm4302, %v3060, %v3283
        %v4326 = vsel %vm4302, %v3061, %v3285
        %v4327 = vsel %vm4302, %v3066, %v3287
        %v4328 = vsel %vm4302, %v3067, %v3289
        %v4329 = vsel %vm4302, %v3068, %v3291
        %v4330 = vsel %vm4302, %v3069, %v3293
        %v4331 = vsel %vm4302, %v3070, %v3295
        %v4332 = vsel %vm4302, %v3071, %v3297
        %v4333 = vsel %vm4302, %v3072, %v3299
        %v4334 = vsel %vm4302, %v3073, %v3301
        %v4335 = vsel %vm4302, %v3078, %v3303
        %v4336 = vsel %vm4302, %v3079, %v3305
        %v4337 = vsel %vm4302, %v3080, %v3307
        %v4338 = vsel %vm4302, %v3081, %v3309
        %v4339 = vsel %vm4302, %v3082, %v3311
        %v4340 = vsel %vm4302, %v3083, %v3313
        %v4341 = vsel %vm4302, %v3084, %v3315
        %v4342 = vsel %vm4302, %v3085, %v3317
        %v4343 = vsel %vm4302, %v3090, %v3319
        %v4344 = vsel %vm4302, %v3091, %v3321
        %v4345 = vsel %vm4302, %v3092, %v3323
        %v4346 = vsel %vm4302, %v3093, %v3325
        %v4347 = vsel %vm4302, %v3094, %v3327
        %v4348 = vsel %vm4302, %v3095, %v3329
        %v4349 = vsel %vm4302, %v3096, %v3331
        %v4350 = vsel %vm4302, %v3097, %v3333
        %v4351 = vsel %vm4302, %v3102, %v3335
        %v4352 = vsel %vm4302, %v3103, %v3337
        %v4353 = vsel %vm4302, %v3104, %v3339
        %v4354 = vsel %vm4302, %v3105, %v3341
        %v4355 = vsel %vm4302, %v3106, %v3343
        %v4356 = vsel %vm4302, %v3107, %v3345
        %v4357 = vsel %vm4302, %v3108, %v3347
        %v4358 = vsel %vm4302, %v3109, %v3349
        %v4359 = vsel %vm4302, %v3114, %v3351
        %v4360 = vsel %vm4302, %v3115, %v3353
        %v4361 = vsel %vm4302, %v3116, %v3355
        %v4362 = vsel %vm4302, %v3117, %v3357
        %v4363 = vsel %vm4302, %v3118, %v3359
        %v4364 = vsel %vm4302, %v3119, %v3361
        %v4365 = vsel %vm4302, %v3120, %v3363
        %v4366 = vsel %vm4302, %v3121, %v3365
        %vm4367 = vcmask 523264
        %v4368 = vsel %vm4367, %v4303, %v3439
        %v4369 = vsel %vm4367, %v4304, %v3441
        %v4370 = vsel %vm4367, %v4305, %v3443
        %v4371 = vsel %vm4367, %v4306, %v3445
        %v4372 = vsel %vm4367, %v4307, %v3447
        %v4373 = vsel %vm4367, %v4308, %v3449
        %v4374 = vsel %vm4367, %v4309, %v3451
        %v4375 = vsel %vm4367, %v4310, %v3453
        %v4376 = vsel %vm4367, %v4311, %v3455
        %v4377 = vsel %vm4367, %v4312, %v3457
        %v4378 = vsel %vm4367, %v4313, %v3459
        %v4379 = vsel %vm4367, %v4314, %v3461
        %v4380 = vsel %vm4367, %v4315, %v3463
        %v4381 = vsel %vm4367, %v4316, %v3465
        %v4382 = vsel %vm4367, %v4317, %v3467
        %v4383 = vsel %vm4367, %v4318, %v3469
        %v4384 = vsel %vm4367, %v4319, %v3471
        %v4385 = vsel %vm4367, %v4320, %v3473
        %v4386 = vsel %vm4367, %v4321, %v3475
        %v4387 = vsel %vm4367, %v4322, %v3477
        %v4388 = vsel %vm4367, %v4323, %v3479
        %v4389 = vsel %vm4367, %v4324, %v3481
        %v4390 = vsel %vm4367, %v4325, %v3483
        %v4391 = vsel %vm4367, %v4326, %v3485
        %v4392 = vsel %vm4367, %v4327, %v3487
        %v4393 = vsel %vm4367, %v4328, %v3489
        %v4394 = vsel %vm4367, %v4329, %v3491
        %v4395 = vsel %vm4367, %v4330, %v3493
        %v4396 = vsel %vm4367, %v4331, %v3495
        %v4397 = vsel %vm4367, %v4332, %v3497
        %v4398 = vsel %vm4367, %v4333, %v3499
        %v4399 = vsel %vm4367, %v4334, %v3501
        %v4400 = vsel %vm4367, %v4335, %v3503
        %v4401 = vsel %vm4367, %v4336, %v3505
        %v4402 = vsel %vm4367, %v4337, %v3507
        %v4403 = vsel %vm4367, %v4338, %v3509
        %v4404 = vsel %vm4367, %v4339, %v3511
        %v4405 = vsel %vm4367, %v4340, %v3513
        %v4406 = vsel %vm4367, %v4341, %v3515
        %v4407 = vsel %vm4367, %v4342, %v3517
        %v4408 = vsel %vm4367, %v4343, %v3519
        %v4409 = vsel %vm4367, %v4344, %v3521
        %v4410 = vsel %vm4367, %v4345, %v3523
        %v4411 = vsel %vm4367, %v4346, %v3525
        %v4412 = vsel %vm4367, %v4347, %v3527
        %v4413 = vsel %vm4367, %v4348, %v3529
        %v4414 = vsel %vm4367, %v4349, %v3531
        %v4415 = vsel %vm4367, %v4350, %v3533
        %v4416 = vsel %vm4367, %v4351, %v3535
        %v4417 = vsel %vm4367, %v4352, %v3537
        %v4418 = vsel %vm4367, %v4353, %v3539
        %v4419 = vsel %vm4367, %v4354, %v3541
        %v4420 = vsel %vm4367, %v4355, %v3543
        %v4421 = vsel %vm4367, %v4356, %v3545
        %v4422 = vsel %vm4367, %v4357, %v3547
        %v4423 = vsel %vm4367, %v4358, %v3549
        %v4424 = vsel %vm4367, %v4359, %v3551
        %v4425 = vsel %vm4367, %v4360, %v3553
        %v4426 = vsel %vm4367, %v4361, %v3555
        %v4427 = vsel %vm4367, %v4362, %v3557
        %v4428 = vsel %vm4367, %v4363, %v3559
        %v4429 = vsel %vm4367, %v4364, %v3561
        %v4430 = vsel %vm4367, %v4365, %v3563
        %v4431 = vsel %vm4367, %v4366, %v3565
        %vm4432 = vcmask 785408
        %v4433 = vsel %vm4432, %v4368, %v3639
        %v4434 = vsel %vm4432, %v4369, %v3641
        %v4435 = vsel %vm4432, %v4370, %v3643
        %v4436 = vsel %vm4432, %v4371, %v3645
        %v4437 = vsel %vm4432, %v4372, %v3647
        %v4438 = vsel %vm4432, %v4373, %v3649
        %v4439 = vsel %vm4432, %v4374, %v3651
        %v4440 = vsel %vm4432, %v4375, %v3653
        %v4441 = vsel %vm4432, %v4376, %v3655
        %v4442 = vsel %vm4432, %v4377, %v3657
        %v4443 = vsel %vm4432, %v4378, %v3659
        %v4444 = vsel %vm4432, %v4379, %v3661
        %v4445 = vsel %vm4432, %v4380, %v3663
        %v4446 = vsel %vm4432, %v4381, %v3665
        %v4447 = vsel %vm4432, %v4382, %v3667
        %v4448 = vsel %vm4432, %v4383, %v3669
        %v4449 = vsel %vm4432, %v4384, %v3671
        %v4450 = vsel %vm4432, %v4385, %v3673
        %v4451 = vsel %vm4432, %v4386, %v3675
        %v4452 = vsel %vm4432, %v4387, %v3677
        %v4453 = vsel %vm4432, %v4388, %v3679
        %v4454 = vsel %vm4432, %v4389, %v3681
        %v4455 = vsel %vm4432, %v4390, %v3683
        %v4456 = vsel %vm4432, %v4391, %v3685
        %v4457 = vsel %vm4432, %v4392, %v3687
        %v4458 = vsel %vm4432, %v4393, %v3689
        %v4459 = vsel %vm4432, %v4394, %v3691
        %v4460 = vsel %vm4432, %v4395, %v3693
        %v4461 = vsel %vm4432, %v4396, %v3695
        %v4462 = vsel %vm4432, %v4397, %v3697
        %v4463 = vsel %vm4432, %v4398, %v3699
        %v4464 = vsel %vm4432, %v4399, %v3701
        %v4465 = vsel %vm4432, %v4400, %v3703
        %v4466 = vsel %vm4432, %v4401, %v3705
        %v4467 = vsel %vm4432, %v4402, %v3707
        %v4468 = vsel %vm4432, %v4403, %v3709
        %v4469 = vsel %vm4432, %v4404, %v3711
        %v4470 = vsel %vm4432, %v4405, %v3713
        %v4471 = vsel %vm4432, %v4406, %v3715
        %v4472 = vsel %vm4432, %v4407, %v3717
        %v4473 = vsel %vm4432, %v4408, %v3719
        %v4474 = vsel %vm4432, %v4409, %v3721
        %v4475 = vsel %vm4432, %v4410, %v3723
        %v4476 = vsel %vm4432, %v4411, %v3725
        %v4477 = vsel %vm4432, %v4412, %v3727
        %v4478 = vsel %vm4432, %v4413, %v3729
        %v4479 = vsel %vm4432, %v4414, %v3731
        %v4480 = vsel %vm4432, %v4415, %v3733
        %v4481 = vsel %vm4432, %v4416, %v3735
        %v4482 = vsel %vm4432, %v4417, %v3737
        %v4483 = vsel %vm4432, %v4418, %v3739
        %v4484 = vsel %vm4432, %v4419, %v3741
        %v4485 = vsel %vm4432, %v4420, %v3743
        %v4486 = vsel %vm4432, %v4421, %v3745
        %v4487 = vsel %vm4432, %v4422, %v3747
        %v4488 = vsel %vm4432, %v4423, %v3749
        %v4489 = vsel %vm4432, %v4424, %v3751
        %v4490 = vsel %vm4432, %v4425, %v3753
        %v4491 = vsel %vm4432, %v4426, %v3755
        %v4492 = vsel %vm4432, %v4427, %v3757
        %v4493 = vsel %vm4432, %v4428, %v3759
        %v4494 = vsel %vm4432, %v4429, %v3761
        %v4495 = vsel %vm4432, %v4430, %v3763
        %v4496 = vsel %vm4432, %v4431, %v3765
        %v4497 = vsel %vm4302, %v3034, %v3846
        %v4498 = vsel %vm4302, %v3035, %v3255
        %v4499 = vsel %vm4302, %v3036, %v3257
        %v4500 = vsel %vm4302, %v3037, %v3259
        %v4501 = vsel %vm4302, %v3038, %v3261
        %v4502 = vsel %vm4302, %v3039, %v3263
        %v4503 = vsel %vm4302, %v3040, %v3265
        %v4504 = vsel %vm4302, %v3041, %v3267
        %v4505 = vsel %vm4302, %v3046, %v3848
        %v4506 = vsel %vm4302, %v3047, %v3271
        %v4507 = vsel %vm4302, %v3048, %v3273
        %v4508 = vsel %vm4302, %v3049, %v3275
        %v4509 = vsel %vm4302, %v3050, %v3277
        %v4510 = vsel %vm4302, %v3051, %v3279
        %v4511 = vsel %vm4302, %v3052, %v3281
        %v4512 = vsel %vm4302, %v3053, %v3283
        %v4513 = vsel %vm4302, %v3058, %v3850
        %v4514 = vsel %vm4302, %v3059, %v3287
        %v4515 = vsel %vm4302, %v3060, %v3289
        %v4516 = vsel %vm4302, %v3061, %v3291
        %v4517 = vsel %vm4302, %v3062, %v3293
        %v4518 = vsel %vm4302, %v3063, %v3295
        %v4519 = vsel %vm4302, %v3064, %v3297
        %v4520 = vsel %vm4302, %v3065, %v3299
        %v4521 = vsel %vm4302, %v3070, %v3852
        %v4522 = vsel %vm4302, %v3071, %v3303
        %v4523 = vsel %vm4302, %v3072, %v3305
        %v4524 = vsel %vm4302, %v3073, %v3307
        %v4525 = vsel %vm4302, %v3074, %v3309
        %v4526 = vsel %vm4302, %v3075, %v3311
        %v4527 = vsel %vm4302, %v3076, %v3313
        %v4528 = vsel %vm4302, %v3077, %v3315
        %v4529 = vsel %vm4302, %v3082, %v3854
        %v4530 = vsel %vm4302, %v3083, %v3319
        %v4531 = vsel %vm4302, %v3084, %v3321
        %v4532 = vsel %vm4302, %v3085, %v3323
        %v4533 = vsel %vm4302, %v3086, %v3325
        %v4534 = vsel %vm4302, %v3087, %v3327
        %v4535 = vsel %vm4302, %v3088, %v3329
        %v4536 = vsel %vm4302, %v3089, %v3331
        %v4537 = vsel %vm4302, %v3094, %v3856
        %v4538 = vsel %vm4302, %v3095, %v3335
        %v4539 = vsel %vm4302, %v3096, %v3337
        %v4540 = vsel %vm4302, %v3097, %v3339
        %v4541 = vsel %vm4302, %v3098, %v3341
        %v4542 = vsel %vm4302, %v3099, %v3343
        %v4543 = vsel %vm4302, %v3100, %v3345
        %v4544 = vsel %vm4302, %v3101, %v3347
        %v4545 = vsel %vm4302, %v3106, %v3858
        %v4546 = vsel %vm4302, %v3107, %v3351
        %v4547 = vsel %vm4302, %v3108, %v3353
        %v4548 = vsel %vm4302, %v3109, %v3355
        %v4549 = vsel %vm4302, %v3110, %v3357
        %v4550 = vsel %vm4302, %v3111, %v3359
        %v4551 = vsel %vm4302, %v3112, %v3361
        %v4552 = vsel %vm4302, %v3113, %v3363
        %v4553 = vsel %vm4302, %v3118, %v3860
        %v4554 = vsel %vm4302, %v3119, %v3862
        %v4555 = vsel %vm4302, %v3120, %v3864
        %v4556 = vsel %vm4302, %v3121, %v3866
        %v4557 = vsel %vm4302, %v3122, %v3868
        %v4558 = vsel %vm4302, %v3123, %v3870
        %v4559 = vsel %vm4302, %v3124, %v3872
        %v4560 = vsel %vm4302, %v3125, %v3874
        %v4561 = vsel %vm4367, %v4497, %v3892
        %v4562 = vsel %vm4367, %v4498, %v3455
        %v4563 = vsel %vm4367, %v4499, %v3457
        %v4564 = vsel %vm4367, %v4500, %v3459
        %v4565 = vsel %vm4367, %v4501, %v3461
        %v4566 = vsel %vm4367, %v4502, %v3463
        %v4567 = vsel %vm4367, %v4503, %v3465
        %v4568 = vsel %vm4367, %v4504, %v3467
        %v4569 = vsel %vm4367, %v4505, %v3894
        %v4570 = vsel %vm4367, %v4506, %v3471
        %v4571 = vsel %vm4367, %v4507, %v3473
        %v4572 = vsel %vm4367, %v4508, %v3475
        %v4573 = vsel %vm4367, %v4509, %v3477
        %v4574 = vsel %vm4367, %v4510, %v3479
        %v4575 = vsel %vm4367, %v4511, %v3481
        %v4576 = vsel %vm4367, %v4512, %v3483
        %v4577 = vsel %vm4367, %v4513, %v3896
        %v4578 = vsel %vm4367, %v4514, %v3487
        %v4579 = vsel %vm4367, %v4515, %v3489
        %v4580 = vsel %vm4367, %v4516, %v3491
        %v4581 = vsel %vm4367, %v4517, %v3493
        %v4582 = vsel %vm4367, %v4518, %v3495
        %v4583 = vsel %vm4367, %v4519, %v3497
        %v4584 = vsel %vm4367, %v4520, %v3499
        %v4585 = vsel %vm4367, %v4521, %v3898
        %v4586 = vsel %vm4367, %v4522, %v3503
        %v4587 = vsel %vm4367, %v4523, %v3505
        %v4588 = vsel %vm4367, %v4524, %v3507
        %v4589 = vsel %vm4367, %v4525, %v3509
        %v4590 = vsel %vm4367, %v4526, %v3511
        %v4591 = vsel %vm4367, %v4527, %v3513
        %v4592 = vsel %vm4367, %v4528, %v3515
        %v4593 = vsel %vm4367, %v4529, %v3900
        %v4594 = vsel %vm4367, %v4530, %v3519
        %v4595 = vsel %vm4367, %v4531, %v3521
        %v4596 = vsel %vm4367, %v4532, %v3523
        %v4597 = vsel %vm4367, %v4533, %v3525
        %v4598 = vsel %vm4367, %v4534, %v3527
        %v4599 = vsel %vm4367, %v4535, %v3529
        %v4600 = vsel %vm4367, %v4536, %v3531
        %v4601 = vsel %vm4367, %v4537, %v3902
        %v4602 = vsel %vm4367, %v4538, %v3535
        %v4603 = vsel %vm4367, %v4539, %v3537
        %v4604 = vsel %vm4367, %v4540, %v3539
        %v4605 = vsel %vm4367, %v4541, %v3541
        %v4606 = vsel %vm4367, %v4542, %v3543
        %v4607 = vsel %vm4367, %v4543, %v3545
        %v4608 = vsel %vm4367, %v4544, %v3547
        %v4609 = vsel %vm4367, %v4545, %v3904
        %v4610 = vsel %vm4367, %v4546, %v3551
        %v4611 = vsel %vm4367, %v4547, %v3553
        %v4612 = vsel %vm4367, %v4548, %v3555
        %v4613 = vsel %vm4367, %v4549, %v3557
        %v4614 = vsel %vm4367, %v4550, %v3559
        %v4615 = vsel %vm4367, %v4551, %v3561
        %v4616 = vsel %vm4367, %v4552, %v3563
        %v4617 = vsel %vm4367, %v4553, %v3906
        %v4618 = vsel %vm4367, %v4554, %v3908
        %v4619 = vsel %vm4367, %v4555, %v3910
        %v4620 = vsel %vm4367, %v4556, %v3912
        %v4621 = vsel %vm4367, %v4557, %v3914
        %v4622 = vsel %vm4367, %v4558, %v3916
        %v4623 = vsel %vm4367, %v4559, %v3918
        %v4624 = vsel %vm4367, %v4560, %v3920
        %v4625 = vsel %vm4432, %v4561, %v3938
        %v4626 = vsel %vm4432, %v4562, %v3655
        %v4627 = vsel %vm4432, %v4563, %v3657
        %v4628 = vsel %vm4432, %v4564, %v3659
        %v4629 = vsel %vm4432, %v4565, %v3661
        %v4630 = vsel %vm4432, %v4566, %v3663
        %v4631 = vsel %vm4432, %v4567, %v3665
        %v4632 = vsel %vm4432, %v4568, %v3667
        %v4633 = vsel %vm4432, %v4569, %v3940
        %v4634 = vsel %vm4432, %v4570, %v3671
        %v4635 = vsel %vm4432, %v4571, %v3673
        %v4636 = vsel %vm4432, %v4572, %v3675
        %v4637 = vsel %vm4432, %v4573, %v3677
        %v4638 = vsel %vm4432, %v4574, %v3679
        %v4639 = vsel %vm4432, %v4575, %v3681
        %v4640 = vsel %vm4432, %v4576, %v3683
        %v4641 = vsel %vm4432, %v4577, %v3942
        %v4642 = vsel %vm4432, %v4578, %v3687
        %v4643 = vsel %vm4432, %v4579, %v3689
        %v4644 = vsel %vm4432, %v4580, %v3691
        %v4645 = vsel %vm4432, %v4581, %v3693
        %v4646 = vsel %vm4432, %v4582, %v3695
        %v4647 = vsel %vm4432, %v4583, %v3697
        %v4648 = vsel %vm4432, %v4584, %v3699
        %v4649 = vsel %vm4432, %v4585, %v3944
        %v4650 = vsel %vm4432, %v4586, %v3703
        %v4651 = vsel %vm4432, %v4587, %v3705
        %v4652 = vsel %vm4432, %v4588, %v3707
        %v4653 = vsel %vm4432, %v4589, %v3709
        %v4654 = vsel %vm4432, %v4590, %v3711
        %v4655 = vsel %vm4432, %v4591, %v3713
        %v4656 = vsel %vm4432, %v4592, %v3715
        %v4657 = vsel %vm4432, %v4593, %v3946
        %v4658 = vsel %vm4432, %v4594, %v3719
        %v4659 = vsel %vm4432, %v4595, %v3721
        %v4660 = vsel %vm4432, %v4596, %v3723
        %v4661 = vsel %vm4432, %v4597, %v3725
        %v4662 = vsel %vm4432, %v4598, %v3727
        %v4663 = vsel %vm4432, %v4599, %v3729
        %v4664 = vsel %vm4432, %v4600, %v3731
        %v4665 = vsel %vm4432, %v4601, %v3948
        %v4666 = vsel %vm4432, %v4602, %v3735
        %v4667 = vsel %vm4432, %v4603, %v3737
        %v4668 = vsel %vm4432, %v4604, %v3739
        %v4669 = vsel %vm4432, %v4605, %v3741
        %v4670 = vsel %vm4432, %v4606, %v3743
        %v4671 = vsel %vm4432, %v4607, %v3745
        %v4672 = vsel %vm4432, %v4608, %v3747
        %v4673 = vsel %vm4432, %v4609, %v3950
        %v4674 = vsel %vm4432, %v4610, %v3751
        %v4675 = vsel %vm4432, %v4611, %v3753
        %v4676 = vsel %vm4432, %v4612, %v3755
        %v4677 = vsel %vm4432, %v4613, %v3757
        %v4678 = vsel %vm4432, %v4614, %v3759
        %v4679 = vsel %vm4432, %v4615, %v3761
        %v4680 = vsel %vm4432, %v4616, %v3763
        %v4681 = vsel %vm4432, %v4617, %v3952
        %v4682 = vsel %vm4432, %v4618, %v3954
        %v4683 = vsel %vm4432, %v4619, %v3956
        %v4684 = vsel %vm4432, %v4620, %v3958
        %v4685 = vsel %vm4432, %v4621, %v3960
        %v4686 = vsel %vm4432, %v4622, %v3962
        %v4687 = vsel %vm4432, %v4623, %v3964
        %v4688 = vsel %vm4432, %v4624, %v3966
        %v4689 = vsel %vm4302, %v3050, %v3992
        %v4690 = vsel %vm4302, %v3051, %v3994
        %v4691 = vsel %vm4302, %v3052, %v3996
        %v4692 = vsel %vm4302, %v3062, %v3998
        %v4693 = vsel %vm4302, %v3063, %v4000
        %v4694 = vsel %vm4302, %v3064, %v4002
        %v4695 = vsel %vm4302, %v3074, %v4004
        %v4696 = vsel %vm4302, %v3075, %v4006
        %v4697 = vsel %vm4302, %v3076, %v4008
        %v4698 = vsel %vm4302, %v3086, %v4010
        %v4699 = vsel %vm4302, %v3087, %v4012
        %v4700 = vsel %vm4302, %v3088, %v4014
        %v4701 = vsel %vm4302, %v3098, %v4016
        %v4702 = vsel %vm4302, %v3099, %v4018
        %v4703 = vsel %vm4302, %v3100, %v4020
        %v4704 = vsel %vm4302, %v3110, %v4022
        %v4705 = vsel %vm4302, %v3111, %v4024
        %v4706 = vsel %vm4302, %v3112, %v4026
        %v4707 = vsel %vm4302, %v3122, %v4028
        %v4708 = vsel %vm4302, %v3123, %v4030
        %v4709 = vsel %vm4302, %v3124, %v4032
        %v4710 = vsel %vm4302, %v3129, %v3868
        %v4711 = vsel %vm4302, %v3130, %v3870
        %v4712 = vsel %vm4302, %v3131, %v3872
        %v4713 = vsel %vm4302, %v3132, %v3874
        %v4714 = vsel %vm4302, %v3133, %v4034
        %v4715 = vsel %vm4302, %v3134, %v4036
        %v4716 = vsel %vm4302, %v3135, %v4038
        %v4717 = vsel %vm4302, %v3136, %v4040
        %v4718 = vsel %vm4367, %v4314, %v4075
        %v4719 = vsel %vm4367, %v4315, %v3894
        %v4720 = vsel %vm4367, %v4316, %v3471
        %v4721 = vsel %vm4367, %v4317, %v3473
        %v4722 = vsel %vm4367, %v4318, %v3475
        %v4723 = vsel %vm4367, %v4689, %v3477
        %v4724 = vsel %vm4367, %v4690, %v3479
        %v4725 = vsel %vm4367, %v4691, %v3481
        %v4726 = vsel %vm4367, %v4322, %v4077
        %v4727 = vsel %vm4367, %v4323, %v3896
        %v4728 = vsel %vm4367, %v4324, %v3487
        %v4729 = vsel %vm4367, %v4325, %v3489
        %v4730 = vsel %vm4367, %v4326, %v3491
        %v4731 = vsel %vm4367, %v4692, %v3493
        %v4732 = vsel %vm4367, %v4693, %v3495
        %v4733 = vsel %vm4367, %v4694, %v3497
        %v4734 = vsel %vm4367, %v4330, %v4079
        %v4735 = vsel %vm4367, %v4331, %v3898
        %v4736 = vsel %vm4367, %v4332, %v3503
        %v4737 = vsel %vm4367, %v4333, %v3505
        %v4738 = vsel %vm4367, %v4334, %v3507
        %v4739 = vsel %vm4367, %v4695, %v3509
        %v4740 = vsel %vm4367, %v4696, %v3511
        %v4741 = vsel %vm4367, %v4697, %v3513
        %v4742 = vsel %vm4367, %v4338, %v4081
        %v4743 = vsel %vm4367, %v4339, %v3900
        %v4744 = vsel %vm4367, %v4340, %v3519
        %v4745 = vsel %vm4367, %v4341, %v3521
        %v4746 = vsel %vm4367, %v4342, %v3523
        %v4747 = vsel %vm4367, %v4698, %v3525
        %v4748 = vsel %vm4367, %v4699, %v3527
        %v4749 = vsel %vm4367, %v4700, %v3529
        %v4750 = vsel %vm4367, %v4346, %v4083
        %v4751 = vsel %vm4367, %v4347, %v3902
        %v4752 = vsel %vm4367, %v4348, %v3535
        %v4753 = vsel %vm4367, %v4349, %v3537
        %v4754 = vsel %vm4367, %v4350, %v3539
        %v4755 = vsel %vm4367, %v4701, %v3541
        %v4756 = vsel %vm4367, %v4702, %v3543
        %v4757 = vsel %vm4367, %v4703, %v3545
        %v4758 = vsel %vm4367, %v4354, %v4085
        %v4759 = vsel %vm4367, %v4355, %v3904
        %v4760 = vsel %vm4367, %v4356, %v3551
        %v4761 = vsel %vm4367, %v4357, %v3553
        %v4762 = vsel %vm4367, %v4358, %v3555
        %v4763 = vsel %vm4367, %v4704, %v3557
        %v4764 = vsel %vm4367, %v4705, %v3559
        %v4765 = vsel %vm4367, %v4706, %v3561
        %v4766 = vsel %vm4367, %v4362, %v4087
        %v4767 = vsel %vm4367, %v4363, %v3906
        %v4768 = vsel %vm4367, %v4364, %v3908
        %v4769 = vsel %vm4367, %v4365, %v3910
        %v4770 = vsel %vm4367, %v4366, %v3912
        %v4771 = vsel %vm4367, %v4707, %v3914
        %v4772 = vsel %vm4367, %v4708, %v3916
        %v4773 = vsel %vm4367, %v4709, %v3918
        %v4774 = vsel %vm4367, %v4710, %v4089
        %v4775 = vsel %vm4367, %v4711, %v4091
        %v4776 = vsel %vm4367, %v4712, %v4093
        %v4777 = vsel %vm4367, %v4713, %v4095
        %v4778 = vsel %vm4367, %v4714, %v4097
        %v4779 = vsel %vm4367, %v4715, %v4099
        %v4780 = vsel %vm4367, %v4716, %v4101
        %v4781 = vsel %vm4367, %v4717, %v4103
        %v4782 = vsel %vm4432, %v4718, %v4121
        %v4783 = vsel %vm4432, %v4719, %v3940
        %v4784 = vsel %vm4432, %v4720, %v3671
        %v4785 = vsel %vm4432, %v4721, %v3673
        %v4786 = vsel %vm4432, %v4722, %v3675
        %v4787 = vsel %vm4432, %v4723, %v3677
        %v4788 = vsel %vm4432, %v4724, %v3679
        %v4789 = vsel %vm4432, %v4725, %v3681
        %v4790 = vsel %vm4432, %v4726, %v4123
        %v4791 = vsel %vm4432, %v4727, %v3942
        %v4792 = vsel %vm4432, %v4728, %v3687
        %v4793 = vsel %vm4432, %v4729, %v3689
        %v4794 = vsel %vm4432, %v4730, %v3691
        %v4795 = vsel %vm4432, %v4731, %v3693
        %v4796 = vsel %vm4432, %v4732, %v3695
        %v4797 = vsel %vm4432, %v4733, %v3697
        %v4798 = vsel %vm4432, %v4734, %v4125
        %v4799 = vsel %vm4432, %v4735, %v3944
        %v4800 = vsel %vm4432, %v4736, %v3703
        %v4801 = vsel %vm4432, %v4737, %v3705
        %v4802 = vsel %vm4432, %v4738, %v3707
        %v4803 = vsel %vm4432, %v4739, %v3709
        %v4804 = vsel %vm4432, %v4740, %v3711
        %v4805 = vsel %vm4432, %v4741, %v3713
        %v4806 = vsel %vm4432, %v4742, %v4127
        %v4807 = vsel %vm4432, %v4743, %v3946
        %v4808 = vsel %vm4432, %v4744, %v3719
        %v4809 = vsel %vm4432, %v4745, %v3721
        %v4810 = vsel %vm4432, %v4746, %v3723
        %v4811 = vsel %vm4432, %v4747, %v3725
        %v4812 = vsel %vm4432, %v4748, %v3727
        %v4813 = vsel %vm4432, %v4749, %v3729
        %v4814 = vsel %vm4432, %v4750, %v4129
        %v4815 = vsel %vm4432, %v4751, %v3948
        %v4816 = vsel %vm4432, %v4752, %v3735
        %v4817 = vsel %vm4432, %v4753, %v3737
        %v4818 = vsel %vm4432, %v4754, %v3739
        %v4819 = vsel %vm4432, %v4755, %v3741
        %v4820 = vsel %vm4432, %v4756, %v3743
        %v4821 = vsel %vm4432, %v4757, %v3745
        %v4822 = vsel %vm4432, %v4758, %v4131
        %v4823 = vsel %vm4432, %v4759, %v3950
        %v4824 = vsel %vm4432, %v4760, %v3751
        %v4825 = vsel %vm4432, %v4761, %v3753
        %v4826 = vsel %vm4432, %v4762, %v3755
        %v4827 = vsel %vm4432, %v4763, %v3757
        %v4828 = vsel %vm4432, %v4764, %v3759
        %v4829 = vsel %vm4432, %v4765, %v3761
        %v4830 = vsel %vm4432, %v4766, %v4133
        %v4831 = vsel %vm4432, %v4767, %v3952
        %v4832 = vsel %vm4432, %v4768, %v3954
        %v4833 = vsel %vm4432, %v4769, %v3956
        %v4834 = vsel %vm4432, %v4770, %v3958
        %v4835 = vsel %vm4432, %v4771, %v3960
        %v4836 = vsel %vm4432, %v4772, %v3962
        %v4837 = vsel %vm4432, %v4773, %v3964
        %v4838 = vsel %vm4432, %v4774, %v4135
        %v4839 = vsel %vm4432, %v4775, %v4137
        %v4840 = vsel %vm4432, %v4776, %v4139
        %v4841 = vsel %vm4432, %v4777, %v4141
        %v4842 = vsel %vm4432, %v4778, %v4143
        %v4843 = vsel %vm4432, %v4779, %v4145
        %v4844 = vsel %vm4432, %v4780, %v4147
        %v4845 = vsel %vm4432, %v4781, %v4149
        %v4846 = vsel %vm4302, %v3128, %v3866
        %v4847 = vsel %vm4302, %v3140, %v4168
        %v4848 = vsel %vm4302, %v3141, %v4170
        %v4849 = vsel %vm4302, %v3142, %v4172
        %v4850 = vsel %vm4302, %v3143, %v4174
        %v4851 = vsel %vm4302, %v3144, %v4176
        %v4852 = vsel %vm4302, %v3145, %v4178
        %v4853 = vsel %vm4302, %v3146, %v4180
        %v4854 = vsel %vm4302, %v3147, %v4182
        %v4855 = vsel %vm4367, %v4692, %v4193
        %v4856 = vsel %vm4367, %v4693, %v4195
        %v4857 = vsel %vm4367, %v4695, %v4197
        %v4858 = vsel %vm4367, %v4696, %v4199
        %v4859 = vsel %vm4367, %v4698, %v4201
        %v4860 = vsel %vm4367, %v4699, %v4203
        %v4861 = vsel %vm4367, %v4701, %v4205
        %v4862 = vsel %vm4367, %v4702, %v4207
        %v4863 = vsel %vm4367, %v4704, %v4209
        %v4864 = vsel %vm4367, %v4705, %v4211
        %v4865 = vsel %vm4367, %v4707, %v4213
        %v4866 = vsel %vm4367, %v4708, %v4215
        %v4867 = vsel %vm4367, %v4846, %v3912
        %v4868 = vsel %vm4367, %v4710, %v3914
        %v4869 = vsel %vm4367, %v4711, %v3916
        %v4870 = vsel %vm4367, %v4712, %v3918
        %v4871 = vsel %vm4367, %v4713, %v3920
        %v4872 = vsel %vm4367, %v4714, %v4217
        %v4873 = vsel %vm4367, %v4715, %v4219
        %v4874 = vsel %vm4367, %v4716, %v4221
        %v4875 = vsel %vm4367, %v4847, %v4097
        %v4876 = vsel %vm4367, %v4848, %v4099
        %v4877 = vsel %vm4367, %v4849, %v4101
        %v4878 = vsel %vm4367, %v4850, %v4103
        %v4879 = vsel %vm4367, %v4851, %v4223
        %v4880 = vsel %vm4367, %v4852, %v4225
        %v4881 = vsel %vm4367, %v4853, %v4227
        %v4882 = vsel %vm4367, %v4854, %v4229
        %v4883 = vsel %vm4432, %v4386, %v4258
        %v4884 = vsel %vm4432, %v4387, %v4123
        %v4885 = vsel %vm4432, %v4388, %v3942
        %v4886 = vsel %vm4432, %v4389, %v3687
        %v4887 = vsel %vm4432, %v4390, %v3689
        %v4888 = vsel %vm4432, %v4391, %v3691
        %v4889 = vsel %vm4432, %v4855, %v3693
        %v4890 = vsel %vm4432, %v4856, %v3695
        %v4891 = vsel %vm4432, %v4394, %v4260
        %v4892 = vsel %vm4432, %v4395, %v4125
        %v4893 = vsel %vm4432, %v4396, %v3944
        %v4894 = vsel %vm4432, %v4397, %v3703
        %v4895 = vsel %vm4432, %v4398, %v3705
        %v4896 = vsel %vm4432, %v4399, %v3707
        %v4897 = vsel %vm4432, %v4857, %v3709
        %v4898 = vsel %vm4432, %v4858, %v3711
        %v4899 = vsel %vm4432, %v4402, %v4262
        %v4900 = vsel %vm4432, %v4403, %v4127
        %v4901 = vsel %vm4432, %v4404, %v3946
        %v4902 = vsel %vm4432, %v4405, %v3719
        %v4903 = vsel %vm4432, %v4406, %v3721
        %v4904 = vsel %vm4432, %v4407, %v3723
        %v4905 = vsel %vm4432, %v4859, %v3725
        %v4906 = vsel %vm4432, %v4860, %v3727
        %v4907 = vsel %vm4432, %v4410, %v4264
        %v4908 = vsel %vm4432, %v4411, %v4129
        %v4909 = vsel %vm4432, %v4412, %v3948
        %v4910 = vsel %vm4432, %v4413, %v3735
        %v4911 = vsel %vm4432, %v4414, %v3737
        %v4912 = vsel %vm4432, %v4415, %v3739
        %v4913 = vsel %vm4432, %v4861, %v3741
        %v4914 = vsel %vm4432, %v4862, %v3743
        %v4915 = vsel %vm4432, %v4418, %v4266
        %v4916 = vsel %vm4432, %v4419, %v4131
        %v4917 = vsel %vm4432, %v4420, %v3950
        %v4918 = vsel %vm4432, %v4421, %v3751
        %v4919 = vsel %vm4432, %v4422, %v3753
        %v4920 = vsel %vm4432, %v4423, %v3755
        %v4921 = vsel %vm4432, %v4863, %v3757
        %v4922 = vsel %vm4432, %v4864, %v3759
        %v4923 = vsel %vm4432, %v4426, %v4268
        %v4924 = vsel %vm4432, %v4427, %v4133
        %v4925 = vsel %vm4432, %v4428, %v3952
        %v4926 = vsel %vm4432, %v4429, %v3954
        %v4927 = vsel %vm4432, %v4430, %v3956
        %v4928 = vsel %vm4432, %v4431, %v3958
        %v4929 = vsel %vm4432, %v4865, %v3960
        %v4930 = vsel %vm4432, %v4866, %v3962
        %v4931 = vsel %vm4432, %v4867, %v4270
        %v4932 = vsel %vm4432, %v4868, %v4135
        %v4933 = vsel %vm4432, %v4869, %v4137
        %v4934 = vsel %vm4432, %v4870, %v4139
        %v4935 = vsel %vm4432, %v4871, %v4141
        %v4936 = vsel %vm4432, %v4872, %v4143
        %v4937 = vsel %vm4432, %v4873, %v4145
        %v4938 = vsel %vm4432, %v4874, %v4147
        %v4939 = vsel %vm4432, %v4875, %v4272
        %v4940 = vsel %vm4432, %v4876, %v4274
        %v4941 = vsel %vm4432, %v4877, %v4276
        %v4942 = vsel %vm4432, %v4878, %v4278
        %v4943 = vsel %vm4432, %v4879, %v4280
        %v4944 = vsel %vm4432, %v4880, %v4282
        %v4945 = vsel %vm4432, %v4881, %v4284
        %v4946 = vsel %vm4432, %v4882, %v4286
        %4949 = vrot.lane.b32.xlu0 %v3140, 32
        %v4950 = vpop.permute.xlu0 %4949
        %4951 = vrot.lane.b32.xlu0 %v3152, 32
        %v4952 = vpop.permute.xlu0 %4951
        %4953 = vrot.lane.b32.xlu0 %v3153, 32
        %v4954 = vpop.permute.xlu0 %4953
        %4955 = vrot.lane.b32.xlu0 %v3154, 32
        %v4956 = vpop.permute.xlu0 %4955
        %4957 = vrot.lane.b32.xlu0 %v3155, 32
        %v4958 = vpop.permute.xlu0 %4957
        %4959 = vrot.lane.b32.xlu0 %v3156, 32
        %v4960 = vpop.permute.xlu0 %4959
        %4961 = vrot.lane.b32.xlu0 %v3157, 32
        %v4962 = vpop.permute.xlu0 %4961
        %4963 = vrot.lane.b32.xlu0 %v3158, 32
        %v4964 = vpop.permute.xlu0 %4963
        %4965 = vrot.lane.b32.xlu0 %v3159, 32
        %v4966 = vpop.permute.xlu0 %4965
        %4977 = vrot.lane.b32.xlu0 %v3153, 64
        %v4978 = vpop.permute.xlu0 %4977
        %4979 = vrot.lane.b32.xlu0 %v3154, 64
        %v4980 = vpop.permute.xlu0 %4979
        %4981 = vrot.lane.b32.xlu0 %v3155, 64
        %v4982 = vpop.permute.xlu0 %4981
        %4983 = vrot.lane.b32.xlu0 %v3156, 64
        %v4984 = vpop.permute.xlu0 %4983
        %4985 = vrot.lane.b32.xlu0 %v3157, 64
        %v4986 = vpop.permute.xlu0 %4985
        %4987 = vrot.lane.b32.xlu0 %v3158, 64
        %v4988 = vpop.permute.xlu0 %4987
        %4989 = vrot.lane.b32.xlu0 %v3159, 64
        %v4990 = vpop.permute.xlu0 %4989
        %4991 = vrot.lane.b32.xlu0 %v3160, 64
        %v4992 = vpop.permute.xlu0 %4991
        %5002 = vrot.lane.b32.xlu0 %v3077, 96
        %v5003 = vpop.permute.xlu0 %5002
        %5004 = vrot.lane.b32.xlu0 %v3089, 96
        %v5005 = vpop.permute.xlu0 %5004
        %5006 = vrot.lane.b32.xlu0 %v3101, 96
        %v5007 = vpop.permute.xlu0 %5006
        %5008 = vrot.lane.b32.xlu0 %v3113, 96
        %v5009 = vpop.permute.xlu0 %5008
        %5010 = vrot.lane.b32.xlu0 %v3125, 96
        %v5011 = vpop.permute.xlu0 %5010
        %5012 = vrot.lane.b32.xlu0 %v3136, 96
        %v5013 = vpop.permute.xlu0 %5012
        %5014 = vrot.lane.b32.xlu0 %v3137, 96
        %v5015 = vpop.permute.xlu0 %5014
        %5016 = vrot.lane.b32.xlu0 %v3147, 96
        %v5017 = vpop.permute.xlu0 %5016
        %5018 = vrot.lane.b32.xlu0 %v3148, 96
        %v5019 = vpop.permute.xlu0 %5018
        %5020 = vrot.lane.b32.xlu0 %v3149, 96
        %v5021 = vpop.permute.xlu0 %5020
        %5022 = vrot.lane.b32.xlu0 %v3158, 96
        %v5023 = vpop.permute.xlu0 %5022
        %5024 = vrot.lane.b32.xlu0 %v3159, 96
        %v5025 = vpop.permute.xlu0 %5024
        %5026 = vrot.lane.b32.xlu0 %v3160, 96
        %v5027 = vpop.permute.xlu0 %5026
        %5028 = vrot.lane.b32.xlu0 %v3161, 96
        %v5029 = vpop.permute.xlu0 %5028
        %5052 = vrot.lane.b32.xlu0 %v3139, 32
        %v5053 = vpop.permute.xlu0 %5052
        %5054 = vrot.lane.b32.xlu0 %v3151, 32
        %v5055 = vpop.permute.xlu0 %5054
        %5056 = vrot.lane.b32.xlu0 %v3163, 32
        %v5057 = vpop.permute.xlu0 %5056
        %5058 = vrot.lane.b32.xlu0 %v3164, 32
        %v5059 = vpop.permute.xlu0 %5058
        %5060 = vrot.lane.b32.xlu0 %v3165, 32
        %v5061 = vpop.permute.xlu0 %5060
        %5062 = vrot.lane.b32.xlu0 %v3166, 32
        %v5063 = vpop.permute.xlu0 %5062
        %5064 = vrot.lane.b32.xlu0 %v3167, 32
        %v5065 = vpop.permute.xlu0 %5064
        %5066 = vrot.lane.b32.xlu0 %v3168, 32
        %v5067 = vpop.permute.xlu0 %5066
        %5068 = vrot.lane.b32.xlu0 %v3169, 32
        %v5069 = vpop.permute.xlu0 %5068
        %5070 = vrot.lane.b32.xlu0 %v3170, 32
        %v5071 = vpop.permute.xlu0 %5070
        %5083 = vrot.lane.b32.xlu0 %v3152, 64
        %v5084 = vpop.permute.xlu0 %5083
        %5085 = vrot.lane.b32.xlu0 %v3164, 64
        %v5086 = vpop.permute.xlu0 %5085
        %5087 = vrot.lane.b32.xlu0 %v3165, 64
        %v5088 = vpop.permute.xlu0 %5087
        %5089 = vrot.lane.b32.xlu0 %v3166, 64
        %v5090 = vpop.permute.xlu0 %5089
        %5091 = vrot.lane.b32.xlu0 %v3167, 64
        %v5092 = vpop.permute.xlu0 %5091
        %5093 = vrot.lane.b32.xlu0 %v3168, 64
        %v5094 = vpop.permute.xlu0 %5093
        %5095 = vrot.lane.b32.xlu0 %v3169, 64
        %v5096 = vpop.permute.xlu0 %5095
        %5097 = vrot.lane.b32.xlu0 %v3170, 64
        %v5098 = vpop.permute.xlu0 %5097
        %5099 = vrot.lane.b32.xlu0 %v3171, 64
        %v5100 = vpop.permute.xlu0 %5099
        %5111 = vrot.lane.b32.xlu0 %v3165, 96
        %v5112 = vpop.permute.xlu0 %5111
        %5113 = vrot.lane.b32.xlu0 %v3166, 96
        %v5114 = vpop.permute.xlu0 %5113
        %5115 = vrot.lane.b32.xlu0 %v3167, 96
        %v5116 = vpop.permute.xlu0 %5115
        %5117 = vrot.lane.b32.xlu0 %v3168, 96
        %v5118 = vpop.permute.xlu0 %5117
        %5119 = vrot.lane.b32.xlu0 %v3169, 96
        %v5120 = vpop.permute.xlu0 %5119
        %5121 = vrot.lane.b32.xlu0 %v3170, 96
        %v5122 = vpop.permute.xlu0 %5121
        %5123 = vrot.lane.b32.xlu0 %v3171, 96
        %v5124 = vpop.permute.xlu0 %5123
        %5125 = vrot.lane.b32.xlu0 %v3172, 96
        %v5126 = vpop.permute.xlu0 %5125
        %v5135 = vsel %vm4302, %v3127, %v3864
        %v5136 = vsel %vm4302, %v3139, %v4950
        %v5137 = vsel %vm4302, %v3151, %v4952
        %v5138 = vsel %vm4302, %v3152, %v4954
        %v5139 = vsel %vm4302, %v3153, %v4956
        %v5140 = vsel %vm4302, %v3154, %v4958
        %v5141 = vsel %vm4302, %v3155, %v4960
        %v5142 = vsel %vm4302, %v3156, %v4962
        %v5143 = vsel %vm4302, %v3157, %v4964
        %v5144 = vsel %vm4302, %v3158, %v4966
        %v5145 = vsel %vm4367, %v5135, %v3910
        %v5146 = vsel %vm4367, %v5136, %v4095
        %v5147 = vsel %vm4367, %v5137, %v4978
        %v5148 = vsel %vm4367, %v5138, %v4980
        %v5149 = vsel %vm4367, %v5139, %v4982
        %v5150 = vsel %vm4367, %v5140, %v4984
        %v5151 = vsel %vm4367, %v5141, %v4986
        %v5152 = vsel %vm4367, %v5142, %v4988
        %v5153 = vsel %vm4367, %v5143, %v4990
        %v5154 = vsel %vm4367, %v5144, %v4992
        %v5155 = vsel %vm4432, %v4857, %v5003
        %v5156 = vsel %vm4432, %v4859, %v5005
        %v5157 = vsel %vm4432, %v4861, %v5007
        %v5158 = vsel %vm4432, %v4863, %v5009
        %v5159 = vsel %vm4432, %v4865, %v5011
        %v5160 = vsel %vm4432, %v5145, %v3956
        %v5161 = vsel %vm4432, %v4867, %v3958
        %v5162 = vsel %vm4432, %v4868, %v3960
        %v5163 = vsel %vm4432, %v4869, %v3962
        %v5164 = vsel %vm4432, %v4870, %v3964
        %v5165 = vsel %vm4432, %v4871, %v3966
        %v5166 = vsel %vm4432, %v4872, %v5013
        %v5167 = vsel %vm4432, %v4873, %v5015
        %v5168 = vsel %vm4432, %v5146, %v4141
        %v5169 = vsel %vm4432, %v4875, %v4143
        %v5170 = vsel %vm4432, %v4876, %v4145
        %v5171 = vsel %vm4432, %v4877, %v4147
        %v5172 = vsel %vm4432, %v4878, %v4149
        %v5173 = vsel %vm4432, %v4879, %v5017
        %v5174 = vsel %vm4432, %v4880, %v5019
        %v5175 = vsel %vm4432, %v4881, %v5021
        %v5176 = vsel %vm4432, %v5147, %v4280
        %v5177 = vsel %vm4432, %v5148, %v4282
        %v5178 = vsel %vm4432, %v5149, %v4284
        %v5179 = vsel %vm4432, %v5150, %v4286
        %v5180 = vsel %vm4432, %v5151, %v5023
        %v5181 = vsel %vm4432, %v5152, %v5025
        %v5182 = vsel %vm4432, %v5153, %v5027
        %v5183 = vsel %vm4432, %v5154, %v5029
        %v5184 = vsel %vm4302, %v3126, %v3862
        %v5185 = vsel %vm4302, %v3138, %v5053
        %v5186 = vsel %vm4302, %v3150, %v5055
        %v5187 = vsel %vm4302, %v3162, %v5057
        %v5188 = vsel %vm4302, %v3163, %v5059
        %v5189 = vsel %vm4302, %v3164, %v5061
        %v5190 = vsel %vm4302, %v3165, %v5063
        %v5191 = vsel %vm4302, %v3166, %v5065
        %v5192 = vsel %vm4302, %v3167, %v5067
        %v5193 = vsel %vm4302, %v3168, %v5069
        %v5194 = vsel %vm4302, %v3169, %v5071
        %v5195 = vsel %vm4367, %v5184, %v3908
        %v5196 = vsel %vm4367, %v5185, %v4093
        %v5197 = vsel %vm4367, %v5186, %v5084
        %v5198 = vsel %vm4367, %v5187, %v5086
        %v5199 = vsel %vm4367, %v5188, %v5088
        %v5200 = vsel %vm4367, %v5189, %v5090
        %v5201 = vsel %vm4367, %v5190, %v5092
        %v5202 = vsel %vm4367, %v5191, %v5094
        %v5203 = vsel %vm4367, %v5192, %v5096
        %v5204 = vsel %vm4367, %v5193, %v5098
        %v5205 = vsel %vm4367, %v5194, %v5100
        %v5206 = vsel %vm4432, %v5195, %v3954
        %v5207 = vsel %vm4432, %v5196, %v4139
        %v5208 = vsel %vm4432, %v5197, %v4278
        %v5209 = vsel %vm4432, %v5198, %v5112
        %v5210 = vsel %vm4432, %v5199, %v5114
        %v5211 = vsel %vm4432, %v5200, %v5116
        %v5212 = vsel %vm4432, %v5201, %v5118
        %v5213 = vsel %vm4432, %v5202, %v5120
        %v5214 = vsel %vm4432, %v5203, %v5122
        %v5215 = vsel %vm4432, %v5204, %v5124
        %v5216 = vsel %vm4432, %v5205, %v5126
        %v5217 = vpack.c.bf16 %v4434, %v4433
        %v5218 = vpack.c.bf16 %v4626, %v4625
        %v5219 = vpack.c.bf16 %v4783, %v4782
        %v5220 = vpack.c.bf16 %v4884, %v4883
        %v5221 = vpack.c.bf16 %v4459, %v4458
        %v5222 = vpack.c.bf16 %v4466, %v4465
        %v5223 = vpack.c.bf16 %v3083, %v3082
        %v5224 = vpack.c.bf16 %v4436, %v4435
        %v5225 = vpack.c.bf16 %v4628, %v4627
        %v5226 = vpack.c.bf16 %v4785, %v4784
        %v5227 = vpack.c.bf16 %v4886, %v4885
        %v5228 = vpack.c.bf16 %v4461, %v4460
        %v5229 = vpack.c.bf16 %v4468, %v4467
        %v5230 = vpack.c.bf16 %v3085, %v3084
        %v5231 = vpack.c.bf16 %v4438, %v4437
        %v5232 = vpack.c.bf16 %v4630, %v4629
        %v5233 = vpack.c.bf16 %v4787, %v4786
        %v5234 = vpack.c.bf16 %v4888, %v4887
        %v5235 = vpack.c.bf16 %v4463, %v4462
        %v5236 = vpack.c.bf16 %v4470, %v4469
        %v5237 = vpack.c.bf16 %v3087, %v3086
        %v5238 = vpack.c.bf16 %v4440, %v4439
        %v5239 = vpack.c.bf16 %v4632, %v4631
        %v5240 = vpack.c.bf16 %v4789, %v4788
        %v5241 = vpack.c.bf16 %v4890, %v4889
        %v5242 = vpack.c.bf16 %v5155, %v4464
        %v5243 = vpack.c.bf16 %v4472, %v4471
        %v5244 = vpack.c.bf16 %v3089, %v3088
        %v5245 = vpack.c.bf16 %v4442, %v4441
        %v5246 = vpack.c.bf16 %v4634, %v4633
        %v5247 = vpack.c.bf16 %v4791, %v4790
        %v5248 = vpack.c.bf16 %v4892, %v4891
        %v5249 = vpack.c.bf16 %v4467, %v4466
        %v5250 = vpack.c.bf16 %v4474, %v4473
        %v5251 = vpack.c.bf16 %v3095, %v3094
        %v5252 = vpack.c.bf16 %v4444, %v4443
        %v5253 = vpack.c.bf16 %v4636, %v4635
        %v5254 = vpack.c.bf16 %v4793, %v4792
        %v5255 = vpack.c.bf16 %v4894, %v4893
        %v5256 = vpack.c.bf16 %v4469, %v4468
        %v5257 = vpack.c.bf16 %v4476, %v4475
        %v5258 = vpack.c.bf16 %v3097, %v3096
        %v5259 = vpack.c.bf16 %v4446, %v4445
        %v5260 = vpack.c.bf16 %v4638, %v4637
        %v5261 = vpack.c.bf16 %v4795, %v4794
        %v5262 = vpack.c.bf16 %v4896, %v4895
        %v5263 = vpack.c.bf16 %v4471, %v4470
        %v5264 = vpack.c.bf16 %v4478, %v4477
        %v5265 = vpack.c.bf16 %v3099, %v3098
        %v5266 = vpack.c.bf16 %v4448, %v4447
        %v5267 = vpack.c.bf16 %v4640, %v4639
        %v5268 = vpack.c.bf16 %v4797, %v4796
        %v5269 = vpack.c.bf16 %v4898, %v4897
        %v5270 = vpack.c.bf16 %v5156, %v4472
        %v5271 = vpack.c.bf16 %v4480, %v4479
        %v5272 = vpack.c.bf16 %v3101, %v3100
        %v5273 = vpack.c.bf16 %v4450, %v4449
        %v5274 = vpack.c.bf16 %v4642, %v4641
        %v5275 = vpack.c.bf16 %v4799, %v4798
        %v5276 = vpack.c.bf16 %v4900, %v4899
        %v5277 = vpack.c.bf16 %v4475, %v4474
        %v5278 = vpack.c.bf16 %v4482, %v4481
        %v5279 = vpack.c.bf16 %v3107, %v3106
        %v5280 = vpack.c.bf16 %v4452, %v4451
        %v5281 = vpack.c.bf16 %v4644, %v4643
        %v5282 = vpack.c.bf16 %v4801, %v4800
        %v5283 = vpack.c.bf16 %v4902, %v4901
        %v5284 = vpack.c.bf16 %v4477, %v4476
        %v5285 = vpack.c.bf16 %v4484, %v4483
        %v5286 = vpack.c.bf16 %v3109, %v3108
        %v5287 = vpack.c.bf16 %v4454, %v4453
        %v5288 = vpack.c.bf16 %v4646, %v4645
        %v5289 = vpack.c.bf16 %v4803, %v4802
        %v5290 = vpack.c.bf16 %v4904, %v4903
        %v5291 = vpack.c.bf16 %v4479, %v4478
        %v5292 = vpack.c.bf16 %v4486, %v4485
        %v5293 = vpack.c.bf16 %v3111, %v3110
        %v5294 = vpack.c.bf16 %v4456, %v4455
        %v5295 = vpack.c.bf16 %v4648, %v4647
        %v5296 = vpack.c.bf16 %v4805, %v4804
        %v5297 = vpack.c.bf16 %v4906, %v4905
        %v5298 = vpack.c.bf16 %v5157, %v4480
        %v5299 = vpack.c.bf16 %v4488, %v4487
        %v5300 = vpack.c.bf16 %v3113, %v3112
        %v5301 = vpack.c.bf16 %v4458, %v4457
        %v5302 = vpack.c.bf16 %v4650, %v4649
        %v5303 = vpack.c.bf16 %v4807, %v4806
        %v5304 = vpack.c.bf16 %v4908, %v4907
        %v5305 = vpack.c.bf16 %v4483, %v4482
        %v5306 = vpack.c.bf16 %v4490, %v4489
        %v5307 = vpack.c.bf16 %v3119, %v3118
        %v5308 = vpack.c.bf16 %v4460, %v4459
        %v5309 = vpack.c.bf16 %v4652, %v4651
        %v5310 = vpack.c.bf16 %v4809, %v4808
        %v5311 = vpack.c.bf16 %v4910, %v4909
        %v5312 = vpack.c.bf16 %v4485, %v4484
        %v5313 = vpack.c.bf16 %v4492, %v4491
        %v5314 = vpack.c.bf16 %v3121, %v3120
        %v5315 = vpack.c.bf16 %v4462, %v4461
        %v5316 = vpack.c.bf16 %v4654, %v4653
        %v5317 = vpack.c.bf16 %v4811, %v4810
        %v5318 = vpack.c.bf16 %v4912, %v4911
        %v5319 = vpack.c.bf16 %v4487, %v4486
        %v5320 = vpack.c.bf16 %v4494, %v4493
        %v5321 = vpack.c.bf16 %v3123, %v3122
        %v5322 = vpack.c.bf16 %v4464, %v4463
        %v5323 = vpack.c.bf16 %v4656, %v4655
        %v5324 = vpack.c.bf16 %v4813, %v4812
        %v5325 = vpack.c.bf16 %v4914, %v4913
        %v5326 = vpack.c.bf16 %v5158, %v4488
        %v5327 = vpack.c.bf16 %v4496, %v4495
        %v5328 = vpack.c.bf16 %v3125, %v3124
        %v5329 = vpack.c.bf16 %v4658, %v4657
        %v5330 = vpack.c.bf16 %v4815, %v4814
        %v5331 = vpack.c.bf16 %v4916, %v4915
        %v5332 = vpack.c.bf16 %v4491, %v4490
        %v5333 = vpack.c.bf16 %v5160, %v5206
        %v5334 = vpack.c.bf16 %v3131, %v3130
        %v5335 = vpack.c.bf16 %v4660, %v4659
        %v5336 = vpack.c.bf16 %v4817, %v4816
        %v5337 = vpack.c.bf16 %v4918, %v4917
        %v5338 = vpack.c.bf16 %v4493, %v4492
        %v5339 = vpack.c.bf16 %v5162, %v5161
        %v5340 = vpack.c.bf16 %v3133, %v3132
        %v5341 = vpack.c.bf16 %v4662, %v4661
        %v5342 = vpack.c.bf16 %v4819, %v4818
        %v5343 = vpack.c.bf16 %v4920, %v4919
        %v5344 = vpack.c.bf16 %v4495, %v4494
        %v5345 = vpack.c.bf16 %v5164, %v5163
        %v5346 = vpack.c.bf16 %v3135, %v3134
        %v5347 = vpack.c.bf16 %v4664, %v4663
        %v5348 = vpack.c.bf16 %v4821, %v4820
        %v5349 = vpack.c.bf16 %v4922, %v4921
        %v5350 = vpack.c.bf16 %v5159, %v4496
        %v5351 = vpack.c.bf16 %v5166, %v5165
        %v5352 = vpack.c.bf16 %v3137, %v3136
        %v5353 = vpack.c.bf16 %v4666, %v4665
        %v5354 = vpack.c.bf16 %v4823, %v4822
        %v5355 = vpack.c.bf16 %v4924, %v4923
        %v5356 = vpack.c.bf16 %v5161, %v5160
        %v5357 = vpack.c.bf16 %v5168, %v5207
        %v5358 = vpack.c.bf16 %v3143, %v3142
        %v5359 = vpack.c.bf16 %v4668, %v4667
        %v5360 = vpack.c.bf16 %v4825, %v4824
        %v5361 = vpack.c.bf16 %v4926, %v4925
        %v5362 = vpack.c.bf16 %v5163, %v5162
        %v5363 = vpack.c.bf16 %v5170, %v5169
        %v5364 = vpack.c.bf16 %v3145, %v3144
        %v5365 = vpack.c.bf16 %v4670, %v4669
        %v5366 = vpack.c.bf16 %v4827, %v4826
        %v5367 = vpack.c.bf16 %v4928, %v4927
        %v5368 = vpack.c.bf16 %v5165, %v5164
        %v5369 = vpack.c.bf16 %v5172, %v5171
        %v5370 = vpack.c.bf16 %v3147, %v3146
        %v5371 = vpack.c.bf16 %v4672, %v4671
        %v5372 = vpack.c.bf16 %v4829, %v4828
        %v5373 = vpack.c.bf16 %v4930, %v4929
        %v5374 = vpack.c.bf16 %v5167, %v5166
        %v5375 = vpack.c.bf16 %v5174, %v5173
        %v5376 = vpack.c.bf16 %v3149, %v3148
        %v5377 = vpack.c.bf16 %v4674, %v4673
        %v5378 = vpack.c.bf16 %v4831, %v4830
        %v5379 = vpack.c.bf16 %v4932, %v4931
        %v5380 = vpack.c.bf16 %v5169, %v5168
        %v5381 = vpack.c.bf16 %v5176, %v5208
        %v5382 = vpack.c.bf16 %v3155, %v3154
        %v5383 = vpack.c.bf16 %v4676, %v4675
        %v5384 = vpack.c.bf16 %v4833, %v4832
        %v5385 = vpack.c.bf16 %v4934, %v4933
        %v5386 = vpack.c.bf16 %v5171, %v5170
        %v5387 = vpack.c.bf16 %v5178, %v5177
        %v5388 = vpack.c.bf16 %v3157, %v3156
        %v5389 = vpack.c.bf16 %v4678, %v4677
        %v5390 = vpack.c.bf16 %v4835, %v4834
        %v5391 = vpack.c.bf16 %v4936, %v4935
        %v5392 = vpack.c.bf16 %v5173, %v5172
        %v5393 = vpack.c.bf16 %v5180, %v5179
        %v5394 = vpack.c.bf16 %v3159, %v3158
        %v5395 = vpack.c.bf16 %v4680, %v4679
        %v5396 = vpack.c.bf16 %v4837, %v4836
        %v5397 = vpack.c.bf16 %v4938, %v4937
        %v5398 = vpack.c.bf16 %v5175, %v5174
        %v5399 = vpack.c.bf16 %v5182, %v5181
        %v5400 = vpack.c.bf16 %v3161, %v3160
        %v5401 = vpack.c.bf16 %v4682, %v4681
        %v5402 = vpack.c.bf16 %v4839, %v4838
        %v5403 = vpack.c.bf16 %v4940, %v4939
        %v5404 = vpack.c.bf16 %v5177, %v5176
        %v5405 = vpack.c.bf16 %v5210, %v5209
        %v5406 = vpack.c.bf16 %v3167, %v3166
        %v5407 = vpack.c.bf16 %v4684, %v4683
        %v5408 = vpack.c.bf16 %v4841, %v4840
        %v5409 = vpack.c.bf16 %v4942, %v4941
        %v5410 = vpack.c.bf16 %v5179, %v5178
        %v5411 = vpack.c.bf16 %v5212, %v5211
        %v5412 = vpack.c.bf16 %v3169, %v3168
        %v5413 = vpack.c.bf16 %v4686, %v4685
        %v5414 = vpack.c.bf16 %v4843, %v4842
        %v5415 = vpack.c.bf16 %v4944, %v4943
        %v5416 = vpack.c.bf16 %v5181, %v5180
        %v5417 = vpack.c.bf16 %v5214, %v5213
        %v5418 = vpack.c.bf16 %v3171, %v3170
        %v5419 = vpack.c.bf16 %v4688, %v4687
        %v5420 = vpack.c.bf16 %v4845, %v4844
        %v5421 = vpack.c.bf16 %v4946, %v4945
        %v5422 = vpack.c.bf16 %v5183, %v5182
        %v5423 = vpack.c.bf16 %v5216, %v5215
        %v5424 = vpack.c.bf16 %v3173, %v3172
        %v5425 = vld [vmem:[%s3] sm:$0xf]
        %v5426 = vld [vmem:[%s3 + $0x4] sm:$0xf]
        %v5427 = vld [vmem:[%s3 + $0x8] sm:$0xf]
        %v5428 = vld [vmem:[%s3 + $0xc] sm:$0xf]
        %v5429 = vld [vmem:[%s3 + $0x10] sm:$0xf]
        %v5430 = vld [vmem:[%s3 + $0x14] sm:$0xf]
        %v5431 = vld [vmem:[%s3 + $0x18] sm:$0xf]
        %v5432 = vld [vmem:[%s3 + $0x1c] sm:$0xf]
        %v5433 = vld [vmem:[%s3 + $0x20] sm:$0xf]
        %v5434 = vld [vmem:[%s3 + $0x24] sm:$0xf]
        %v5435 = vld [vmem:[%s3 + $0x28] sm:$0xf]
        %v5436 = vld [vmem:[%s3 + $0x2c] sm:$0xf]
        %v5437 = vld [vmem:[%s3 + $0x30] sm:$0xf]
        %v5438 = vld [vmem:[%s3 + $0x34] sm:$0xf]
        %v5439 = vld [vmem:[%s3 + $0x38] sm:$0xf]
        %v5440 = vld [vmem:[%s3 + $0x3c] sm:$0xf]
        %v5441 = vld [vmem:[%s3 + $0x40] sm:$0xf]
        %v5442 = vld [vmem:[%s3 + $0x44] sm:$0xf]
        %v5443 = vld [vmem:[%s3 + $0x48] sm:$0xf]
        %v5444 = vld [vmem:[%s3 + $0x4c] sm:$0xf]
        %v5445 = vld [vmem:[%s3 + $0x50] sm:$0xf]
        %v5446 = vld [vmem:[%s3 + $0x54] sm:$0xf]
        %v5447 = vld [vmem:[%s3 + $0x58] sm:$0xf]
        %v5448 = vld [vmem:[%s3 + $0x5c] sm:$0xf]
        %v5449 = vld [vmem:[%s3 + $0x60] sm:$0xf]
        %v5450 = vld [vmem:[%s3 + $0x64] sm:$0xf]
        %v5451 = vld [vmem:[%s3 + $0x68] sm:$0xf]
        %v5452 = vld [vmem:[%s3 + $0x6c] sm:$0xf]
        %v5453 = vld [vmem:[%s3 + $0x70] sm:$0xf]
        %v5454 = vld [vmem:[%s3 + $0x74] sm:$0xf]
        %v5455 = vld [vmem:[%s3 + $0x78] sm:$0xf]
        %v5456 = vld [vmem:[%s3 + $0x7c] sm:$0xf]
        %v5457 = vld [vmem:[%s3 + $0x80] sm:$0xf]
        %v5458 = vld [vmem:[%s3 + $0x84] sm:$0xf]
        %v5459 = vld [vmem:[%s3 + $0x88] sm:$0xf]
        %v5460 = vld [vmem:[%s3 + $0x8c] sm:$0xf]
        %v5461 = vld [vmem:[%s3 + $0x90] sm:$0xf]
        %v5462 = vld [vmem:[%s3 + $0x94] sm:$0xf]
        %v5463 = vld [vmem:[%s3 + $0x98] sm:$0xf]
        %v5464 = vld [vmem:[%s3 + $0x9c] sm:$0xf]
        %v5465 = vld [vmem:[%s3 + $0xa0] sm:$0xf]
        %v5466 = vld [vmem:[%s3 + $0xa4] sm:$0xf]
        %v5467 = vld [vmem:[%s3 + $0xa8] sm:$0xf]
        %v5468 = vld [vmem:[%s3 + $0xac] sm:$0xf]
        %v5469 = vld [vmem:[%s3 + $0xb0] sm:$0xf]
        %v5470 = vld [vmem:[%s3 + $0xb4] sm:$0xf]
        %v5471 = vld [vmem:[%s3 + $0xb8] sm:$0xf]
        %v5472 = vld [vmem:[%s3 + $0xbc] sm:$0xf]
        %v5473 = vld [vmem:[%s3 + $0xc0] sm:$0xf]
        %v5474 = vld [vmem:[%s3 + $0xc4] sm:$0xf]
        %v5475 = vld [vmem:[%s3 + $0xc8] sm:$0xf]
        %v5476 = vld [vmem:[%s3 + $0xcc] sm:$0xf]
        %v5477 = vld [vmem:[%s3 + $0xd0] sm:$0xf]
        %v5478 = vld [vmem:[%s3 + $0xd4] sm:$0xf]
        %v5479 = vld [vmem:[%s3 + $0xd8] sm:$0xf]
        %v5480 = vld [vmem:[%s3 + $0xdc] sm:$0xf]
        %v5481 = vld [vmem:[%s3 + $0xe0] sm:$0xf]
        %v5482 = vld [vmem:[%s3 + $0xe4] sm:$0xf]
        %v5483 = vld [vmem:[%s3 + $0xe8] sm:$0xf]
        %v5484 = vld [vmem:[%s3 + $0xec] sm:$0xf]
        %v5485 = vld [vmem:[%s3 + $0xf0] sm:$0xf]
        %v5486 = vld [vmem:[%s3 + $0xf4] sm:$0xf]
        %v5487 = vld [vmem:[%s3 + $0xf8] sm:$0xf]
        %v5488 = vld [vmem:[%s3 + $0xfc] sm:$0xf]
        %v5489 = vld [vmem:[%s3 + $0x100] sm:$0xf]
        %v5490 = vld [vmem:[%s3 + $0x104] sm:$0xf]
        %v5491 = vld [vmem:[%s3 + $0x108] sm:$0xf]
        %v5492 = vld [vmem:[%s3 + $0x10c] sm:$0xf]
        %v5493 = vld [vmem:[%s3 + $0x110] sm:$0xf]
        %v5494 = vld [vmem:[%s3 + $0x114] sm:$0xf]
        %v5495 = vld [vmem:[%s3 + $0x118] sm:$0xf]
        %v5496 = vld [vmem:[%s3 + $0x11c] sm:$0xf]
        %v5497 = vld [vmem:[%s3 + $0x120] sm:$0xf]
        %v5498 = vld [vmem:[%s3 + $0x124] sm:$0xf]
        %v5499 = vld [vmem:[%s3 + $0x128] sm:$0xf]
        %v5500 = vld [vmem:[%s3 + $0x12c] sm:$0xf]
        %v5501 = vld [vmem:[%s3 + $0x130] sm:$0xf]
        %v5502 = vld [vmem:[%s3 + $0x134] sm:$0xf]
        %v5503 = vld [vmem:[%s3 + $0x138] sm:$0xf]
        %v5504 = vld [vmem:[%s3 + $0x13c] sm:$0xf]
        %v5505 = vld [vmem:[%s3 + $0x140] sm:$0xf]
        %v5506 = vld [vmem:[%s3 + $0x144] sm:$0xf]
        %v5507 = vld [vmem:[%s3 + $0x148] sm:$0xf]
        %v5508 = vld [vmem:[%s3 + $0x14c] sm:$0xf]
        %v5509 = vld [vmem:[%s3 + $0x150] sm:$0xf]
        %v5510 = vld [vmem:[%s3 + $0x154] sm:$0xf]
        %v5511 = vld [vmem:[%s3 + $0x158] sm:$0xf]
        %v5512 = vld [vmem:[%s3 + $0x15c] sm:$0xf]
        %v5513 = vld [vmem:[%s3 + $0x160] sm:$0xf]
        %v5514 = vld [vmem:[%s3 + $0x164] sm:$0xf]
        %v5515 = vld [vmem:[%s3 + $0x168] sm:$0xf]
        %v5516 = vld [vmem:[%s3 + $0x16c] sm:$0xf]
        %v5517 = vld [vmem:[%s3 + $0x170] sm:$0xf]
        %v5518 = vld [vmem:[%s3 + $0x174] sm:$0xf]
        %v5519 = vld [vmem:[%s3 + $0x178] sm:$0xf]
        %v5520 = vld [vmem:[%s3 + $0x17c] sm:$0xf]
        %v5521 = vld [vmem:[%s3 + $0x180] sm:$0xf]
        %v5522 = vld [vmem:[%s3 + $0x184] sm:$0xf]
        %v5523 = vld [vmem:[%s3 + $0x188] sm:$0xf]
        %v5524 = vld [vmem:[%s3 + $0x18c] sm:$0xf]
        %v5525 = vld [vmem:[%s4] sm:$0x1]
        %v5527 = vlaneseq
        %v5528 = vshrl.u32 %v5527, 7
        %v5529 = vsub.s32 0, %v5528
        %v5530 = vrot.slane %v5525, %v5529
        %v5632 = vunpack.c.l.b16 %v5425
        %v5633 = vunpack.c.l.b16 %v5426
        %v5634 = vunpack.c.l.b16 %v5427
        %v5635 = vunpack.c.l.b16 %v5428
        %v5636 = vunpack.c.l.b16 %v5429
        %v5637 = vunpack.c.l.b16 %v5430
        %v5638 = vunpack.c.l.b16 %v5431
        %v5639 = vunpack.c.l.b16 %v5432
        %v5640 = vunpack.c.l.b16 %v5433
        %v5641 = vunpack.c.l.b16 %v5434
        %v5642 = vunpack.c.l.b16 %v5435
        %v5643 = vunpack.c.l.b16 %v5436
        %v5644 = vunpack.c.l.b16 %v5437
        %v5645 = vunpack.c.l.b16 %v5438
        %v5646 = vunpack.c.l.b16 %v5439
        %v5647 = vunpack.c.l.b16 %v5440
        %v5648 = vunpack.c.l.b16 %v5441
        %v5649 = vunpack.c.l.b16 %v5442
        %v5650 = vunpack.c.l.b16 %v5443
        %v5651 = vunpack.c.l.b16 %v5444
        %v5652 = vunpack.c.l.b16 %v5445
        %v5653 = vunpack.c.l.b16 %v5446
        %v5654 = vunpack.c.l.b16 %v5447
        %v5655 = vunpack.c.l.b16 %v5448
        %v5656 = vunpack.c.l.b16 %v5449
        %v5657 = vunpack.c.l.b16 %v5450
        %v5658 = vunpack.c.l.b16 %v5451
        %v5659 = vunpack.c.l.b16 %v5452
        %v5660 = vunpack.c.l.b16 %v5453
        %v5661 = vunpack.c.l.b16 %v5454
        %v5662 = vunpack.c.l.b16 %v5455
        %v5663 = vunpack.c.l.b16 %v5456
        %v5664 = vunpack.c.l.b16 %v5457
        %v5665 = vunpack.c.l.b16 %v5458
        %v5666 = vunpack.c.l.b16 %v5459
        %v5667 = vunpack.c.l.b16 %v5460
        %v5668 = vunpack.c.l.b16 %v5461
        %v5669 = vunpack.c.l.b16 %v5462
        %v5670 = vunpack.c.l.b16 %v5463
        %v5671 = vunpack.c.l.b16 %v5464
        %v5672 = vunpack.c.l.b16 %v5465
        %v5673 = vunpack.c.l.b16 %v5466
        %v5674 = vunpack.c.l.b16 %v5467
        %v5675 = vunpack.c.l.b16 %v5468
        %v5676 = vunpack.c.l.b16 %v5469
        %v5677 = vunpack.c.l.b16 %v5470
        %v5678 = vunpack.c.l.b16 %v5471
        %v5679 = vunpack.c.l.b16 %v5472
        %v5680 = vunpack.c.l.b16 %v5473
        %v5681 = vunpack.c.l.b16 %v5474
        %v5682 = vunpack.c.l.b16 %v5475
        %v5683 = vunpack.c.l.b16 %v5476
        %v5684 = vunpack.c.l.b16 %v5477
        %v5685 = vunpack.c.l.b16 %v5478
        %v5686 = vunpack.c.l.b16 %v5479
        %v5687 = vunpack.c.l.b16 %v5480
        %v5688 = vunpack.c.l.b16 %v5481
        %v5689 = vunpack.c.l.b16 %v5482
        %v5690 = vunpack.c.l.b16 %v5483
        %v5691 = vunpack.c.l.b16 %v5484
        %v5692 = vunpack.c.l.b16 %v5485
        %v5693 = vunpack.c.l.b16 %v5486
        %v5694 = vunpack.c.l.b16 %v5487
        %v5695 = vunpack.c.l.b16 %v5488
        %v5696 = vunpack.c.l.b16 %v5489
        %v5697 = vunpack.c.l.b16 %v5490
        %v5698 = vunpack.c.l.b16 %v5491
        %v5699 = vunpack.c.l.b16 %v5492
        %v5700 = vunpack.c.l.b16 %v5493
        %v5701 = vunpack.c.l.b16 %v5494
        %v5702 = vunpack.c.l.b16 %v5495
        %v5703 = vunpack.c.l.b16 %v5496
        %v5704 = vunpack.c.l.b16 %v5497
        %v5705 = vunpack.c.l.b16 %v5498
        %v5706 = vunpack.c.l.b16 %v5499
        %v5707 = vunpack.c.l.b16 %v5500
        %v5708 = vunpack.c.l.b16 %v5501
        %v5709 = vunpack.c.l.b16 %v5502
        %v5710 = vunpack.c.l.b16 %v5503
        %v5711 = vunpack.c.l.b16 %v5504
        %v5712 = vunpack.c.l.b16 %v5505
        %v5713 = vunpack.c.l.b16 %v5506
        %v5714 = vunpack.c.l.b16 %v5507
        %v5715 = vunpack.c.l.b16 %v5508
        %v5716 = vunpack.c.l.b16 %v5509
        %v5717 = vunpack.c.l.b16 %v5510
        %v5718 = vunpack.c.l.b16 %v5511
        %v5719 = vunpack.c.l.b16 %v5512
        %v5720 = vunpack.c.l.b16 %v5513
        %v5721 = vunpack.c.l.b16 %v5514
        %v5722 = vunpack.c.l.b16 %v5515
        %v5723 = vunpack.c.l.b16 %v5516
        %v5724 = vunpack.c.l.b16 %v5517
        %v5725 = vunpack.c.l.b16 %v5518
        %v5726 = vunpack.c.l.b16 %v5519
        %v5727 = vunpack.c.l.b16 %v5520
        %v5728 = vunpack.c.l.b16 %v5521
        %v5729 = vunpack.c.l.b16 %v5522
        %v5730 = vunpack.c.l.b16 %v5523
        %v5731 = vunpack.c.l.b16 %v5524
        %v5732 = vpack.c.b16 %v5633, %v5632
        %v5733 = vpack.c.b16 %v5635, %v5634
        %v5734 = vpack.c.b16 %v5637, %v5636
        %v5735 = vpack.c.b16 %v5639, %v5638
        %v5736 = vpack.c.b16 %v5641, %v5640
        %v5737 = vpack.c.b16 %v5643, %v5642
        %v5738 = vpack.c.b16 %v5645, %v5644
        %v5739 = vpack.c.b16 %v5647, %v5646
        %v5740 = vpack.c.b16 %v5649, %v5648
        %v5741 = vpack.c.b16 %v5651, %v5650
        %v5742 = vpack.c.b16 %v5653, %v5652
        %v5743 = vpack.c.b16 %v5655, %v5654
        %v5744 = vpack.c.b16 %v5657, %v5656
        %v5745 = vpack.c.b16 %v5659, %v5658
        %v5746 = vpack.c.b16 %v5661, %v5660
        %v5747 = vpack.c.b16 %v5663, %v5662
        %v5748 = vpack.c.b16 %v5665, %v5664
        %v5749 = vpack.c.b16 %v5667, %v5666
        %v5750 = vpack.c.b16 %v5669, %v5668
        %v5751 = vpack.c.b16 %v5671, %v5670
        %v5752 = vpack.c.b16 %v5673, %v5672
        %v5753 = vpack.c.b16 %v5675, %v5674
        %v5754 = vpack.c.b16 %v5677, %v5676
        %v5755 = vpack.c.b16 %v5679, %v5678
        %v5756 = vpack.c.b16 %v5681, %v5680
        %v5757 = vpack.c.b16 %v5683, %v5682
        %v5758 = vpack.c.b16 %v5685, %v5684
        %v5759 = vpack.c.b16 %v5687, %v5686
        %v5760 = vpack.c.b16 %v5689, %v5688
        %v5761 = vpack.c.b16 %v5691, %v5690
        %v5762 = vpack.c.b16 %v5693, %v5692
        %v5763 = vpack.c.b16 %v5695, %v5694
        %v5764 = vpack.c.b16 %v5697, %v5696
        %v5765 = vpack.c.b16 %v5699, %v5698
        %v5766 = vpack.c.b16 %v5701, %v5700
        %v5767 = vpack.c.b16 %v5703, %v5702
        %v5768 = vpack.c.b16 %v5705, %v5704
        %v5769 = vpack.c.b16 %v5707, %v5706
        %v5770 = vpack.c.b16 %v5709, %v5708
        %v5771 = vpack.c.b16 %v5711, %v5710
        %v5772 = vpack.c.b16 %v5713, %v5712
        %v5773 = vpack.c.b16 %v5715, %v5714
        %v5774 = vpack.c.b16 %v5717, %v5716
        %v5775 = vpack.c.b16 %v5719, %v5718
        %v5776 = vpack.c.b16 %v5721, %v5720
        %v5777 = vpack.c.b16 %v5723, %v5722
        %v5778 = vpack.c.b16 %v5725, %v5724
        %v5779 = vpack.c.b16 %v5727, %v5726
        %v5780 = vpack.c.b16 %v5729, %v5728
        %v5781 = vpack.c.b16 %v5731, %v5730
        %v5833 = vsel %vm4302, %v5223, 0
        %v5836 = vsel %vm4302, %v5230, 0
        %v5839 = vsel %vm4302, %v5237, 0
        %v5842 = vsel %vm4302, %v5244, 0
        %v5845 = vsel %vm4302, %v5251, 0
        %v5848 = vsel %vm4302, %v5258, 0
        %v5851 = vsel %vm4302, %v5265, 0
        %v5854 = vsel %vm4302, %v5272, 0
        %v5857 = vsel %vm4302, %v5279, 0
        %v5860 = vsel %vm4302, %v5286, 0
        %v5863 = vsel %vm4302, %v5293, 0
        %v5866 = vsel %vm4302, %v5300, 0
        %v5869 = vsel %vm4302, %v5307, 0
        %v5872 = vsel %vm4302, %v5314, 0
        %v5875 = vsel %vm4302, %v5321, 0
        %v5878 = vsel %vm4302, %v5328, 0
        %v5881 = vsel %vm4302, %v5334, 0
        %v5884 = vsel %vm4302, %v5340, 0
        %v5887 = vsel %vm4302, %v5346, 0
        %v5890 = vsel %vm4302, %v5352, 0
        %v5893 = vsel %vm4302, %v5358, 0
        %v5896 = vsel %vm4302, %v5364, 0
        %v5899 = vsel %vm4302, %v5370, 0
        %v5902 = vsel %vm4302, %v5376, 0
        %v5905 = vsel %vm4302, %v5382, 0
        %v5908 = vsel %vm4302, %v5388, 0
        %v5911 = vsel %vm4302, %v5394, 0
        %v5914 = vsel %vm4302, %v5400, 0
        %v5917 = vsel %vm4302, %v5406, 0
        %v5920 = vsel %vm4302, %v5412, 0
        %v5923 = vsel %vm4302, %v5418, 0
        %v5926 = vsel %vm4302, %v5424, 0
        %5928 = vmatprep.subr.bf16.mxu0 0
        %5929 = vmatpush1.bf16.msra.mxu0 %v5739
        %5930 = vmatprep.subr.bf16.mxu0 0
        %5931 = vmatpush1.bf16.msra.mxu0 %v5738
        %5932 = vmatprep.subr.bf16.mxu0 0
        %5933 = vmatpush1.bf16.msra.mxu0 %v5737
        %5934 = vmatprep.subr.bf16.mxu0 0
        %5935 = vmatpush1.bf16.msra.mxu0 %v5736
        %5936 = vmatprep.subr.bf16.mxu0 0
        %5937 = vmatpush1.bf16.msra.mxu0 %v5735
        %5938 = vmatprep.subr.bf16.mxu0 0
        %5939 = vmatpush1.bf16.msra.mxu0 %v5734
        %5940 = vmatprep.subr.bf16.mxu0 0
        %5941 = vmatpush1.bf16.msra.mxu0 %v5733
        %5942 = vmatprep.subr.bf16.mxu0 0
        %5943 = vmatpush1.bf16.msra.mxu0 %v5732
        %5944 = vmatprep.subr.bf16.mxu0 0
        %5945 = vmatpush2.bf16.msra.mxu0 %v5747
        %5946 = vmatprep.subr.bf16.mxu0 0
        %5947 = vmatpush2.bf16.msra.mxu0 %v5746
        %5948 = vmatprep.subr.bf16.mxu0 0
        %5949 = vmatpush2.bf16.msra.mxu0 %v5745
        %5950 = vmatprep.subr.bf16.mxu0 0
        %5951 = vmatpush2.bf16.msra.mxu0 %v5744
        %5952 = vmatprep.subr.bf16.mxu0 0
        %5953 = vmatpush2.bf16.msra.mxu0 %v5743
        %5954 = vmatprep.subr.bf16.mxu0 0
        %5955 = vmatpush2.bf16.msra.mxu0 %v5742
        %5956 = vmatprep.subr.bf16.mxu0 0
        %5957 = vmatpush2.bf16.msra.mxu0 %v5741
        %5958 = vmatprep.subr.bf16.mxu0 0
        %5959 = vmatpush2.bf16.msra.mxu0 %v5740
        %5960 = vmatprep.mubr.bf16.mxu0 %v5218
        %5961 = vmatmul.mubr.bf16.gmra.mxu0 %v5217
        %v5962 = vpop.f32.mrf.mxu0
        %v5963 = vadd.f32 %v5530, %v5962
        %v5964 = vpop.f32.mrf.mxu0
        %v5965 = vpop.f32.mrf.mxu0
        %v5966 = vadd.f32 %v5530, %v5965
        %v5967 = vpop.f32.mrf.mxu0
        %5968 = vmatprep.mubr.bf16.mxu0 %v5225
        %5969 = vmatmul.mubr.bf16.gmra.mxu0 %v5224
        %v5970 = vpop.f32.mrf.mxu0
        %v5971 = vadd.f32 %v5530, %v5970
        %v5972 = vpop.f32.mrf.mxu0
        %v5973 = vpop.f32.mrf.mxu0
        %v5974 = vadd.f32 %v5530, %v5973
        %v5975 = vpop.f32.mrf.mxu0
        %5976 = vmatprep.mubr.bf16.mxu0 %v5232
        %5977 = vmatmul.mubr.bf16.gmra.mxu0 %v5231
        %v5978 = vpop.f32.mrf.mxu0
        %v5979 = vadd.f32 %v5530, %v5978
        %v5980 = vpop.f32.mrf.mxu0
        %v5981 = vpop.f32.mrf.mxu0
        %v5982 = vadd.f32 %v5530, %v5981
        %v5983 = vpop.f32.mrf.mxu0
        %5984 = vmatprep.mubr.bf16.mxu0 %v5239
        %5985 = vmatmul.mubr.bf16.gmra.mxu0 %v5238
        %v5986 = vpop.f32.mrf.mxu0
        %v5987 = vadd.f32 %v5530, %v5986
        %v5988 = vpop.f32.mrf.mxu0
        %v5989 = vpop.f32.mrf.mxu0
        %v5990 = vadd.f32 %v5530, %v5989
        %v5991 = vpop.f32.mrf.mxu0
        %5992 = vmatprep.mubr.bf16.mxu0 %v5246
        %5993 = vmatmul.mubr.bf16.gmra.mxu0 %v5245
        %v5994 = vpop.f32.mrf.mxu0
        %v5995 = vadd.f32 %v5530, %v5994
        %v5996 = vpop.f32.mrf.mxu0
        %v5997 = vpop.f32.mrf.mxu0
        %v5998 = vadd.f32 %v5530, %v5997
        %v5999 = vpop.f32.mrf.mxu0
        %6000 = vmatprep.mubr.bf16.mxu0 %v5253
        %6001 = vmatmul.mubr.bf16.gmra.mxu0 %v5252
        %v6002 = vpop.f32.mrf.mxu0
        %v6003 = vadd.f32 %v5530, %v6002
        %v6004 = vpop.f32.mrf.mxu0
        %v6005 = vpop.f32.mrf.mxu0
        %v6006 = vadd.f32 %v5530, %v6005
        %v6007 = vpop.f32.mrf.mxu0
        %6008 = vmatprep.mubr.bf16.mxu0 %v5260
        %6009 = vmatmul.mubr.bf16.gmra.mxu0 %v5259
        %v6010 = vpop.f32.mrf.mxu0
        %v6011 = vadd.f32 %v5530, %v6010
        %v6012 = vpop.f32.mrf.mxu0
        %v6013 = vpop.f32.mrf.mxu0
        %v6014 = vadd.f32 %v5530, %v6013
        %v6015 = vpop.f32.mrf.mxu0
        %6016 = vmatprep.mubr.bf16.mxu0 %v5267
        %6017 = vmatmul.mubr.bf16.gmra.mxu0 %v5266
        %v6018 = vpop.f32.mrf.mxu0
        %v6019 = vadd.f32 %v5530, %v6018
        %v6020 = vpop.f32.mrf.mxu0
        %v6021 = vpop.f32.mrf.mxu0
        %v6022 = vadd.f32 %v5530, %v6021
        %v6023 = vpop.f32.mrf.mxu0
        %6024 = vmatprep.mubr.bf16.mxu0 %v5274
        %6025 = vmatmul.mubr.bf16.gmra.mxu0 %v5273
        %v6026 = vpop.f32.mrf.mxu0
        %v6027 = vadd.f32 %v5530, %v6026
        %v6028 = vpop.f32.mrf.mxu0
        %v6029 = vpop.f32.mrf.mxu0
        %v6030 = vadd.f32 %v5530, %v6029
        %v6031 = vpop.f32.mrf.mxu0
        %6032 = vmatprep.mubr.bf16.mxu0 %v5281
        %6033 = vmatmul.mubr.bf16.gmra.mxu0 %v5280
        %v6034 = vpop.f32.mrf.mxu0
        %v6035 = vadd.f32 %v5530, %v6034
        %v6036 = vpop.f32.mrf.mxu0
        %v6037 = vpop.f32.mrf.mxu0
        %v6038 = vadd.f32 %v5530, %v6037
        %v6039 = vpop.f32.mrf.mxu0
        %6040 = vmatprep.mubr.bf16.mxu0 %v5288
        %6041 = vmatmul.mubr.bf16.gmra.mxu0 %v5287
        %v6042 = vpop.f32.mrf.mxu0
        %v6043 = vadd.f32 %v5530, %v6042
        %v6044 = vpop.f32.mrf.mxu0
        %v6045 = vpop.f32.mrf.mxu0
        %v6046 = vadd.f32 %v5530, %v6045
        %v6047 = vpop.f32.mrf.mxu0
        %6048 = vmatprep.mubr.bf16.mxu0 %v5295
        %6049 = vmatmul.mubr.bf16.gmra.mxu0 %v5294
        %v6050 = vpop.f32.mrf.mxu0
        %v6051 = vadd.f32 %v5530, %v6050
        %v6052 = vpop.f32.mrf.mxu0
        %v6053 = vpop.f32.mrf.mxu0
        %v6054 = vadd.f32 %v5530, %v6053
        %v6055 = vpop.f32.mrf.mxu0
        %6056 = vmatprep.mubr.bf16.mxu0 %v5302
        %6057 = vmatmul.mubr.bf16.gmra.mxu0 %v5301
        %v6058 = vpop.f32.mrf.mxu0
        %v6059 = vadd.f32 %v5530, %v6058
        %v6060 = vpop.f32.mrf.mxu0
        %v6061 = vpop.f32.mrf.mxu0
        %v6062 = vadd.f32 %v5530, %v6061
        %v6063 = vpop.f32.mrf.mxu0
        %6064 = vmatprep.mubr.bf16.mxu0 %v5309
        %6065 = vmatmul.mubr.bf16.gmra.mxu0 %v5308
        %v6066 = vpop.f32.mrf.mxu0
        %v6067 = vadd.f32 %v5530, %v6066
        %v6068 = vpop.f32.mrf.mxu0
        %v6069 = vpop.f32.mrf.mxu0
        %v6070 = vadd.f32 %v5530, %v6069
        %v6071 = vpop.f32.mrf.mxu0
        %6072 = vmatprep.mubr.bf16.mxu0 %v5316
        %6073 = vmatmul.mubr.bf16.gmra.mxu0 %v5315
        %v6074 = vpop.f32.mrf.mxu0
        %v6075 = vadd.f32 %v5530, %v6074
        %v6076 = vpop.f32.mrf.mxu0
        %v6077 = vpop.f32.mrf.mxu0
        %v6078 = vadd.f32 %v5530, %v6077
        %v6079 = vpop.f32.mrf.mxu0
        %6080 = vmatprep.mubr.bf16.mxu0 %v5323
        %6081 = vmatmul.mubr.bf16.gmra.mxu0 %v5322
        %v6082 = vpop.f32.mrf.mxu0
        %v6083 = vadd.f32 %v5530, %v6082
        %v6084 = vpop.f32.mrf.mxu0
        %v6085 = vpop.f32.mrf.mxu0
        %v6086 = vadd.f32 %v5530, %v6085
        %v6087 = vpop.f32.mrf.mxu0
        %6088 = vmatprep.mubr.bf16.mxu0 %v5329
        %6089 = vmatmul.mubr.bf16.gmra.mxu0 %v5222
        %v6090 = vpop.f32.mrf.mxu0
        %v6091 = vadd.f32 %v5530, %v6090
        %v6092 = vpop.f32.mrf.mxu0
        %v6093 = vpop.f32.mrf.mxu0
        %v6094 = vadd.f32 %v5530, %v6093
        %v6095 = vpop.f32.mrf.mxu0
        %6096 = vmatprep.mubr.bf16.mxu0 %v5335
        %6097 = vmatmul.mubr.bf16.gmra.mxu0 %v5229
        %v6098 = vpop.f32.mrf.mxu0
        %v6099 = vadd.f32 %v5530, %v6098
        %v6100 = vpop.f32.mrf.mxu0
        %v6101 = vpop.f32.mrf.mxu0
        %v6102 = vadd.f32 %v5530, %v6101
        %v6103 = vpop.f32.mrf.mxu0
        %6104 = vmatprep.mubr.bf16.mxu0 %v5341
        %6105 = vmatmul.mubr.bf16.gmra.mxu0 %v5236
        %v6106 = vpop.f32.mrf.mxu0
        %v6107 = vadd.f32 %v5530, %v6106
        %v6108 = vpop.f32.mrf.mxu0
        %v6109 = vpop.f32.mrf.mxu0
        %v6110 = vadd.f32 %v5530, %v6109
        %v6111 = vpop.f32.mrf.mxu0
        %6112 = vmatprep.mubr.bf16.mxu0 %v5347
        %6113 = vmatmul.mubr.bf16.gmra.mxu0 %v5243
        %v6114 = vpop.f32.mrf.mxu0
        %v6115 = vadd.f32 %v5530, %v6114
        %v6116 = vpop.f32.mrf.mxu0
        %v6117 = vpop.f32.mrf.mxu0
        %v6118 = vadd.f32 %v5530, %v6117
        %v6119 = vpop.f32.mrf.mxu0
        %6120 = vmatprep.mubr.bf16.mxu0 %v5353
        %6121 = vmatmul.mubr.bf16.gmra.mxu0 %v5250
        %v6122 = vpop.f32.mrf.mxu0
        %v6123 = vadd.f32 %v5530, %v6122
        %v6124 = vpop.f32.mrf.mxu0
        %v6125 = vpop.f32.mrf.mxu0
        %v6126 = vadd.f32 %v5530, %v6125
        %v6127 = vpop.f32.mrf.mxu0
        %6128 = vmatprep.mubr.bf16.mxu0 %v5359
        %6129 = vmatmul.mubr.bf16.gmra.mxu0 %v5257
        %v6130 = vpop.f32.mrf.mxu0
        %v6131 = vadd.f32 %v5530, %v6130
        %v6132 = vpop.f32.mrf.mxu0
        %v6133 = vpop.f32.mrf.mxu0
        %v6134 = vadd.f32 %v5530, %v6133
        %v6135 = vpop.f32.mrf.mxu0
        %6136 = vmatprep.mubr.bf16.mxu0 %v5365
        %6137 = vmatmul.mubr.bf16.gmra.mxu0 %v5264
        %v6138 = vpop.f32.mrf.mxu0
        %v6139 = vadd.f32 %v5530, %v6138
        %v6140 = vpop.f32.mrf.mxu0
        %v6141 = vpop.f32.mrf.mxu0
        %v6142 = vadd.f32 %v5530, %v6141
        %v6143 = vpop.f32.mrf.mxu0
        %6144 = vmatprep.mubr.bf16.mxu0 %v5371
        %6145 = vmatmul.mubr.bf16.gmra.mxu0 %v5271
        %v6146 = vpop.f32.mrf.mxu0
        %v6147 = vadd.f32 %v5530, %v6146
        %v6148 = vpop.f32.mrf.mxu0
        %v6149 = vpop.f32.mrf.mxu0
        %v6150 = vadd.f32 %v5530, %v6149
        %v6151 = vpop.f32.mrf.mxu0
        %6152 = vmatprep.mubr.bf16.mxu0 %v5377
        %6153 = vmatmul.mubr.bf16.gmra.mxu0 %v5278
        %v6154 = vpop.f32.mrf.mxu0
        %v6155 = vadd.f32 %v5530, %v6154
        %v6156 = vpop.f32.mrf.mxu0
        %v6157 = vpop.f32.mrf.mxu0
        %v6158 = vadd.f32 %v5530, %v6157
        %v6159 = vpop.f32.mrf.mxu0
        %6160 = vmatprep.mubr.bf16.mxu0 %v5383
        %6161 = vmatmul.mubr.bf16.gmra.mxu0 %v5285
        %v6162 = vpop.f32.mrf.mxu0
        %v6163 = vadd.f32 %v5530, %v6162
        %v6164 = vpop.f32.mrf.mxu0
        %v6165 = vpop.f32.mrf.mxu0
        %v6166 = vadd.f32 %v5530, %v6165
        %v6167 = vpop.f32.mrf.mxu0
        %6168 = vmatprep.mubr.bf16.mxu0 %v5389
        %6169 = vmatmul.mubr.bf16.gmra.mxu0 %v5292
        %v6170 = vpop.f32.mrf.mxu0
        %v6171 = vadd.f32 %v5530, %v6170
        %v6172 = vpop.f32.mrf.mxu0
        %v6173 = vpop.f32.mrf.mxu0
        %v6174 = vadd.f32 %v5530, %v6173
        %v6175 = vpop.f32.mrf.mxu0
        %6176 = vmatprep.mubr.bf16.mxu0 %v5395
        %6177 = vmatmul.mubr.bf16.gmra.mxu0 %v5299
        %v6178 = vpop.f32.mrf.mxu0
        %v6179 = vadd.f32 %v5530, %v6178
        %v6180 = vpop.f32.mrf.mxu0
        %v6181 = vpop.f32.mrf.mxu0
        %v6182 = vadd.f32 %v5530, %v6181
        %v6183 = vpop.f32.mrf.mxu0
        %6184 = vmatprep.mubr.bf16.mxu0 %v5401
        %6185 = vmatmul.mubr.bf16.gmra.mxu0 %v5306
        %v6186 = vpop.f32.mrf.mxu0
        %v6187 = vadd.f32 %v5530, %v6186
        %v6188 = vpop.f32.mrf.mxu0
        %v6189 = vpop.f32.mrf.mxu0
        %v6190 = vadd.f32 %v5530, %v6189
        %v6191 = vpop.f32.mrf.mxu0
        %6192 = vmatprep.mubr.bf16.mxu0 %v5407
        %6193 = vmatmul.mubr.bf16.gmra.mxu0 %v5313
        %v6194 = vpop.f32.mrf.mxu0
        %v6195 = vadd.f32 %v5530, %v6194
        %v6196 = vpop.f32.mrf.mxu0
        %v6197 = vpop.f32.mrf.mxu0
        %v6198 = vadd.f32 %v5530, %v6197
        %v6199 = vpop.f32.mrf.mxu0
        %6200 = vmatprep.mubr.bf16.mxu0 %v5413
        %6201 = vmatmul.mubr.bf16.gmra.mxu0 %v5320
        %v6202 = vpop.f32.mrf.mxu0
        %v6203 = vadd.f32 %v5530, %v6202
        %v6204 = vpop.f32.mrf.mxu0
        %v6205 = vpop.f32.mrf.mxu0
        %v6206 = vadd.f32 %v5530, %v6205
        %v6207 = vpop.f32.mrf.mxu0
        %6208 = vmatprep.mubr.bf16.mxu0 %v5419
        %6209 = vmatmul.mubr.bf16.gmra.mxu0 %v5327
        %v6210 = vpop.f32.mrf.mxu0
        %v6211 = vadd.f32 %v5530, %v6210
        %v6212 = vpop.f32.mrf.mxu0
        %v6213 = vpop.f32.mrf.mxu0
        %v6214 = vadd.f32 %v5530, %v6213
        %v6215 = vpop.f32.mrf.mxu0
        %6216 = vdwg.mxu0
        %6217 = vmatprep.subr.bf16.mxu0 0
        %6218 = vmatpush1.bf16.msra.mxu0 %v5755
        %6219 = vmatprep.subr.bf16.mxu0 0
        %6220 = vmatpush1.bf16.msra.mxu0 %v5754
        %6221 = vmatprep.subr.bf16.mxu0 0
        %6222 = vmatpush1.bf16.msra.mxu0 %v5753
        %6223 = vmatprep.subr.bf16.mxu0 0
        %6224 = vmatpush1.bf16.msra.mxu0 %v5752
        %6225 = vmatprep.subr.bf16.mxu0 0
        %6226 = vmatpush1.bf16.msra.mxu0 %v5751
        %6227 = vmatprep.subr.bf16.mxu0 0
        %6228 = vmatpush1.bf16.msra.mxu0 %v5750
        %6229 = vmatprep.subr.bf16.mxu0 0
        %6230 = vmatpush1.bf16.msra.mxu0 %v5749
        %6231 = vmatprep.subr.bf16.mxu0 0
        %6232 = vmatpush1.bf16.msra.mxu0 %v5748
        %6233 = vmatprep.subr.bf16.mxu0 0
        %6234 = vmatpush2.bf16.msra.mxu0 %v5763
        %6235 = vmatprep.subr.bf16.mxu0 0
        %6236 = vmatpush2.bf16.msra.mxu0 %v5762
        %6237 = vmatprep.subr.bf16.mxu0 0
        %6238 = vmatpush2.bf16.msra.mxu0 %v5761
        %6239 = vmatprep.subr.bf16.mxu0 0
        %6240 = vmatpush2.bf16.msra.mxu0 %v5760
        %6241 = vmatprep.subr.bf16.mxu0 0
        %6242 = vmatpush2.bf16.msra.mxu0 %v5759
        %6243 = vmatprep.subr.bf16.mxu0 0
        %6244 = vmatpush2.bf16.msra.mxu0 %v5758
        %6245 = vmatprep.subr.bf16.mxu0 0
        %6246 = vmatpush2.bf16.msra.mxu0 %v5757
        %6247 = vmatprep.subr.bf16.mxu0 0
        %6248 = vmatpush2.bf16.msra.mxu0 %v5756
        %6249 = vmatprep.mubr.bf16.mxu0 %v5220
        %6250 = vmatmul.mubr.bf16.gmra.mxu0 %v5219
        %v6251 = vpop.f32.mrf.mxu0
        %v6252 = vadd.f32 %v5963, %v6251
        %v6253 = vpop.f32.mrf.mxu0
        %v6254 = vpop.f32.mrf.mxu0
        %v6255 = vadd.f32 %v5966, %v6254
        %v6256 = vpop.f32.mrf.mxu0
        %6257 = vmatprep.mubr.bf16.mxu0 %v5227
        %6258 = vmatmul.mubr.bf16.gmra.mxu0 %v5226
        %v6259 = vpop.f32.mrf.mxu0
        %v6260 = vadd.f32 %v5971, %v6259
        %v6261 = vpop.f32.mrf.mxu0
        %v6262 = vpop.f32.mrf.mxu0
        %v6263 = vadd.f32 %v5974, %v6262
        %v6264 = vpop.f32.mrf.mxu0
        %6265 = vmatprep.mubr.bf16.mxu0 %v5234
        %6266 = vmatmul.mubr.bf16.gmra.mxu0 %v5233
        %v6267 = vpop.f32.mrf.mxu0
        %v6268 = vadd.f32 %v5979, %v6267
        %v6269 = vpop.f32.mrf.mxu0
        %v6270 = vpop.f32.mrf.mxu0
        %v6271 = vadd.f32 %v5982, %v6270
        %v6272 = vpop.f32.mrf.mxu0
        %6273 = vmatprep.mubr.bf16.mxu0 %v5241
        %6274 = vmatmul.mubr.bf16.gmra.mxu0 %v5240
        %v6275 = vpop.f32.mrf.mxu0
        %v6276 = vadd.f32 %v5987, %v6275
        %v6277 = vpop.f32.mrf.mxu0
        %v6278 = vpop.f32.mrf.mxu0
        %v6279 = vadd.f32 %v5990, %v6278
        %v6280 = vpop.f32.mrf.mxu0
        %6281 = vmatprep.mubr.bf16.mxu0 %v5248
        %6282 = vmatmul.mubr.bf16.gmra.mxu0 %v5247
        %v6283 = vpop.f32.mrf.mxu0
        %v6284 = vadd.f32 %v5995, %v6283
        %v6285 = vpop.f32.mrf.mxu0
        %v6286 = vpop.f32.mrf.mxu0
        %v6287 = vadd.f32 %v5998, %v6286
        %v6288 = vpop.f32.mrf.mxu0
        %6289 = vmatprep.mubr.bf16.mxu0 %v5255
        %6290 = vmatmul.mubr.bf16.gmra.mxu0 %v5254
        %v6291 = vpop.f32.mrf.mxu0
        %v6292 = vadd.f32 %v6003, %v6291
        %v6293 = vpop.f32.mrf.mxu0
        %v6294 = vpop.f32.mrf.mxu0
        %v6295 = vadd.f32 %v6006, %v6294
        %v6296 = vpop.f32.mrf.mxu0
        %6297 = vmatprep.mubr.bf16.mxu0 %v5262
        %6298 = vmatmul.mubr.bf16.gmra.mxu0 %v5261
        %v6299 = vpop.f32.mrf.mxu0
        %v6300 = vadd.f32 %v6011, %v6299
        %v6301 = vpop.f32.mrf.mxu0
        %v6302 = vpop.f32.mrf.mxu0
        %v6303 = vadd.f32 %v6014, %v6302
        %v6304 = vpop.f32.mrf.mxu0
        %6305 = vmatprep.mubr.bf16.mxu0 %v5269
        %6306 = vmatmul.mubr.bf16.gmra.mxu0 %v5268
        %v6307 = vpop.f32.mrf.mxu0
        %v6308 = vadd.f32 %v6019, %v6307
        %v6309 = vpop.f32.mrf.mxu0
        %v6310 = vpop.f32.mrf.mxu0
        %v6311 = vadd.f32 %v6022, %v6310
        %v6312 = vpop.f32.mrf.mxu0
        %6313 = vmatprep.mubr.bf16.mxu0 %v5276
        %6314 = vmatmul.mubr.bf16.gmra.mxu0 %v5275
        %v6315 = vpop.f32.mrf.mxu0
        %v6316 = vadd.f32 %v6027, %v6315
        %v6317 = vpop.f32.mrf.mxu0
        %v6318 = vpop.f32.mrf.mxu0
        %v6319 = vadd.f32 %v6030, %v6318
        %v6320 = vpop.f32.mrf.mxu0
        %6321 = vmatprep.mubr.bf16.mxu0 %v5283
        %6322 = vmatmul.mubr.bf16.gmra.mxu0 %v5282
        %v6323 = vpop.f32.mrf.mxu0
        %v6324 = vadd.f32 %v6035, %v6323
        %v6325 = vpop.f32.mrf.mxu0
        %v6326 = vpop.f32.mrf.mxu0
        %v6327 = vadd.f32 %v6038, %v6326
        %v6328 = vpop.f32.mrf.mxu0
        %6329 = vmatprep.mubr.bf16.mxu0 %v5290
        %6330 = vmatmul.mubr.bf16.gmra.mxu0 %v5289
        %v6331 = vpop.f32.mrf.mxu0
        %v6332 = vadd.f32 %v6043, %v6331
        %v6333 = vpop.f32.mrf.mxu0
        %v6334 = vpop.f32.mrf.mxu0
        %v6335 = vadd.f32 %v6046, %v6334
        %v6336 = vpop.f32.mrf.mxu0
        %6337 = vmatprep.mubr.bf16.mxu0 %v5297
        %6338 = vmatmul.mubr.bf16.gmra.mxu0 %v5296
        %v6339 = vpop.f32.mrf.mxu0
        %v6340 = vadd.f32 %v6051, %v6339
        %v6341 = vpop.f32.mrf.mxu0
        %v6342 = vpop.f32.mrf.mxu0
        %v6343 = vadd.f32 %v6054, %v6342
        %v6344 = vpop.f32.mrf.mxu0
        %6345 = vmatprep.mubr.bf16.mxu0 %v5304
        %6346 = vmatmul.mubr.bf16.gmra.mxu0 %v5303
        %v6347 = vpop.f32.mrf.mxu0
        %v6348 = vadd.f32 %v6059, %v6347
        %v6349 = vpop.f32.mrf.mxu0
        %v6350 = vpop.f32.mrf.mxu0
        %v6351 = vadd.f32 %v6062, %v6350
        %v6352 = vpop.f32.mrf.mxu0
        %6353 = vmatprep.mubr.bf16.mxu0 %v5311
        %6354 = vmatmul.mubr.bf16.gmra.mxu0 %v5310
        %v6355 = vpop.f32.mrf.mxu0
        %v6356 = vadd.f32 %v6067, %v6355
        %v6357 = vpop.f32.mrf.mxu0
        %v6358 = vpop.f32.mrf.mxu0
        %v6359 = vadd.f32 %v6070, %v6358
        %v6360 = vpop.f32.mrf.mxu0
        %6361 = vmatprep.mubr.bf16.mxu0 %v5318
        %6362 = vmatmul.mubr.bf16.gmra.mxu0 %v5317
        %v6363 = vpop.f32.mrf.mxu0
        %v6364 = vadd.f32 %v6075, %v6363
        %v6365 = vpop.f32.mrf.mxu0
        %v6366 = vpop.f32.mrf.mxu0
        %v6367 = vadd.f32 %v6078, %v6366
        %v6368 = vpop.f32.mrf.mxu0
        %6369 = vmatprep.mubr.bf16.mxu0 %v5325
        %6370 = vmatmul.mubr.bf16.gmra.mxu0 %v5324
        %v6371 = vpop.f32.mrf.mxu0
        %v6372 = vadd.f32 %v6083, %v6371
        %v6373 = vpop.f32.mrf.mxu0
        %v6374 = vpop.f32.mrf.mxu0
        %v6375 = vadd.f32 %v6086, %v6374
        %v6376 = vpop.f32.mrf.mxu0
        %6377 = vmatprep.mubr.bf16.mxu0 %v5331
        %6378 = vmatmul.mubr.bf16.gmra.mxu0 %v5330
        %v6379 = vpop.f32.mrf.mxu0
        %v6380 = vadd.f32 %v6091, %v6379
        %v6381 = vpop.f32.mrf.mxu0
        %v6382 = vpop.f32.mrf.mxu0
        %v6383 = vadd.f32 %v6094, %v6382
        %v6384 = vpop.f32.mrf.mxu0
        %6385 = vmatprep.mubr.bf16.mxu0 %v5337
        %6386 = vmatmul.mubr.bf16.gmra.mxu0 %v5336
        %v6387 = vpop.f32.mrf.mxu0
        %v6388 = vadd.f32 %v6099, %v6387
        %v6389 = vpop.f32.mrf.mxu0
        %v6390 = vpop.f32.mrf.mxu0
        %v6391 = vadd.f32 %v6102, %v6390
        %v6392 = vpop.f32.mrf.mxu0
        %6393 = vmatprep.mubr.bf16.mxu0 %v5343
        %6394 = vmatmul.mubr.bf16.gmra.mxu0 %v5342
        %v6395 = vpop.f32.mrf.mxu0
        %v6396 = vadd.f32 %v6107, %v6395
        %v6397 = vpop.f32.mrf.mxu0
        %v6398 = vpop.f32.mrf.mxu0
        %v6399 = vadd.f32 %v6110, %v6398
        %v6400 = vpop.f32.mrf.mxu0
        %6401 = vmatprep.mubr.bf16.mxu0 %v5349
        %6402 = vmatmul.mubr.bf16.gmra.mxu0 %v5348
        %v6403 = vpop.f32.mrf.mxu0
        %v6404 = vadd.f32 %v6115, %v6403
        %v6405 = vpop.f32.mrf.mxu0
        %v6406 = vpop.f32.mrf.mxu0
        %v6407 = vadd.f32 %v6118, %v6406
        %v6408 = vpop.f32.mrf.mxu0
        %6409 = vmatprep.mubr.bf16.mxu0 %v5355
        %6410 = vmatmul.mubr.bf16.gmra.mxu0 %v5354
        %v6411 = vpop.f32.mrf.mxu0
        %v6412 = vadd.f32 %v6123, %v6411
        %v6413 = vpop.f32.mrf.mxu0
        %v6414 = vpop.f32.mrf.mxu0
        %v6415 = vadd.f32 %v6126, %v6414
        %v6416 = vpop.f32.mrf.mxu0
        %6417 = vmatprep.mubr.bf16.mxu0 %v5361
        %6418 = vmatmul.mubr.bf16.gmra.mxu0 %v5360
        %v6419 = vpop.f32.mrf.mxu0
        %v6420 = vadd.f32 %v6131, %v6419
        %v6421 = vpop.f32.mrf.mxu0
        %v6422 = vpop.f32.mrf.mxu0
        %v6423 = vadd.f32 %v6134, %v6422
        %v6424 = vpop.f32.mrf.mxu0
        %6425 = vmatprep.mubr.bf16.mxu0 %v5367
        %6426 = vmatmul.mubr.bf16.gmra.mxu0 %v5366
        %v6427 = vpop.f32.mrf.mxu0
        %v6428 = vadd.f32 %v6139, %v6427
        %v6429 = vpop.f32.mrf.mxu0
        %v6430 = vpop.f32.mrf.mxu0
        %v6431 = vadd.f32 %v6142, %v6430
        %v6432 = vpop.f32.mrf.mxu0
        %6433 = vmatprep.mubr.bf16.mxu0 %v5373
        %6434 = vmatmul.mubr.bf16.gmra.mxu0 %v5372
        %v6435 = vpop.f32.mrf.mxu0
        %v6436 = vadd.f32 %v6147, %v6435
        %v6437 = vpop.f32.mrf.mxu0
        %v6438 = vpop.f32.mrf.mxu0
        %v6439 = vadd.f32 %v6150, %v6438
        %v6440 = vpop.f32.mrf.mxu0
        %6441 = vmatprep.mubr.bf16.mxu0 %v5379
        %6442 = vmatmul.mubr.bf16.gmra.mxu0 %v5378
        %v6443 = vpop.f32.mrf.mxu0
        %v6444 = vadd.f32 %v6155, %v6443
        %v6445 = vpop.f32.mrf.mxu0
        %v6446 = vpop.f32.mrf.mxu0
        %v6447 = vadd.f32 %v6158, %v6446
        %v6448 = vpop.f32.mrf.mxu0
        %6449 = vmatprep.mubr.bf16.mxu0 %v5385
        %6450 = vmatmul.mubr.bf16.gmra.mxu0 %v5384
        %v6451 = vpop.f32.mrf.mxu0
        %v6452 = vadd.f32 %v6163, %v6451
        %v6453 = vpop.f32.mrf.mxu0
        %v6454 = vpop.f32.mrf.mxu0
        %v6455 = vadd.f32 %v6166, %v6454
        %v6456 = vpop.f32.mrf.mxu0
        %6457 = vmatprep.mubr.bf16.mxu0 %v5391
        %6458 = vmatmul.mubr.bf16.gmra.mxu0 %v5390
        %v6459 = vpop.f32.mrf.mxu0
        %v6460 = vadd.f32 %v6171, %v6459
        %v6461 = vpop.f32.mrf.mxu0
        %v6462 = vpop.f32.mrf.mxu0
        %v6463 = vadd.f32 %v6174, %v6462
        %v6464 = vpop.f32.mrf.mxu0
        %6465 = vmatprep.mubr.bf16.mxu0 %v5397
        %6466 = vmatmul.mubr.bf16.gmra.mxu0 %v5396
        %v6467 = vpop.f32.mrf.mxu0
        %v6468 = vadd.f32 %v6179, %v6467
        %v6469 = vpop.f32.mrf.mxu0
        %v6470 = vpop.f32.mrf.mxu0
        %v6471 = vadd.f32 %v6182, %v6470
        %v6472 = vpop.f32.mrf.mxu0
        %6473 = vmatprep.mubr.bf16.mxu0 %v5403
        %6474 = vmatmul.mubr.bf16.gmra.mxu0 %v5402
        %v6475 = vpop.f32.mrf.mxu0
        %v6476 = vadd.f32 %v6187, %v6475
        %v6477 = vpop.f32.mrf.mxu0
        %v6478 = vpop.f32.mrf.mxu0
        %v6479 = vadd.f32 %v6190, %v6478
        %v6480 = vpop.f32.mrf.mxu0
        %6481 = vmatprep.mubr.bf16.mxu0 %v5409
        %6482 = vmatmul.mubr.bf16.gmra.mxu0 %v5408
        %v6483 = vpop.f32.mrf.mxu0
        %v6484 = vadd.f32 %v6195, %v6483
        %v6485 = vpop.f32.mrf.mxu0
        %v6486 = vpop.f32.mrf.mxu0
        %v6487 = vadd.f32 %v6198, %v6486
        %v6488 = vpop.f32.mrf.mxu0
        %6489 = vmatprep.mubr.bf16.mxu0 %v5415
        %6490 = vmatmul.mubr.bf16.gmra.mxu0 %v5414
        %v6491 = vpop.f32.mrf.mxu0
        %v6492 = vadd.f32 %v6203, %v6491
        %v6493 = vpop.f32.mrf.mxu0
        %v6494 = vpop.f32.mrf.mxu0
        %v6495 = vadd.f32 %v6206, %v6494
        %v6496 = vpop.f32.mrf.mxu0
        %6497 = vmatprep.mubr.bf16.mxu0 %v5421
        %6498 = vmatmul.mubr.bf16.gmra.mxu0 %v5420
        %v6499 = vpop.f32.mrf.mxu0
        %v6500 = vadd.f32 %v6211, %v6499
        %v6501 = vpop.f32.mrf.mxu0
        %v6502 = vpop.f32.mrf.mxu0
        %v6503 = vadd.f32 %v6214, %v6502
        %v6504 = vpop.f32.mrf.mxu0
        %6505 = vdwg.mxu0
        %6506 = vmatprep.subr.bf16.mxu0 0
        %6507 = vmatpush1.bf16.msra.mxu0 %v5771
        %6508 = vmatprep.subr.bf16.mxu0 0
        %6509 = vmatpush1.bf16.msra.mxu0 %v5770
        %6510 = vmatprep.subr.bf16.mxu0 0
        %6511 = vmatpush1.bf16.msra.mxu0 %v5769
        %6512 = vmatprep.subr.bf16.mxu0 0
        %6513 = vmatpush1.bf16.msra.mxu0 %v5768
        %6514 = vmatprep.subr.bf16.mxu0 0
        %6515 = vmatpush1.bf16.msra.mxu0 %v5767
        %6516 = vmatprep.subr.bf16.mxu0 0
        %6517 = vmatpush1.bf16.msra.mxu0 %v5766
        %6518 = vmatprep.subr.bf16.mxu0 0
        %6519 = vmatpush1.bf16.msra.mxu0 %v5765
        %6520 = vmatprep.subr.bf16.mxu0 0
        %6521 = vmatpush1.bf16.msra.mxu0 %v5764
        %6522 = vmatprep.subr.bf16.mxu0 0
        %6523 = vmatpush2.bf16.msra.mxu0 %v5779
        %6524 = vmatprep.subr.bf16.mxu0 0
        %6525 = vmatpush2.bf16.msra.mxu0 %v5778
        %6526 = vmatprep.subr.bf16.mxu0 0
        %6527 = vmatpush2.bf16.msra.mxu0 %v5777
        %6528 = vmatprep.subr.bf16.mxu0 0
        %6529 = vmatpush2.bf16.msra.mxu0 %v5776
        %6530 = vmatprep.subr.bf16.mxu0 0
        %6531 = vmatpush2.bf16.msra.mxu0 %v5775
        %6532 = vmatprep.subr.bf16.mxu0 0
        %6533 = vmatpush2.bf16.msra.mxu0 %v5774
        %6534 = vmatprep.subr.bf16.mxu0 0
        %6535 = vmatpush2.bf16.msra.mxu0 %v5773
        %6536 = vmatprep.subr.bf16.mxu0 0
        %6537 = vmatpush2.bf16.msra.mxu0 %v5772
        %6538 = vmatprep.mubr.bf16.mxu0 %v5222
        %6539 = vmatmul.mubr.bf16.gmra.mxu0 %v5221
        %v6540 = vpop.f32.mrf.mxu0
        %v6541 = vadd.f32 %v6252, %v6540
        %v6542 = vpop.f32.mrf.mxu0
        %v6543 = vpop.f32.mrf.mxu0
        %v6544 = vadd.f32 %v6255, %v6543
        %v6545 = vpop.f32.mrf.mxu0
        %6546 = vmatprep.mubr.bf16.mxu0 %v5229
        %6547 = vmatmul.mubr.bf16.gmra.mxu0 %v5228
        %v6548 = vpop.f32.mrf.mxu0
        %v6549 = vadd.f32 %v6260, %v6548
        %v6550 = vpop.f32.mrf.mxu0
        %v6551 = vpop.f32.mrf.mxu0
        %v6552 = vadd.f32 %v6263, %v6551
        %v6553 = vpop.f32.mrf.mxu0
        %6554 = vmatprep.mubr.bf16.mxu0 %v5236
        %6555 = vmatmul.mubr.bf16.gmra.mxu0 %v5235
        %v6556 = vpop.f32.mrf.mxu0
        %v6557 = vadd.f32 %v6268, %v6556
        %v6558 = vpop.f32.mrf.mxu0
        %v6559 = vpop.f32.mrf.mxu0
        %v6560 = vadd.f32 %v6271, %v6559
        %v6561 = vpop.f32.mrf.mxu0
        %6562 = vmatprep.mubr.bf16.mxu0 %v5243
        %6563 = vmatmul.mubr.bf16.gmra.mxu0 %v5242
        %v6564 = vpop.f32.mrf.mxu0
        %v6565 = vadd.f32 %v6276, %v6564
        %v6566 = vpop.f32.mrf.mxu0
        %v6567 = vpop.f32.mrf.mxu0
        %v6568 = vadd.f32 %v6279, %v6567
        %v6569 = vpop.f32.mrf.mxu0
        %6570 = vmatprep.mubr.bf16.mxu0 %v5250
        %6571 = vmatmul.mubr.bf16.gmra.mxu0 %v5249
        %v6572 = vpop.f32.mrf.mxu0
        %v6573 = vadd.f32 %v6284, %v6572
        %v6574 = vpop.f32.mrf.mxu0
        %v6575 = vpop.f32.mrf.mxu0
        %v6576 = vadd.f32 %v6287, %v6575
        %v6577 = vpop.f32.mrf.mxu0
        %6578 = vmatprep.mubr.bf16.mxu0 %v5257
        %6579 = vmatmul.mubr.bf16.gmra.mxu0 %v5256
        %v6580 = vpop.f32.mrf.mxu0
        %v6581 = vadd.f32 %v6292, %v6580
        %v6582 = vpop.f32.mrf.mxu0
        %v6583 = vpop.f32.mrf.mxu0
        %v6584 = vadd.f32 %v6295, %v6583
        %v6585 = vpop.f32.mrf.mxu0
        %6586 = vmatprep.mubr.bf16.mxu0 %v5264
        %6587 = vmatmul.mubr.bf16.gmra.mxu0 %v5263
        %v6588 = vpop.f32.mrf.mxu0
        %v6589 = vadd.f32 %v6300, %v6588
        %v6590 = vpop.f32.mrf.mxu0
        %v6591 = vpop.f32.mrf.mxu0
        %v6592 = vadd.f32 %v6303, %v6591
        %v6593 = vpop.f32.mrf.mxu0
        %6594 = vmatprep.mubr.bf16.mxu0 %v5271
        %6595 = vmatmul.mubr.bf16.gmra.mxu0 %v5270
        %v6596 = vpop.f32.mrf.mxu0
        %v6597 = vadd.f32 %v6308, %v6596
        %v6598 = vpop.f32.mrf.mxu0
        %v6599 = vpop.f32.mrf.mxu0
        %v6600 = vadd.f32 %v6311, %v6599
        %v6601 = vpop.f32.mrf.mxu0
        %6602 = vmatprep.mubr.bf16.mxu0 %v5278
        %6603 = vmatmul.mubr.bf16.gmra.mxu0 %v5277
        %v6604 = vpop.f32.mrf.mxu0
        %v6605 = vadd.f32 %v6316, %v6604
        %v6606 = vpop.f32.mrf.mxu0
        %v6607 = vpop.f32.mrf.mxu0
        %v6608 = vadd.f32 %v6319, %v6607
        %v6609 = vpop.f32.mrf.mxu0
        %6610 = vmatprep.mubr.bf16.mxu0 %v5285
        %6611 = vmatmul.mubr.bf16.gmra.mxu0 %v5284
        %v6612 = vpop.f32.mrf.mxu0
        %v6613 = vadd.f32 %v6324, %v6612
        %v6614 = vpop.f32.mrf.mxu0
        %v6615 = vpop.f32.mrf.mxu0
        %v6616 = vadd.f32 %v6327, %v6615
        %v6617 = vpop.f32.mrf.mxu0
        %6618 = vmatprep.mubr.bf16.mxu0 %v5292
        %6619 = vmatmul.mubr.bf16.gmra.mxu0 %v5291
        %v6620 = vpop.f32.mrf.mxu0
        %v6621 = vadd.f32 %v6332, %v6620
        %v6622 = vpop.f32.mrf.mxu0
        %v6623 = vpop.f32.mrf.mxu0
        %v6624 = vadd.f32 %v6335, %v6623
        %v6625 = vpop.f32.mrf.mxu0
        %6626 = vmatprep.mubr.bf16.mxu0 %v5299
        %6627 = vmatmul.mubr.bf16.gmra.mxu0 %v5298
        %v6628 = vpop.f32.mrf.mxu0
        %v6629 = vadd.f32 %v6340, %v6628
        %v6630 = vpop.f32.mrf.mxu0
        %v6631 = vpop.f32.mrf.mxu0
        %v6632 = vadd.f32 %v6343, %v6631
        %v6633 = vpop.f32.mrf.mxu0
        %6634 = vmatprep.mubr.bf16.mxu0 %v5306
        %6635 = vmatmul.mubr.bf16.gmra.mxu0 %v5305
        %v6636 = vpop.f32.mrf.mxu0
        %v6637 = vadd.f32 %v6348, %v6636
        %v6638 = vpop.f32.mrf.mxu0
        %v6639 = vpop.f32.mrf.mxu0
        %v6640 = vadd.f32 %v6351, %v6639
        %v6641 = vpop.f32.mrf.mxu0
        %6642 = vmatprep.mubr.bf16.mxu0 %v5313
        %6643 = vmatmul.mubr.bf16.gmra.mxu0 %v5312
        %v6644 = vpop.f32.mrf.mxu0
        %v6645 = vadd.f32 %v6356, %v6644
        %v6646 = vpop.f32.mrf.mxu0
        %v6647 = vpop.f32.mrf.mxu0
        %v6648 = vadd.f32 %v6359, %v6647
        %v6649 = vpop.f32.mrf.mxu0
        %6650 = vmatprep.mubr.bf16.mxu0 %v5320
        %6651 = vmatmul.mubr.bf16.gmra.mxu0 %v5319
        %v6652 = vpop.f32.mrf.mxu0
        %v6653 = vadd.f32 %v6364, %v6652
        %v6654 = vpop.f32.mrf.mxu0
        %v6655 = vpop.f32.mrf.mxu0
        %v6656 = vadd.f32 %v6367, %v6655
        %v6657 = vpop.f32.mrf.mxu0
        %6658 = vmatprep.mubr.bf16.mxu0 %v5327
        %6659 = vmatmul.mubr.bf16.gmra.mxu0 %v5326
        %v6660 = vpop.f32.mrf.mxu0
        %v6661 = vadd.f32 %v6372, %v6660
        %v6662 = vpop.f32.mrf.mxu0
        %v6663 = vpop.f32.mrf.mxu0
        %v6664 = vadd.f32 %v6375, %v6663
        %v6665 = vpop.f32.mrf.mxu0
        %6666 = vmatprep.mubr.bf16.mxu0 %v5333
        %6667 = vmatmul.mubr.bf16.gmra.mxu0 %v5332
        %v6668 = vpop.f32.mrf.mxu0
        %v6669 = vadd.f32 %v6380, %v6668
        %v6670 = vpop.f32.mrf.mxu0
        %v6671 = vpop.f32.mrf.mxu0
        %v6672 = vadd.f32 %v6383, %v6671
        %v6673 = vpop.f32.mrf.mxu0
        %6674 = vmatprep.mubr.bf16.mxu0 %v5339
        %6675 = vmatmul.mubr.bf16.gmra.mxu0 %v5338
        %v6676 = vpop.f32.mrf.mxu0
        %v6677 = vadd.f32 %v6388, %v6676
        %v6678 = vpop.f32.mrf.mxu0
        %v6679 = vpop.f32.mrf.mxu0
        %v6680 = vadd.f32 %v6391, %v6679
        %v6681 = vpop.f32.mrf.mxu0
        %6682 = vmatprep.mubr.bf16.mxu0 %v5345
        %6683 = vmatmul.mubr.bf16.gmra.mxu0 %v5344
        %v6684 = vpop.f32.mrf.mxu0
        %v6685 = vadd.f32 %v6396, %v6684
        %v6686 = vpop.f32.mrf.mxu0
        %v6687 = vpop.f32.mrf.mxu0
        %v6688 = vadd.f32 %v6399, %v6687
        %v6689 = vpop.f32.mrf.mxu0
        %6690 = vmatprep.mubr.bf16.mxu0 %v5351
        %6691 = vmatmul.mubr.bf16.gmra.mxu0 %v5350
        %v6692 = vpop.f32.mrf.mxu0
        %v6693 = vadd.f32 %v6404, %v6692
        %v6694 = vpop.f32.mrf.mxu0
        %v6695 = vpop.f32.mrf.mxu0
        %v6696 = vadd.f32 %v6407, %v6695
        %v6697 = vpop.f32.mrf.mxu0
        %6698 = vmatprep.mubr.bf16.mxu0 %v5357
        %6699 = vmatmul.mubr.bf16.gmra.mxu0 %v5356
        %v6700 = vpop.f32.mrf.mxu0
        %v6701 = vadd.f32 %v6412, %v6700
        %v6702 = vpop.f32.mrf.mxu0
        %v6703 = vpop.f32.mrf.mxu0
        %v6704 = vadd.f32 %v6415, %v6703
        %v6705 = vpop.f32.mrf.mxu0
        %6706 = vmatprep.mubr.bf16.mxu0 %v5363
        %6707 = vmatmul.mubr.bf16.gmra.mxu0 %v5362
        %v6708 = vpop.f32.mrf.mxu0
        %v6709 = vadd.f32 %v6420, %v6708
        %v6710 = vpop.f32.mrf.mxu0
        %v6711 = vpop.f32.mrf.mxu0
        %v6712 = vadd.f32 %v6423, %v6711
        %v6713 = vpop.f32.mrf.mxu0
        %6714 = vmatprep.mubr.bf16.mxu0 %v5369
        %6715 = vmatmul.mubr.bf16.gmra.mxu0 %v5368
        %v6716 = vpop.f32.mrf.mxu0
        %v6717 = vadd.f32 %v6428, %v6716
        %v6718 = vpop.f32.mrf.mxu0
        %v6719 = vpop.f32.mrf.mxu0
        %v6720 = vadd.f32 %v6431, %v6719
        %v6721 = vpop.f32.mrf.mxu0
        %6722 = vmatprep.mubr.bf16.mxu0 %v5375
        %6723 = vmatmul.mubr.bf16.gmra.mxu0 %v5374
        %v6724 = vpop.f32.mrf.mxu0
        %v6725 = vadd.f32 %v6436, %v6724
        %v6726 = vpop.f32.mrf.mxu0
        %v6727 = vpop.f32.mrf.mxu0
        %v6728 = vadd.f32 %v6439, %v6727
        %v6729 = vpop.f32.mrf.mxu0
        %6730 = vmatprep.mubr.bf16.mxu0 %v5381
        %6731 = vmatmul.mubr.bf16.gmra.mxu0 %v5380
        %v6732 = vpop.f32.mrf.mxu0
        %v6733 = vadd.f32 %v6444, %v6732
        %v6734 = vpop.f32.mrf.mxu0
        %v6735 = vpop.f32.mrf.mxu0
        %v6736 = vadd.f32 %v6447, %v6735
        %v6737 = vpop.f32.mrf.mxu0
        %6738 = vmatprep.mubr.bf16.mxu0 %v5387
        %6739 = vmatmul.mubr.bf16.gmra.mxu0 %v5386
        %v6740 = vpop.f32.mrf.mxu0
        %v6741 = vadd.f32 %v6452, %v6740
        %v6742 = vpop.f32.mrf.mxu0
        %v6743 = vpop.f32.mrf.mxu0
        %v6744 = vadd.f32 %v6455, %v6743
        %v6745 = vpop.f32.mrf.mxu0
        %6746 = vmatprep.mubr.bf16.mxu0 %v5393
        %6747 = vmatmul.mubr.bf16.gmra.mxu0 %v5392
        %v6748 = vpop.f32.mrf.mxu0
        %v6749 = vadd.f32 %v6460, %v6748
        %v6750 = vpop.f32.mrf.mxu0
        %v6751 = vpop.f32.mrf.mxu0
        %v6752 = vadd.f32 %v6463, %v6751
        %v6753 = vpop.f32.mrf.mxu0
        %6754 = vmatprep.mubr.bf16.mxu0 %v5399
        %6755 = vmatmul.mubr.bf16.gmra.mxu0 %v5398
        %v6756 = vpop.f32.mrf.mxu0
        %v6757 = vadd.f32 %v6468, %v6756
        %v6758 = vpop.f32.mrf.mxu0
        %v6759 = vpop.f32.mrf.mxu0
        %v6760 = vadd.f32 %v6471, %v6759
        %v6761 = vpop.f32.mrf.mxu0
        %6762 = vmatprep.mubr.bf16.mxu0 %v5405
        %6763 = vmatmul.mubr.bf16.gmra.mxu0 %v5404
        %v6764 = vpop.f32.mrf.mxu0
        %v6765 = vadd.f32 %v6476, %v6764
        %v6766 = vpop.f32.mrf.mxu0
        %v6767 = vpop.f32.mrf.mxu0
        %v6768 = vadd.f32 %v6479, %v6767
        %v6769 = vpop.f32.mrf.mxu0
        %6770 = vmatprep.mubr.bf16.mxu0 %v5411
        %6771 = vmatmul.mubr.bf16.gmra.mxu0 %v5410
        %v6772 = vpop.f32.mrf.mxu0
        %v6773 = vadd.f32 %v6484, %v6772
        %v6774 = vpop.f32.mrf.mxu0
        %v6775 = vpop.f32.mrf.mxu0
        %v6776 = vadd.f32 %v6487, %v6775
        %v6777 = vpop.f32.mrf.mxu0
        %6778 = vmatprep.mubr.bf16.mxu0 %v5417
        %6779 = vmatmul.mubr.bf16.gmra.mxu0 %v5416
        %v6780 = vpop.f32.mrf.mxu0
        %v6781 = vadd.f32 %v6492, %v6780
        %v6782 = vpop.f32.mrf.mxu0
        %v6783 = vpop.f32.mrf.mxu0
        %v6784 = vadd.f32 %v6495, %v6783
        %v6785 = vpop.f32.mrf.mxu0
        %6786 = vmatprep.mubr.bf16.mxu0 %v5423
        %6787 = vmatmul.mubr.bf16.gmra.mxu0 %v5422
        %v6788 = vpop.f32.mrf.mxu0
        %v6789 = vadd.f32 %v6500, %v6788
        %v6790 = vpop.f32.mrf.mxu0
        %v6791 = vpop.f32.mrf.mxu0
        %v6792 = vadd.f32 %v6503, %v6791
        %v6793 = vpop.f32.mrf.mxu0
        %6794 = vdwg.mxu0
        %6795 = vmatprep.subr.bf16.mxu0 0
        %6796 = vmatpush1.bf16.msra.mxu0 0
        %6797 = vmatprep.subr.bf16.mxu0 0
        %6798 = vmatpush1.bf16.msra.mxu0 0
        %6799 = vmatprep.subr.bf16.mxu0 0
        %6800 = vmatpush1.bf16.msra.mxu0 0
        %6801 = vmatprep.subr.bf16.mxu0 0
        %6802 = vmatpush1.bf16.msra.mxu0 0
        %6803 = vmatprep.subr.bf16.mxu0 0
        %6804 = vmatpush1.bf16.msra.mxu0 0
        %6805 = vmatprep.subr.bf16.mxu0 0
        %6806 = vmatpush1.bf16.msra.mxu0 0
        %6807 = vmatprep.subr.bf16.mxu0 0
        %6808 = vmatpush1.bf16.msra.mxu0 %v5781
        %6809 = vmatprep.subr.bf16.mxu0 0
        %6810 = vmatpush1.bf16.msra.mxu0 %v5780
        %6811 = vmatprep.subr.bf16.mxu0 0
        %6812 = vmatpush2.bf16.msra.mxu0 0
        %6813 = vmatprep.subr.bf16.mxu0 0
        %6814 = vmatpush2.bf16.msra.mxu0 0
        %6815 = vmatprep.subr.bf16.mxu0 0
        %6816 = vmatpush2.bf16.msra.mxu0 0
        %6817 = vmatprep.subr.bf16.mxu0 0
        %6818 = vmatpush2.bf16.msra.mxu0 0
        %6819 = vmatprep.subr.bf16.mxu0 0
        %6820 = vmatpush2.bf16.msra.mxu0 0
        %6821 = vmatprep.subr.bf16.mxu0 0
        %6822 = vmatpush2.bf16.msra.mxu0 0
        %6823 = vmatprep.subr.bf16.mxu0 0
        %6824 = vmatpush2.bf16.msra.mxu0 0
        %6825 = vmatprep.subr.bf16.mxu0 0
        %6826 = vmatpush2.bf16.msra.mxu0 0
        %6827 = vmatprep.mubr.bf16.mxu0 0
        %6828 = vmatmul.mubr.bf16.gmra.mxu0 %v5833
        %v6829 = vpop.f32.mrf.mxu0
        %v6830 = vadd.f32 %v6541, %v6829
        %v6831 = vpop.f32.mrf.mxu0
        %v6832 = vpop.f32.mrf.mxu0
        %v6833 = vadd.f32 %v6544, %v6832
        %v6834 = vpop.f32.mrf.mxu0
        %6835 = vmatprep.mubr.bf16.mxu0 0
        %6836 = vmatmul.mubr.bf16.gmra.mxu0 %v5836
        %v6837 = vpop.f32.mrf.mxu0
        %v6838 = vadd.f32 %v6549, %v6837
        %v6839 = vpop.f32.mrf.mxu0
        %v6840 = vpop.f32.mrf.mxu0
        %v6841 = vadd.f32 %v6552, %v6840
        %v6842 = vpop.f32.mrf.mxu0
        %6843 = vmatprep.mubr.bf16.mxu0 0
        %6844 = vmatmul.mubr.bf16.gmra.mxu0 %v5839
        %v6845 = vpop.f32.mrf.mxu0
        %v6846 = vadd.f32 %v6557, %v6845
        %v6847 = vpop.f32.mrf.mxu0
        %v6848 = vpop.f32.mrf.mxu0
        %v6849 = vadd.f32 %v6560, %v6848
        %v6850 = vpop.f32.mrf.mxu0
        %6851 = vmatprep.mubr.bf16.mxu0 0
        %6852 = vmatmul.mubr.bf16.gmra.mxu0 %v5842
        %v6853 = vpop.f32.mrf.mxu0
        %v6854 = vadd.f32 %v6565, %v6853
        %v6855 = vpop.f32.mrf.mxu0
        %v6856 = vpop.f32.mrf.mxu0
        %v6857 = vadd.f32 %v6568, %v6856
        %v6858 = vpop.f32.mrf.mxu0
        %6859 = vmatprep.mubr.bf16.mxu0 0
        %6860 = vmatmul.mubr.bf16.gmra.mxu0 %v5845
        %v6861 = vpop.f32.mrf.mxu0
        %v6862 = vadd.f32 %v6573, %v6861
        %v6863 = vpop.f32.mrf.mxu0
        %v6864 = vpop.f32.mrf.mxu0
        %v6865 = vadd.f32 %v6576, %v6864
        %v6866 = vpop.f32.mrf.mxu0
        %6867 = vmatprep.mubr.bf16.mxu0 0
        %6868 = vmatmul.mubr.bf16.gmra.mxu0 %v5848
        %v6869 = vpop.f32.mrf.mxu0
        %v6870 = vadd.f32 %v6581, %v6869
        %v6871 = vpop.f32.mrf.mxu0
        %v6872 = vpop.f32.mrf.mxu0
        %v6873 = vadd.f32 %v6584, %v6872
        %v6874 = vpop.f32.mrf.mxu0
        %6875 = vmatprep.mubr.bf16.mxu0 0
        %6876 = vmatmul.mubr.bf16.gmra.mxu0 %v5851
        %v6877 = vpop.f32.mrf.mxu0
        %v6878 = vadd.f32 %v6589, %v6877
        %v6879 = vpop.f32.mrf.mxu0
        %v6880 = vpop.f32.mrf.mxu0
        %v6881 = vadd.f32 %v6592, %v6880
        %v6882 = vpop.f32.mrf.mxu0
        %6883 = vmatprep.mubr.bf16.mxu0 0
        %6884 = vmatmul.mubr.bf16.gmra.mxu0 %v5854
        %v6885 = vpop.f32.mrf.mxu0
        %v6886 = vadd.f32 %v6597, %v6885
        %v6887 = vpop.f32.mrf.mxu0
        %v6888 = vpop.f32.mrf.mxu0
        %v6889 = vadd.f32 %v6600, %v6888
        %v6890 = vpop.f32.mrf.mxu0
        %6891 = vmatprep.mubr.bf16.mxu0 0
        %6892 = vmatmul.mubr.bf16.gmra.mxu0 %v5857
        %v6893 = vpop.f32.mrf.mxu0
        %v6894 = vadd.f32 %v6605, %v6893
        %v6895 = vpop.f32.mrf.mxu0
        %v6896 = vpop.f32.mrf.mxu0
        %v6897 = vadd.f32 %v6608, %v6896
        %v6898 = vpop.f32.mrf.mxu0
        %6899 = vmatprep.mubr.bf16.mxu0 0
        %6900 = vmatmul.mubr.bf16.gmra.mxu0 %v5860
        %v6901 = vpop.f32.mrf.mxu0
        %v6902 = vadd.f32 %v6613, %v6901
        %v6903 = vpop.f32.mrf.mxu0
        %v6904 = vpop.f32.mrf.mxu0
        %v6905 = vadd.f32 %v6616, %v6904
        %v6906 = vpop.f32.mrf.mxu0
        %6907 = vmatprep.mubr.bf16.mxu0 0
        %6908 = vmatmul.mubr.bf16.gmra.mxu0 %v5863
        %v6909 = vpop.f32.mrf.mxu0
        %v6910 = vadd.f32 %v6621, %v6909
        %v6911 = vpop.f32.mrf.mxu0
        %v6912 = vpop.f32.mrf.mxu0
        %v6913 = vadd.f32 %v6624, %v6912
        %v6914 = vpop.f32.mrf.mxu0
        %6915 = vmatprep.mubr.bf16.mxu0 0
        %6916 = vmatmul.mubr.bf16.gmra.mxu0 %v5866
        %v6917 = vpop.f32.mrf.mxu0
        %v6918 = vadd.f32 %v6629, %v6917
        %v6919 = vpop.f32.mrf.mxu0
        %v6920 = vpop.f32.mrf.mxu0
        %v6921 = vadd.f32 %v6632, %v6920
        %v6922 = vpop.f32.mrf.mxu0
        %6923 = vmatprep.mubr.bf16.mxu0 0
        %6924 = vmatmul.mubr.bf16.gmra.mxu0 %v5869
        %v6925 = vpop.f32.mrf.mxu0
        %v6926 = vadd.f32 %v6637, %v6925
        %v6927 = vpop.f32.mrf.mxu0
        %v6928 = vpop.f32.mrf.mxu0
        %v6929 = vadd.f32 %v6640, %v6928
        %v6930 = vpop.f32.mrf.mxu0
        %6931 = vmatprep.mubr.bf16.mxu0 0
        %6932 = vmatmul.mubr.bf16.gmra.mxu0 %v5872
        %v6933 = vpop.f32.mrf.mxu0
        %v6934 = vadd.f32 %v6645, %v6933
        %v6935 = vpop.f32.mrf.mxu0
        %v6936 = vpop.f32.mrf.mxu0
        %v6937 = vadd.f32 %v6648, %v6936
        %v6938 = vpop.f32.mrf.mxu0
        %6939 = vmatprep.mubr.bf16.mxu0 0
        %6940 = vmatmul.mubr.bf16.gmra.mxu0 %v5875
        %v6941 = vpop.f32.mrf.mxu0
        %v6942 = vadd.f32 %v6653, %v6941
        %v6943 = vpop.f32.mrf.mxu0
        %v6944 = vpop.f32.mrf.mxu0
        %v6945 = vadd.f32 %v6656, %v6944
        %v6946 = vpop.f32.mrf.mxu0
        %6947 = vmatprep.mubr.bf16.mxu0 0
        %6948 = vmatmul.mubr.bf16.gmra.mxu0 %v5878
        %v6949 = vpop.f32.mrf.mxu0
        %v6950 = vadd.f32 %v6661, %v6949
        %v6951 = vpop.f32.mrf.mxu0
        %v6952 = vpop.f32.mrf.mxu0
        %v6953 = vadd.f32 %v6664, %v6952
        %v6954 = vpop.f32.mrf.mxu0
        %6955 = vmatprep.mubr.bf16.mxu0 0
        %6956 = vmatmul.mubr.bf16.gmra.mxu0 %v5881
        %v6957 = vpop.f32.mrf.mxu0
        %v6958 = vadd.f32 %v6669, %v6957
        %v6959 = vpop.f32.mrf.mxu0
        %v6960 = vpop.f32.mrf.mxu0
        %v6961 = vadd.f32 %v6672, %v6960
        %v6962 = vpop.f32.mrf.mxu0
        %6963 = vmatprep.mubr.bf16.mxu0 0
        %6964 = vmatmul.mubr.bf16.gmra.mxu0 %v5884
        %v6965 = vpop.f32.mrf.mxu0
        %v6966 = vadd.f32 %v6677, %v6965
        %v6967 = vpop.f32.mrf.mxu0
        %v6968 = vpop.f32.mrf.mxu0
        %v6969 = vadd.f32 %v6680, %v6968
        %v6970 = vpop.f32.mrf.mxu0
        %6971 = vmatprep.mubr.bf16.mxu0 0
        %6972 = vmatmul.mubr.bf16.gmra.mxu0 %v5887
        %v6973 = vpop.f32.mrf.mxu0
        %v6974 = vadd.f32 %v6685, %v6973
        %v6975 = vpop.f32.mrf.mxu0
        %v6976 = vpop.f32.mrf.mxu0
        %v6977 = vadd.f32 %v6688, %v6976
        %v6978 = vpop.f32.mrf.mxu0
        %6979 = vmatprep.mubr.bf16.mxu0 0
        %6980 = vmatmul.mubr.bf16.gmra.mxu0 %v5890
        %v6981 = vpop.f32.mrf.mxu0
        %v6982 = vadd.f32 %v6693, %v6981
        %v6983 = vpop.f32.mrf.mxu0
        %v6984 = vpop.f32.mrf.mxu0
        %v6985 = vadd.f32 %v6696, %v6984
        %v6986 = vpop.f32.mrf.mxu0
        %6987 = vmatprep.mubr.bf16.mxu0 0
        %6988 = vmatmul.mubr.bf16.gmra.mxu0 %v5893
        %v6989 = vpop.f32.mrf.mxu0
        %v6990 = vadd.f32 %v6701, %v6989
        %v6991 = vpop.f32.mrf.mxu0
        %v6992 = vpop.f32.mrf.mxu0
        %v6993 = vadd.f32 %v6704, %v6992
        %v6994 = vpop.f32.mrf.mxu0
        %6995 = vmatprep.mubr.bf16.mxu0 0
        %6996 = vmatmul.mubr.bf16.gmra.mxu0 %v5896
        %v6997 = vpop.f32.mrf.mxu0
        %v6998 = vadd.f32 %v6709, %v6997
        %v6999 = vpop.f32.mrf.mxu0
        %v7000 = vpop.f32.mrf.mxu0
        %v7001 = vadd.f32 %v6712, %v7000
        %v7002 = vpop.f32.mrf.mxu0
        %7003 = vmatprep.mubr.bf16.mxu0 0
        %7004 = vmatmul.mubr.bf16.gmra.mxu0 %v5899
        %v7005 = vpop.f32.mrf.mxu0
        %v7006 = vadd.f32 %v6717, %v7005
        %v7007 = vpop.f32.mrf.mxu0
        %v7008 = vpop.f32.mrf.mxu0
        %v7009 = vadd.f32 %v6720, %v7008
        %v7010 = vpop.f32.mrf.mxu0
        %7011 = vmatprep.mubr.bf16.mxu0 0
        %7012 = vmatmul.mubr.bf16.gmra.mxu0 %v5902
        %v7013 = vpop.f32.mrf.mxu0
        %v7014 = vadd.f32 %v6725, %v7013
        %v7015 = vpop.f32.mrf.mxu0
        %v7016 = vpop.f32.mrf.mxu0
        %v7017 = vadd.f32 %v6728, %v7016
        %v7018 = vpop.f32.mrf.mxu0
        %7019 = vmatprep.mubr.bf16.mxu0 0
        %7020 = vmatmul.mubr.bf16.gmra.mxu0 %v5905
        %v7021 = vpop.f32.mrf.mxu0
        %v7022 = vadd.f32 %v6733, %v7021
        %v7023 = vpop.f32.mrf.mxu0
        %v7024 = vpop.f32.mrf.mxu0
        %v7025 = vadd.f32 %v6736, %v7024
        %v7026 = vpop.f32.mrf.mxu0
        %7027 = vmatprep.mubr.bf16.mxu0 0
        %7028 = vmatmul.mubr.bf16.gmra.mxu0 %v5908
        %v7029 = vpop.f32.mrf.mxu0
        %v7030 = vadd.f32 %v6741, %v7029
        %v7031 = vpop.f32.mrf.mxu0
        %v7032 = vpop.f32.mrf.mxu0
        %v7033 = vadd.f32 %v6744, %v7032
        %v7034 = vpop.f32.mrf.mxu0
        %7035 = vmatprep.mubr.bf16.mxu0 0
        %7036 = vmatmul.mubr.bf16.gmra.mxu0 %v5911
        %v7037 = vpop.f32.mrf.mxu0
        %v7038 = vadd.f32 %v6749, %v7037
        %v7039 = vpop.f32.mrf.mxu0
        %v7040 = vpop.f32.mrf.mxu0
        %v7041 = vadd.f32 %v6752, %v7040
        %v7042 = vpop.f32.mrf.mxu0
        %7043 = vmatprep.mubr.bf16.mxu0 0
        %7044 = vmatmul.mubr.bf16.gmra.mxu0 %v5914
        %v7045 = vpop.f32.mrf.mxu0
        %v7046 = vadd.f32 %v6757, %v7045
        %v7047 = vpop.f32.mrf.mxu0
        %v7048 = vpop.f32.mrf.mxu0
        %v7049 = vadd.f32 %v6760, %v7048
        %v7050 = vpop.f32.mrf.mxu0
        %7051 = vmatprep.mubr.bf16.mxu0 0
        %7052 = vmatmul.mubr.bf16.gmra.mxu0 %v5917
        %v7053 = vpop.f32.mrf.mxu0
        %v7054 = vadd.f32 %v6765, %v7053
        %v7055 = vpop.f32.mrf.mxu0
        %v7056 = vpop.f32.mrf.mxu0
        %v7057 = vadd.f32 %v6768, %v7056
        %v7058 = vpop.f32.mrf.mxu0
        %7059 = vmatprep.mubr.bf16.mxu0 0
        %7060 = vmatmul.mubr.bf16.gmra.mxu0 %v5920
        %v7061 = vpop.f32.mrf.mxu0
        %v7062 = vadd.f32 %v6773, %v7061
        %v7063 = vpop.f32.mrf.mxu0
        %v7064 = vpop.f32.mrf.mxu0
        %v7065 = vadd.f32 %v6776, %v7064
        %v7066 = vpop.f32.mrf.mxu0
        %7067 = vmatprep.mubr.bf16.mxu0 0
        %7068 = vmatmul.mubr.bf16.gmra.mxu0 %v5923
        %v7069 = vpop.f32.mrf.mxu0
        %v7070 = vadd.f32 %v6781, %v7069
        %v7071 = vpop.f32.mrf.mxu0
        %v7072 = vpop.f32.mrf.mxu0
        %v7073 = vadd.f32 %v6784, %v7072
        %v7074 = vpop.f32.mrf.mxu0
        %7075 = vmatprep.mubr.bf16.mxu0 0
        %7076 = vmatmul.mubr.bf16.gmra.mxu0 %v5926
        %v7077 = vpop.f32.mrf.mxu0
        %v7078 = vadd.f32 %v6789, %v7077
        %v7079 = vpop.f32.mrf.mxu0
        %v7080 = vpop.f32.mrf.mxu0
        %v7081 = vadd.f32 %v6792, %v7080
        %v7082 = vpop.f32.mrf.mxu0
        %7083 = vdwg.mxu0
        %v7084 = vmax.f32 %v6830, 0.0
        %v7085 = vmax.f32 %v6833, 0.0
        %v7086 = vmax.f32 %v6838, 0.0
        %v7087 = vmax.f32 %v6841, 0.0
        %v7088 = vmax.f32 %v6846, 0.0
        %v7089 = vmax.f32 %v6849, 0.0
        %v7090 = vmax.f32 %v6854, 0.0
        %v7091 = vmax.f32 %v6857, 0.0
        %v7092 = vmax.f32 %v6862, 0.0
        %v7093 = vmax.f32 %v6865, 0.0
        %v7094 = vmax.f32 %v6870, 0.0
        %v7095 = vmax.f32 %v6873, 0.0
        %v7096 = vmax.f32 %v6878, 0.0
        %v7097 = vmax.f32 %v6881, 0.0
        %v7098 = vmax.f32 %v6886, 0.0
        %v7099 = vmax.f32 %v6889, 0.0
        %v7100 = vmax.f32 %v6894, 0.0
        %v7101 = vmax.f32 %v6897, 0.0
        %v7102 = vmax.f32 %v6902, 0.0
        %v7103 = vmax.f32 %v6905, 0.0
        %v7104 = vmax.f32 %v6910, 0.0
        %v7105 = vmax.f32 %v6913, 0.0
        %v7106 = vmax.f32 %v6918, 0.0
        %v7107 = vmax.f32 %v6921, 0.0
        %v7108 = vmax.f32 %v6926, 0.0
        %v7109 = vmax.f32 %v6929, 0.0
        %v7110 = vmax.f32 %v6934, 0.0
        %v7111 = vmax.f32 %v6937, 0.0
        %v7112 = vmax.f32 %v6942, 0.0
        %v7113 = vmax.f32 %v6945, 0.0
        %v7114 = vmax.f32 %v6950, 0.0
        %v7115 = vmax.f32 %v6953, 0.0
        %v7116 = vmax.f32 %v6958, 0.0
        %v7117 = vmax.f32 %v6961, 0.0
        %v7118 = vmax.f32 %v6966, 0.0
        %v7119 = vmax.f32 %v6969, 0.0
        %v7120 = vmax.f32 %v6974, 0.0
        %v7121 = vmax.f32 %v6977, 0.0
        %v7122 = vmax.f32 %v6982, 0.0
        %v7123 = vmax.f32 %v6985, 0.0
        %v7124 = vmax.f32 %v6990, 0.0
        %v7125 = vmax.f32 %v6993, 0.0
        %v7126 = vmax.f32 %v6998, 0.0
        %v7127 = vmax.f32 %v7001, 0.0
        %v7128 = vmax.f32 %v7006, 0.0
        %v7129 = vmax.f32 %v7009, 0.0
        %v7130 = vmax.f32 %v7014, 0.0
        %v7131 = vmax.f32 %v7017, 0.0
        %v7132 = vmax.f32 %v7022, 0.0
        %v7133 = vmax.f32 %v7025, 0.0
        %v7134 = vmax.f32 %v7030, 0.0
        %v7135 = vmax.f32 %v7033, 0.0
        %v7136 = vmax.f32 %v7038, 0.0
        %v7137 = vmax.f32 %v7041, 0.0
        %v7138 = vmax.f32 %v7046, 0.0
        %v7139 = vmax.f32 %v7049, 0.0
        %v7140 = vmax.f32 %v7054, 0.0
        %v7141 = vmax.f32 %v7057, 0.0
        %v7142 = vmax.f32 %v7062, 0.0
        %v7143 = vmax.f32 %v7065, 0.0
        %v7144 = vmax.f32 %v7070, 0.0
        %v7145 = vmax.f32 %v7073, 0.0
        %v7146 = vmax.f32 %v7078, 0.0
        %v7147 = vmax.f32 %v7081, 0.0
        %v7148 = vmax.f32 %v7084, %v7092
        %v7149 = vmax.f32 %v7085, %v7093
        %v7150 = vmax.f32 %v7086, %v7094
        %v7151 = vmax.f32 %v7087, %v7095
        %v7152 = vmax.f32 %v7088, %v7096
        %v7153 = vmax.f32 %v7089, %v7097
        %v7154 = vmax.f32 %v7090, %v7098
        %v7155 = vmax.f32 %v7091, %v7099
        %v7156 = vmax.f32 %v7100, %v7108
        %v7157 = vmax.f32 %v7101, %v7109
        %v7158 = vmax.f32 %v7102, %v7110
        %v7159 = vmax.f32 %v7103, %v7111
        %v7160 = vmax.f32 %v7104, %v7112
        %v7161 = vmax.f32 %v7105, %v7113
        %v7162 = vmax.f32 %v7106, %v7114
        %v7163 = vmax.f32 %v7107, %v7115
        %v7164 = vmax.f32 %v7116, %v7124
        %v7165 = vmax.f32 %v7117, %v7125
        %v7166 = vmax.f32 %v7118, %v7126
        %v7167 = vmax.f32 %v7119, %v7127
        %v7168 = vmax.f32 %v7120, %v7128
        %v7169 = vmax.f32 %v7121, %v7129
        %v7170 = vmax.f32 %v7122, %v7130
        %v7171 = vmax.f32 %v7123, %v7131
        %v7172 = vmax.f32 %v7132, %v7140
        %v7173 = vmax.f32 %v7133, %v7141
        %v7174 = vmax.f32 %v7134, %v7142
        %v7175 = vmax.f32 %v7135, %v7143
        %v7176 = vmax.f32 %v7136, %v7144
        %v7177 = vmax.f32 %v7137, %v7145
        %v7178 = vmax.f32 %v7138, %v7146
        %v7179 = vmax.f32 %v7139, %v7147
        %v7180 = vmax.f32 %v7148, %v7149
        %v7181 = vmax.f32 %v7150, %v7151
        %v7182 = vmax.f32 %v7152, %v7153
        %v7183 = vmax.f32 %v7154, %v7155
        %v7184 = vmax.f32 %v7156, %v7157
        %v7185 = vmax.f32 %v7158, %v7159
        %v7186 = vmax.f32 %v7160, %v7161
        %v7187 = vmax.f32 %v7162, %v7163
        %v7188 = vmax.f32 %v7164, %v7165
        %v7189 = vmax.f32 %v7166, %v7167
        %v7190 = vmax.f32 %v7168, %v7169
        %v7191 = vmax.f32 %v7170, %v7171
        %v7192 = vmax.f32 %v7172, %v7173
        %v7193 = vmax.f32 %v7174, %v7175
        %v7194 = vmax.f32 %v7176, %v7177
        %v7195 = vmax.f32 %v7178, %v7179
        %7197 = vrot.lane.b32.xlu0 %v7181, 64
        %v7198 = vpop.permute.xlu0 %7197
        %7201 = vrot.lane.b32.xlu0 %v7183, 64
        %v7202 = vpop.permute.xlu0 %7201
        %7205 = vrot.lane.b32.xlu0 %v7185, 64
        %v7206 = vpop.permute.xlu0 %7205
        %7209 = vrot.lane.b32.xlu0 %v7187, 64
        %v7210 = vpop.permute.xlu0 %7209
        %7213 = vrot.lane.b32.xlu0 %v7189, 64
        %v7214 = vpop.permute.xlu0 %7213
        %7217 = vrot.lane.b32.xlu0 %v7191, 64
        %v7218 = vpop.permute.xlu0 %7217
        %7221 = vrot.lane.b32.xlu0 %v7193, 64
        %v7222 = vpop.permute.xlu0 %7221
        %7225 = vrot.lane.b32.xlu0 %v7195, 64
        %v7226 = vpop.permute.xlu0 %7225
        %v7228 = vsel %vm4367, %v7180, %v7198
        %v7229 = vsel %vm4367, %v7182, %v7202
        %v7230 = vsel %vm4367, %v7184, %v7206
        %v7231 = vsel %vm4367, %v7186, %v7210
        %v7232 = vsel %vm4367, %v7188, %v7214
        %v7233 = vsel %vm4367, %v7190, %v7218
        %v7234 = vsel %vm4367, %v7192, %v7222
        %v7235 = vsel %vm4367, %v7194, %v7226
        %v7236 = vpack.c.bf16 %v7228, %v7228
        %v7237 = vpack.c.bf16 %v7229, %v7229
        %v7238 = vpack.c.bf16 %v7230, %v7230
        %v7239 = vpack.c.bf16 %v7231, %v7231
        %v7240 = vpack.c.bf16 %v7232, %v7232
        %v7241 = vpack.c.bf16 %v7233, %v7233
        %v7242 = vpack.c.bf16 %v7234, %v7234
        %v7243 = vpack.c.bf16 %v7235, %v7235
        %v7244 = vld [vmem:[%s5] sm:$0xff]
        %v7245 = vld [vmem:[%s5 + $0x8] sm:$0xff]
        %v7246 = vld [vmem:[%s5 + $0x10] sm:$0xff]
        %v7247 = vld [vmem:[%s5 + $0x18] sm:$0xff]
        %v7248 = vld [vmem:[%s5 + $0x20] sm:$0xff]
        %v7249 = vld [vmem:[%s5 + $0x28] sm:$0xff]
        %v7250 = vld [vmem:[%s5 + $0x30] sm:$0xff]
        %v7251 = vld [vmem:[%s5 + $0x38] sm:$0xff]
        %v7252 = vld [vmem:[%s5 + $0x40] sm:$0xff]
        %v7253 = vld [vmem:[%s5 + $0x48] sm:$0xff]
        %v7254 = vld [vmem:[%s5 + $0x50] sm:$0xff]
        %v7255 = vld [vmem:[%s5 + $0x58] sm:$0xff]
        %v7256 = vld [vmem:[%s5 + $0x60] sm:$0xff]
        %v7257 = vld [vmem:[%s5 + $0x68] sm:$0xff]
        %v7258 = vld [vmem:[%s5 + $0x70] sm:$0xff]
        %v7259 = vld [vmem:[%s5 + $0x78] sm:$0xff]
        %v7260 = vld [vmem:[%s5 + $0x80] sm:$0xff]
        %v7261 = vld [vmem:[%s5 + $0x88] sm:$0xff]
        %v7262 = vld [vmem:[%s5 + $0x90] sm:$0xff]
        %v7263 = vld [vmem:[%s5 + $0x98] sm:$0xff]
        %v7264 = vld [vmem:[%s5 + $0xa0] sm:$0xff]
        %v7265 = vld [vmem:[%s5 + $0xa8] sm:$0xff]
        %v7266 = vld [vmem:[%s5 + $0xb0] sm:$0xff]
        %v7267 = vld [vmem:[%s5 + $0xb8] sm:$0xff]
        %v7268 = vld [vmem:[%s5 + $0xc0] sm:$0xff]
        %v7269 = vld [vmem:[%s5 + $0xc8] sm:$0xff]
        %v7270 = vld [vmem:[%s5 + $0xd0] sm:$0xff]
        %v7271 = vld [vmem:[%s5 + $0xd8] sm:$0xff]
        %v7272 = vld [vmem:[%s5 + $0xe0] sm:$0xff]
        %v7273 = vld [vmem:[%s5 + $0xe8] sm:$0xff]
        %v7274 = vld [vmem:[%s5 + $0xf0] sm:$0xff]
        %v7275 = vld [vmem:[%s5 + $0xf8] sm:$0xff]
        %v7276 = vld [vmem:[%s5 + $0x100] sm:$0xff]
        %v7277 = vld [vmem:[%s5 + $0x108] sm:$0xff]
        %v7278 = vld [vmem:[%s5 + $0x110] sm:$0xff]
        %v7279 = vld [vmem:[%s5 + $0x118] sm:$0xff]
        %v7280 = vld [vmem:[%s5 + $0x120] sm:$0xff]
        %v7281 = vld [vmem:[%s5 + $0x128] sm:$0xff]
        %v7282 = vld [vmem:[%s5 + $0x130] sm:$0xff]
        %v7283 = vld [vmem:[%s5 + $0x138] sm:$0xff]
        %v7284 = vld [vmem:[%s5 + $0x140] sm:$0xff]
        %v7285 = vld [vmem:[%s5 + $0x148] sm:$0xff]
        %v7286 = vld [vmem:[%s5 + $0x150] sm:$0xff]
        %v7287 = vld [vmem:[%s5 + $0x158] sm:$0xff]
        %v7288 = vld [vmem:[%s5 + $0x160] sm:$0xff]
        %v7289 = vld [vmem:[%s5 + $0x168] sm:$0xff]
        %v7290 = vld [vmem:[%s5 + $0x170] sm:$0xff]
        %v7291 = vld [vmem:[%s5 + $0x178] sm:$0xff]
        %v7292 = vld [vmem:[%s5 + $0x180] sm:$0xff]
        %v7293 = vld [vmem:[%s5 + $0x188] sm:$0xff]
        %v7294 = vld [vmem:[%s5 + $0x190] sm:$0xff]
        %v7295 = vld [vmem:[%s5 + $0x198] sm:$0xff]
        %v7296 = vld [vmem:[%s5 + $0x1a0] sm:$0xff]
        %v7297 = vld [vmem:[%s5 + $0x1a8] sm:$0xff]
        %v7298 = vld [vmem:[%s5 + $0x1b0] sm:$0xff]
        %v7299 = vld [vmem:[%s5 + $0x1b8] sm:$0xff]
        %v7300 = vld [vmem:[%s5 + $0x1c0] sm:$0xff]
        %v7301 = vld [vmem:[%s5 + $0x1c8] sm:$0xff]
        %v7302 = vld [vmem:[%s5 + $0x1d0] sm:$0xff]
        %v7303 = vld [vmem:[%s5 + $0x1d8] sm:$0xff]
        %v7304 = vld [vmem:[%s5 + $0x1e0] sm:$0xff]
        %v7305 = vld [vmem:[%s5 + $0x1e8] sm:$0xff]
        %v7306 = vld [vmem:[%s5 + $0x1f0] sm:$0xff]
        %v7307 = vld [vmem:[%s5 + $0x1f8] sm:$0xff]
        %v7308 = vld [vmem:[%s5 + $0x200] sm:$0xff]
        %v7309 = vld [vmem:[%s5 + $0x208] sm:$0xff]
        %v7310 = vld [vmem:[%s5 + $0x210] sm:$0xff]
        %v7311 = vld [vmem:[%s5 + $0x218] sm:$0xff]
        %v7312 = vld [vmem:[%s5 + $0x220] sm:$0xff]
        %v7313 = vld [vmem:[%s5 + $0x228] sm:$0xff]
        %v7314 = vld [vmem:[%s5 + $0x230] sm:$0xff]
        %v7315 = vld [vmem:[%s5 + $0x238] sm:$0xff]
        %v7316 = vld [vmem:[%s5 + $0x240] sm:$0xff]
        %v7317 = vld [vmem:[%s5 + $0x248] sm:$0xff]
        %v7318 = vld [vmem:[%s5 + $0x250] sm:$0xff]
        %v7319 = vld [vmem:[%s5 + $0x258] sm:$0xff]
        %v7320 = vld [vmem:[%s5 + $0x260] sm:$0xff]
        %v7321 = vld [vmem:[%s5 + $0x268] sm:$0xff]
        %v7322 = vld [vmem:[%s5 + $0x270] sm:$0xff]
        %v7323 = vld [vmem:[%s5 + $0x278] sm:$0xff]
        %v7324 = vld [vmem:[%s5 + $0x280] sm:$0xff]
        %v7325 = vld [vmem:[%s5 + $0x288] sm:$0xff]
        %v7326 = vld [vmem:[%s5 + $0x290] sm:$0xff]
        %v7327 = vld [vmem:[%s5 + $0x298] sm:$0xff]
        %v7328 = vld [vmem:[%s5 + $0x2a0] sm:$0xff]
        %v7329 = vld [vmem:[%s5 + $0x2a8] sm:$0xff]
        %v7330 = vld [vmem:[%s5 + $0x2b0] sm:$0xff]
        %v7331 = vld [vmem:[%s5 + $0x2b8] sm:$0xff]
        %v7332 = vld [vmem:[%s5 + $0x2c0] sm:$0xff]
        %v7333 = vld [vmem:[%s5 + $0x2c8] sm:$0xff]
        %v7334 = vld [vmem:[%s5 + $0x2d0] sm:$0xff]
        %v7335 = vld [vmem:[%s5 + $0x2d8] sm:$0xff]
        %v7336 = vld [vmem:[%s5 + $0x2e0] sm:$0xff]
        %v7337 = vld [vmem:[%s5 + $0x2e8] sm:$0xff]
        %v7338 = vld [vmem:[%s5 + $0x2f0] sm:$0xff]
        %v7339 = vld [vmem:[%s5 + $0x2f8] sm:$0xff]
        %v7340 = vld [vmem:[%s5 + $0x300] sm:$0xff]
        %v7341 = vld [vmem:[%s5 + $0x308] sm:$0xff]
        %v7342 = vld [vmem:[%s5 + $0x310] sm:$0xff]
        %v7343 = vld [vmem:[%s5 + $0x318] sm:$0xff]
        %v7344 = vld [vmem:[%s5 + $0x320] sm:$0xff]
        %v7345 = vld [vmem:[%s5 + $0x328] sm:$0xff]
        %v7346 = vld [vmem:[%s5 + $0x330] sm:$0xff]
        %v7347 = vld [vmem:[%s5 + $0x338] sm:$0xff]
        %v7348 = vld [vmem:[%s5 + $0x340] sm:$0xff]
        %v7349 = vld [vmem:[%s5 + $0x348] sm:$0xff]
        %v7350 = vld [vmem:[%s5 + $0x350] sm:$0xff]
        %v7351 = vld [vmem:[%s5 + $0x358] sm:$0xff]
        %v7352 = vld [vmem:[%s5 + $0x360] sm:$0xff]
        %v7353 = vld [vmem:[%s5 + $0x368] sm:$0xff]
        %v7354 = vld [vmem:[%s5 + $0x370] sm:$0xff]
        %v7355 = vld [vmem:[%s5 + $0x378] sm:$0xff]
        %v7356 = vld [vmem:[%s5 + $0x380] sm:$0xff]
        %v7357 = vld [vmem:[%s5 + $0x388] sm:$0xff]
        %v7358 = vld [vmem:[%s5 + $0x390] sm:$0xff]
        %v7359 = vld [vmem:[%s5 + $0x398] sm:$0xff]
        %v7360 = vld [vmem:[%s5 + $0x3a0] sm:$0xff]
        %v7361 = vld [vmem:[%s5 + $0x3a8] sm:$0xff]
        %v7362 = vld [vmem:[%s5 + $0x3b0] sm:$0xff]
        %v7363 = vld [vmem:[%s5 + $0x3b8] sm:$0xff]
        %v7364 = vld [vmem:[%s5 + $0x3c0] sm:$0xff]
        %v7365 = vld [vmem:[%s5 + $0x3c8] sm:$0xff]
        %v7366 = vld [vmem:[%s5 + $0x3d0] sm:$0xff]
        %v7367 = vld [vmem:[%s5 + $0x3d8] sm:$0xff]
        %v7368 = vld [vmem:[%s5 + $0x3e0] sm:$0xff]
        %v7369 = vld [vmem:[%s5 + $0x3e8] sm:$0xff]
        %v7370 = vld [vmem:[%s5 + $0x3f0] sm:$0xff]
        %v7371 = vld [vmem:[%s5 + $0x3f8] sm:$0xff]
        %v7372 = vld [vmem:[%s5 + $0x400] sm:$0xff]
        %v7373 = vld [vmem:[%s5 + $0x408] sm:$0xff]
        %v7374 = vld [vmem:[%s5 + $0x410] sm:$0xff]
        %v7375 = vld [vmem:[%s5 + $0x418] sm:$0xff]
        %v7376 = vld [vmem:[%s5 + $0x420] sm:$0xff]
        %v7377 = vld [vmem:[%s5 + $0x428] sm:$0xff]
        %v7378 = vld [vmem:[%s5 + $0x430] sm:$0xff]
        %v7379 = vld [vmem:[%s5 + $0x438] sm:$0xff]
        %v7380 = vld [vmem:[%s5 + $0x440] sm:$0xff]
        %v7381 = vld [vmem:[%s5 + $0x448] sm:$0xff]
        %v7382 = vld [vmem:[%s5 + $0x450] sm:$0xff]
        %v7383 = vld [vmem:[%s5 + $0x458] sm:$0xff]
        %v7384 = vld [vmem:[%s5 + $0x460] sm:$0xff]
        %v7385 = vld [vmem:[%s5 + $0x468] sm:$0xff]
        %v7386 = vld [vmem:[%s5 + $0x470] sm:$0xff]
        %v7387 = vld [vmem:[%s5 + $0x478] sm:$0xff]
        %v7388 = vld [vmem:[%s5 + $0x480] sm:$0xff]
        %v7389 = vld [vmem:[%s5 + $0x488] sm:$0xff]
        %v7390 = vld [vmem:[%s5 + $0x490] sm:$0xff]
        %v7391 = vld [vmem:[%s5 + $0x498] sm:$0xff]
        %v7392 = vld [vmem:[%s5 + $0x4a0] sm:$0xff]
        %v7393 = vld [vmem:[%s5 + $0x4a8] sm:$0xff]
        %v7394 = vld [vmem:[%s5 + $0x4b0] sm:$0xff]
        %v7395 = vld [vmem:[%s5 + $0x4b8] sm:$0xff]
        %v7396 = vld [vmem:[%s5 + $0x4c0] sm:$0xff]
        %v7397 = vld [vmem:[%s5 + $0x4c8] sm:$0xff]
        %v7398 = vld [vmem:[%s5 + $0x4d0] sm:$0xff]
        %v7399 = vld [vmem:[%s5 + $0x4d8] sm:$0xff]
        %v7400 = vld [vmem:[%s5 + $0x4e0] sm:$0xff]
        %v7401 = vld [vmem:[%s5 + $0x4e8] sm:$0xff]
        %v7402 = vld [vmem:[%s5 + $0x4f0] sm:$0xff]
        %v7403 = vld [vmem:[%s5 + $0x4f8] sm:$0xff]
        %v7404 = vld [vmem:[%s5 + $0x500] sm:$0xff]
        %v7405 = vld [vmem:[%s5 + $0x508] sm:$0xff]
        %v7406 = vld [vmem:[%s5 + $0x510] sm:$0xff]
        %v7407 = vld [vmem:[%s5 + $0x518] sm:$0xff]
        %v7408 = vld [vmem:[%s5 + $0x520] sm:$0xff]
        %v7409 = vld [vmem:[%s5 + $0x528] sm:$0xff]
        %v7410 = vld [vmem:[%s5 + $0x530] sm:$0xff]
        %v7411 = vld [vmem:[%s5 + $0x538] sm:$0xff]
        %v7412 = vld [vmem:[%s5 + $0x540] sm:$0xff]
        %v7413 = vld [vmem:[%s5 + $0x548] sm:$0xff]
        %v7414 = vld [vmem:[%s5 + $0x550] sm:$0xff]
        %v7415 = vld [vmem:[%s5 + $0x558] sm:$0xff]
        %v7416 = vld [vmem:[%s5 + $0x560] sm:$0xff]
        %v7417 = vld [vmem:[%s5 + $0x568] sm:$0xff]
        %v7418 = vld [vmem:[%s5 + $0x570] sm:$0xff]
        %v7419 = vld [vmem:[%s5 + $0x578] sm:$0xff]
        %v7420 = vld [vmem:[%s5 + $0x580] sm:$0xff]
        %v7421 = vld [vmem:[%s5 + $0x588] sm:$0xff]
        %v7422 = vld [vmem:[%s5 + $0x590] sm:$0xff]
        %v7423 = vld [vmem:[%s5 + $0x598] sm:$0xff]
        %v7424 = vld [vmem:[%s5 + $0x5a0] sm:$0xff]
        %v7425 = vld [vmem:[%s5 + $0x5a8] sm:$0xff]
        %v7426 = vld [vmem:[%s5 + $0x5b0] sm:$0xff]
        %v7427 = vld [vmem:[%s5 + $0x5b8] sm:$0xff]
        %v7428 = vld [vmem:[%s5 + $0x5c0] sm:$0xff]
        %v7429 = vld [vmem:[%s5 + $0x5c8] sm:$0xff]
        %v7430 = vld [vmem:[%s5 + $0x5d0] sm:$0xff]
        %v7431 = vld [vmem:[%s5 + $0x5d8] sm:$0xff]
        %v7432 = vld [vmem:[%s5 + $0x5e0] sm:$0xff]
        %v7433 = vld [vmem:[%s5 + $0x5e8] sm:$0xff]
        %v7434 = vld [vmem:[%s5 + $0x5f0] sm:$0xff]
        %v7435 = vld [vmem:[%s5 + $0x5f8] sm:$0xff]
        %v7436 = vld [vmem:[%s5 + $0x600] sm:$0xff]
        %v7437 = vld [vmem:[%s5 + $0x608] sm:$0xff]
        %v7438 = vld [vmem:[%s5 + $0x610] sm:$0xff]
        %v7439 = vld [vmem:[%s5 + $0x618] sm:$0xff]
        %v7440 = vld [vmem:[%s5 + $0x620] sm:$0xff]
        %v7441 = vld [vmem:[%s5 + $0x628] sm:$0xff]
        %v7442 = vld [vmem:[%s5 + $0x630] sm:$0xff]
        %v7443 = vld [vmem:[%s5 + $0x638] sm:$0xff]
        %v7444 = vld [vmem:[%s5 + $0x640] sm:$0xff]
        %v7445 = vld [vmem:[%s5 + $0x648] sm:$0xff]
        %v7446 = vld [vmem:[%s5 + $0x650] sm:$0xff]
        %v7447 = vld [vmem:[%s5 + $0x658] sm:$0xff]
        %v7448 = vld [vmem:[%s5 + $0x660] sm:$0xff]
        %v7449 = vld [vmem:[%s5 + $0x668] sm:$0xff]
        %v7450 = vld [vmem:[%s5 + $0x670] sm:$0xff]
        %v7451 = vld [vmem:[%s5 + $0x678] sm:$0xff]
        %v7452 = vld [vmem:[%s5 + $0x680] sm:$0xff]
        %v7453 = vld [vmem:[%s5 + $0x688] sm:$0xff]
        %v7454 = vld [vmem:[%s5 + $0x690] sm:$0xff]
        %v7455 = vld [vmem:[%s5 + $0x698] sm:$0xff]
        %v7456 = vld [vmem:[%s5 + $0x6a0] sm:$0xff]
        %v7457 = vld [vmem:[%s5 + $0x6a8] sm:$0xff]
        %v7458 = vld [vmem:[%s5 + $0x6b0] sm:$0xff]
        %v7459 = vld [vmem:[%s5 + $0x6b8] sm:$0xff]
        %v7460 = vld [vmem:[%s5 + $0x6c0] sm:$0xff]
        %v7461 = vld [vmem:[%s5 + $0x6c8] sm:$0xff]
        %v7462 = vld [vmem:[%s5 + $0x6d0] sm:$0xff]
        %v7463 = vld [vmem:[%s5 + $0x6d8] sm:$0xff]
        %v7464 = vld [vmem:[%s5 + $0x6e0] sm:$0xff]
        %v7465 = vld [vmem:[%s5 + $0x6e8] sm:$0xff]
        %v7466 = vld [vmem:[%s5 + $0x6f0] sm:$0xff]
        %v7467 = vld [vmem:[%s5 + $0x6f8] sm:$0xff]
        %v7468 = vld [vmem:[%s5 + $0x700] sm:$0xff]
        %v7469 = vld [vmem:[%s5 + $0x708] sm:$0xff]
        %v7470 = vld [vmem:[%s5 + $0x710] sm:$0xff]
        %v7471 = vld [vmem:[%s5 + $0x718] sm:$0xff]
        %v7472 = vld [vmem:[%s5 + $0x720] sm:$0xff]
        %v7473 = vld [vmem:[%s5 + $0x728] sm:$0xff]
        %v7474 = vld [vmem:[%s5 + $0x730] sm:$0xff]
        %v7475 = vld [vmem:[%s5 + $0x738] sm:$0xff]
        %v7476 = vld [vmem:[%s5 + $0x740] sm:$0xff]
        %v7477 = vld [vmem:[%s5 + $0x748] sm:$0xff]
        %v7478 = vld [vmem:[%s5 + $0x750] sm:$0xff]
        %v7479 = vld [vmem:[%s5 + $0x758] sm:$0xff]
        %v7480 = vld [vmem:[%s5 + $0x760] sm:$0xff]
        %v7481 = vld [vmem:[%s5 + $0x768] sm:$0xff]
        %v7482 = vld [vmem:[%s5 + $0x770] sm:$0xff]
        %v7483 = vld [vmem:[%s5 + $0x778] sm:$0xff]
        %v7484 = vld [vmem:[%s5 + $0x780] sm:$0xff]
        %v7485 = vld [vmem:[%s5 + $0x788] sm:$0xff]
        %v7486 = vld [vmem:[%s5 + $0x790] sm:$0xff]
        %v7487 = vld [vmem:[%s5 + $0x798] sm:$0xff]
        %v7488 = vld [vmem:[%s5 + $0x7a0] sm:$0xff]
        %v7489 = vld [vmem:[%s5 + $0x7a8] sm:$0xff]
        %v7490 = vld [vmem:[%s5 + $0x7b0] sm:$0xff]
        %v7491 = vld [vmem:[%s5 + $0x7b8] sm:$0xff]
        %v7492 = vld [vmem:[%s5 + $0x7c0] sm:$0xff]
        %v7493 = vld [vmem:[%s5 + $0x7c8] sm:$0xff]
        %v7494 = vld [vmem:[%s5 + $0x7d0] sm:$0xff]
        %v7495 = vld [vmem:[%s5 + $0x7d8] sm:$0xff]
        %v7496 = vld [vmem:[%s5 + $0x7e0] sm:$0xff]
        %v7497 = vld [vmem:[%s5 + $0x7e8] sm:$0xff]
        %v7498 = vld [vmem:[%s5 + $0x7f0] sm:$0xff]
        %v7499 = vld [vmem:[%s5 + $0x7f8] sm:$0xff]
        %v7500 = vld [vmem:[%s6] sm:$0xf]
        %v7502 = vlaneseq
        %v7503 = vshrl.u32 %v7502, 7
        %v7504 = vsub.s32 0, %v7503
        %v7505 = vrot.slane %v7500, %v7504
        %v7506 = vlaneseq
        %v7507 = vshrl.u32 %v7506, 7
        %v7508 = vsub.s32 1, %v7507
        %v7509 = vrot.slane %v7500, %v7508
        %v7510 = vlaneseq
        %v7511 = vshrl.u32 %v7510, 7
        %v7512 = vsub.s32 2, %v7511
        %v7513 = vrot.slane %v7500, %v7512
        %v7514 = vlaneseq
        %v7515 = vshrl.u32 %v7514, 7
        %v7516 = vsub.s32 3, %v7515
        %v7517 = vrot.slane %v7500, %v7516
        %v7778 = vunpack.c.l.b16 %v7244
        %v7779 = vunpack.c.h.b16 %v7244
        %v7780 = vunpack.c.l.b16 %v7245
        %v7781 = vunpack.c.h.b16 %v7245
        %v7782 = vunpack.c.l.b16 %v7246
        %v7783 = vunpack.c.h.b16 %v7246
        %v7784 = vunpack.c.l.b16 %v7247
        %v7785 = vunpack.c.h.b16 %v7247
        %v7786 = vunpack.c.l.b16 %v7248
        %v7787 = vunpack.c.h.b16 %v7248
        %v7788 = vunpack.c.l.b16 %v7249
        %v7789 = vunpack.c.h.b16 %v7249
        %v7790 = vunpack.c.l.b16 %v7250
        %v7791 = vunpack.c.h.b16 %v7250
        %v7792 = vunpack.c.l.b16 %v7251
        %v7793 = vunpack.c.h.b16 %v7251
        %v7794 = vunpack.c.l.b16 %v7252
        %v7795 = vunpack.c.h.b16 %v7252
        %v7796 = vunpack.c.l.b16 %v7253
        %v7797 = vunpack.c.h.b16 %v7253
        %v7798 = vunpack.c.l.b16 %v7254
        %v7799 = vunpack.c.h.b16 %v7254
        %v7800 = vunpack.c.l.b16 %v7255
        %v7801 = vunpack.c.h.b16 %v7255
        %v7802 = vunpack.c.l.b16 %v7256
        %v7803 = vunpack.c.h.b16 %v7256
        %v7804 = vunpack.c.l.b16 %v7257
        %v7805 = vunpack.c.h.b16 %v7257
        %v7806 = vunpack.c.l.b16 %v7258
        %v7807 = vunpack.c.h.b16 %v7258
        %v7808 = vunpack.c.l.b16 %v7259
        %v7809 = vunpack.c.h.b16 %v7259
        %v7810 = vunpack.c.l.b16 %v7260
        %v7811 = vunpack.c.h.b16 %v7260
        %v7812 = vunpack.c.l.b16 %v7261
        %v7813 = vunpack.c.h.b16 %v7261
        %v7814 = vunpack.c.l.b16 %v7262
        %v7815 = vunpack.c.h.b16 %v7262
        %v7816 = vunpack.c.l.b16 %v7263
        %v7817 = vunpack.c.h.b16 %v7263
        %v7818 = vunpack.c.l.b16 %v7264
        %v7819 = vunpack.c.h.b16 %v7264
        %v7820 = vunpack.c.l.b16 %v7265
        %v7821 = vunpack.c.h.b16 %v7265
        %v7822 = vunpack.c.l.b16 %v7266
        %v7823 = vunpack.c.h.b16 %v7266
        %v7824 = vunpack.c.l.b16 %v7267
        %v7825 = vunpack.c.h.b16 %v7267
        %v7826 = vunpack.c.l.b16 %v7268
        %v7827 = vunpack.c.h.b16 %v7268
        %v7828 = vunpack.c.l.b16 %v7269
        %v7829 = vunpack.c.h.b16 %v7269
        %v7830 = vunpack.c.l.b16 %v7270
        %v7831 = vunpack.c.h.b16 %v7270
        %v7832 = vunpack.c.l.b16 %v7271
        %v7833 = vunpack.c.h.b16 %v7271
        %v7834 = vunpack.c.l.b16 %v7272
        %v7835 = vunpack.c.h.b16 %v7272
        %v7836 = vunpack.c.l.b16 %v7273
        %v7837 = vunpack.c.h.b16 %v7273
        %v7838 = vunpack.c.l.b16 %v7274
        %v7839 = vunpack.c.h.b16 %v7274
        %v7840 = vunpack.c.l.b16 %v7275
        %v7841 = vunpack.c.h.b16 %v7275
        %v7842 = vunpack.c.l.b16 %v7276
        %v7843 = vunpack.c.h.b16 %v7276
        %v7844 = vunpack.c.l.b16 %v7277
        %v7845 = vunpack.c.h.b16 %v7277
        %v7846 = vunpack.c.l.b16 %v7278
        %v7847 = vunpack.c.h.b16 %v7278
        %v7848 = vunpack.c.l.b16 %v7279
        %v7849 = vunpack.c.h.b16 %v7279
        %v7850 = vunpack.c.l.b16 %v7280
        %v7851 = vunpack.c.h.b16 %v7280
        %v7852 = vunpack.c.l.b16 %v7281
        %v7853 = vunpack.c.h.b16 %v7281
        %v7854 = vunpack.c.l.b16 %v7282
        %v7855 = vunpack.c.h.b16 %v7282
        %v7856 = vunpack.c.l.b16 %v7283
        %v7857 = vunpack.c.h.b16 %v7283
        %v7858 = vunpack.c.l.b16 %v7284
        %v7859 = vunpack.c.h.b16 %v7284
        %v7860 = vunpack.c.l.b16 %v7285
        %v7861 = vunpack.c.h.b16 %v7285
        %v7862 = vunpack.c.l.b16 %v7286
        %v7863 = vunpack.c.h.b16 %v7286
        %v7864 = vunpack.c.l.b16 %v7287
        %v7865 = vunpack.c.h.b16 %v7287
        %v7866 = vunpack.c.l.b16 %v7288
        %v7867 = vunpack.c.h.b16 %v7288
        %v7868 = vunpack.c.l.b16 %v7289
        %v7869 = vunpack.c.h.b16 %v7289
        %v7870 = vunpack.c.l.b16 %v7290
        %v7871 = vunpack.c.h.b16 %v7290
        %v7872 = vunpack.c.l.b16 %v7291
        %v7873 = vunpack.c.h.b16 %v7291
        %v7874 = vunpack.c.l.b16 %v7292
        %v7875 = vunpack.c.h.b16 %v7292
        %v7876 = vunpack.c.l.b16 %v7293
        %v7877 = vunpack.c.h.b16 %v7293
        %v7878 = vunpack.c.l.b16 %v7294
        %v7879 = vunpack.c.h.b16 %v7294
        %v7880 = vunpack.c.l.b16 %v7295
        %v7881 = vunpack.c.h.b16 %v7295
        %v7882 = vunpack.c.l.b16 %v7296
        %v7883 = vunpack.c.h.b16 %v7296
        %v7884 = vunpack.c.l.b16 %v7297
        %v7885 = vunpack.c.h.b16 %v7297
        %v7886 = vunpack.c.l.b16 %v7298
        %v7887 = vunpack.c.h.b16 %v7298
        %v7888 = vunpack.c.l.b16 %v7299
        %v7889 = vunpack.c.h.b16 %v7299
        %v7890 = vunpack.c.l.b16 %v7300
        %v7891 = vunpack.c.h.b16 %v7300
        %v7892 = vunpack.c.l.b16 %v7301
        %v7893 = vunpack.c.h.b16 %v7301
        %v7894 = vunpack.c.l.b16 %v7302
        %v7895 = vunpack.c.h.b16 %v7302
        %v7896 = vunpack.c.l.b16 %v7303
        %v7897 = vunpack.c.h.b16 %v7303
        %v7898 = vunpack.c.l.b16 %v7304
        %v7899 = vunpack.c.h.b16 %v7304
        %v7900 = vunpack.c.l.b16 %v7305
        %v7901 = vunpack.c.h.b16 %v7305
        %v7902 = vunpack.c.l.b16 %v7306
        %v7903 = vunpack.c.h.b16 %v7306
        %v7904 = vunpack.c.l.b16 %v7307
        %v7905 = vunpack.c.h.b16 %v7307
        %v7906 = vunpack.c.l.b16 %v7308
        %v7907 = vunpack.c.h.b16 %v7308
        %v7908 = vunpack.c.l.b16 %v7309
        %v7909 = vunpack.c.h.b16 %v7309
        %v7910 = vunpack.c.l.b16 %v7310
        %v7911 = vunpack.c.h.b16 %v7310
        %v7912 = vunpack.c.l.b16 %v7311
        %v7913 = vunpack.c.h.b16 %v7311
        %v7914 = vunpack.c.l.b16 %v7312
        %v7915 = vunpack.c.h.b16 %v7312
        %v7916 = vunpack.c.l.b16 %v7313
        %v7917 = vunpack.c.h.b16 %v7313
        %v7918 = vunpack.c.l.b16 %v7314
        %v7919 = vunpack.c.h.b16 %v7314
        %v7920 = vunpack.c.l.b16 %v7315
        %v7921 = vunpack.c.h.b16 %v7315
        %v7922 = vunpack.c.l.b16 %v7316
        %v7923 = vunpack.c.h.b16 %v7316
        %v7924 = vunpack.c.l.b16 %v7317
        %v7925 = vunpack.c.h.b16 %v7317
        %v7926 = vunpack.c.l.b16 %v7318
        %v7927 = vunpack.c.h.b16 %v7318
        %v7928 = vunpack.c.l.b16 %v7319
        %v7929 = vunpack.c.h.b16 %v7319
        %v7930 = vunpack.c.l.b16 %v7320
        %v7931 = vunpack.c.h.b16 %v7320
        %v7932 = vunpack.c.l.b16 %v7321
        %v7933 = vunpack.c.h.b16 %v7321
        %v7934 = vunpack.c.l.b16 %v7322
        %v7935 = vunpack.c.h.b16 %v7322
        %v7936 = vunpack.c.l.b16 %v7323
        %v7937 = vunpack.c.h.b16 %v7323
        %v7938 = vunpack.c.l.b16 %v7324
        %v7939 = vunpack.c.h.b16 %v7324
        %v7940 = vunpack.c.l.b16 %v7325
        %v7941 = vunpack.c.h.b16 %v7325
        %v7942 = vunpack.c.l.b16 %v7326
        %v7943 = vunpack.c.h.b16 %v7326
        %v7944 = vunpack.c.l.b16 %v7327
        %v7945 = vunpack.c.h.b16 %v7327
        %v7946 = vunpack.c.l.b16 %v7328
        %v7947 = vunpack.c.h.b16 %v7328
        %v7948 = vunpack.c.l.b16 %v7329
        %v7949 = vunpack.c.h.b16 %v7329
        %v7950 = vunpack.c.l.b16 %v7330
        %v7951 = vunpack.c.h.b16 %v7330
        %v7952 = vunpack.c.l.b16 %v7331
        %v7953 = vunpack.c.h.b16 %v7331
        %v7954 = vunpack.c.l.b16 %v7332
        %v7955 = vunpack.c.h.b16 %v7332
        %v7956 = vunpack.c.l.b16 %v7333
        %v7957 = vunpack.c.h.b16 %v7333
        %v7958 = vunpack.c.l.b16 %v7334
        %v7959 = vunpack.c.h.b16 %v7334
        %v7960 = vunpack.c.l.b16 %v7335
        %v7961 = vunpack.c.h.b16 %v7335
        %v7962 = vunpack.c.l.b16 %v7336
        %v7963 = vunpack.c.h.b16 %v7336
        %v7964 = vunpack.c.l.b16 %v7337
        %v7965 = vunpack.c.h.b16 %v7337
        %v7966 = vunpack.c.l.b16 %v7338
        %v7967 = vunpack.c.h.b16 %v7338
        %v7968 = vunpack.c.l.b16 %v7339
        %v7969 = vunpack.c.h.b16 %v7339
        %v7970 = vunpack.c.l.b16 %v7340
        %v7971 = vunpack.c.h.b16 %v7340
        %v7972 = vunpack.c.l.b16 %v7341
        %v7973 = vunpack.c.h.b16 %v7341
        %v7974 = vunpack.c.l.b16 %v7342
        %v7975 = vunpack.c.h.b16 %v7342
        %v7976 = vunpack.c.l.b16 %v7343
        %v7977 = vunpack.c.h.b16 %v7343
        %v7978 = vunpack.c.l.b16 %v7344
        %v7979 = vunpack.c.h.b16 %v7344
        %v7980 = vunpack.c.l.b16 %v7345
        %v7981 = vunpack.c.h.b16 %v7345
        %v7982 = vunpack.c.l.b16 %v7346
        %v7983 = vunpack.c.h.b16 %v7346
        %v7984 = vunpack.c.l.b16 %v7347
        %v7985 = vunpack.c.h.b16 %v7347
        %v7986 = vunpack.c.l.b16 %v7348
        %v7987 = vunpack.c.h.b16 %v7348
        %v7988 = vunpack.c.l.b16 %v7349
        %v7989 = vunpack.c.h.b16 %v7349
        %v7990 = vunpack.c.l.b16 %v7350
        %v7991 = vunpack.c.h.b16 %v7350
        %v7992 = vunpack.c.l.b16 %v7351
        %v7993 = vunpack.c.h.b16 %v7351
        %v7994 = vunpack.c.l.b16 %v7352
        %v7995 = vunpack.c.h.b16 %v7352
        %v7996 = vunpack.c.l.b16 %v7353
        %v7997 = vunpack.c.h.b16 %v7353
        %v7998 = vunpack.c.l.b16 %v7354
        %v7999 = vunpack.c.h.b16 %v7354
        %v8000 = vunpack.c.l.b16 %v7355
        %v8001 = vunpack.c.h.b16 %v7355
        %v8002 = vunpack.c.l.b16 %v7356
        %v8003 = vunpack.c.h.b16 %v7356
        %v8004 = vunpack.c.l.b16 %v7357
        %v8005 = vunpack.c.h.b16 %v7357
        %v8006 = vunpack.c.l.b16 %v7358
        %v8007 = vunpack.c.h.b16 %v7358
        %v8008 = vunpack.c.l.b16 %v7359
        %v8009 = vunpack.c.h.b16 %v7359
        %v8010 = vunpack.c.l.b16 %v7360
        %v8011 = vunpack.c.h.b16 %v7360
        %v8012 = vunpack.c.l.b16 %v7361
        %v8013 = vunpack.c.h.b16 %v7361
        %v8014 = vunpack.c.l.b16 %v7362
        %v8015 = vunpack.c.h.b16 %v7362
        %v8016 = vunpack.c.l.b16 %v7363
        %v8017 = vunpack.c.h.b16 %v7363
        %v8018 = vunpack.c.l.b16 %v7364
        %v8019 = vunpack.c.h.b16 %v7364
        %v8020 = vunpack.c.l.b16 %v7365
        %v8021 = vunpack.c.h.b16 %v7365
        %v8022 = vunpack.c.l.b16 %v7366
        %v8023 = vunpack.c.h.b16 %v7366
        %v8024 = vunpack.c.l.b16 %v7367
        %v8025 = vunpack.c.h.b16 %v7367
        %v8026 = vunpack.c.l.b16 %v7368
        %v8027 = vunpack.c.h.b16 %v7368
        %v8028 = vunpack.c.l.b16 %v7369
        %v8029 = vunpack.c.h.b16 %v7369
        %v8030 = vunpack.c.l.b16 %v7370
        %v8031 = vunpack.c.h.b16 %v7370
        %v8032 = vunpack.c.l.b16 %v7371
        %v8033 = vunpack.c.h.b16 %v7371
        %v8034 = vunpack.c.l.b16 %v7372
        %v8035 = vunpack.c.h.b16 %v7372
        %v8036 = vunpack.c.l.b16 %v7373
        %v8037 = vunpack.c.h.b16 %v7373
        %v8038 = vunpack.c.l.b16 %v7374
        %v8039 = vunpack.c.h.b16 %v7374
        %v8040 = vunpack.c.l.b16 %v7375
        %v8041 = vunpack.c.h.b16 %v7375
        %v8042 = vunpack.c.l.b16 %v7376
        %v8043 = vunpack.c.h.b16 %v7376
        %v8044 = vunpack.c.l.b16 %v7377
        %v8045 = vunpack.c.h.b16 %v7377
        %v8046 = vunpack.c.l.b16 %v7378
        %v8047 = vunpack.c.h.b16 %v7378
        %v8048 = vunpack.c.l.b16 %v7379
        %v8049 = vunpack.c.h.b16 %v7379
        %v8050 = vunpack.c.l.b16 %v7380
        %v8051 = vunpack.c.h.b16 %v7380
        %v8052 = vunpack.c.l.b16 %v7381
        %v8053 = vunpack.c.h.b16 %v7381
        %v8054 = vunpack.c.l.b16 %v7382
        %v8055 = vunpack.c.h.b16 %v7382
        %v8056 = vunpack.c.l.b16 %v7383
        %v8057 = vunpack.c.h.b16 %v7383
        %v8058 = vunpack.c.l.b16 %v7384
        %v8059 = vunpack.c.h.b16 %v7384
        %v8060 = vunpack.c.l.b16 %v7385
        %v8061 = vunpack.c.h.b16 %v7385
        %v8062 = vunpack.c.l.b16 %v7386
        %v8063 = vunpack.c.h.b16 %v7386
        %v8064 = vunpack.c.l.b16 %v7387
        %v8065 = vunpack.c.h.b16 %v7387
        %v8066 = vunpack.c.l.b16 %v7388
        %v8067 = vunpack.c.h.b16 %v7388
        %v8068 = vunpack.c.l.b16 %v7389
        %v8069 = vunpack.c.h.b16 %v7389
        %v8070 = vunpack.c.l.b16 %v7390
        %v8071 = vunpack.c.h.b16 %v7390
        %v8072 = vunpack.c.l.b16 %v7391
        %v8073 = vunpack.c.h.b16 %v7391
        %v8074 = vunpack.c.l.b16 %v7392
        %v8075 = vunpack.c.h.b16 %v7392
        %v8076 = vunpack.c.l.b16 %v7393
        %v8077 = vunpack.c.h.b16 %v7393
        %v8078 = vunpack.c.l.b16 %v7394
        %v8079 = vunpack.c.h.b16 %v7394
        %v8080 = vunpack.c.l.b16 %v7395
        %v8081 = vunpack.c.h.b16 %v7395
        %v8082 = vunpack.c.l.b16 %v7396
        %v8083 = vunpack.c.h.b16 %v7396
        %v8084 = vunpack.c.l.b16 %v7397
        %v8085 = vunpack.c.h.b16 %v7397
        %v8086 = vunpack.c.l.b16 %v7398
        %v8087 = vunpack.c.h.b16 %v7398
        %v8088 = vunpack.c.l.b16 %v7399
        %v8089 = vunpack.c.h.b16 %v7399
        %v8090 = vunpack.c.l.b16 %v7400
        %v8091 = vunpack.c.h.b16 %v7400
        %v8092 = vunpack.c.l.b16 %v7401
        %v8093 = vunpack.c.h.b16 %v7401
        %v8094 = vunpack.c.l.b16 %v7402
        %v8095 = vunpack.c.h.b16 %v7402
        %v8096 = vunpack.c.l.b16 %v7403
        %v8097 = vunpack.c.h.b16 %v7403
        %v8098 = vunpack.c.l.b16 %v7404
        %v8099 = vunpack.c.h.b16 %v7404
        %v8100 = vunpack.c.l.b16 %v7405
        %v8101 = vunpack.c.h.b16 %v7405
        %v8102 = vunpack.c.l.b16 %v7406
        %v8103 = vunpack.c.h.b16 %v7406
        %v8104 = vunpack.c.l.b16 %v7407
        %v8105 = vunpack.c.h.b16 %v7407
        %v8106 = vunpack.c.l.b16 %v7408
        %v8107 = vunpack.c.h.b16 %v7408
        %v8108 = vunpack.c.l.b16 %v7409
        %v8109 = vunpack.c.h.b16 %v7409
        %v8110 = vunpack.c.l.b16 %v7410
        %v8111 = vunpack.c.h.b16 %v7410
        %v8112 = vunpack.c.l.b16 %v7411
        %v8113 = vunpack.c.h.b16 %v7411
        %v8114 = vunpack.c.l.b16 %v7412
        %v8115 = vunpack.c.h.b16 %v7412
        %v8116 = vunpack.c.l.b16 %v7413
        %v8117 = vunpack.c.h.b16 %v7413
        %v8118 = vunpack.c.l.b16 %v7414
        %v8119 = vunpack.c.h.b16 %v7414
        %v8120 = vunpack.c.l.b16 %v7415
        %v8121 = vunpack.c.h.b16 %v7415
        %v8122 = vunpack.c.l.b16 %v7416
        %v8123 = vunpack.c.h.b16 %v7416
        %v8124 = vunpack.c.l.b16 %v7417
        %v8125 = vunpack.c.h.b16 %v7417
        %v8126 = vunpack.c.l.b16 %v7418
        %v8127 = vunpack.c.h.b16 %v7418
        %v8128 = vunpack.c.l.b16 %v7419
        %v8129 = vunpack.c.h.b16 %v7419
        %v8130 = vunpack.c.l.b16 %v7420
        %v8131 = vunpack.c.h.b16 %v7420
        %v8132 = vunpack.c.l.b16 %v7421
        %v8133 = vunpack.c.h.b16 %v7421
        %v8134 = vunpack.c.l.b16 %v7422
        %v8135 = vunpack.c.h.b16 %v7422
        %v8136 = vunpack.c.l.b16 %v7423
        %v8137 = vunpack.c.h.b16 %v7423
        %v8138 = vunpack.c.l.b16 %v7424
        %v8139 = vunpack.c.h.b16 %v7424
        %v8140 = vunpack.c.l.b16 %v7425
        %v8141 = vunpack.c.h.b16 %v7425
        %v8142 = vunpack.c.l.b16 %v7426
        %v8143 = vunpack.c.h.b16 %v7426
        %v8144 = vunpack.c.l.b16 %v7427
        %v8145 = vunpack.c.h.b16 %v7427
        %v8146 = vunpack.c.l.b16 %v7428
        %v8147 = vunpack.c.h.b16 %v7428
        %v8148 = vunpack.c.l.b16 %v7429
        %v8149 = vunpack.c.h.b16 %v7429
        %v8150 = vunpack.c.l.b16 %v7430
        %v8151 = vunpack.c.h.b16 %v7430
        %v8152 = vunpack.c.l.b16 %v7431
        %v8153 = vunpack.c.h.b16 %v7431
        %v8154 = vunpack.c.l.b16 %v7432
        %v8155 = vunpack.c.h.b16 %v7432
        %v8156 = vunpack.c.l.b16 %v7433
        %v8157 = vunpack.c.h.b16 %v7433
        %v8158 = vunpack.c.l.b16 %v7434
        %v8159 = vunpack.c.h.b16 %v7434
        %v8160 = vunpack.c.l.b16 %v7435
        %v8161 = vunpack.c.h.b16 %v7435
        %v8162 = vunpack.c.l.b16 %v7436
        %v8163 = vunpack.c.h.b16 %v7436
        %v8164 = vunpack.c.l.b16 %v7437
        %v8165 = vunpack.c.h.b16 %v7437
        %v8166 = vunpack.c.l.b16 %v7438
        %v8167 = vunpack.c.h.b16 %v7438
        %v8168 = vunpack.c.l.b16 %v7439
        %v8169 = vunpack.c.h.b16 %v7439
        %v8170 = vunpack.c.l.b16 %v7440
        %v8171 = vunpack.c.h.b16 %v7440
        %v8172 = vunpack.c.l.b16 %v7441
        %v8173 = vunpack.c.h.b16 %v7441
        %v8174 = vunpack.c.l.b16 %v7442
        %v8175 = vunpack.c.h.b16 %v7442
        %v8176 = vunpack.c.l.b16 %v7443
        %v8177 = vunpack.c.h.b16 %v7443
        %v8178 = vunpack.c.l.b16 %v7444
        %v8179 = vunpack.c.h.b16 %v7444
        %v8180 = vunpack.c.l.b16 %v7445
        %v8181 = vunpack.c.h.b16 %v7445
        %v8182 = vunpack.c.l.b16 %v7446
        %v8183 = vunpack.c.h.b16 %v7446
        %v8184 = vunpack.c.l.b16 %v7447
        %v8185 = vunpack.c.h.b16 %v7447
        %v8186 = vunpack.c.l.b16 %v7448
        %v8187 = vunpack.c.h.b16 %v7448
        %v8188 = vunpack.c.l.b16 %v7449
        %v8189 = vunpack.c.h.b16 %v7449
        %v8190 = vunpack.c.l.b16 %v7450
        %v8191 = vunpack.c.h.b16 %v7450
        %v8192 = vunpack.c.l.b16 %v7451
        %v8193 = vunpack.c.h.b16 %v7451
        %v8194 = vunpack.c.l.b16 %v7452
        %v8195 = vunpack.c.h.b16 %v7452
        %v8196 = vunpack.c.l.b16 %v7453
        %v8197 = vunpack.c.h.b16 %v7453
        %v8198 = vunpack.c.l.b16 %v7454
        %v8199 = vunpack.c.h.b16 %v7454
        %v8200 = vunpack.c.l.b16 %v7455
        %v8201 = vunpack.c.h.b16 %v7455
        %v8202 = vunpack.c.l.b16 %v7456
        %v8203 = vunpack.c.h.b16 %v7456
        %v8204 = vunpack.c.l.b16 %v7457
        %v8205 = vunpack.c.h.b16 %v7457
        %v8206 = vunpack.c.l.b16 %v7458
        %v8207 = vunpack.c.h.b16 %v7458
        %v8208 = vunpack.c.l.b16 %v7459
        %v8209 = vunpack.c.h.b16 %v7459
        %v8210 = vunpack.c.l.b16 %v7460
        %v8211 = vunpack.c.h.b16 %v7460
        %v8212 = vunpack.c.l.b16 %v7461
        %v8213 = vunpack.c.h.b16 %v7461
        %v8214 = vunpack.c.l.b16 %v7462
        %v8215 = vunpack.c.h.b16 %v7462
        %v8216 = vunpack.c.l.b16 %v7463
        %v8217 = vunpack.c.h.b16 %v7463
        %v8218 = vunpack.c.l.b16 %v7464
        %v8219 = vunpack.c.h.b16 %v7464
        %v8220 = vunpack.c.l.b16 %v7465
        %v8221 = vunpack.c.h.b16 %v7465
        %v8222 = vunpack.c.l.b16 %v7466
        %v8223 = vunpack.c.h.b16 %v7466
        %v8224 = vunpack.c.l.b16 %v7467
        %v8225 = vunpack.c.h.b16 %v7467
        %v8226 = vunpack.c.l.b16 %v7468
        %v8227 = vunpack.c.h.b16 %v7468
        %v8228 = vunpack.c.l.b16 %v7469
        %v8229 = vunpack.c.h.b16 %v7469
        %v8230 = vunpack.c.l.b16 %v7470
        %v8231 = vunpack.c.h.b16 %v7470
        %v8232 = vunpack.c.l.b16 %v7471
        %v8233 = vunpack.c.h.b16 %v7471
        %v8234 = vunpack.c.l.b16 %v7472
        %v8235 = vunpack.c.h.b16 %v7472
        %v8236 = vunpack.c.l.b16 %v7473
        %v8237 = vunpack.c.h.b16 %v7473
        %v8238 = vunpack.c.l.b16 %v7474
        %v8239 = vunpack.c.h.b16 %v7474
        %v8240 = vunpack.c.l.b16 %v7475
        %v8241 = vunpack.c.h.b16 %v7475
        %v8242 = vunpack.c.l.b16 %v7476
        %v8243 = vunpack.c.h.b16 %v7476
        %v8244 = vunpack.c.l.b16 %v7477
        %v8245 = vunpack.c.h.b16 %v7477
        %v8246 = vunpack.c.l.b16 %v7478
        %v8247 = vunpack.c.h.b16 %v7478
        %v8248 = vunpack.c.l.b16 %v7479
        %v8249 = vunpack.c.h.b16 %v7479
        %v8250 = vunpack.c.l.b16 %v7480
        %v8251 = vunpack.c.h.b16 %v7480
        %v8252 = vunpack.c.l.b16 %v7481
        %v8253 = vunpack.c.h.b16 %v7481
        %v8254 = vunpack.c.l.b16 %v7482
        %v8255 = vunpack.c.h.b16 %v7482
        %v8256 = vunpack.c.l.b16 %v7483
        %v8257 = vunpack.c.h.b16 %v7483
        %v8258 = vunpack.c.l.b16 %v7484
        %v8259 = vunpack.c.h.b16 %v7484
        %v8260 = vunpack.c.l.b16 %v7485
        %v8261 = vunpack.c.h.b16 %v7485
        %v8262 = vunpack.c.l.b16 %v7486
        %v8263 = vunpack.c.h.b16 %v7486
        %v8264 = vunpack.c.l.b16 %v7487
        %v8265 = vunpack.c.h.b16 %v7487
        %v8266 = vunpack.c.l.b16 %v7488
        %v8267 = vunpack.c.h.b16 %v7488
        %v8268 = vunpack.c.l.b16 %v7489
        %v8269 = vunpack.c.h.b16 %v7489
        %v8270 = vunpack.c.l.b16 %v7490
        %v8271 = vunpack.c.h.b16 %v7490
        %v8272 = vunpack.c.l.b16 %v7491
        %v8273 = vunpack.c.h.b16 %v7491
        %v8274 = vunpack.c.l.b16 %v7492
        %v8275 = vunpack.c.h.b16 %v7492
        %v8276 = vunpack.c.l.b16 %v7493
        %v8277 = vunpack.c.h.b16 %v7493
        %v8278 = vunpack.c.l.b16 %v7494
        %v8279 = vunpack.c.h.b16 %v7494
        %v8280 = vunpack.c.l.b16 %v7495
        %v8281 = vunpack.c.h.b16 %v7495
        %v8282 = vunpack.c.l.b16 %v7496
        %v8283 = vunpack.c.h.b16 %v7496
        %v8284 = vunpack.c.l.b16 %v7497
        %v8285 = vunpack.c.h.b16 %v7497
        %v8286 = vunpack.c.l.b16 %v7498
        %v8287 = vunpack.c.h.b16 %v7498
        %v8288 = vunpack.c.l.b16 %v7499
        %v8289 = vunpack.c.h.b16 %v7499
        %v8290 = vpack.c.b16 %v7782, %v7778
        %v8291 = vpack.c.b16 %v7783, %v7779
        %v8292 = vpack.c.b16 %v7784, %v7780
        %v8293 = vpack.c.b16 %v7785, %v7781
        %v8294 = vpack.c.b16 %v7790, %v7786
        %v8295 = vpack.c.b16 %v7791, %v7787
        %v8296 = vpack.c.b16 %v7792, %v7788
        %v8297 = vpack.c.b16 %v7793, %v7789
        %v8298 = vpack.c.b16 %v7798, %v7794
        %v8299 = vpack.c.b16 %v7799, %v7795
        %v8300 = vpack.c.b16 %v7800, %v7796
        %v8301 = vpack.c.b16 %v7801, %v7797
        %v8302 = vpack.c.b16 %v7806, %v7802
        %v8303 = vpack.c.b16 %v7807, %v7803
        %v8304 = vpack.c.b16 %v7808, %v7804
        %v8305 = vpack.c.b16 %v7809, %v7805
        %v8306 = vpack.c.b16 %v7814, %v7810
        %v8307 = vpack.c.b16 %v7815, %v7811
        %v8308 = vpack.c.b16 %v7816, %v7812
        %v8309 = vpack.c.b16 %v7817, %v7813
        %v8310 = vpack.c.b16 %v7822, %v7818
        %v8311 = vpack.c.b16 %v7823, %v7819
        %v8312 = vpack.c.b16 %v7824, %v7820
        %v8313 = vpack.c.b16 %v7825, %v7821
        %v8314 = vpack.c.b16 %v7830, %v7826
        %v8315 = vpack.c.b16 %v7831, %v7827
        %v8316 = vpack.c.b16 %v7832, %v7828
        %v8317 = vpack.c.b16 %v7833, %v7829
        %v8318 = vpack.c.b16 %v7838, %v7834
        %v8319 = vpack.c.b16 %v7839, %v7835
        %v8320 = vpack.c.b16 %v7840, %v7836
        %v8321 = vpack.c.b16 %v7841, %v7837
        %v8322 = vpack.c.b16 %v7846, %v7842
        %v8323 = vpack.c.b16 %v7847, %v7843
        %v8324 = vpack.c.b16 %v7848, %v7844
        %v8325 = vpack.c.b16 %v7849, %v7845
        %v8326 = vpack.c.b16 %v7854, %v7850
        %v8327 = vpack.c.b16 %v7855, %v7851
        %v8328 = vpack.c.b16 %v7856, %v7852
        %v8329 = vpack.c.b16 %v7857, %v7853
        %v8330 = vpack.c.b16 %v7862, %v7858
        %v8331 = vpack.c.b16 %v7863, %v7859
        %v8332 = vpack.c.b16 %v7864, %v7860
        %v8333 = vpack.c.b16 %v7865, %v7861
        %v8334 = vpack.c.b16 %v7870, %v7866
        %v8335 = vpack.c.b16 %v7871, %v7867
        %v8336 = vpack.c.b16 %v7872, %v7868
        %v8337 = vpack.c.b16 %v7873, %v7869
        %v8338 = vpack.c.b16 %v7878, %v7874
        %v8339 = vpack.c.b16 %v7879, %v7875
        %v8340 = vpack.c.b16 %v7880, %v7876
        %v8341 = vpack.c.b16 %v7881, %v7877
        %v8342 = vpack.c.b16 %v7886, %v7882
        %v8343 = vpack.c.b16 %v7887, %v7883
        %v8344 = vpack.c.b16 %v7888, %v7884
        %v8345 = vpack.c.b16 %v7889, %v7885
        %v8346 = vpack.c.b16 %v7894, %v7890
        %v8347 = vpack.c.b16 %v7895, %v7891
        %v8348 = vpack.c.b16 %v7896, %v7892
        %v8349 = vpack.c.b16 %v7897, %v7893
        %v8350 = vpack.c.b16 %v7902, %v7898
        %v8351 = vpack.c.b16 %v7903, %v7899
        %v8352 = vpack.c.b16 %v7904, %v7900
        %v8353 = vpack.c.b16 %v7905, %v7901
        %v8354 = vpack.c.b16 %v7910, %v7906
        %v8355 = vpack.c.b16 %v7911, %v7907
        %v8356 = vpack.c.b16 %v7912, %v7908
        %v8357 = vpack.c.b16 %v7913, %v7909
        %v8358 = vpack.c.b16 %v7918, %v7914
        %v8359 = vpack.c.b16 %v7919, %v7915
        %v8360 = vpack.c.b16 %v7920, %v7916
        %v8361 = vpack.c.b16 %v7921, %v7917
        %v8362 = vpack.c.b16 %v7926, %v7922
        %v8363 = vpack.c.b16 %v7927, %v7923
        %v8364 = vpack.c.b16 %v7928, %v7924
        %v8365 = vpack.c.b16 %v7929, %v7925
        %v8366 = vpack.c.b16 %v7934, %v7930
        %v8367 = vpack.c.b16 %v7935, %v7931
        %v8368 = vpack.c.b16 %v7936, %v7932
        %v8369 = vpack.c.b16 %v7937, %v7933
        %v8370 = vpack.c.b16 %v7942, %v7938
        %v8371 = vpack.c.b16 %v7943, %v7939
        %v8372 = vpack.c.b16 %v7944, %v7940
        %v8373 = vpack.c.b16 %v7945, %v7941
        %v8374 = vpack.c.b16 %v7950, %v7946
        %v8375 = vpack.c.b16 %v7951, %v7947
        %v8376 = vpack.c.b16 %v7952, %v7948
        %v8377 = vpack.c.b16 %v7953, %v7949
        %v8378 = vpack.c.b16 %v7958, %v7954
        %v8379 = vpack.c.b16 %v7959, %v7955
        %v8380 = vpack.c.b16 %v7960, %v7956
        %v8381 = vpack.c.b16 %v7961, %v7957
        %v8382 = vpack.c.b16 %v7966, %v7962
        %v8383 = vpack.c.b16 %v7967, %v7963
        %v8384 = vpack.c.b16 %v7968, %v7964
        %v8385 = vpack.c.b16 %v7969, %v7965
        %v8386 = vpack.c.b16 %v7974, %v7970
        %v8387 = vpack.c.b16 %v7975, %v7971
        %v8388 = vpack.c.b16 %v7976, %v7972
        %v8389 = vpack.c.b16 %v7977, %v7973
        %v8390 = vpack.c.b16 %v7982, %v7978
        %v8391 = vpack.c.b16 %v7983, %v7979
        %v8392 = vpack.c.b16 %v7984, %v7980
        %v8393 = vpack.c.b16 %v7985, %v7981
        %v8394 = vpack.c.b16 %v7990, %v7986
        %v8395 = vpack.c.b16 %v7991, %v7987
        %v8396 = vpack.c.b16 %v7992, %v7988
        %v8397 = vpack.c.b16 %v7993, %v7989
        %v8398 = vpack.c.b16 %v7998, %v7994
        %v8399 = vpack.c.b16 %v7999, %v7995
        %v8400 = vpack.c.b16 %v8000, %v7996
        %v8401 = vpack.c.b16 %v8001, %v7997
        %v8402 = vpack.c.b16 %v8006, %v8002
        %v8403 = vpack.c.b16 %v8007, %v8003
        %v8404 = vpack.c.b16 %v8008, %v8004
        %v8405 = vpack.c.b16 %v8009, %v8005
        %v8406 = vpack.c.b16 %v8014, %v8010
        %v8407 = vpack.c.b16 %v8015, %v8011
        %v8408 = vpack.c.b16 %v8016, %v8012
        %v8409 = vpack.c.b16 %v8017, %v8013
        %v8410 = vpack.c.b16 %v8022, %v8018
        %v8411 = vpack.c.b16 %v8023, %v8019
        %v8412 = vpack.c.b16 %v8024, %v8020
        %v8413 = vpack.c.b16 %v8025, %v8021
        %v8414 = vpack.c.b16 %v8030, %v8026
        %v8415 = vpack.c.b16 %v8031, %v8027
        %v8416 = vpack.c.b16 %v8032, %v8028
        %v8417 = vpack.c.b16 %v8033, %v8029
        %v8418 = vpack.c.b16 %v8038, %v8034
        %v8419 = vpack.c.b16 %v8039, %v8035
        %v8420 = vpack.c.b16 %v8040, %v8036
        %v8421 = vpack.c.b16 %v8041, %v8037
        %v8422 = vpack.c.b16 %v8046, %v8042
        %v8423 = vpack.c.b16 %v8047, %v8043
        %v8424 = vpack.c.b16 %v8048, %v8044
        %v8425 = vpack.c.b16 %v8049, %v8045
        %v8426 = vpack.c.b16 %v8054, %v8050
        %v8427 = vpack.c.b16 %v8055, %v8051
        %v8428 = vpack.c.b16 %v8056, %v8052
        %v8429 = vpack.c.b16 %v8057, %v8053
        %v8430 = vpack.c.b16 %v8062, %v8058
        %v8431 = vpack.c.b16 %v8063, %v8059
        %v8432 = vpack.c.b16 %v8064, %v8060
        %v8433 = vpack.c.b16 %v8065, %v8061
        %v8434 = vpack.c.b16 %v8070, %v8066
        %v8435 = vpack.c.b16 %v8071, %v8067
        %v8436 = vpack.c.b16 %v8072, %v8068
        %v8437 = vpack.c.b16 %v8073, %v8069
        %v8438 = vpack.c.b16 %v8078, %v8074
        %v8439 = vpack.c.b16 %v8079, %v8075
        %v8440 = vpack.c.b16 %v8080, %v8076
        %v8441 = vpack.c.b16 %v8081, %v8077
        %v8442 = vpack.c.b16 %v8086, %v8082
        %v8443 = vpack.c.b16 %v8087, %v8083
        %v8444 = vpack.c.b16 %v8088, %v8084
        %v8445 = vpack.c.b16 %v8089, %v8085
        %v8446 = vpack.c.b16 %v8094, %v8090
        %v8447 = vpack.c.b16 %v8095, %v8091
        %v8448 = vpack.c.b16 %v8096, %v8092
        %v8449 = vpack.c.b16 %v8097, %v8093
        %v8450 = vpack.c.b16 %v8102, %v8098
        %v8451 = vpack.c.b16 %v8103, %v8099
        %v8452 = vpack.c.b16 %v8104, %v8100
        %v8453 = vpack.c.b16 %v8105, %v8101
        %v8454 = vpack.c.b16 %v8110, %v8106
        %v8455 = vpack.c.b16 %v8111, %v8107
        %v8456 = vpack.c.b16 %v8112, %v8108
        %v8457 = vpack.c.b16 %v8113, %v8109
        %v8458 = vpack.c.b16 %v8118, %v8114
        %v8459 = vpack.c.b16 %v8119, %v8115
        %v8460 = vpack.c.b16 %v8120, %v8116
        %v8461 = vpack.c.b16 %v8121, %v8117
        %v8462 = vpack.c.b16 %v8126, %v8122
        %v8463 = vpack.c.b16 %v8127, %v8123
        %v8464 = vpack.c.b16 %v8128, %v8124
        %v8465 = vpack.c.b16 %v8129, %v8125
        %v8466 = vpack.c.b16 %v8134, %v8130
        %v8467 = vpack.c.b16 %v8135, %v8131
        %v8468 = vpack.c.b16 %v8136, %v8132
        %v8469 = vpack.c.b16 %v8137, %v8133
        %v8470 = vpack.c.b16 %v8142, %v8138
        %v8471 = vpack.c.b16 %v8143, %v8139
        %v8472 = vpack.c.b16 %v8144, %v8140
        %v8473 = vpack.c.b16 %v8145, %v8141
        %v8474 = vpack.c.b16 %v8150, %v8146
        %v8475 = vpack.c.b16 %v8151, %v8147
        %v8476 = vpack.c.b16 %v8152, %v8148
        %v8477 = vpack.c.b16 %v8153, %v8149
        %v8478 = vpack.c.b16 %v8158, %v8154
        %v8479 = vpack.c.b16 %v8159, %v8155
        %v8480 = vpack.c.b16 %v8160, %v8156
        %v8481 = vpack.c.b16 %v8161, %v8157
        %v8482 = vpack.c.b16 %v8166, %v8162
        %v8483 = vpack.c.b16 %v8167, %v8163
        %v8484 = vpack.c.b16 %v8168, %v8164
        %v8485 = vpack.c.b16 %v8169, %v8165
        %v8486 = vpack.c.b16 %v8174, %v8170
        %v8487 = vpack.c.b16 %v8175, %v8171
        %v8488 = vpack.c.b16 %v8176, %v8172
        %v8489 = vpack.c.b16 %v8177, %v8173
        %v8490 = vpack.c.b16 %v8182, %v8178
        %v8491 = vpack.c.b16 %v8183, %v8179
        %v8492 = vpack.c.b16 %v8184, %v8180
        %v8493 = vpack.c.b16 %v8185, %v8181
        %v8494 = vpack.c.b16 %v8190, %v8186
        %v8495 = vpack.c.b16 %v8191, %v8187
        %v8496 = vpack.c.b16 %v8192, %v8188
        %v8497 = vpack.c.b16 %v8193, %v8189
        %v8498 = vpack.c.b16 %v8198, %v8194
        %v8499 = vpack.c.b16 %v8199, %v8195
        %v8500 = vpack.c.b16 %v8200, %v8196
        %v8501 = vpack.c.b16 %v8201, %v8197
        %v8502 = vpack.c.b16 %v8206, %v8202
        %v8503 = vpack.c.b16 %v8207, %v8203
        %v8504 = vpack.c.b16 %v8208, %v8204
        %v8505 = vpack.c.b16 %v8209, %v8205
        %v8506 = vpack.c.b16 %v8214, %v8210
        %v8507 = vpack.c.b16 %v8215, %v8211
        %v8508 = vpack.c.b16 %v8216, %v8212
        %v8509 = vpack.c.b16 %v8217, %v8213
        %v8510 = vpack.c.b16 %v8222, %v8218
        %v8511 = vpack.c.b16 %v8223, %v8219
        %v8512 = vpack.c.b16 %v8224, %v8220
        %v8513 = vpack.c.b16 %v8225, %v8221
        %v8514 = vpack.c.b16 %v8230, %v8226
        %v8515 = vpack.c.b16 %v8231, %v8227
        %v8516 = vpack.c.b16 %v8232, %v8228
        %v8517 = vpack.c.b16 %v8233, %v8229
        %v8518 = vpack.c.b16 %v8238, %v8234
        %v8519 = vpack.c.b16 %v8239, %v8235
        %v8520 = vpack.c.b16 %v8240, %v8236
        %v8521 = vpack.c.b16 %v8241, %v8237
        %v8522 = vpack.c.b16 %v8246, %v8242
        %v8523 = vpack.c.b16 %v8247, %v8243
        %v8524 = vpack.c.b16 %v8248, %v8244
        %v8525 = vpack.c.b16 %v8249, %v8245
        %v8526 = vpack.c.b16 %v8254, %v8250
        %v8527 = vpack.c.b16 %v8255, %v8251
        %v8528 = vpack.c.b16 %v8256, %v8252
        %v8529 = vpack.c.b16 %v8257, %v8253
        %v8530 = vpack.c.b16 %v8262, %v8258
        %v8531 = vpack.c.b16 %v8263, %v8259
        %v8532 = vpack.c.b16 %v8264, %v8260
        %v8533 = vpack.c.b16 %v8265, %v8261
        %v8534 = vpack.c.b16 %v8270, %v8266
        %v8535 = vpack.c.b16 %v8271, %v8267
        %v8536 = vpack.c.b16 %v8272, %v8268
        %v8537 = vpack.c.b16 %v8273, %v8269
        %v8538 = vpack.c.b16 %v8278, %v8274
        %v8539 = vpack.c.b16 %v8279, %v8275
        %v8540 = vpack.c.b16 %v8280, %v8276
        %v8541 = vpack.c.b16 %v8281, %v8277
        %v8542 = vpack.c.b16 %v8286, %v8282
        %v8543 = vpack.c.b16 %v8287, %v8283
        %v8544 = vpack.c.b16 %v8288, %v8284
        %v8545 = vpack.c.b16 %v8289, %v8285
        %8802 = vmatprep.subr.bf16.mxu0 %v8319
        %8803 = vmatpush1.bf16.msra.mxu0 %v8318
        %8804 = vmatprep.subr.bf16.mxu0 %v8315
        %8805 = vmatpush1.bf16.msra.mxu0 %v8314
        %8806 = vmatprep.subr.bf16.mxu0 %v8311
        %8807 = vmatpush1.bf16.msra.mxu0 %v8310
        %8808 = vmatprep.subr.bf16.mxu0 %v8307
        %8809 = vmatpush1.bf16.msra.mxu0 %v8306
        %8810 = vmatprep.subr.bf16.mxu0 %v8303
        %8811 = vmatpush1.bf16.msra.mxu0 %v8302
        %8812 = vmatprep.subr.bf16.mxu0 %v8299
        %8813 = vmatpush1.bf16.msra.mxu0 %v8298
        %8814 = vmatprep.subr.bf16.mxu0 %v8295
        %8815 = vmatpush1.bf16.msra.mxu0 %v8294
        %8816 = vmatprep.subr.bf16.mxu0 %v8291
        %8817 = vmatpush1.bf16.msra.mxu0 %v8290
        %8818 = vmatprep.subr.bf16.mxu0 %v8351
        %8819 = vmatpush2.bf16.msra.mxu0 %v8350
        %8820 = vmatprep.subr.bf16.mxu0 %v8347
        %8821 = vmatpush2.bf16.msra.mxu0 %v8346
        %8822 = vmatprep.subr.bf16.mxu0 %v8343
        %8823 = vmatpush2.bf16.msra.mxu0 %v8342
        %8824 = vmatprep.subr.bf16.mxu0 %v8339
        %8825 = vmatpush2.bf16.msra.mxu0 %v8338
        %8826 = vmatprep.subr.bf16.mxu0 %v8335
        %8827 = vmatpush2.bf16.msra.mxu0 %v8334
        %8828 = vmatprep.subr.bf16.mxu0 %v8331
        %8829 = vmatpush2.bf16.msra.mxu0 %v8330
        %8830 = vmatprep.subr.bf16.mxu0 %v8327
        %8831 = vmatpush2.bf16.msra.mxu0 %v8326
        %8832 = vmatprep.subr.bf16.mxu0 %v8323
        %8833 = vmatpush2.bf16.msra.mxu0 %v8322
        %8834 = vmatprep.mubr.bf16.mxu0 %v7237
        %8835 = vmatmul.mubr.bf16.gmra.mxu0 %v7236
        %v8836 = vpop.f32.mrf.mxu0
        %v8837 = vadd.f32 %v7505, %v8836
        %v8838 = vpop.f32.mrf.mxu0
        %v8839 = vadd.f32 %v7509, %v8838
        %v8840 = vpop.f32.mrf.mxu0
        %v8841 = vpop.f32.mrf.mxu0
        %8842 = vdwg.mxu0
        %8843 = vmatprep.subr.bf16.mxu0 %v8383
        %8844 = vmatpush1.bf16.msra.mxu0 %v8382
        %8845 = vmatprep.subr.bf16.mxu0 %v8379
        %8846 = vmatpush1.bf16.msra.mxu0 %v8378
        %8847 = vmatprep.subr.bf16.mxu0 %v8375
        %8848 = vmatpush1.bf16.msra.mxu0 %v8374
        %8849 = vmatprep.subr.bf16.mxu0 %v8371
        %8850 = vmatpush1.bf16.msra.mxu0 %v8370
        %8851 = vmatprep.subr.bf16.mxu0 %v8367
        %8852 = vmatpush1.bf16.msra.mxu0 %v8366
        %8853 = vmatprep.subr.bf16.mxu0 %v8363
        %8854 = vmatpush1.bf16.msra.mxu0 %v8362
        %8855 = vmatprep.subr.bf16.mxu0 %v8359
        %8856 = vmatpush1.bf16.msra.mxu0 %v8358
        %8857 = vmatprep.subr.bf16.mxu0 %v8355
        %8858 = vmatpush1.bf16.msra.mxu0 %v8354
        %8859 = vmatprep.subr.bf16.mxu0 %v8415
        %8860 = vmatpush2.bf16.msra.mxu0 %v8414
        %8861 = vmatprep.subr.bf16.mxu0 %v8411
        %8862 = vmatpush2.bf16.msra.mxu0 %v8410
        %8863 = vmatprep.subr.bf16.mxu0 %v8407
        %8864 = vmatpush2.bf16.msra.mxu0 %v8406
        %8865 = vmatprep.subr.bf16.mxu0 %v8403
        %8866 = vmatpush2.bf16.msra.mxu0 %v8402
        %8867 = vmatprep.subr.bf16.mxu0 %v8399
        %8868 = vmatpush2.bf16.msra.mxu0 %v8398
        %8869 = vmatprep.subr.bf16.mxu0 %v8395
        %8870 = vmatpush2.bf16.msra.mxu0 %v8394
        %8871 = vmatprep.subr.bf16.mxu0 %v8391
        %8872 = vmatpush2.bf16.msra.mxu0 %v8390
        %8873 = vmatprep.subr.bf16.mxu0 %v8387
        %8874 = vmatpush2.bf16.msra.mxu0 %v8386
        %8875 = vmatprep.mubr.bf16.mxu0 %v7239
        %8876 = vmatmul.mubr.bf16.gmra.mxu0 %v7238
        %v8877 = vpop.f32.mrf.mxu0
        %v8878 = vadd.f32 %v8837, %v8877
        %v8879 = vpop.f32.mrf.mxu0
        %v8880 = vadd.f32 %v8839, %v8879
        %v8881 = vpop.f32.mrf.mxu0
        %v8882 = vpop.f32.mrf.mxu0
        %8883 = vdwg.mxu0
        %8884 = vmatprep.subr.bf16.mxu0 %v8447
        %8885 = vmatpush1.bf16.msra.mxu0 %v8446
        %8886 = vmatprep.subr.bf16.mxu0 %v8443
        %8887 = vmatpush1.bf16.msra.mxu0 %v8442
        %8888 = vmatprep.subr.bf16.mxu0 %v8439
        %8889 = vmatpush1.bf16.msra.mxu0 %v8438
        %8890 = vmatprep.subr.bf16.mxu0 %v8435
        %8891 = vmatpush1.bf16.msra.mxu0 %v8434
        %8892 = vmatprep.subr.bf16.mxu0 %v8431
        %8893 = vmatpush1.bf16.msra.mxu0 %v8430
        %8894 = vmatprep.subr.bf16.mxu0 %v8427
        %8895 = vmatpush1.bf16.msra.mxu0 %v8426
        %8896 = vmatprep.subr.bf16.mxu0 %v8423
        %8897 = vmatpush1.bf16.msra.mxu0 %v8422
        %8898 = vmatprep.subr.bf16.mxu0 %v8419
        %8899 = vmatpush1.bf16.msra.mxu0 %v8418
        %8900 = vmatprep.subr.bf16.mxu0 %v8479
        %8901 = vmatpush2.bf16.msra.mxu0 %v8478
        %8902 = vmatprep.subr.bf16.mxu0 %v8475
        %8903 = vmatpush2.bf16.msra.mxu0 %v8474
        %8904 = vmatprep.subr.bf16.mxu0 %v8471
        %8905 = vmatpush2.bf16.msra.mxu0 %v8470
        %8906 = vmatprep.subr.bf16.mxu0 %v8467
        %8907 = vmatpush2.bf16.msra.mxu0 %v8466
        %8908 = vmatprep.subr.bf16.mxu0 %v8463
        %8909 = vmatpush2.bf16.msra.mxu0 %v8462
        %8910 = vmatprep.subr.bf16.mxu0 %v8459
        %8911 = vmatpush2.bf16.msra.mxu0 %v8458
        %8912 = vmatprep.subr.bf16.mxu0 %v8455
        %8913 = vmatpush2.bf16.msra.mxu0 %v8454
        %8914 = vmatprep.subr.bf16.mxu0 %v8451
        %8915 = vmatpush2.bf16.msra.mxu0 %v8450
        %8916 = vmatprep.mubr.bf16.mxu0 %v7241
        %8917 = vmatmul.mubr.bf16.gmra.mxu0 %v7240
        %v8918 = vpop.f32.mrf.mxu0
        %v8919 = vadd.f32 %v8878, %v8918
        %v8920 = vpop.f32.mrf.mxu0
        %v8921 = vadd.f32 %v8880, %v8920
        %v8922 = vpop.f32.mrf.mxu0
        %v8923 = vpop.f32.mrf.mxu0
        %8924 = vdwg.mxu0
        %8925 = vmatprep.subr.bf16.mxu0 %v8511
        %8926 = vmatpush1.bf16.msra.mxu0 %v8510
        %8927 = vmatprep.subr.bf16.mxu0 %v8507
        %8928 = vmatpush1.bf16.msra.mxu0 %v8506
        %8929 = vmatprep.subr.bf16.mxu0 %v8503
        %8930 = vmatpush1.bf16.msra.mxu0 %v8502
        %8931 = vmatprep.subr.bf16.mxu0 %v8499
        %8932 = vmatpush1.bf16.msra.mxu0 %v8498
        %8933 = vmatprep.subr.bf16.mxu0 %v8495
        %8934 = vmatpush1.bf16.msra.mxu0 %v8494
        %8935 = vmatprep.subr.bf16.mxu0 %v8491
        %8936 = vmatpush1.bf16.msra.mxu0 %v8490
        %8937 = vmatprep.subr.bf16.mxu0 %v8487
        %8938 = vmatpush1.bf16.msra.mxu0 %v8486
        %8939 = vmatprep.subr.bf16.mxu0 %v8483
        %8940 = vmatpush1.bf16.msra.mxu0 %v8482
        %8941 = vmatprep.subr.bf16.mxu0 %v8543
        %8942 = vmatpush2.bf16.msra.mxu0 %v8542
        %8943 = vmatprep.subr.bf16.mxu0 %v8539
        %8944 = vmatpush2.bf16.msra.mxu0 %v8538
        %8945 = vmatprep.subr.bf16.mxu0 %v8535
        %8946 = vmatpush2.bf16.msra.mxu0 %v8534
        %8947 = vmatprep.subr.bf16.mxu0 %v8531
        %8948 = vmatpush2.bf16.msra.mxu0 %v8530
        %8949 = vmatprep.subr.bf16.mxu0 %v8527
        %8950 = vmatpush2.bf16.msra.mxu0 %v8526
        %8951 = vmatprep.subr.bf16.mxu0 %v8523
        %8952 = vmatpush2.bf16.msra.mxu0 %v8522
        %8953 = vmatprep.subr.bf16.mxu0 %v8519
        %8954 = vmatpush2.bf16.msra.mxu0 %v8518
        %8955 = vmatprep.subr.bf16.mxu0 %v8515
        %8956 = vmatpush2.bf16.msra.mxu0 %v8514
        %8957 = vmatprep.mubr.bf16.mxu0 %v7243
        %8958 = vmatmul.mubr.bf16.gmra.mxu0 %v7242
        %v8959 = vpop.f32.mrf.mxu0
        %v8960 = vadd.f32 %v8919, %v8959
        %v8961 = vpop.f32.mrf.mxu0
        %v8962 = vadd.f32 %v8921, %v8961
        %v8963 = vpop.f32.mrf.mxu0
        %v8964 = vpop.f32.mrf.mxu0
        %8965 = vdwg.mxu0
        %8966 = vmatprep.subr.bf16.mxu0 %v8321
        %8967 = vmatpush1.bf16.msra.mxu0 %v8320
        %8968 = vmatprep.subr.bf16.mxu0 %v8317
        %8969 = vmatpush1.bf16.msra.mxu0 %v8316
        %8970 = vmatprep.subr.bf16.mxu0 %v8313
        %8971 = vmatpush1.bf16.msra.mxu0 %v8312
        %8972 = vmatprep.subr.bf16.mxu0 %v8309
        %8973 = vmatpush1.bf16.msra.mxu0 %v8308
        %8974 = vmatprep.subr.bf16.mxu0 %v8305
        %8975 = vmatpush1.bf16.msra.mxu0 %v8304
        %8976 = vmatprep.subr.bf16.mxu0 %v8301
        %8977 = vmatpush1.bf16.msra.mxu0 %v8300
        %8978 = vmatprep.subr.bf16.mxu0 %v8297
        %8979 = vmatpush1.bf16.msra.mxu0 %v8296
        %8980 = vmatprep.subr.bf16.mxu0 %v8293
        %8981 = vmatpush1.bf16.msra.mxu0 %v8292
        %8982 = vmatprep.subr.bf16.mxu0 %v8353
        %8983 = vmatpush2.bf16.msra.mxu0 %v8352
        %8984 = vmatprep.subr.bf16.mxu0 %v8349
        %8985 = vmatpush2.bf16.msra.mxu0 %v8348
        %8986 = vmatprep.subr.bf16.mxu0 %v8345
        %8987 = vmatpush2.bf16.msra.mxu0 %v8344
        %8988 = vmatprep.subr.bf16.mxu0 %v8341
        %8989 = vmatpush2.bf16.msra.mxu0 %v8340
        %8990 = vmatprep.subr.bf16.mxu0 %v8337
        %8991 = vmatpush2.bf16.msra.mxu0 %v8336
        %8992 = vmatprep.subr.bf16.mxu0 %v8333
        %8993 = vmatpush2.bf16.msra.mxu0 %v8332
        %8994 = vmatprep.subr.bf16.mxu0 %v8329
        %8995 = vmatpush2.bf16.msra.mxu0 %v8328
        %8996 = vmatprep.subr.bf16.mxu0 %v8325
        %8997 = vmatpush2.bf16.msra.mxu0 %v8324
        %8998 = vmatprep.mubr.bf16.mxu0 %v7237
        %8999 = vmatmul.mubr.bf16.gmra.mxu0 %v7236
        %v9000 = vpop.f32.mrf.mxu0
        %v9001 = vadd.f32 %v7513, %v9000
        %v9002 = vpop.f32.mrf.mxu0
        %v9003 = vadd.f32 %v7517, %v9002
        %v9004 = vpop.f32.mrf.mxu0
        %v9005 = vpop.f32.mrf.mxu0
        %9006 = vdwg.mxu0
        %9007 = vmatprep.subr.bf16.mxu0 %v8385
        %9008 = vmatpush1.bf16.msra.mxu0 %v8384
        %9009 = vmatprep.subr.bf16.mxu0 %v8381
        %9010 = vmatpush1.bf16.msra.mxu0 %v8380
        %9011 = vmatprep.subr.bf16.mxu0 %v8377
        %9012 = vmatpush1.bf16.msra.mxu0 %v8376
        %9013 = vmatprep.subr.bf16.mxu0 %v8373
        %9014 = vmatpush1.bf16.msra.mxu0 %v8372
        %9015 = vmatprep.subr.bf16.mxu0 %v8369
        %9016 = vmatpush1.bf16.msra.mxu0 %v8368
        %9017 = vmatprep.subr.bf16.mxu0 %v8365
        %9018 = vmatpush1.bf16.msra.mxu0 %v8364
        %9019 = vmatprep.subr.bf16.mxu0 %v8361
        %9020 = vmatpush1.bf16.msra.mxu0 %v8360
        %9021 = vmatprep.subr.bf16.mxu0 %v8357
        %9022 = vmatpush1.bf16.msra.mxu0 %v8356
        %9023 = vmatprep.subr.bf16.mxu0 %v8417
        %9024 = vmatpush2.bf16.msra.mxu0 %v8416
        %9025 = vmatprep.subr.bf16.mxu0 %v8413
        %9026 = vmatpush2.bf16.msra.mxu0 %v8412
        %9027 = vmatprep.subr.bf16.mxu0 %v8409
        %9028 = vmatpush2.bf16.msra.mxu0 %v8408
        %9029 = vmatprep.subr.bf16.mxu0 %v8405
        %9030 = vmatpush2.bf16.msra.mxu0 %v8404
        %9031 = vmatprep.subr.bf16.mxu0 %v8401
        %9032 = vmatpush2.bf16.msra.mxu0 %v8400
        %9033 = vmatprep.subr.bf16.mxu0 %v8397
        %9034 = vmatpush2.bf16.msra.mxu0 %v8396
        %9035 = vmatprep.subr.bf16.mxu0 %v8393
        %9036 = vmatpush2.bf16.msra.mxu0 %v8392
        %9037 = vmatprep.subr.bf16.mxu0 %v8389
        %9038 = vmatpush2.bf16.msra.mxu0 %v8388
        %9039 = vmatprep.mubr.bf16.mxu0 %v7239
        %9040 = vmatmul.mubr.bf16.gmra.mxu0 %v7238
        %v9041 = vpop.f32.mrf.mxu0
        %v9042 = vadd.f32 %v9001, %v9041
        %v9043 = vpop.f32.mrf.mxu0
        %v9044 = vadd.f32 %v9003, %v9043
        %v9045 = vpop.f32.mrf.mxu0
        %v9046 = vpop.f32.mrf.mxu0
        %9047 = vdwg.mxu0
        %9048 = vmatprep.subr.bf16.mxu0 %v8449
        %9049 = vmatpush1.bf16.msra.mxu0 %v8448
        %9050 = vmatprep.subr.bf16.mxu0 %v8445
        %9051 = vmatpush1.bf16.msra.mxu0 %v8444
        %9052 = vmatprep.subr.bf16.mxu0 %v8441
        %9053 = vmatpush1.bf16.msra.mxu0 %v8440
        %9054 = vmatprep.subr.bf16.mxu0 %v8437
        %9055 = vmatpush1.bf16.msra.mxu0 %v8436
        %9056 = vmatprep.subr.bf16.mxu0 %v8433
        %9057 = vmatpush1.bf16.msra.mxu0 %v8432
        %9058 = vmatprep.subr.bf16.mxu0 %v8429
        %9059 = vmatpush1.bf16.msra.mxu0 %v8428
        %9060 = vmatprep.subr.bf16.mxu0 %v8425
        %9061 = vmatpush1.bf16.msra.mxu0 %v8424
        %9062 = vmatprep.subr.bf16.mxu0 %v8421
        %9063 = vmatpush1.bf16.msra.mxu0 %v8420
        %9064 = vmatprep.subr.bf16.mxu0 %v8481
        %9065 = vmatpush2.bf16.msra.mxu0 %v8480
        %9066 = vmatprep.subr.bf16.mxu0 %v8477
        %9067 = vmatpush2.bf16.msra.mxu0 %v8476
        %9068 = vmatprep.subr.bf16.mxu0 %v8473
        %9069 = vmatpush2.bf16.msra.mxu0 %v8472
        %9070 = vmatprep.subr.bf16.mxu0 %v8469
        %9071 = vmatpush2.bf16.msra.mxu0 %v8468
        %9072 = vmatprep.subr.bf16.mxu0 %v8465
        %9073 = vmatpush2.bf16.msra.mxu0 %v8464
        %9074 = vmatprep.subr.bf16.mxu0 %v8461
        %9075 = vmatpush2.bf16.msra.mxu0 %v8460
        %9076 = vmatprep.subr.bf16.mxu0 %v8457
        %9077 = vmatpush2.bf16.msra.mxu0 %v8456
        %9078 = vmatprep.subr.bf16.mxu0 %v8453
        %9079 = vmatpush2.bf16.msra.mxu0 %v8452
        %9080 = vmatprep.mubr.bf16.mxu0 %v7241
        %9081 = vmatmul.mubr.bf16.gmra.mxu0 %v7240
        %v9082 = vpop.f32.mrf.mxu0
        %v9083 = vadd.f32 %v9042, %v9082
        %v9084 = vpop.f32.mrf.mxu0
        %v9085 = vadd.f32 %v9044, %v9084
        %v9086 = vpop.f32.mrf.mxu0
        %v9087 = vpop.f32.mrf.mxu0
        %9088 = vdwg.mxu0
        %9089 = vmatprep.subr.bf16.mxu0 %v8513
        %9090 = vmatpush1.bf16.msra.mxu0 %v8512
        %9091 = vmatprep.subr.bf16.mxu0 %v8509
        %9092 = vmatpush1.bf16.msra.mxu0 %v8508
        %9093 = vmatprep.subr.bf16.mxu0 %v8505
        %9094 = vmatpush1.bf16.msra.mxu0 %v8504
        %9095 = vmatprep.subr.bf16.mxu0 %v8501
        %9096 = vmatpush1.bf16.msra.mxu0 %v8500
        %9097 = vmatprep.subr.bf16.mxu0 %v8497
        %9098 = vmatpush1.bf16.msra.mxu0 %v8496
        %9099 = vmatprep.subr.bf16.mxu0 %v8493
        %9100 = vmatpush1.bf16.msra.mxu0 %v8492
        %9101 = vmatprep.subr.bf16.mxu0 %v8489
        %9102 = vmatpush1.bf16.msra.mxu0 %v8488
        %9103 = vmatprep.subr.bf16.mxu0 %v8485
        %9104 = vmatpush1.bf16.msra.mxu0 %v8484
        %9105 = vmatprep.subr.bf16.mxu0 %v8545
        %9106 = vmatpush2.bf16.msra.mxu0 %v8544
        %9107 = vmatprep.subr.bf16.mxu0 %v8541
        %9108 = vmatpush2.bf16.msra.mxu0 %v8540
        %9109 = vmatprep.subr.bf16.mxu0 %v8537
        %9110 = vmatpush2.bf16.msra.mxu0 %v8536
        %9111 = vmatprep.subr.bf16.mxu0 %v8533
        %9112 = vmatpush2.bf16.msra.mxu0 %v8532
        %9113 = vmatprep.subr.bf16.mxu0 %v8529
        %9114 = vmatpush2.bf16.msra.mxu0 %v8528
        %9115 = vmatprep.subr.bf16.mxu0 %v8525
        %9116 = vmatpush2.bf16.msra.mxu0 %v8524
        %9117 = vmatprep.subr.bf16.mxu0 %v8521
        %9118 = vmatpush2.bf16.msra.mxu0 %v8520
        %9119 = vmatprep.subr.bf16.mxu0 %v8517
        %9120 = vmatpush2.bf16.msra.mxu0 %v8516
        %9121 = vmatprep.mubr.bf16.mxu0 %v7243
        %9122 = vmatmul.mubr.bf16.gmra.mxu0 %v7242
        %v9123 = vpop.f32.mrf.mxu0
        %v9124 = vadd.f32 %v9083, %v9123
        %v9125 = vpop.f32.mrf.mxu0
        %v9126 = vadd.f32 %v9085, %v9125
        %v9127 = vpop.f32.mrf.mxu0
        %v9128 = vpop.f32.mrf.mxu0
        %9129 = vdwg.mxu0
        %v9130 = vmax.f32 %v8960, 0.0
        %v9131 = vmax.f32 %v8962, 0.0
        %v9132 = vmax.f32 %v9124, 0.0
        %v9133 = vmax.f32 %v9126, 0.0
        %v9134 = vpack.c.bf16 %v9130, %v9130
        %v9135 = vpack.c.bf16 %v9131, %v9131
        %v9136 = vpack.c.bf16 %v9132, %v9132
        %v9137 = vpack.c.bf16 %v9133, %v9133
        %v9138 = vld [vmem:[%s7] sm:$0xf]
        %v9139 = vld [vmem:[%s7 + $0x4] sm:$0xf]
        %v9140 = vld [vmem:[%s7 + $0x8] sm:$0xf]
        %v9141 = vld [vmem:[%s7 + $0xc] sm:$0xf]
        %v9142 = vld [vmem:[%s7 + $0x10] sm:$0xf]
        %v9143 = vld [vmem:[%s7 + $0x14] sm:$0xf]
        %v9144 = vld [vmem:[%s7 + $0x18] sm:$0xf]
        %v9145 = vld [vmem:[%s7 + $0x1c] sm:$0xf]
        %v9146 = vld [vmem:[%s7 + $0x20] sm:$0xf]
        %v9147 = vld [vmem:[%s7 + $0x24] sm:$0xf]
        %v9148 = vld [vmem:[%s7 + $0x28] sm:$0xf]
        %v9149 = vld [vmem:[%s7 + $0x2c] sm:$0xf]
        %v9150 = vld [vmem:[%s7 + $0x30] sm:$0xf]
        %v9151 = vld [vmem:[%s7 + $0x34] sm:$0xf]
        %v9152 = vld [vmem:[%s7 + $0x38] sm:$0xf]
        %v9153 = vld [vmem:[%s7 + $0x3c] sm:$0xf]
        %v9154 = vld [vmem:[%s7 + $0x40] sm:$0xf]
        %v9155 = vld [vmem:[%s7 + $0x44] sm:$0xf]
        %v9156 = vld [vmem:[%s7 + $0x48] sm:$0xf]
        %v9157 = vld [vmem:[%s7 + $0x4c] sm:$0xf]
        %v9158 = vld [vmem:[%s7 + $0x50] sm:$0xf]
        %v9159 = vld [vmem:[%s7 + $0x54] sm:$0xf]
        %v9160 = vld [vmem:[%s7 + $0x58] sm:$0xf]
        %v9161 = vld [vmem:[%s7 + $0x5c] sm:$0xf]
        %v9162 = vld [vmem:[%s7 + $0x60] sm:$0xf]
        %v9163 = vld [vmem:[%s7 + $0x64] sm:$0xf]
        %v9164 = vld [vmem:[%s7 + $0x68] sm:$0xf]
        %v9165 = vld [vmem:[%s7 + $0x6c] sm:$0xf]
        %v9166 = vld [vmem:[%s7 + $0x70] sm:$0xf]
        %v9167 = vld [vmem:[%s7 + $0x74] sm:$0xf]
        %v9168 = vld [vmem:[%s7 + $0x78] sm:$0xf]
        %v9169 = vld [vmem:[%s7 + $0x7c] sm:$0xf]
        %v9170 = vld [vmem:[%s7 + $0x80] sm:$0xf]
        %v9171 = vld [vmem:[%s7 + $0x84] sm:$0xf]
        %v9172 = vld [vmem:[%s7 + $0x88] sm:$0xf]
        %v9173 = vld [vmem:[%s7 + $0x8c] sm:$0xf]
        %v9174 = vld [vmem:[%s7 + $0x90] sm:$0xf]
        %v9175 = vld [vmem:[%s7 + $0x94] sm:$0xf]
        %v9176 = vld [vmem:[%s7 + $0x98] sm:$0xf]
        %v9177 = vld [vmem:[%s7 + $0x9c] sm:$0xf]
        %v9178 = vld [vmem:[%s7 + $0xa0] sm:$0xf]
        %v9179 = vld [vmem:[%s7 + $0xa4] sm:$0xf]
        %v9180 = vld [vmem:[%s7 + $0xa8] sm:$0xf]
        %v9181 = vld [vmem:[%s7 + $0xac] sm:$0xf]
        %v9182 = vld [vmem:[%s7 + $0xb0] sm:$0xf]
        %v9183 = vld [vmem:[%s7 + $0xb4] sm:$0xf]
        %v9184 = vld [vmem:[%s7 + $0xb8] sm:$0xf]
        %v9185 = vld [vmem:[%s7 + $0xbc] sm:$0xf]
        %v9186 = vld [vmem:[%s7 + $0xc0] sm:$0xf]
        %v9187 = vld [vmem:[%s7 + $0xc4] sm:$0xf]
        %v9188 = vld [vmem:[%s7 + $0xc8] sm:$0xf]
        %v9189 = vld [vmem:[%s7 + $0xcc] sm:$0xf]
        %v9190 = vld [vmem:[%s7 + $0xd0] sm:$0xf]
        %v9191 = vld [vmem:[%s7 + $0xd4] sm:$0xf]
        %v9192 = vld [vmem:[%s7 + $0xd8] sm:$0xf]
        %v9193 = vld [vmem:[%s7 + $0xdc] sm:$0xf]
        %v9194 = vld [vmem:[%s7 + $0xe0] sm:$0xf]
        %v9195 = vld [vmem:[%s7 + $0xe4] sm:$0xf]
        %v9196 = vld [vmem:[%s7 + $0xe8] sm:$0xf]
        %v9197 = vld [vmem:[%s7 + $0xec] sm:$0xf]
        %v9198 = vld [vmem:[%s7 + $0xf0] sm:$0xf]
        %v9199 = vld [vmem:[%s7 + $0xf4] sm:$0xf]
        %v9200 = vld [vmem:[%s7 + $0xf8] sm:$0xf]
        %v9201 = vld [vmem:[%s7 + $0xfc] sm:$0xf]
        %v9202 = vld [vmem:[%s8] sm:$0x1]
        %v9204 = vlaneseq
        %v9205 = vshrl.u32 %v9204, 7
        %v9206 = vsub.s32 0, %v9205
        %v9207 = vrot.slane %v9202, %v9206
        %v9273 = vunpack.c.l.b16 %v9138
        %v9274 = vunpack.c.l.b16 %v9139
        %v9275 = vunpack.c.l.b16 %v9140
        %v9276 = vunpack.c.l.b16 %v9141
        %v9277 = vunpack.c.l.b16 %v9142
        %v9278 = vunpack.c.l.b16 %v9143
        %v9279 = vunpack.c.l.b16 %v9144
        %v9280 = vunpack.c.l.b16 %v9145
        %v9281 = vunpack.c.l.b16 %v9146
        %v9282 = vunpack.c.l.b16 %v9147
        %v9283 = vunpack.c.l.b16 %v9148
        %v9284 = vunpack.c.l.b16 %v9149
        %v9285 = vunpack.c.l.b16 %v9150
        %v9286 = vunpack.c.l.b16 %v9151
        %v9287 = vunpack.c.l.b16 %v9152
        %v9288 = vunpack.c.l.b16 %v9153
        %v9289 = vunpack.c.l.b16 %v9154
        %v9290 = vunpack.c.l.b16 %v9155
        %v9291 = vunpack.c.l.b16 %v9156
        %v9292 = vunpack.c.l.b16 %v9157
        %v9293 = vunpack.c.l.b16 %v9158
        %v9294 = vunpack.c.l.b16 %v9159
        %v9295 = vunpack.c.l.b16 %v9160
        %v9296 = vunpack.c.l.b16 %v9161
        %v9297 = vunpack.c.l.b16 %v9162
        %v9298 = vunpack.c.l.b16 %v9163
        %v9299 = vunpack.c.l.b16 %v9164
        %v9300 = vunpack.c.l.b16 %v9165
        %v9301 = vunpack.c.l.b16 %v9166
        %v9302 = vunpack.c.l.b16 %v9167
        %v9303 = vunpack.c.l.b16 %v9168
        %v9304 = vunpack.c.l.b16 %v9169
        %v9305 = vunpack.c.l.b16 %v9170
        %v9306 = vunpack.c.l.b16 %v9171
        %v9307 = vunpack.c.l.b16 %v9172
        %v9308 = vunpack.c.l.b16 %v9173
        %v9309 = vunpack.c.l.b16 %v9174
        %v9310 = vunpack.c.l.b16 %v9175
        %v9311 = vunpack.c.l.b16 %v9176
        %v9312 = vunpack.c.l.b16 %v9177
        %v9313 = vunpack.c.l.b16 %v9178
        %v9314 = vunpack.c.l.b16 %v9179
        %v9315 = vunpack.c.l.b16 %v9180
        %v9316 = vunpack.c.l.b16 %v9181
        %v9317 = vunpack.c.l.b16 %v9182
        %v9318 = vunpack.c.l.b16 %v9183
        %v9319 = vunpack.c.l.b16 %v9184
        %v9320 = vunpack.c.l.b16 %v9185
        %v9321 = vunpack.c.l.b16 %v9186
        %v9322 = vunpack.c.l.b16 %v9187
        %v9323 = vunpack.c.l.b16 %v9188
        %v9324 = vunpack.c.l.b16 %v9189
        %v9325 = vunpack.c.l.b16 %v9190
        %v9326 = vunpack.c.l.b16 %v9191
        %v9327 = vunpack.c.l.b16 %v9192
        %v9328 = vunpack.c.l.b16 %v9193
        %v9329 = vunpack.c.l.b16 %v9194
        %v9330 = vunpack.c.l.b16 %v9195
        %v9331 = vunpack.c.l.b16 %v9196
        %v9332 = vunpack.c.l.b16 %v9197
        %v9333 = vunpack.c.l.b16 %v9198
        %v9334 = vunpack.c.l.b16 %v9199
        %v9335 = vunpack.c.l.b16 %v9200
        %v9336 = vunpack.c.l.b16 %v9201
        %v9337 = vpack.c.b16 %v9274, %v9273
        %v9338 = vpack.c.b16 %v9276, %v9275
        %v9339 = vpack.c.b16 %v9278, %v9277
        %v9340 = vpack.c.b16 %v9280, %v9279
        %v9341 = vpack.c.b16 %v9282, %v9281
        %v9342 = vpack.c.b16 %v9284, %v9283
        %v9343 = vpack.c.b16 %v9286, %v9285
        %v9344 = vpack.c.b16 %v9288, %v9287
        %v9345 = vpack.c.b16 %v9290, %v9289
        %v9346 = vpack.c.b16 %v9292, %v9291
        %v9347 = vpack.c.b16 %v9294, %v9293
        %v9348 = vpack.c.b16 %v9296, %v9295
        %v9349 = vpack.c.b16 %v9298, %v9297
        %v9350 = vpack.c.b16 %v9300, %v9299
        %v9351 = vpack.c.b16 %v9302, %v9301
        %v9352 = vpack.c.b16 %v9304, %v9303
        %v9353 = vpack.c.b16 %v9306, %v9305
        %v9354 = vpack.c.b16 %v9308, %v9307
        %v9355 = vpack.c.b16 %v9310, %v9309
        %v9356 = vpack.c.b16 %v9312, %v9311
        %v9357 = vpack.c.b16 %v9314, %v9313
        %v9358 = vpack.c.b16 %v9316, %v9315
        %v9359 = vpack.c.b16 %v9318, %v9317
        %v9360 = vpack.c.b16 %v9320, %v9319
        %v9361 = vpack.c.b16 %v9322, %v9321
        %v9362 = vpack.c.b16 %v9324, %v9323
        %v9363 = vpack.c.b16 %v9326, %v9325
        %v9364 = vpack.c.b16 %v9328, %v9327
        %v9365 = vpack.c.b16 %v9330, %v9329
        %v9366 = vpack.c.b16 %v9332, %v9331
        %v9367 = vpack.c.b16 %v9334, %v9333
        %v9368 = vpack.c.b16 %v9336, %v9335
        %9401 = vmatprep.subr.bf16.mxu0 0
        %9402 = vmatpush1.bf16.msra.mxu0 %v9344
        %9403 = vmatprep.subr.bf16.mxu0 0
        %9404 = vmatpush1.bf16.msra.mxu0 %v9343
        %9405 = vmatprep.subr.bf16.mxu0 0
        %9406 = vmatpush1.bf16.msra.mxu0 %v9342
        %9407 = vmatprep.subr.bf16.mxu0 0
        %9408 = vmatpush1.bf16.msra.mxu0 %v9341
        %9409 = vmatprep.subr.bf16.mxu0 0
        %9410 = vmatpush1.bf16.msra.mxu0 %v9340
        %9411 = vmatprep.subr.bf16.mxu0 0
        %9412 = vmatpush1.bf16.msra.mxu0 %v9339
        %9413 = vmatprep.subr.bf16.mxu0 0
        %9414 = vmatpush1.bf16.msra.mxu0 %v9338
        %9415 = vmatprep.subr.bf16.mxu0 0
        %9416 = vmatpush1.bf16.msra.mxu0 %v9337
        %9417 = vmatprep.subr.bf16.mxu0 0
        %9418 = vmatpush2.bf16.msra.mxu0 %v9352
        %9419 = vmatprep.subr.bf16.mxu0 0
        %9420 = vmatpush2.bf16.msra.mxu0 %v9351
        %9421 = vmatprep.subr.bf16.mxu0 0
        %9422 = vmatpush2.bf16.msra.mxu0 %v9350
        %9423 = vmatprep.subr.bf16.mxu0 0
        %9424 = vmatpush2.bf16.msra.mxu0 %v9349
        %9425 = vmatprep.subr.bf16.mxu0 0
        %9426 = vmatpush2.bf16.msra.mxu0 %v9348
        %9427 = vmatprep.subr.bf16.mxu0 0
        %9428 = vmatpush2.bf16.msra.mxu0 %v9347
        %9429 = vmatprep.subr.bf16.mxu0 0
        %9430 = vmatpush2.bf16.msra.mxu0 %v9346
        %9431 = vmatprep.subr.bf16.mxu0 0
        %9432 = vmatpush2.bf16.msra.mxu0 %v9345
        %9433 = vmatprep.mubr.bf16.mxu0 %v9135
        %9434 = vmatmul.mubr.bf16.gmra.mxu0 %v9134
        %v9435 = vpop.f32.mrf.mxu0
        %v9436 = vadd.f32 %v9207, %v9435
        %v9437 = vpop.f32.mrf.mxu0
        %v9438 = vpop.f32.mrf.mxu0
        %v9439 = vpop.f32.mrf.mxu0
        %9440 = vdwg.mxu0
        %9441 = vmatprep.subr.bf16.mxu0 0
        %9442 = vmatpush1.bf16.msra.mxu0 %v9360
        %9443 = vmatprep.subr.bf16.mxu0 0
        %9444 = vmatpush1.bf16.msra.mxu0 %v9359
        %9445 = vmatprep.subr.bf16.mxu0 0
        %9446 = vmatpush1.bf16.msra.mxu0 %v9358
        %9447 = vmatprep.subr.bf16.mxu0 0
        %9448 = vmatpush1.bf16.msra.mxu0 %v9357
        %9449 = vmatprep.subr.bf16.mxu0 0
        %9450 = vmatpush1.bf16.msra.mxu0 %v9356
        %9451 = vmatprep.subr.bf16.mxu0 0
        %9452 = vmatpush1.bf16.msra.mxu0 %v9355
        %9453 = vmatprep.subr.bf16.mxu0 0
        %9454 = vmatpush1.bf16.msra.mxu0 %v9354
        %9455 = vmatprep.subr.bf16.mxu0 0
        %9456 = vmatpush1.bf16.msra.mxu0 %v9353
        %9457 = vmatprep.subr.bf16.mxu0 0
        %9458 = vmatpush2.bf16.msra.mxu0 %v9368
        %9459 = vmatprep.subr.bf16.mxu0 0
        %9460 = vmatpush2.bf16.msra.mxu0 %v9367
        %9461 = vmatprep.subr.bf16.mxu0 0
        %9462 = vmatpush2.bf16.msra.mxu0 %v9366
        %9463 = vmatprep.subr.bf16.mxu0 0
        %9464 = vmatpush2.bf16.msra.mxu0 %v9365
        %9465 = vmatprep.subr.bf16.mxu0 0
        %9466 = vmatpush2.bf16.msra.mxu0 %v9364
        %9467 = vmatprep.subr.bf16.mxu0 0
        %9468 = vmatpush2.bf16.msra.mxu0 %v9363
        %9469 = vmatprep.subr.bf16.mxu0 0
        %9470 = vmatpush2.bf16.msra.mxu0 %v9362
        %9471 = vmatprep.subr.bf16.mxu0 0
        %9472 = vmatpush2.bf16.msra.mxu0 %v9361
        %9473 = vmatprep.mubr.bf16.mxu0 %v9137
        %9474 = vmatmul.mubr.bf16.gmra.mxu0 %v9136
        %v9475 = vpop.f32.mrf.mxu0
        %v9476 = vadd.f32 %v9436, %v9475
        %v9477 = vpop.f32.mrf.mxu0
        %v9478 = vpop.f32.mrf.mxu0
        %v9479 = vpop.f32.mrf.mxu0
        %9480 = vdwg.mxu0
        %vm9481 = vcmask 80896
        %v9482 = vsel %vm9481, %v9476, -inf
        %9483 = vmax.xlane.f32.xlu0 %v9482
        %v9484 = vpop.xlane.xlu0 %9483
        %v9485 = vsub.f32 %v9476, %v9484
        %v9486 = vmul.f32 %v9485, 1.442695
        %v9487 = vpow.pop %v9486
        %v9488 = vsel %vm9481, %v9487, 0.0
        %9489 = vadd.xlane.f32.xlu0 %v9488
        %v9490 = vpop.xlane.xlu0 %9489
        %v9491 = vlog2.pop %v9490
        %v9492 = vmul.f32 %v9491, 0.6931472
        %v9493 = vsub.f32 %v9485, %v9492
        %9494 = vst.msk [vmem:[%s326] sm:$0xff] %vm9481, %v9493
        %s9495 = sand.u32 %s225, 1
        %s9496 = scalar_lea.sflag [#allocation3], %s9495
        %s9497 = sand.u32 %s225, 1
        %s9498 = smul.addr %s9497, 8
        %s9499 = scalar_lea.vmem [#allocation2], %s9498
        // Predicated region
        $region57: #{net_forward.1} parent=55 // pred_check
          %p9500 = pneg %p235
        $region58: #{net_forward.1} parent=55 // pred_check_branch
          %9502 = sbr.rel (%p9500) target = $region60
        $region59: #{net_forward.1} parent=55 // pred_region
          %s9504 = ssub.s32 128, 128
          %9505 = vsyncadd %s9496, %s9504
          %s9506 = smul.addr %s23, 128
          %s9507 = scalar_lea.hbm %s9, %s9506
          %s9509 = sshll.u32 %s9499, 4
          %s9510 = int_to_ptr.vmem [resolvable:$true] %s9509
          %9512 = dma.vmem_to_hbm [thread:$0]  %s9510, 128, %s9507, %s9496
        $region60: #{net_forward.1} parent=55 // pred_fallthru
          _
      $region56: #{net_forward.1} parent=5 // pred_fallthru
        _
      %p9513 = scmp.le.s32.totalorder 2, %s18
      // Predicated region
      $region61: #{net_forward.1} parent=5 // pred_check
        %p9514 = pneg %p9513
      $region62: #{net_forward.1} parent=5 // pred_check_branch
        %9516 = sbr.rel (%p9514) target = $region64
      $region63: #{net_forward.1} parent=5 // pred_region
        %s9517 = ssub.s32 %s18, 2
        // Predicated region
        $region65: #{net_forward.1} parent=63 // pred_check
          %p9518 = pneg %p241
        $region66: #{net_forward.1} parent=63 // pred_check_branch
          %9520 = sbr.rel (%p9518) target = $region68
        $region67: #{net_forward.1} parent=63 // pred_region
          %s9521 = sand.u32 %s226, 1
          %s9522 = scalar_lea.sflag [#allocation3], %s9521
          %s9523 = sand.u32 %s226, 1
          %s9524 = smul.addr %s9523, 8
          %s9525 = scalar_lea.vmem [#allocation2], %s9524
          %9526 = dma.done %s9522, 128
        $region68: #{net_forward.1} parent=63 // pred_fallthru
          _
      $region64: #{net_forward.1} parent=5 // pred_fallthru
        _
    $region6: #{net_forward.1} parent=1 // loop_footer
      %s22 = sadd.s32 1, %s18
    $region7: #{net_forward.1} parent=1 // loop_footer_branch
      %17 = sbr.rel target = $region3
    $region8: #{net_forward.1} parent=1 // loop_exit
      _
    %9527 = vsyncpa [#allocation3], 1
    %s9528 = scalar_lea.sflag [#allocation3], 1
    %9529 = vsyncpa %s9528, 1

</llo_original>
